<compile_context>
chip_gen: v5e
topology: v5e:2x2
jax: 0.10.0
libtpu: 0.0.40
codegen_flags: <defaults>
</compile_context>

<pallas_src>
import functools
import math

import jax
import jax.numpy as jnp
from jax import lax
from jax.experimental import pallas as pl
from jax.experimental.pallas import tpu as pltpu


def _layernorm(x, g, b, eps=1e-5):
    mu = jnp.mean(x, axis=-1, keepdims=True)
    xc = x - mu
    var = jnp.mean(xc * xc, axis=-1, keepdims=True)
    return xc * lax.rsqrt(var + eps) * g + b


def _vit_kernel(
    # constant-index inputs (fetched once)
    patches_ref, wpatch_ref, cls_ref, pos_ref, lnpre_g_ref, lnpre_b_ref,
    # per-layer inputs (streamed along the grid axis)
    ln1_g_ref, ln1_b_ref, wqkv_ref, bqkv_ref, wo_ref, bo_ref,
    ln2_g_ref, ln2_b_ref, wfc_ref, bfc_ref, wproj_ref, bproj_ref,
    # constant-index head inputs
    lnpost_g_ref, lnpost_b_ref, proj_ref,
    # output
    o_ref,
    # scratch (persists across grid steps)
    state_ref,
    *, num_heads, mlp_chunk):
    l = pl.program_id(0)
    S, D = pos_ref.shape                 # S = num_patches + 1
    B, N, _ = o_ref.shape                # N = num_patches
    Sp = state_ref.shape[0] // B         # padded per-batch sequence length
    H = num_heads
    hd = D // H
    scale = 1.0 / math.sqrt(hd)
    bf16 = jnp.bfloat16

    # Internal per-batch slab layout (Sp rows, sublane aligned):
    #   rows [0, N)  : patch tokens (the rows ultimately emitted)
    #   row   N      : cls token
    #   rows (N, Sp) : zero padding (masked out of attention keys)

    # ---------------- patch embed + cls + pos + ln_pre (first step only) ----
    @pl.when(l == 0)
    def _embed():
        tok = jnp.dot(patches_ref[...].astype(bf16), wpatch_ref[...],
                      preferred_element_type=jnp.float32)          # (B*N, D)
        g0 = lnpre_g_ref[...]
        b0 = lnpre_b_ref[...]
        cls_row = cls_ref[...] + pos_ref[0:1, :]                    # (1, D)
        pos_tok = pos_ref[1:, :]                                    # (N, D)
        zpad = jnp.zeros((Sp - S, D), jnp.float32)
        parts = []
        for b in range(B):
            seq_b = jnp.concatenate(
                [tok[b * N:(b + 1) * N, :] + pos_tok, cls_row], axis=0)
            parts.append(
                jnp.concatenate([_layernorm(seq_b, g0, b0), zpad], axis=0))
        state_ref[...] = jnp.concatenate(parts, axis=0)   # one aligned store

    # ---------------- one ResidualAttentionBlock (every step) ---------------
    st = state_ref[...]                                             # (B*Sp, D) f32

    # padded key columns -> -inf before softmax
    key_pos = lax.broadcasted_iota(jnp.int32, (1, Sp), 1)
    kmask = jnp.where(key_pos >= S, -1e30, 0.0).astype(jnp.float32)

    # Multi-head self-attention (pre-LN); qkv projected for the whole slab ----
    y1 = _layernorm(st, ln1_g_ref[...], ln1_b_ref[...])
    qkv = (jnp.dot(y1.astype(bf16), wqkv_ref[...],
                   preferred_element_type=jnp.float32) + bqkv_ref[...])  # (B*Sp, 3D)

    per_batch = []
    for b in range(B):
        qkv_b = qkv[b * Sp:(b + 1) * Sp, :]          # sublane-aligned slice
        heads = []
        for h in range(H):
            q = qkv_b[:, h * hd:(h + 1) * hd]
            k = qkv_b[:, D + h * hd:D + (h + 1) * hd]
            v = qkv_b[:, 2 * D + h * hd:2 * D + (h + 1) * hd]
            s = lax.dot_general(q.astype(bf16), k.astype(bf16),
                                (((1,), (1,)), ((), ())),
                                preferred_element_type=jnp.float32)
            s = s * scale + kmask
            s = s - jnp.max(s, axis=-1, keepdims=True)
            e = jnp.exp(s)
            p = e * pl.reciprocal(jnp.sum(e, axis=-1, keepdims=True),
                                  approx=True)
            heads.append(jnp.dot(p.astype(bf16), v.astype(bf16),
                                 preferred_element_type=jnp.float32))
        per_batch.append(jnp.concatenate(heads, axis=-1))           # (Sp, D)
    attn_cat = jnp.concatenate(per_batch, axis=0)                   # (B*Sp, D)
    # fused out-projection: one big (B*Sp, D) @ (D, D) MXU dot
    attn_out = (jnp.dot(attn_cat.astype(bf16), wo_ref[...],
                        preferred_element_type=jnp.float32) + bo_ref[...])
    st = st + attn_out

    # MLP: Linear -> QuickGELU -> Linear (pre-LN), chunked over the hidden dim
    y2 = _layernorm(st, ln2_g_ref[...], ln2_b_ref[...]).astype(bf16)
    Dh = wfc_ref.shape[1]
    mlp = jnp.zeros_like(st)
    for c in range(0, Dh, mlp_chunk):
        h1 = (jnp.dot(y2, wfc_ref[:, c:c + mlp_chunk],
                      preferred_element_type=jnp.float32)
              + bfc_ref[:, c:c + mlp_chunk])
        # QuickGELU: x * sigmoid(1.702 x) == x * 1/(1 + exp(-1.702 x))
        h1 = h1 * pl.reciprocal(1.0 + jnp.exp(-1.702 * h1), approx=True)
        mlp = mlp + jnp.dot(h1.astype(bf16), wproj_ref[c:c + mlp_chunk, :],
                            preferred_element_type=jnp.float32)
    st = st + mlp + bproj_ref[...]
    state_ref[...] = st

    # ---------------- ln_post (patch tokens) + projection (last step) -------
    @pl.when(l == pl.num_programs(0) - 1)
    def _head():
        gz = lnpost_g_ref[...]
        bz = lnpost_b_ref[...]
        proj = proj_ref[...]
        for b in range(B):
            rows = state_ref[b * Sp:b * Sp + N, :]     # aligned patch-token slab
            y = _layernorm(rows, gz, bz).astype(bf16)
            o_ref[b] = jnp.dot(y, proj, preferred_element_type=jnp.float32)


def vit_forward(params, x, *, num_heads):
    B, Cin, R, _ = x.shape
    wpatch = params["wpatch"]
    P, D = wpatch.shape
    ps = int(round(math.sqrt(P // Cin)))
    G = R // ps
    N = G * G
    S = N + 1
    Sp = ((S + 7) // 8) * 8          # sublane-aligned per-batch sequence slab
    L = params["wqkv"].shape[0]
    Dout = params["proj"].shape[1]
    mlp_chunk = min(4 * D, 512)

    # Non-overlapping patch extraction: pure layout plumbing on the wrapper
    # side; the actual projection matmul runs on the MXU inside the kernel.
    patches = x.reshape(B, Cin, G, ps, G, ps)
    patches = patches.transpose(0, 2, 4, 1, 3, 5).reshape(B * N, Cin * ps * ps)
    patches = patches.astype(jnp.float32)

    def cspec(shape):
        nd = len(shape)
        return pl.BlockSpec(shape, lambda l, nd=nd: (0,) * nd)

    def lspec(shape):
        nd = len(shape)
        return pl.BlockSpec((None,) + shape, lambda l, nd=nd: (l,) + (0,) * nd)

    grid_spec = pltpu.PrefetchScalarGridSpec(
        num_scalar_prefetch=0,
        grid=(L,),
        in_specs=[
            cspec((B * N, P)), cspec((P, D)), cspec((1, D)), cspec((S, D)),
            cspec((1, D)), cspec((1, D)),
            lspec((1, D)), lspec((1, D)),
            lspec((D, 3 * D)), lspec((1, 3 * D)),
            lspec((D, D)), lspec((1, D)),
            lspec((1, D)), lspec((1, D)),
            lspec((D, 4 * D)), lspec((1, 4 * D)),
            lspec((4 * D, D)), lspec((1, D)),
            cspec((1, D)), cspec((1, D)), cspec((D, Dout)),
        ],
        out_specs=pl.BlockSpec((B, N, Dout), lambda l: (0, 0, 0)),
        scratch_shapes=[
            pltpu.VMEM((B * Sp, D), jnp.float32),   # resident token state
        ],
    )

    kernel = functools.partial(_vit_kernel, num_heads=num_heads,
                               mlp_chunk=mlp_chunk)
    out = pl.pallas_call(
        kernel,
        grid_spec=grid_spec,
        out_shape=jax.ShapeDtypeStruct((B, N, Dout), jnp.float32),
        compiler_params=pltpu.CompilerParams(
            dimension_semantics=("arbitrary",),      # layers are sequential
            vmem_limit_bytes=48 * 1024 * 1024),
    )(patches, wpatch, params["cls"], params["pos"],
      params["lnpre_g"], params["lnpre_b"],
      params["ln1_g"], params["ln1_b"], params["wqkv"], params["bqkv"],
      params["wo"], params["bo"], params["ln2_g"], params["ln2_b"],
      params["wfc"], params["bfc"], params["wproj"], params["bproj"],
      params["lnpost_g"], params["lnpost_b"], params["proj"])
    return out


# ---------------------------------------------------------------------------
# Deterministic synthetic parameters (layout already transposed for x @ W).
# Matmul weights are stored in bf16 (streamed as-is by the kernel); LN params,
# biases, cls and positional embeddings stay f32.
# ---------------------------------------------------------------------------
def init_params(key, *, input_resolution, patch_size, width, layers, heads,
                output_dim):
    D = width
    P = 3 * patch_size * patch_size
    N = (input_resolution // patch_size) ** 2
    S = N + 1
    L = layers
    sc = D ** -0.5
    ks = jax.random.split(key, 12)
    bf = jnp.bfloat16

    def nrm(k, shape, s, dtype=jnp.float32):
        return (s * jax.random.normal(k, shape, jnp.float32)).astype(dtype)

    p = {}
    p["wpatch"] = nrm(ks[0], (P, D), P ** -0.5, bf)      # conv1 as (P, D) matmul
    p["cls"] = nrm(ks[1], (1, D), sc)
    p["pos"] = nrm(ks[2], (S, D), sc)
    p["lnpre_g"] = jnp.ones((1, D), jnp.float32)
    p["lnpre_b"] = jnp.zeros((1, D), jnp.float32)
    p["ln1_g"] = jnp.ones((L, 1, D), jnp.float32)
    p["ln1_b"] = jnp.zeros((L, 1, D), jnp.float32)
    p["wqkv"] = nrm(ks[3], (L, D, 3 * D), sc, bf)
    p["bqkv"] = nrm(ks[4], (L, 1, 3 * D), 0.02)
    p["wo"] = nrm(ks[5], (L, D, D), sc, bf)
    p["bo"] = nrm(ks[6], (L, 1, D), 0.02)
    p["ln2_g"] = jnp.ones((L, 1, D), jnp.float32)
    p["ln2_b"] = jnp.zeros((L, 1, D), jnp.float32)
    p["wfc"] = nrm(ks[7], (L, D, 4 * D), sc, bf)
    p["bfc"] = nrm(ks[8], (L, 1, 4 * D), 0.02)
    p["wproj"] = nrm(ks[9], (L, 4 * D, D), (4 * D) ** -0.5, bf)
    p["bproj"] = nrm(ks[10], (L, 1, D), 0.02)
    p["lnpost_g"] = jnp.ones((1, D), jnp.float32)
    p["lnpost_b"] = jnp.zeros((1, D), jnp.float32)
    p["proj"] = nrm(ks[11], (D, output_dim), sc, bf)
    return p


# ---------------------------------------------------------------------------
# Pure-JAX reference of the same forward pass (f32 compute, same bf16-rounded
# weights) for a correctness check.
# ---------------------------------------------------------------------------
def vit_reference(params, x, *, num_heads):
    B, Cin, R, _ = x.shape
    P, D = params["wpatch"].shape
    ps = int(round(math.sqrt(P // Cin)))
    G = R // ps
    N = G * G
    S = N + 1
    H = num_heads
    hd = D // H
    L = params["wqkv"].shape[0]
    f32 = jnp.float32

    def ln(v, g, b, eps=1e-5):
        mu = jnp.mean(v, axis=-1, keepdims=True)
        var = jnp.mean((v - mu) ** 2, axis=-1, keepdims=True)
        return (v - mu) * lax.rsqrt(var + eps) * g + b

    patches = x.reshape(B, Cin, G, ps, G, ps).transpose(0, 2, 4, 1, 3, 5)
    patches = patches.reshape(B, N, Cin * ps * ps).astype(f32)
    tok = patches @ params["wpatch"].astype(f32)                     # (B, N, D)
    cls = jnp.broadcast_to(params["cls"][None], (B, 1, D))
    seq = jnp.concatenate([cls, tok], axis=1) + params["pos"][None]
    seq = ln(seq, params["lnpre_g"], params["lnpre_b"])
    for li in range(L):
        y = ln(seq, params["ln1_g"][li], params["ln1_b"][li])
        qkv = y @ params["wqkv"][li].astype(f32) + params["bqkv"][li]
        q = qkv[..., 0:D].reshape(B, S, H, hd)
        k = qkv[..., D:2 * D].reshape(B, S, H, hd)
        v = qkv[..., 2 * D:3 * D].reshape(B, S, H, hd)
        s = jnp.einsum("bqhd,bkhd->bhqk", q, k) / math.sqrt(hd)
        p = jax.nn.softmax(s, axis=-1)
        o = jnp.einsum("bhqk,bkhd->bqhd", p, v).reshape(B, S, D)
        seq = seq + o @ params["wo"][li].astype(f32) + params["bo"][li]
        y2 = ln(seq, params["ln2_g"][li], params["ln2_b"][li])
        h1 = y2 @ params["wfc"][li].astype(f32) + params["bfc"][li]
        h1 = h1 * jax.nn.sigmoid(1.702 * h1)
        seq = seq + h1 @ params["wproj"][li].astype(f32) + params["bproj"][li]
    out = ln(seq[:, 1:, :], params["lnpost_g"], params["lnpost_b"])
    return out @ params["proj"].astype(f32)


if __name__ == "__main__":
    batch = 2               # TODO(synk): fold larger batches into M for real workloads
    input_resolution = 16
    patch_size = 4          # -> 4x4 = 16 patches, seq = 17 (padded to 24 in-kernel)
    width = 256             # heads=2 -> head_dim=128 (lane-aligned head slices)
    layers = 2
    heads = 2
    output_dim = 128        # lane-dense output

    key = jax.random.PRNGKey(0)
    kx, kp = jax.random.split(key)
    x = jax.random.normal(
        kx, (batch, 3, input_resolution, input_resolution), jnp.float32)
    params = init_params(kp, input_resolution=input_resolution,
                         patch_size=patch_size, width=width, layers=layers,
                         heads=heads, output_dim=output_dim)

    fwd = jax.jit(lambda p, xx: vit_forward(p, xx, num_heads=heads))
    out = jax.block_until_ready(fwd(params, x))

    N = (input_resolution // patch_size) ** 2
    assert out.shape == (batch, N, output_dim), out.shape
    assert bool(jnp.all(jnp.isfinite(out)))

    with jax.default_matmul_precision("float32"):
        ref = vit_reference(params, x, num_heads=heads)
    err = float(jnp.max(jnp.abs(out - ref)))
    rel = float(jnp.linalg.norm(out - ref) / (jnp.linalg.norm(ref) + 1e-12))
    assert err < 2e-1, f"max abs diff vs reference: {err}"
    assert rel < 2e-2, f"relative error vs reference: {rel}"

    print("KERNEL_OK")
</pallas_src>

<mosaic_0001>
module attributes {stable_mosaic.version = 11 : i64} {
  func.func @_vit_kernel(%arg0: i32, %arg1: memref<32x48xf32, #tpu.memory_space<vmem>>, %arg2: memref<48x256xbf16, #tpu.memory_space<vmem>>, %arg3: memref<1x256xf32, #tpu.memory_space<vmem>>, %arg4: memref<17x256xf32, #tpu.memory_space<vmem>>, %arg5: memref<1x256xf32, #tpu.memory_space<vmem>>, %arg6: memref<1x256xf32, #tpu.memory_space<vmem>>, %arg7: memref<1x1x256xf32, #tpu.memory_space<vmem>>, %arg8: memref<1x1x256xf32, #tpu.memory_space<vmem>>, %arg9: memref<1x256x768xbf16, #tpu.memory_space<vmem>>, %arg10: memref<1x1x768xf32, #tpu.memory_space<vmem>>, %arg11: memref<1x256x256xbf16, #tpu.memory_space<vmem>>, %arg12: memref<1x1x256xf32, #tpu.memory_space<vmem>>, %arg13: memref<1x1x256xf32, #tpu.memory_space<vmem>>, %arg14: memref<1x1x256xf32, #tpu.memory_space<vmem>>, %arg15: memref<1x256x1024xbf16, #tpu.memory_space<vmem>>, %arg16: memref<1x1x1024xf32, #tpu.memory_space<vmem>>, %arg17: memref<1x1024x256xbf16, #tpu.memory_space<vmem>>, %arg18: memref<1x1x256xf32, #tpu.memory_space<vmem>>, %arg19: memref<1x256xf32, #tpu.memory_space<vmem>>, %arg20: memref<1x256xf32, #tpu.memory_space<vmem>>, %arg21: memref<256x128xbf16, #tpu.memory_space<vmem>>, %arg22: memref<2x16x128xf32, #tpu.memory_space<vmem>>, %arg23: memref<48x256xf32, #tpu.memory_space<vmem>>) attributes {dimension_semantics = [#tpu.dimension_semantics<arbitrary>], iteration_bounds = array<i64: 2>, scalar_prefetch = 0 : i64, scratch_operands = 1 : i64, tpu.core_type = #tpu.core_type<tc>, window_params = [{pipeline_mode = #tpu.pipeline_mode<synchronous>, transform_indices = @transform_0, window_bounds = array<i64: 32, 48>}, {pipeline_mode = #tpu.pipeline_mode<synchronous>, transform_indices = @transform_1, window_bounds = array<i64: 48, 256>}, {pipeline_mode = #tpu.pipeline_mode<synchronous>, transform_indices = @transform_2, window_bounds = array<i64: 1, 256>}, {pipeline_mode = #tpu.pipeline_mode<synchronous>, transform_indices = @transform_3, window_bounds = array<i64: 17, 256>}, {pipeline_mode = #tpu.pipeline_mode<synchronous>, transform_indices = @transform_4, window_bounds = array<i64: 1, 256>}, {pipeline_mode = #tpu.pipeline_mode<synchronous>, transform_indices = @transform_5, window_bounds = array<i64: 1, 256>}, {transform_indices = @transform_6, window_bounds = array<i64: 1, 1, 256>}, {transform_indices = @transform_7, window_bounds = array<i64: 1, 1, 256>}, {transform_indices = @transform_8, window_bounds = array<i64: 1, 256, 768>}, {transform_indices = @transform_9, window_bounds = array<i64: 1, 1, 768>}, {transform_indices = @transform_10, window_bounds = array<i64: 1, 256, 256>}, {transform_indices = @transform_11, window_bounds = array<i64: 1, 1, 256>}, {transform_indices = @transform_12, window_bounds = array<i64: 1, 1, 256>}, {transform_indices = @transform_13, window_bounds = array<i64: 1, 1, 256>}, {transform_indices = @transform_14, window_bounds = array<i64: 1, 256, 1024>}, {transform_indices = @transform_15, window_bounds = array<i64: 1, 1, 1024>}, {transform_indices = @transform_16, window_bounds = array<i64: 1, 1024, 256>}, {transform_indices = @transform_17, window_bounds = array<i64: 1, 1, 256>}, {pipeline_mode = #tpu.pipeline_mode<synchronous>, transform_indices = @transform_18, window_bounds = array<i64: 1, 256>}, {pipeline_mode = #tpu.pipeline_mode<synchronous>, transform_indices = @transform_19, window_bounds = array<i64: 1, 256>}, {pipeline_mode = #tpu.pipeline_mode<synchronous>, transform_indices = @transform_20, window_bounds = array<i64: 256, 128>}, {pipeline_mode = #tpu.pipeline_mode<synchronous>, transform_indices = @transform_21, window_bounds = array<i64: 2, 16, 128>}]} {
    %c0_i32 = arith.constant 0 : i32
    %0 = arith.cmpi eq, %arg0, %c0_i32 : i32
    %1 = arith.extui %0 : i1 to i32
    %c0_i32_0 = arith.constant 0 : i32
    %2 = arith.cmpi ne, %1, %c0_i32_0 : i32
    scf.if %2 {
      %c0_91 = arith.constant 0 : index
      %c0_92 = arith.constant 0 : index
      %221 = vector.load %arg1[%c0_91, %c0_92] : memref<32x48xf32, #tpu.memory_space<vmem>>, vector<32x48xf32>
      %222 = arith.truncf %221 : vector<32x48xf32> to vector<32x48xbf16>
      %c0_93 = arith.constant 0 : index
      %c0_94 = arith.constant 0 : index
      %223 = vector.load %arg2[%c0_93, %c0_94] : memref<48x256xbf16, #tpu.memory_space<vmem>>, vector<48x256xbf16>
      %cst_95 = arith.constant dense<0.000000e+00> : vector<32x256xf32>
      %224 = tpu.matmul %222, %223, %cst_95 {dimension_numbers = #tpu.dot_dimension_numbers<[1], [0], [0], [1], [0, 0, 1, 1], [], []>} : vector<32x48xbf16>, vector<48x256xbf16>, vector<32x256xf32> -> vector<32x256xf32>
      %c0_96 = arith.constant 0 : index
      %c0_97 = arith.constant 0 : index
      %225 = vector.load %arg5[%c0_96, %c0_97] : memref<1x256xf32, #tpu.memory_space<vmem>>, vector<1x256xf32>
      %c0_98 = arith.constant 0 : index
      %c0_99 = arith.constant 0 : index
      %226 = vector.load %arg6[%c0_98, %c0_99] : memref<1x256xf32, #tpu.memory_space<vmem>>, vector<1x256xf32>
      %c0_100 = arith.constant 0 : index
      %c0_101 = arith.constant 0 : index
      %227 = vector.load %arg3[%c0_100, %c0_101] : memref<1x256xf32, #tpu.memory_space<vmem>>, vector<1x256xf32>
      %c0_102 = arith.constant 0 : index
      %c0_103 = arith.constant 0 : index
      %228 = vector.load %arg4[%c0_102, %c0_103] : memref<17x256xf32, #tpu.memory_space<vmem>>, vector<1x256xf32>
      %229 = arith.addf %227, %228 : vector<1x256xf32>
      %c1 = arith.constant 1 : index
      %c0_104 = arith.constant 0 : index
      %230 = vector.load %arg4[%c1, %c0_104] : memref<17x256xf32, #tpu.memory_space<vmem>>, vector<16x256xf32>
      %cst_105 = arith.constant 0.000000e+00 : f32
      %231 = vector.broadcast %cst_105 : f32 to vector<7x256xf32>
      %232 = vector.extract_strided_slice %224 {offsets = [0, 0], sizes = [16, 256], strides = [1, 1]} : vector<32x256xf32> to vector<16x256xf32>
      %233 = arith.addf %232, %230 : vector<16x256xf32>
      %234 = tpu.concatenate %233, %229 in 0 : vector<16x256xf32>, vector<1x256xf32> -> vector<17x256xf32>
      %cst_106 = arith.constant dense<0.000000e+00> : vector<17xf32>
      %235 = vector.multi_reduction <add>, %234, %cst_106 [1] : vector<17x256xf32> to vector<17xf32>
      %236 = vector.shape_cast %235 : vector<17xf32> to vector<17x1xf32>
      %cst_107 = arith.constant 2.560000e+02 : f32
      %237 = vector.broadcast %cst_107 : f32 to vector<17x1xf32>
      %238 = arith.divf %236, %237 : vector<17x1xf32>
      %239 = vector.broadcast %238 : vector<17x1xf32> to vector<17x256xf32>
      %240 = arith.subf %234, %239 : vector<17x256xf32>
      %241 = arith.mulf %240, %240 : vector<17x256xf32>
      %cst_108 = arith.constant dense<0.000000e+00> : vector<17xf32>
      %242 = vector.multi_reduction <add>, %241, %cst_108 [1] : vector<17x256xf32> to vector<17xf32>
      %243 = vector.shape_cast %242 : vector<17xf32> to vector<17x1xf32>
      %cst_109 = arith.constant 2.560000e+02 : f32
      %244 = vector.broadcast %cst_109 : f32 to vector<17x1xf32>
      %245 = arith.divf %243, %244 : vector<17x1xf32>
      %cst_110 = arith.constant 9.99999974E-6 : f32
      %246 = vector.broadcast %cst_110 : f32 to vector<17x1xf32>
      %247 = arith.addf %245, %246 : vector<17x1xf32>
      %248 = math.rsqrt %247 : vector<17x1xf32>
      %249 = vector.broadcast %248 : vector<17x1xf32> to vector<17x256xf32>
      %250 = arith.mulf %240, %249 : vector<17x256xf32>
      %251 = vector.broadcast %225 : vector<1x256xf32> to vector<17x256xf32>
      %252 = arith.mulf %250, %251 : vector<17x256xf32>
      %253 = vector.broadcast %226 : vector<1x256xf32> to vector<17x256xf32>
      %254 = arith.addf %252, %253 : vector<17x256xf32>
      %255 = tpu.concatenate %254, %231 in 0 : vector<17x256xf32>, vector<7x256xf32> -> vector<24x256xf32>
      %256 = vector.extract_strided_slice %224 {offsets = [16, 0], sizes = [16, 256], strides = [1, 1]} : vector<32x256xf32> to vector<16x256xf32>
      %257 = arith.addf %256, %230 : vector<16x256xf32>
      %258 = tpu.concatenate %257, %229 in 0 : vector<16x256xf32>, vector<1x256xf32> -> vector<17x256xf32>
      %cst_111 = arith.constant dense<0.000000e+00> : vector<17xf32>
      %259 = vector.multi_reduction <add>, %258, %cst_111 [1] : vector<17x256xf32> to vector<17xf32>
      %260 = vector.shape_cast %259 : vector<17xf32> to vector<17x1xf32>
      %cst_112 = arith.constant 2.560000e+02 : f32
      %261 = vector.broadcast %cst_112 : f32 to vector<17x1xf32>
      %262 = arith.divf %260, %261 : vector<17x1xf32>
      %263 = vector.broadcast %262 : vector<17x1xf32> to vector<17x256xf32>
      %264 = arith.subf %258, %263 : vector<17x256xf32>
      %265 = arith.mulf %264, %264 : vector<17x256xf32>
      %cst_113 = arith.constant dense<0.000000e+00> : vector<17xf32>
      %266 = vector.multi_reduction <add>, %265, %cst_113 [1] : vector<17x256xf32> to vector<17xf32>
      %267 = vector.shape_cast %266 : vector<17xf32> to vector<17x1xf32>
      %cst_114 = arith.constant 2.560000e+02 : f32
      %268 = vector.broadcast %cst_114 : f32 to vector<17x1xf32>
      %269 = arith.divf %267, %268 : vector<17x1xf32>
      %cst_115 = arith.constant 9.99999974E-6 : f32
      %270 = vector.broadcast %cst_115 : f32 to vector<17x1xf32>
      %271 = arith.addf %269, %270 : vector<17x1xf32>
      %272 = math.rsqrt %271 : vector<17x1xf32>
      %273 = vector.broadcast %272 : vector<17x1xf32> to vector<17x256xf32>
      %274 = arith.mulf %264, %273 : vector<17x256xf32>
      %275 = vector.broadcast %225 : vector<1x256xf32> to vector<17x256xf32>
      %276 = arith.mulf %274, %275 : vector<17x256xf32>
      %277 = vector.broadcast %226 : vector<1x256xf32> to vector<17x256xf32>
      %278 = arith.addf %276, %277 : vector<17x256xf32>
      %279 = tpu.concatenate %278, %231 in 0 : vector<17x256xf32>, vector<7x256xf32> -> vector<24x256xf32>
      %280 = tpu.concatenate %255, %279 in 0 : vector<24x256xf32>, vector<24x256xf32> -> vector<48x256xf32>
      %c0_116 = arith.constant 0 : index
      %c0_117 = arith.constant 0 : index
      %281 = vector.load %arg23[%c0_116, %c0_117] : memref<48x256xf32, #tpu.memory_space<vmem>>, vector<48x256xf32>
      tpu.vector_store %arg23[%c0_116, %c0_117], %280 {strides = array<i32>} : memref<48x256xf32, #tpu.memory_space<vmem>>, vector<48x256xf32>,
    } else {
    }
    %c0 = arith.constant 0 : index
    %c0_1 = arith.constant 0 : index
    %3 = vector.load %arg23[%c0, %c0_1] : memref<48x256xf32, #tpu.memory_space<vmem>>, vector<48x256xf32>
    %4 = tpu.iota {dimensions = array<i32: 1>} : vector<1x24xi32>
    %c17_i32 = arith.constant 17 : i32
    %5 = vector.broadcast %c17_i32 : i32 to vector<1x24xi32>
    %6 = arith.cmpi sge, %4, %5 : vector<1x24xi32>
    %cst = arith.constant -1.000000e+30 : f32
    %cst_2 = arith.constant 0.000000e+00 : f32
    %7 = vector.broadcast %cst : f32 to vector<1x24xf32>
    %8 = vector.broadcast %cst_2 : f32 to vector<1x24xf32>
    %9 = arith.select %6, %7, %8 : vector<1x24xi1>, vector<1x24xf32>
    %c0_3 = arith.constant 0 : index
    %c0_4 = arith.constant 0 : index
    %c0_5 = arith.constant 0 : index
    %10 = vector.load %arg7[%c0_3, %c0_4, %c0_5] : memref<1x1x256xf32, #tpu.memory_space<vmem>>, vector<1x1x256xf32>
    %11 = vector.shape_cast %10 : vector<1x1x256xf32> to vector<1x256xf32>
    %c0_6 = arith.constant 0 : index
    %c0_7 = arith.constant 0 : index
    %c0_8 = arith.constant 0 : index
    %12 = vector.load %arg8[%c0_6, %c0_7, %c0_8] : memref<1x1x256xf32, #tpu.memory_space<vmem>>, vector<1x1x256xf32>
    %13 = vector.shape_cast %12 : vector<1x1x256xf32> to vector<1x256xf32>
    %cst_9 = arith.constant dense<0.000000e+00> : vector<48xf32>
    %14 = vector.multi_reduction <add>, %3, %cst_9 [1] : vector<48x256xf32> to vector<48xf32>
    %15 = vector.shape_cast %14 : vector<48xf32> to vector<48x1xf32>
    %cst_10 = arith.constant 2.560000e+02 : f32
    %16 = vector.broadcast %cst_10 : f32 to vector<48x1xf32>
    %17 = arith.divf %15, %16 : vector<48x1xf32>
    %18 = vector.broadcast %17 : vector<48x1xf32> to vector<48x256xf32>
    %19 = arith.subf %3, %18 : vector<48x256xf32>
    %20 = arith.mulf %19, %19 : vector<48x256xf32>
    %cst_11 = arith.constant dense<0.000000e+00> : vector<48xf32>
    %21 = vector.multi_reduction <add>, %20, %cst_11 [1] : vector<48x256xf32> to vector<48xf32>
    %22 = vector.shape_cast %21 : vector<48xf32> to vector<48x1xf32>
    %cst_12 = arith.constant 2.560000e+02 : f32
    %23 = vector.broadcast %cst_12 : f32 to vector<48x1xf32>
    %24 = arith.divf %22, %23 : vector<48x1xf32>
    %cst_13 = arith.constant 9.99999974E-6 : f32
    %25 = vector.broadcast %cst_13 : f32 to vector<48x1xf32>
    %26 = arith.addf %24, %25 : vector<48x1xf32>
    %27 = math.rsqrt %26 : vector<48x1xf32>
    %28 = vector.broadcast %27 : vector<48x1xf32> to vector<48x256xf32>
    %29 = arith.mulf %19, %28 : vector<48x256xf32>
    %30 = vector.broadcast %11 : vector<1x256xf32> to vector<48x256xf32>
    %31 = arith.mulf %29, %30 : vector<48x256xf32>
    %32 = vector.broadcast %13 : vector<1x256xf32> to vector<48x256xf32>
    %33 = arith.addf %31, %32 : vector<48x256xf32>
    %34 = arith.truncf %33 : vector<48x256xf32> to vector<48x256xbf16>
    %c0_14 = arith.constant 0 : index
    %c0_15 = arith.constant 0 : index
    %c0_16 = arith.constant 0 : index
    %35 = vector.load %arg9[%c0_14, %c0_15, %c0_16] : memref<1x256x768xbf16, #tpu.memory_space<vmem>>, vector<1x256x768xbf16>
    %36 = vector.shape_cast %35 : vector<1x256x768xbf16> to vector<256x768xbf16>
    %cst_17 = arith.constant dense<0.000000e+00> : vector<48x768xf32>
    %37 = tpu.matmul %34, %36, %cst_17 {dimension_numbers = #tpu.dot_dimension_numbers<[1], [0], [0], [1], [0, 0, 1, 1], [], []>} : vector<48x256xbf16>, vector<256x768xbf16>, vector<48x768xf32> -> vector<48x768xf32>
    %c0_18 = arith.constant 0 : index
    %c0_19 = arith.constant 0 : index
    %c0_20 = arith.constant 0 : index
    %38 = vector.load %arg10[%c0_18, %c0_19, %c0_20] : memref<1x1x768xf32, #tpu.memory_space<vmem>>, vector<1x1x768xf32>
    %39 = vector.shape_cast %38 : vector<1x1x768xf32> to vector<1x768xf32>
    %40 = vector.broadcast %39 : vector<1x768xf32> to vector<48x768xf32>
    %41 = arith.addf %37, %40 : vector<48x768xf32>
    %42 = vector.extract_strided_slice %41 {offsets = [0, 0], sizes = [24, 768], strides = [1, 1]} : vector<48x768xf32> to vector<24x768xf32>
    %43 = vector.extract_strided_slice %42 {offsets = [0, 0], sizes = [24, 128], strides = [1, 1]} : vector<24x768xf32> to vector<24x128xf32>
    %44 = vector.extract_strided_slice %42 {offsets = [0, 256], sizes = [24, 128], strides = [1, 1]} : vector<24x768xf32> to vector<24x128xf32>
    %45 = vector.extract_strided_slice %42 {offsets = [0, 512], sizes = [24, 128], strides = [1, 1]} : vector<24x768xf32> to vector<24x128xf32>
    %46 = arith.truncf %43 : vector<24x128xf32> to vector<24x128xbf16>
    %47 = arith.truncf %44 : vector<24x128xf32> to vector<24x128xbf16>
    %cst_21 = arith.constant dense<0.000000e+00> : vector<24x24xf32>
    %48 = tpu.matmul %46, %47, %cst_21 {dimension_numbers = #tpu.dot_dimension_numbers<[1], [1], [0], [0], [0, 0, 1, 0], [], []>} : vector<24x128xbf16>, vector<24x128xbf16>, vector<24x24xf32> -> vector<24x24xf32>
    %cst_22 = arith.constant 0.0883883461 : f32
    %49 = vector.broadcast %cst_22 : f32 to vector<24x24xf32>
    %50 = arith.mulf %48, %49 : vector<24x24xf32>
    %51 = vector.broadcast %9 : vector<1x24xf32> to vector<24x24xf32>
    %52 = arith.addf %50, %51 : vector<24x24xf32>
    %cst_23 = arith.constant dense<0xFF800000> : vector<24xf32>
    %53 = vector.multi_reduction <maximumf>, %52, %cst_23 [1] : vector<24x24xf32> to vector<24xf32>
    %54 = vector.shape_cast %53 : vector<24xf32> to vector<24x1xf32>
    %55 = vector.broadcast %54 : vector<24x1xf32> to vector<24x24xf32>
    %56 = arith.subf %52, %55 : vector<24x24xf32>
    %57 = math.exp %56 : vector<24x24xf32>
    %cst_24 = arith.constant dense<0.000000e+00> : vector<24xf32>
    %58 = vector.multi_reduction <add>, %57, %cst_24 [1] : vector<24x24xf32> to vector<24xf32>
    %59 = vector.shape_cast %58 : vector<24xf32> to vector<24x1xf32>
    %60 = tpu.reciprocal %59 {approx = true} : vector<24x1xf32> -> vector<24x1xf32>
    %61 = vector.broadcast %60 : vector<24x1xf32> to vector<24x24xf32>
    %62 = arith.mulf %57, %61 : vector<24x24xf32>
    %63 = arith.truncf %62 : vector<24x24xf32> to vector<24x24xbf16>
    %64 = arith.truncf %45 : vector<24x128xf32> to vector<24x128xbf16>
    %cst_25 = arith.constant dense<0.000000e+00> : vector<24x128xf32>
    %65 = tpu.matmul %63, %64, %cst_25 {dimension_numbers = #tpu.dot_dimension_numbers<[1], [0], [0], [1], [0, 0, 1, 1], [], []>} : vector<24x24xbf16>, vector<24x128xbf16>, vector<24x128xf32> -> vector<24x128xf32>
    %66 = vector.extract_strided_slice %42 {offsets = [0, 128], sizes = [24, 128], strides = [1, 1]} : vector<24x768xf32> to vector<24x128xf32>
    %67 = vector.extract_strided_slice %42 {offsets = [0, 384], sizes = [24, 128], strides = [1, 1]} : vector<24x768xf32> to vector<24x128xf32>
    %68 = vector.extract_strided_slice %42 {offsets = [0, 640], sizes = [24, 128], strides = [1, 1]} : vector<24x768xf32> to vector<24x128xf32>
    %69 = arith.truncf %66 : vector<24x128xf32> to vector<24x128xbf16>
    %70 = arith.truncf %67 : vector<24x128xf32> to vector<24x128xbf16>
    %cst_26 = arith.constant dense<0.000000e+00> : vector<24x24xf32>
    %71 = tpu.matmul %69, %70, %cst_26 {dimension_numbers = #tpu.dot_dimension_numbers<[1], [1], [0], [0], [0, 0, 1, 0], [], []>} : vector<24x128xbf16>, vector<24x128xbf16>, vector<24x24xf32> -> vector<24x24xf32>
    %cst_27 = arith.constant 0.0883883461 : f32
    %72 = vector.broadcast %cst_27 : f32 to vector<24x24xf32>
    %73 = arith.mulf %71, %72 : vector<24x24xf32>
    %74 = vector.broadcast %9 : vector<1x24xf32> to vector<24x24xf32>
    %75 = arith.addf %73, %74 : vector<24x24xf32>
    %cst_28 = arith.constant dense<0xFF800000> : vector<24xf32>
    %76 = vector.multi_reduction <maximumf>, %75, %cst_28 [1] : vector<24x24xf32> to vector<24xf32>
    %77 = vector.shape_cast %76 : vector<24xf32> to vector<24x1xf32>
    %78 = vector.broadcast %77 : vector<24x1xf32> to vector<24x24xf32>
    %79 = arith.subf %75, %78 : vector<24x24xf32>
    %80 = math.exp %79 : vector<24x24xf32>
    %cst_29 = arith.constant dense<0.000000e+00> : vector<24xf32>
    %81 = vector.multi_reduction <add>, %80, %cst_29 [1] : vector<24x24xf32> to vector<24xf32>
    %82 = vector.shape_cast %81 : vector<24xf32> to vector<24x1xf32>
    %83 = tpu.reciprocal %82 {approx = true} : vector<24x1xf32> -> vector<24x1xf32>
    %84 = vector.broadcast %83 : vector<24x1xf32> to vector<24x24xf32>
    %85 = arith.mulf %80, %84 : vector<24x24xf32>
    %86 = arith.truncf %85 : vector<24x24xf32> to vector<24x24xbf16>
    %87 = arith.truncf %68 : vector<24x128xf32> to vector<24x128xbf16>
    %cst_30 = arith.constant dense<0.000000e+00> : vector<24x128xf32>
    %88 = tpu.matmul %86, %87, %cst_30 {dimension_numbers = #tpu.dot_dimension_numbers<[1], [0], [0], [1], [0, 0, 1, 1], [], []>} : vector<24x24xbf16>, vector<24x128xbf16>, vector<24x128xf32> -> vector<24x128xf32>
    %89 = tpu.concatenate %65, %88 in 1 : vector<24x128xf32>, vector<24x128xf32> -> vector<24x256xf32>
    %90 = vector.extract_strided_slice %41 {offsets = [24, 0], sizes = [24, 768], strides = [1, 1]} : vector<48x768xf32> to vector<24x768xf32>
    %91 = vector.extract_strided_slice %90 {offsets = [0, 0], sizes = [24, 128], strides = [1, 1]} : vector<24x768xf32> to vector<24x128xf32>
    %92 = vector.extract_strided_slice %90 {offsets = [0, 256], sizes = [24, 128], strides = [1, 1]} : vector<24x768xf32> to vector<24x128xf32>
    %93 = vector.extract_strided_slice %90 {offsets = [0, 512], sizes = [24, 128], strides = [1, 1]} : vector<24x768xf32> to vector<24x128xf32>
    %94 = arith.truncf %91 : vector<24x128xf32> to vector<24x128xbf16>
    %95 = arith.truncf %92 : vector<24x128xf32> to vector<24x128xbf16>
    %cst_31 = arith.constant dense<0.000000e+00> : vector<24x24xf32>
    %96 = tpu.matmul %94, %95, %cst_31 {dimension_numbers = #tpu.dot_dimension_numbers<[1], [1], [0], [0], [0, 0, 1, 0], [], []>} : vector<24x128xbf16>, vector<24x128xbf16>, vector<24x24xf32> -> vector<24x24xf32>
    %cst_32 = arith.constant 0.0883883461 : f32
    %97 = vector.broadcast %cst_32 : f32 to vector<24x24xf32>
    %98 = arith.mulf %96, %97 : vector<24x24xf32>
    %99 = vector.broadcast %9 : vector<1x24xf32> to vector<24x24xf32>
    %100 = arith.addf %98, %99 : vector<24x24xf32>
    %cst_33 = arith.constant dense<0xFF800000> : vector<24xf32>
    %101 = vector.multi_reduction <maximumf>, %100, %cst_33 [1] : vector<24x24xf32> to vector<24xf32>
    %102 = vector.shape_cast %101 : vector<24xf32> to vector<24x1xf32>
    %103 = vector.broadcast %102 : vector<24x1xf32> to vector<24x24xf32>
    %104 = arith.subf %100, %103 : vector<24x24xf32>
    %105 = math.exp %104 : vector<24x24xf32>
    %cst_34 = arith.constant dense<0.000000e+00> : vector<24xf32>
    %106 = vector.multi_reduction <add>, %105, %cst_34 [1] : vector<24x24xf32> to vector<24xf32>
    %107 = vector.shape_cast %106 : vector<24xf32> to vector<24x1xf32>
    %108 = tpu.reciprocal %107 {approx = true} : vector<24x1xf32> -> vector<24x1xf32>
    %109 = vector.broadcast %108 : vector<24x1xf32> to vector<24x24xf32>
    %110 = arith.mulf %105, %109 : vector<24x24xf32>
    %111 = arith.truncf %110 : vector<24x24xf32> to vector<24x24xbf16>
    %112 = arith.truncf %93 : vector<24x128xf32> to vector<24x128xbf16>
    %cst_35 = arith.constant dense<0.000000e+00> : vector<24x128xf32>
    %113 = tpu.matmul %111, %112, %cst_35 {dimension_numbers = #tpu.dot_dimension_numbers<[1], [0], [0], [1], [0, 0, 1, 1], [], []>} : vector<24x24xbf16>, vector<24x128xbf16>, vector<24x128xf32> -> vector<24x128xf32>
    %114 = vector.extract_strided_slice %90 {offsets = [0, 128], sizes = [24, 128], strides = [1, 1]} : vector<24x768xf32> to vector<24x128xf32>
    %115 = vector.extract_strided_slice %90 {offsets = [0, 384], sizes = [24, 128], strides = [1, 1]} : vector<24x768xf32> to vector<24x128xf32>
    %116 = vector.extract_strided_slice %90 {offsets = [0, 640], sizes = [24, 128], strides = [1, 1]} : vector<24x768xf32> to vector<24x128xf32>
    %117 = arith.truncf %114 : vector<24x128xf32> to vector<24x128xbf16>
    %118 = arith.truncf %115 : vector<24x128xf32> to vector<24x128xbf16>
    %cst_36 = arith.constant dense<0.000000e+00> : vector<24x24xf32>
    %119 = tpu.matmul %117, %118, %cst_36 {dimension_numbers = #tpu.dot_dimension_numbers<[1], [1], [0], [0], [0, 0, 1, 0], [], []>} : vector<24x128xbf16>, vector<24x128xbf16>, vector<24x24xf32> -> vector<24x24xf32>
    %cst_37 = arith.constant 0.0883883461 : f32
    %120 = vector.broadcast %cst_37 : f32 to vector<24x24xf32>
    %121 = arith.mulf %119, %120 : vector<24x24xf32>
    %122 = vector.broadcast %9 : vector<1x24xf32> to vector<24x24xf32>
    %123 = arith.addf %121, %122 : vector<24x24xf32>
    %cst_38 = arith.constant dense<0xFF800000> : vector<24xf32>
    %124 = vector.multi_reduction <maximumf>, %123, %cst_38 [1] : vector<24x24xf32> to vector<24xf32>
    %125 = vector.shape_cast %124 : vector<24xf32> to vector<24x1xf32>
    %126 = vector.broadcast %125 : vector<24x1xf32> to vector<24x24xf32>
    %127 = arith.subf %123, %126 : vector<24x24xf32>
    %128 = math.exp %127 : vector<24x24xf32>
    %cst_39 = arith.constant dense<0.000000e+00> : vector<24xf32>
    %129 = vector.multi_reduction <add>, %128, %cst_39 [1] : vector<24x24xf32> to vector<24xf32>
    %130 = vector.shape_cast %129 : vector<24xf32> to vector<24x1xf32>
    %131 = tpu.reciprocal %130 {approx = true} : vector<24x1xf32> -> vector<24x1xf32>
    %132 = vector.broadcast %131 : vector<24x1xf32> to vector<24x24xf32>
    %133 = arith.mulf %128, %132 : vector<24x24xf32>
    %134 = arith.truncf %133 : vector<24x24xf32> to vector<24x24xbf16>
    %135 = arith.truncf %116 : vector<24x128xf32> to vector<24x128xbf16>
    %cst_40 = arith.constant dense<0.000000e+00> : vector<24x128xf32>
    %136 = tpu.matmul %134, %135, %cst_40 {dimension_numbers = #tpu.dot_dimension_numbers<[1], [0], [0], [1], [0, 0, 1, 1], [], []>} : vector<24x24xbf16>, vector<24x128xbf16>, vector<24x128xf32> -> vector<24x128xf32>
    %137 = tpu.concatenate %113, %136 in 1 : vector<24x128xf32>, vector<24x128xf32> -> vector<24x256xf32>
    %138 = tpu.concatenate %89, %137 in 0 : vector<24x256xf32>, vector<24x256xf32> -> vector<48x256xf32>
    %139 = arith.truncf %138 : vector<48x256xf32> to vector<48x256xbf16>
    %c0_41 = arith.constant 0 : index
    %c0_42 = arith.constant 0 : index
    %c0_43 = arith.constant 0 : index
    %140 = vector.load %arg11[%c0_41, %c0_42, %c0_43] : memref<1x256x256xbf16, #tpu.memory_space<vmem>>, vector<1x256x256xbf16>
    %141 = vector.shape_cast %140 : vector<1x256x256xbf16> to vector<256x256xbf16>
    %cst_44 = arith.constant dense<0.000000e+00> : vector<48x256xf32>
    %142 = tpu.matmul %139, %141, %cst_44 {dimension_numbers = #tpu.dot_dimension_numbers<[1], [0], [0], [1], [0, 0, 1, 1], [], []>} : vector<48x256xbf16>, vector<256x256xbf16>, vector<48x256xf32> -> vector<48x256xf32>
    %c0_45 = arith.constant 0 : index
    %c0_46 = arith.constant 0 : index
    %c0_47 = arith.constant 0 : index
    %143 = vector.load %arg12[%c0_45, %c0_46, %c0_47] : memref<1x1x256xf32, #tpu.memory_space<vmem>>, vector<1x1x256xf32>
    %144 = vector.shape_cast %143 : vector<1x1x256xf32> to vector<1x256xf32>
    %145 = vector.broadcast %144 : vector<1x256xf32> to vector<48x256xf32>
    %146 = arith.addf %142, %145 : vector<48x256xf32>
    %147 = arith.addf %3, %146 : vector<48x256xf32>
    %c0_48 = arith.constant 0 : index
    %c0_49 = arith.constant 0 : index
    %c0_50 = arith.constant 0 : index
    %148 = vector.load %arg13[%c0_48, %c0_49, %c0_50] : memref<1x1x256xf32, #tpu.memory_space<vmem>>, vector<1x1x256xf32>
    %149 = vector.shape_cast %148 : vector<1x1x256xf32> to vector<1x256xf32>
    %c0_51 = arith.constant 0 : index
    %c0_52 = arith.constant 0 : index
    %c0_53 = arith.constant 0 : index
    %150 = vector.load %arg14[%c0_51, %c0_52, %c0_53] : memref<1x1x256xf32, #tpu.memory_space<vmem>>, vector<1x1x256xf32>
    %151 = vector.shape_cast %150 : vector<1x1x256xf32> to vector<1x256xf32>
    %cst_54 = arith.constant dense<0.000000e+00> : vector<48xf32>
    %152 = vector.multi_reduction <add>, %147, %cst_54 [1] : vector<48x256xf32> to vector<48xf32>
    %153 = vector.shape_cast %152 : vector<48xf32> to vector<48x1xf32>
    %cst_55 = arith.constant 2.560000e+02 : f32
    %154 = vector.broadcast %cst_55 : f32 to vector<48x1xf32>
    %155 = arith.divf %153, %154 : vector<48x1xf32>
    %156 = vector.broadcast %155 : vector<48x1xf32> to vector<48x256xf32>
    %157 = arith.subf %147, %156 : vector<48x256xf32>
    %158 = arith.mulf %157, %157 : vector<48x256xf32>
    %cst_56 = arith.constant dense<0.000000e+00> : vector<48xf32>
    %159 = vector.multi_reduction <add>, %158, %cst_56 [1] : vector<48x256xf32> to vector<48xf32>
    %160 = vector.shape_cast %159 : vector<48xf32> to vector<48x1xf32>
    %cst_57 = arith.constant 2.560000e+02 : f32
    %161 = vector.broadcast %cst_57 : f32 to vector<48x1xf32>
    %162 = arith.divf %160, %161 : vector<48x1xf32>
    %cst_58 = arith.constant 9.99999974E-6 : f32
    %163 = vector.broadcast %cst_58 : f32 to vector<48x1xf32>
    %164 = arith.addf %162, %163 : vector<48x1xf32>
    %165 = math.rsqrt %164 : vector<48x1xf32>
    %166 = vector.broadcast %165 : vector<48x1xf32> to vector<48x256xf32>
    %167 = arith.mulf %157, %166 : vector<48x256xf32>
    %168 = vector.broadcast %149 : vector<1x256xf32> to vector<48x256xf32>
    %169 = arith.mulf %167, %168 : vector<48x256xf32>
    %170 = vector.broadcast %151 : vector<1x256xf32> to vector<48x256xf32>
    %171 = arith.addf %169, %170 : vector<48x256xf32>
    %172 = arith.truncf %171 : vector<48x256xf32> to vector<48x256xbf16>
    %cst_59 = arith.constant 0.000000e+00 : f32
    %173 = vector.broadcast %cst_59 : f32 to vector<48x256xf32>
    %c0_60 = arith.constant 0 : index
    %c0_61 = arith.constant 0 : index
    %c0_62 = arith.constant 0 : index
    %174 = vector.load %arg15[%c0_60, %c0_61, %c0_62] : memref<1x256x1024xbf16, #tpu.memory_space<vmem>>, vector<1x256x512xbf16>
    %175 = vector.shape_cast %174 : vector<1x256x512xbf16> to vector<256x512xbf16>
    %cst_63 = arith.constant dense<0.000000e+00> : vector<48x512xf32>
    %176 = tpu.matmul %172, %175, %cst_63 {dimension_numbers = #tpu.dot_dimension_numbers<[1], [0], [0], [1], [0, 0, 1, 1], [], []>} : vector<48x256xbf16>, vector<256x512xbf16>, vector<48x512xf32> -> vector<48x512xf32>
    %c0_64 = arith.constant 0 : index
    %c0_65 = arith.constant 0 : index
    %c0_66 = arith.constant 0 : index
    %177 = vector.load %arg16[%c0_64, %c0_65, %c0_66] : memref<1x1x1024xf32, #tpu.memory_space<vmem>>, vector<1x1x512xf32>
    %178 = vector.shape_cast %177 : vector<1x1x512xf32> to vector<1x512xf32>
    %179 = vector.broadcast %178 : vector<1x512xf32> to vector<48x512xf32>
    %180 = arith.addf %176, %179 : vector<48x512xf32>
    %cst_67 = arith.constant -1.702000e+00 : f32
    %181 = vector.broadcast %cst_67 : f32 to vector<48x512xf32>
    %182 = arith.mulf %181, %180 : vector<48x512xf32>
    %183 = math.exp %182 : vector<48x512xf32>
    %cst_68 = arith.constant 1.000000e+00 : f32
    %184 = vector.broadcast %cst_68 : f32 to vector<48x512xf32>
    %185 = arith.addf %184, %183 : vector<48x512xf32>
    %186 = tpu.reciprocal %185 {approx = true} : vector<48x512xf32> -> vector<48x512xf32>
    %187 = arith.mulf %180, %186 : vector<48x512xf32>
    %188 = arith.truncf %187 : vector<48x512xf32> to vector<48x512xbf16>
    %c0_69 = arith.constant 0 : index
    %c0_70 = arith.constant 0 : index
    %c0_71 = arith.constant 0 : index
    %189 = vector.load %arg17[%c0_69, %c0_70, %c0_71] : memref<1x1024x256xbf16, #tpu.memory_space<vmem>>, vector<1x512x256xbf16>
    %190 = vector.shape_cast %189 : vector<1x512x256xbf16> to vector<512x256xbf16>
    %cst_72 = arith.constant dense<0.000000e+00> : vector<48x256xf32>
    %191 = tpu.matmul %188, %190, %cst_72 {dimension_numbers = #tpu.dot_dimension_numbers<[1], [0], [0], [1], [0, 0, 1, 1], [], []>} : vector<48x512xbf16>, vector<512x256xbf16>, vector<48x256xf32> -> vector<48x256xf32>
    %192 = arith.addf %173, %191 : vector<48x256xf32>
    %c0_73 = arith.constant 0 : index
    %c0_74 = arith.constant 0 : index
    %c512 = arith.constant 512 : index
    %193 = vector.load %arg15[%c0_73, %c0_74, %c512] : memref<1x256x1024xbf16, #tpu.memory_space<vmem>>, vector<1x256x512xbf16>
    %194 = vector.shape_cast %193 : vector<1x256x512xbf16> to vector<256x512xbf16>
    %cst_75 = arith.constant dense<0.000000e+00> : vector<48x512xf32>
    %195 = tpu.matmul %172, %194, %cst_75 {dimension_numbers = #tpu.dot_dimension_numbers<[1], [0], [0], [1], [0, 0, 1, 1], [], []>} : vector<48x256xbf16>, vector<256x512xbf16>, vector<48x512xf32> -> vector<48x512xf32>
    %c0_76 = arith.constant 0 : index
    %c0_77 = arith.constant 0 : index
    %c512_78 = arith.constant 512 : index
    %196 = vector.load %arg16[%c0_76, %c0_77, %c512_78] : memref<1x1x1024xf32, #tpu.memory_space<vmem>>, vector<1x1x512xf32>
    %197 = vector.shape_cast %196 : vector<1x1x512xf32> to vector<1x512xf32>
    %198 = vector.broadcast %197 : vector<1x512xf32> to vector<48x512xf32>
    %199 = arith.addf %195, %198 : vector<48x512xf32>
    %cst_79 = arith.constant -1.702000e+00 : f32
    %200 = vector.broadcast %cst_79 : f32 to vector<48x512xf32>
    %201 = arith.mulf %200, %199 : vector<48x512xf32>
    %202 = math.exp %201 : vector<48x512xf32>
    %cst_80 = arith.constant 1.000000e+00 : f32
    %203 = vector.broadcast %cst_80 : f32 to vector<48x512xf32>
    %204 = arith.addf %203, %202 : vector<48x512xf32>
    %205 = tpu.reciprocal %204 {approx = true} : vector<48x512xf32> -> vector<48x512xf32>
    %206 = arith.mulf %199, %205 : vector<48x512xf32>
    %207 = arith.truncf %206 : vector<48x512xf32> to vector<48x512xbf16>
    %c0_81 = arith.constant 0 : index
    %c512_82 = arith.constant 512 : index
    %c0_83 = arith.constant 0 : index
    %208 = vector.load %arg17[%c0_81, %c512_82, %c0_83] : memref<1x1024x256xbf16, #tpu.memory_space<vmem>>, vector<1x512x256xbf16>
    %209 = vector.shape_cast %208 : vector<1x512x256xbf16> to vector<512x256xbf16>
    %cst_84 = arith.constant dense<0.000000e+00> : vector<48x256xf32>
    %210 = tpu.matmul %207, %209, %cst_84 {dimension_numbers = #tpu.dot_dimension_numbers<[1], [0], [0], [1], [0, 0, 1, 1], [], []>} : vector<48x512xbf16>, vector<512x256xbf16>, vector<48x256xf32> -> vector<48x256xf32>
    %211 = arith.addf %192, %210 : vector<48x256xf32>
    %212 = arith.addf %147, %211 : vector<48x256xf32>
    %c0_85 = arith.constant 0 : index
    %c0_86 = arith.constant 0 : index
    %c0_87 = arith.constant 0 : index
    %213 = vector.load %arg18[%c0_85, %c0_86, %c0_87] : memref<1x1x256xf32, #tpu.memory_space<vmem>>, vector<1x1x256xf32>
    %214 = vector.shape_cast %213 : vector<1x1x256xf32> to vector<1x256xf32>
    %215 = vector.broadcast %214 : vector<1x256xf32> to vector<48x256xf32>
    %216 = arith.addf %212, %215 : vector<48x256xf32>
    %c0_88 = arith.constant 0 : index
    %c0_89 = arith.constant 0 : index
    %217 = vector.load %arg23[%c0_88, %c0_89] : memref<48x256xf32, #tpu.memory_space<vmem>>, vector<48x256xf32>
    tpu.vector_store %arg23[%c0_88, %c0_89], %216 {strides = array<i32>} : memref<48x256xf32, #tpu.memory_space<vmem>>, vector<48x256xf32>,
    %c1_i32 = arith.constant 1 : i32
    %218 = arith.cmpi eq, %arg0, %c1_i32 : i32
    %219 = arith.extui %218 : i1 to i32
    %c0_i32_90 = arith.constant 0 : i32
    %220 = arith.cmpi ne, %219, %c0_i32_90 : i32
    scf.if %220 {
      %c0_91 = arith.constant 0 : index
      %c0_92 = arith.constant 0 : index
      %221 = vector.load %arg19[%c0_91, %c0_92] : memref<1x256xf32, #tpu.memory_space<vmem>>, vector<1x256xf32>
      %c0_93 = arith.constant 0 : index
      %c0_94 = arith.constant 0 : index
      %222 = vector.load %arg20[%c0_93, %c0_94] : memref<1x256xf32, #tpu.memory_space<vmem>>, vector<1x256xf32>
      %c0_95 = arith.constant 0 : index
      %c0_96 = arith.constant 0 : index
      %223 = vector.load %arg21[%c0_95, %c0_96] : memref<256x128xbf16, #tpu.memory_space<vmem>>, vector<256x128xbf16>
      %c0_97 = arith.constant 0 : index
      %c0_98 = arith.constant 0 : index
      %224 = vector.load %arg23[%c0_97, %c0_98] : memref<48x256xf32, #tpu.memory_space<vmem>>, vector<16x256xf32>
      %cst_99 = arith.constant dense<0.000000e+00> : vector<16xf32>
      %225 = vector.multi_reduction <add>, %224, %cst_99 [1] : vector<16x256xf32> to vector<16xf32>
      %226 = vector.shape_cast %225 : vector<16xf32> to vector<16x1xf32>
      %cst_100 = arith.constant 2.560000e+02 : f32
      %227 = vector.broadcast %cst_100 : f32 to vector<16x1xf32>
      %228 = arith.divf %226, %227 : vector<16x1xf32>
      %229 = vector.broadcast %228 : vector<16x1xf32> to vector<16x256xf32>
      %230 = arith.subf %224, %229 : vector<16x256xf32>
      %231 = arith.mulf %230, %230 : vector<16x256xf32>
      %cst_101 = arith.constant dense<0.000000e+00> : vector<16xf32>
      %232 = vector.multi_reduction <add>, %231, %cst_101 [1] : vector<16x256xf32> to vector<16xf32>
      %233 = vector.shape_cast %232 : vector<16xf32> to vector<16x1xf32>
      %cst_102 = arith.constant 2.560000e+02 : f32
      %234 = vector.broadcast %cst_102 : f32 to vector<16x1xf32>
      %235 = arith.divf %233, %234 : vector<16x1xf32>
      %cst_103 = arith.constant 9.99999974E-6 : f32
      %236 = vector.broadcast %cst_103 : f32 to vector<16x1xf32>
      %237 = arith.addf %235, %236 : vector<16x1xf32>
      %238 = math.rsqrt %237 : vector<16x1xf32>
      %239 = vector.broadcast %238 : vector<16x1xf32> to vector<16x256xf32>
      %240 = arith.mulf %230, %239 : vector<16x256xf32>
      %241 = vector.broadcast %221 : vector<1x256xf32> to vector<16x256xf32>
      %242 = arith.mulf %240, %241 : vector<16x256xf32>
      %243 = vector.broadcast %222 : vector<1x256xf32> to vector<16x256xf32>
      %244 = arith.addf %242, %243 : vector<16x256xf32>
      %245 = arith.truncf %244 : vector<16x256xf32> to vector<16x256xbf16>
      %cst_104 = arith.constant dense<0.000000e+00> : vector<16x128xf32>
      %246 = tpu.matmul %245, %223, %cst_104 {dimension_numbers = #tpu.dot_dimension_numbers<[1], [0], [0], [1], [0, 0, 1, 1], [], []>} : vector<16x256xbf16>, vector<256x128xbf16>, vector<16x128xf32> -> vector<16x128xf32>
      %c0_105 = arith.constant 0 : index
      %c0_106 = arith.constant 0 : index
      %c0_107 = arith.constant 0 : index
      %247 = vector.load %arg22[%c0_105, %c0_106, %c0_107] : memref<2x16x128xf32, #tpu.memory_space<vmem>>, vector<1x16x128xf32>
      %248 = vector.shape_cast %247 : vector<1x16x128xf32> to vector<16x128xf32>
      %249 = vector.shape_cast %246 : vector<16x128xf32> to vector<1x16x128xf32>
      tpu.vector_store %arg22[%c0_105, %c0_106, %c0_107], %249 {strides = array<i32>} : memref<2x16x128xf32, #tpu.memory_space<vmem>>, vector<1x16x128xf32>,
      %c24 = arith.constant 24 : index
      %c0_108 = arith.constant 0 : index
      %250 = vector.load %arg23[%c24, %c0_108] : memref<48x256xf32, #tpu.memory_space<vmem>>, vector<16x256xf32>
      %cst_109 = arith.constant dense<0.000000e+00> : vector<16xf32>
      %251 = vector.multi_reduction <add>, %250, %cst_109 [1] : vector<16x256xf32> to vector<16xf32>
      %252 = vector.shape_cast %251 : vector<16xf32> to vector<16x1xf32>
      %cst_110 = arith.constant 2.560000e+02 : f32
      %253 = vector.broadcast %cst_110 : f32 to vector<16x1xf32>
      %254 = arith.divf %252, %253 : vector<16x1xf32>
      %255 = vector.broadcast %254 : vector<16x1xf32> to vector<16x256xf32>
      %256 = arith.subf %250, %255 : vector<16x256xf32>
      %257 = arith.mulf %256, %256 : vector<16x256xf32>
      %cst_111 = arith.constant dense<0.000000e+00> : vector<16xf32>
      %258 = vector.multi_reduction <add>, %257, %cst_111 [1] : vector<16x256xf32> to vector<16xf32>
      %259 = vector.shape_cast %258 : vector<16xf32> to vector<16x1xf32>
      %cst_112 = arith.constant 2.560000e+02 : f32
      %260 = vector.broadcast %cst_112 : f32 to vector<16x1xf32>
      %261 = arith.divf %259, %260 : vector<16x1xf32>
      %cst_113 = arith.constant 9.99999974E-6 : f32
      %262 = vector.broadcast %cst_113 : f32 to vector<16x1xf32>
      %263 = arith.addf %261, %262 : vector<16x1xf32>
      %264 = math.rsqrt %263 : vector<16x1xf32>
      %265 = vector.broadcast %264 : vector<16x1xf32> to vector<16x256xf32>
      %266 = arith.mulf %256, %265 : vector<16x256xf32>
      %267 = vector.broadcast %221 : vector<1x256xf32> to vector<16x256xf32>
      %268 = arith.mulf %266, %267 : vector<16x256xf32>
      %269 = vector.broadcast %222 : vector<1x256xf32> to vector<16x256xf32>
      %270 = arith.addf %268, %269 : vector<16x256xf32>
      %271 = arith.truncf %270 : vector<16x256xf32> to vector<16x256xbf16>
      %cst_114 = arith.constant dense<0.000000e+00> : vector<16x128xf32>
      %272 = tpu.matmul %271, %223, %cst_114 {dimension_numbers = #tpu.dot_dimension_numbers<[1], [0], [0], [1], [0, 0, 1, 1], [], []>} : vector<16x256xbf16>, vector<256x128xbf16>, vector<16x128xf32> -> vector<16x128xf32>
      %c1 = arith.constant 1 : index
      %c0_115 = arith.constant 0 : index
      %c0_116 = arith.constant 0 : index
      %273 = vector.load %arg22[%c1, %c0_115, %c0_116] : memref<2x16x128xf32, #tpu.memory_space<vmem>>, vector<1x16x128xf32>
      %274 = vector.shape_cast %273 : vector<1x16x128xf32> to vector<16x128xf32>
      %275 = vector.shape_cast %272 : vector<16x128xf32> to vector<1x16x128xf32>
      tpu.vector_store %arg22[%c1, %c0_115, %c0_116], %275 {strides = array<i32>} : memref<2x16x128xf32, #tpu.memory_space<vmem>>, vector<1x16x128xf32>,
    } else {
    }
    return
  }
  func.func @transform_0(%arg0: i32) -> (i32, i32) {
    %c0_i32 = arith.constant 0 : i32
    %c0_i32_0 = arith.constant 0 : i32
    %c0_i32_1 = arith.constant 0 : i32
    return %c0_i32, %c0_i32_0 : i32, i32
  }
  func.func @transform_1(%arg0: i32) -> (i32, i32) {
    %c0_i32 = arith.constant 0 : i32
    %c0_i32_0 = arith.constant 0 : i32
    %c0_i32_1 = arith.constant 0 : i32
    return %c0_i32, %c0_i32_0 : i32, i32
  }
  func.func @transform_2(%arg0: i32) -> (i32, i32) {
    %c0_i32 = arith.constant 0 : i32
    %c0_i32_0 = arith.constant 0 : i32
    %c0_i32_1 = arith.constant 0 : i32
    return %c0_i32, %c0_i32_0 : i32, i32
  }
  func.func @transform_3(%arg0: i32) -> (i32, i32) {
    %c0_i32 = arith.constant 0 : i32
    %c0_i32_0 = arith.constant 0 : i32
    %c0_i32_1 = arith.constant 0 : i32
    return %c0_i32, %c0_i32_0 : i32, i32
  }
  func.func @transform_4(%arg0: i32) -> (i32, i32) {
    %c0_i32 = arith.constant 0 : i32
    %c0_i32_0 = arith.constant 0 : i32
    %c0_i32_1 = arith.constant 0 : i32
    return %c0_i32, %c0_i32_0 : i32, i32
  }
  func.func @transform_5(%arg0: i32) -> (i32, i32) {
    %c0_i32 = arith.constant 0 : i32
    %c0_i32_0 = arith.constant 0 : i32
    %c0_i32_1 = arith.constant 0 : i32
    return %c0_i32, %c0_i32_0 : i32, i32
  }
  func.func @transform_6(%arg0: i32) -> (i32, i32, i32) {
    %c0_i32 = arith.constant 0 : i32
    %c0_i32_0 = arith.constant 0 : i32
    %c0_i32_1 = arith.constant 0 : i32
    return %arg0, %c0_i32, %c0_i32_0 : i32, i32, i32
  }
  func.func @transform_7(%arg0: i32) -> (i32, i32, i32) {
    %c0_i32 = arith.constant 0 : i32
    %c0_i32_0 = arith.constant 0 : i32
    %c0_i32_1 = arith.constant 0 : i32
    return %arg0, %c0_i32, %c0_i32_0 : i32, i32, i32
  }
  func.func @transform_8(%arg0: i32) -> (i32, i32, i32) {
    %c0_i32 = arith.constant 0 : i32
    %c0_i32_0 = arith.constant 0 : i32
    %c0_i32_1 = arith.constant 0 : i32
    return %arg0, %c0_i32, %c0_i32_0 : i32, i32, i32
  }
  func.func @transform_9(%arg0: i32) -> (i32, i32, i32) {
    %c0_i32 = arith.constant 0 : i32
    %c0_i32_0 = arith.constant 0 : i32
    %c0_i32_1 = arith.constant 0 : i32
    return %arg0, %c0_i32, %c0_i32_0 : i32, i32, i32
  }
  func.func @transform_10(%arg0: i32) -> (i32, i32, i32) {
    %c0_i32 = arith.constant 0 : i32
    %c0_i32_0 = arith.constant 0 : i32
    %c0_i32_1 = arith.constant 0 : i32
    return %arg0, %c0_i32, %c0_i32_0 : i32, i32, i32
  }
  func.func @transform_11(%arg0: i32) -> (i32, i32, i32) {
    %c0_i32 = arith.constant 0 : i32
    %c0_i32_0 = arith.constant 0 : i32
    %c0_i32_1 = arith.constant 0 : i32
    return %arg0, %c0_i32, %c0_i32_0 : i32, i32, i32
  }
  func.func @transform_12(%arg0: i32) -> (i32, i32, i32) {
    %c0_i32 = arith.constant 0 : i32
    %c0_i32_0 = arith.constant 0 : i32
    %c0_i32_1 = arith.constant 0 : i32
    return %arg0, %c0_i32, %c0_i32_0 : i32, i32, i32
  }
  func.func @transform_13(%arg0: i32) -> (i32, i32, i32) {
    %c0_i32 = arith.constant 0 : i32
    %c0_i32_0 = arith.constant 0 : i32
    %c0_i32_1 = arith.constant 0 : i32
    return %arg0, %c0_i32, %c0_i32_0 : i32, i32, i32
  }
  func.func @transform_14(%arg0: i32) -> (i32, i32, i32) {
    %c0_i32 = arith.constant 0 : i32
    %c0_i32_0 = arith.constant 0 : i32
    %c0_i32_1 = arith.constant 0 : i32
    return %arg0, %c0_i32, %c0_i32_0 : i32, i32, i32
  }
  func.func @transform_15(%arg0: i32) -> (i32, i32, i32) {
    %c0_i32 = arith.constant 0 : i32
    %c0_i32_0 = arith.constant 0 : i32
    %c0_i32_1 = arith.constant 0 : i32
    return %arg0, %c0_i32, %c0_i32_0 : i32, i32, i32
  }
  func.func @transform_16(%arg0: i32) -> (i32, i32, i32) {
    %c0_i32 = arith.constant 0 : i32
    %c0_i32_0 = arith.constant 0 : i32
    %c0_i32_1 = arith.constant 0 : i32
    return %arg0, %c0_i32, %c0_i32_0 : i32, i32, i32
  }
  func.func @transform_17(%arg0: i32) -> (i32, i32, i32) {
    %c0_i32 = arith.constant 0 : i32
    %c0_i32_0 = arith.constant 0 : i32
    %c0_i32_1 = arith.constant 0 : i32
    return %arg0, %c0_i32, %c0_i32_0 : i32, i32, i32
  }
  func.func @transform_18(%arg0: i32) -> (i32, i32) {
    %c0_i32 = arith.constant 0 : i32
    %c0_i32_0 = arith.constant 0 : i32
    %c0_i32_1 = arith.constant 0 : i32
    return %c0_i32, %c0_i32_0 : i32, i32
  }
  func.func @transform_19(%arg0: i32) -> (i32, i32) {
    %c0_i32 = arith.constant 0 : i32
    %c0_i32_0 = arith.constant 0 : i32
    %c0_i32_1 = arith.constant 0 : i32
    return %c0_i32, %c0_i32_0 : i32, i32
  }
  func.func @transform_20(%arg0: i32) -> (i32, i32) {
    %c0_i32 = arith.constant 0 : i32
    %c0_i32_0 = arith.constant 0 : i32
    %c0_i32_1 = arith.constant 0 : i32
    return %c0_i32, %c0_i32_0 : i32, i32
  }
  func.func @transform_21(%arg0: i32) -> (i32, i32, i32) {
    %c0_i32 = arith.constant 0 : i32
    %c0_i32_0 = arith.constant 0 : i32
    %c0_i32_1 = arith.constant 0 : i32
    %c0_i32_2 = arith.constant 0 : i32
    return %c0_i32, %c0_i32_0, %c0_i32_1 : i32, i32, i32
  }
}

</mosaic_0001>

<llo_original>
// kernel: _lambda_.1
$region0: #{_lambda_.1}
  #allocation0 [shape = 'u32[]', space=smem, size = 0x4, offset = 0x4, fixed_abs, tag = 'smem constant byte address 0x4 - core index']
  #allocation1 [shape = 'u32[72,128]{1,0:T(1,128)}', space=vmem, size = 0x9000, scoped, tag = 'internal scratch']
  #allocation2 [shape = 'f32[48,256]{1,0:T(8,128)}', space=vmem, size = 0xc000, scoped, tag = 'scratch operand']
  %s0 = inlined_call_operand.vmem [shape: f32[32,48], index: 0, kind: input, shape index: {}]
  %s1 = inlined_call_operand.hbm [shape: bf16[48,256], index: 1, kind: input, shape index: {}]
  %s2 = inlined_call_operand.vmem [shape: f32[1,256], index: 2, kind: input, shape index: {}]
  %s3 = inlined_call_operand.hbm [shape: f32[17,256], index: 3, kind: input, shape index: {}]
  %s4 = inlined_call_operand.hbm [shape: f32[1,256], index: 4, kind: input, shape index: {}]
  %s5 = inlined_call_operand.hbm [shape: f32[1,256], index: 5, kind: input, shape index: {}]
  %s6 = inlined_call_operand.hbm [shape: f32[2,1,256], index: 6, kind: input, shape index: {}]
  %s7 = inlined_call_operand.hbm [shape: f32[2,1,256], index: 7, kind: input, shape index: {}]
  %s8 = inlined_call_operand.vmem [shape: bf16[2,256,768], index: 8, kind: input, shape index: {}]
  %s9 = inlined_call_operand.hbm [shape: f32[2,1,768], index: 9, kind: input, shape index: {}]
  %s10 = inlined_call_operand.hbm [shape: bf16[2,256,256], index: 10, kind: input, shape index: {}]
  %s11 = inlined_call_operand.hbm [shape: f32[2,1,256], index: 11, kind: input, shape index: {}]
  %s12 = inlined_call_operand.hbm [shape: f32[2,1,256], index: 12, kind: input, shape index: {}]
  %s13 = inlined_call_operand.hbm [shape: f32[2,1,256], index: 13, kind: input, shape index: {}]
  %s14 = inlined_call_operand.hbm [shape: bf16[2,256,1024], index: 14, kind: input, shape index: {}]
  %s15 = inlined_call_operand.vmem [shape: f32[2,1,1024], index: 15, kind: input, shape index: {}]
  %s16 = inlined_call_operand.hbm [shape: bf16[2,1024,256], index: 16, kind: input, shape index: {}]
  %s17 = inlined_call_operand.hbm [shape: f32[2,1,256], index: 17, kind: input, shape index: {}]
  %s18 = inlined_call_operand.hbm [shape: f32[1,256], index: 18, kind: input, shape index: {}]
  %s19 = inlined_call_operand.hbm [shape: f32[1,256], index: 19, kind: input, shape index: {}]
  %s20 = inlined_call_operand.vmem [shape: bf16[256,128], index: 20, kind: input, shape index: {}]
  %s21 = inlined_call_operand.hbm [shape: f32[2,16,128], index: 21, kind: output, shape index: {}]
  %s22 = sld [smem:[#allocation0]]
  $region189: #{_lambda_.1} parent=0
    _
  %s24 = ssub.s32 1, %s22
  %s25 = scalar_select 0, %s24, %s22
  $region1: #{_lambda_.1} parent=0
    #allocation3 [shape = 'u8[24576]{0}', space=vmem, size = 0x6000, scoped, tag = 'input window, operand 1, single buffered']
    #allocation4 [shape = 's32[2]{0}', space=sflag, size = 0x8, scoped, tag = 'scoped memory for _lambda_.1']
    #allocation5 [shape = 's32[2]{0}', space=sflag, size = 0x8, scoped, tag = 'scoped memory for _lambda_.1']
    #allocation6 [shape = 'u8[24576]{0}', space=vmem, size = 0x6000, scoped, tag = 'input window, operand 3, single buffered']
    #allocation7 [shape = 's32[1]{0}', space=sflag, size = 0x4, scoped, tag = 'scoped memory for _lambda_.1']
    #allocation8 [shape = 'u8[1024]{0}', space=vmem, size = 0x400, scoped, tag = 'input window, operand 4, single buffered']
    #allocation9 [shape = 'u8[1024]{0}', space=vmem, size = 0x400, scoped, tag = 'input window, operand 5, single buffered']
    #allocation10 [shape = 's32[1]{0}', space=sflag, size = 0x4, scoped, tag = 'scoped memory for _lambda_.1']
    #allocation11 [shape = 'u8[2048]{0}', space=vmem, size = 0x800, scoped, tag = 'input window, operand 6']
    #allocation12 [shape = 'u8[2048]{0}', space=vmem, size = 0x800, scoped, tag = 'input window, operand 7']
    #allocation13 [shape = 'u8[6144]{0}', space=vmem, size = 0x1800, scoped, tag = 'input window, operand 9']
    #allocation14 [shape = 'u8[262144]{0}', space=vmem, size = 0x40000, scoped, tag = 'input window, operand 10']
    #allocation15 [shape = 'u8[2048]{0}', space=vmem, size = 0x800, scoped, tag = 'input window, operand 11']
    #allocation16 [shape = 'u8[2048]{0}', space=vmem, size = 0x800, scoped, tag = 'input window, operand 12']
    #allocation17 [shape = 'u8[2048]{0}', space=vmem, size = 0x800, scoped, tag = 'input window, operand 13']
    #allocation18 [shape = 'u8[1048576]{0}', space=vmem, size = 0x100000, scoped, tag = 'input window, operand 14']
    #allocation19 [shape = 'u8[1048576]{0}', space=vmem, size = 0x100000, scoped, tag = 'input window, operand 16']
    #allocation20 [shape = 'u8[2048]{0}', space=vmem, size = 0x800, scoped, tag = 'input window, operand 17']
    #allocation21 [shape = 'u8[1024]{0}', space=vmem, size = 0x400, scoped, tag = 'input window, operand 18, single buffered']
    #allocation22 [shape = 'u8[1024]{0}', space=vmem, size = 0x400, scoped, tag = 'input window, operand 19, single buffered']
    #allocation23 [shape = 'u8[16384]{0}', space=vmem, size = 0x4000, scoped, tag = 'output window, operand 0, single buffered']
    %26 = vsyncpa [#allocation4], 0
    %27 = vsyncpa [#allocation7], 0
    %28 = vsyncpa [#allocation10], 0
    %29 = vsyncpa [#allocation5], 0
    loop: start=0, step=1, limit=4
    $region2: #{_lambda_.1} parent=1 // loop_pre_header
      _
    $region3: #{_lambda_.1} parent=1 // loop_header
      %s31 = sphi 0, %s35
      %p32 = scmp.ge.s32.totalorder %s31, 4
      %s39 = sphi 0, %s39
      %s41 = sphi 0, %s39
      %s42 = sphi 0, %s41
      %s56 = sphi 0, %s42
      %s60 = sphi 0, %s60
      %s62 = sphi 0, %s60
      %s63 = sphi 0, %s62
      %s77 = sphi 0, %s63
      %s81 = sphi 0, %s81
      %s83 = sphi 0, %s81
      %s84 = sphi 0, %s83
      %s98 = sphi 0, %s84
      %s102 = sphi 0, %s102
      %s104 = sphi 0, %s102
      %s105 = sphi 0, %s104
      %s119 = sphi 0, %s105
      %s123 = sphi 0, %s123
      %s125 = sphi 0, %s123
      %s126 = sphi 0, %s125
      %s140 = sphi 0, %s126
      %s144 = sphi 0, %s144
      %s146 = sphi 0, %s144
      %s147 = sphi 0, %s146
      %s161 = sphi 0, %s147
      %s167 = sphi 0, %s169
      %s170 = sphi 0, %s167
      %s171 = sphi 0, %s170
      %s187 = sphi 0, %s171
      %s193 = sphi 0, %s195
      %s196 = sphi 0, %s193
      %s197 = sphi 0, %s196
      %s213 = sphi 0, %s197
      %s219 = sphi 0, %s221
      %s222 = sphi 0, %s219
      %s223 = sphi 0, %s222
      %s239 = sphi 0, %s223
      %s245 = sphi 0, %s247
      %s248 = sphi 0, %s245
      %s249 = sphi 0, %s248
      %s265 = sphi 0, %s249
      %s271 = sphi 0, %s273
      %s274 = sphi 0, %s271
      %s275 = sphi 0, %s274
      %s291 = sphi 0, %s275
      %s297 = sphi 0, %s299
      %s300 = sphi 0, %s297
      %s301 = sphi 0, %s300
      %s317 = sphi 0, %s301
      %s323 = sphi 0, %s325
      %s326 = sphi 0, %s323
      %s327 = sphi 0, %s326
      %s343 = sphi 0, %s327
      %s349 = sphi 0, %s351
      %s352 = sphi 0, %s349
      %s353 = sphi 0, %s352
      %s369 = sphi 0, %s353
      %s375 = sphi 0, %s377
      %s378 = sphi 0, %s375
      %s379 = sphi 0, %s378
      %s395 = sphi 0, %s379
      %s401 = sphi 0, %s403
      %s404 = sphi 0, %s401
      %s405 = sphi 0, %s404
      %s421 = sphi 0, %s405
      %s427 = sphi 0, %s429
      %s430 = sphi 0, %s427
      %s431 = sphi 0, %s430
      %s447 = sphi 0, %s431
      %s453 = sphi 0, %s455
      %s456 = sphi 0, %s453
      %s457 = sphi 0, %s456
      %s473 = sphi 0, %s457
      %s477 = sphi 0, %s477
      %s479 = sphi 0, %s477
      %s480 = sphi 0, %s479
      %s494 = sphi 0, %s480
      %s498 = sphi 0, %s498
      %s500 = sphi 0, %s498
      %s501 = sphi 0, %s500
      %s515 = sphi 0, %s501
      %s519 = sphi 0, %s519
      %s521 = sphi 0, %s519
      %s522 = sphi 0, %s521
      %s536 = sphi 0, %s522
      %s540 = sphi 0, %s540
      %s542 = sphi 0, %s540
      %s543 = sphi 0, %s542
      %s557 = sphi 0, %s543
    $region4: #{_lambda_.1} parent=1 // loop_header_branch
      %34 = sbr.rel (%p32) target = $region8
    $region5: #{_lambda_.1} parent=1 // loop_body
      %s36 = ssub.s32 %s31, 1
      %s37 = ssub.s32 %s31, 2
      %s38 = sadd.s32 %s31, 1
      %s40 = sadd.s32 %s39, 1
      %p43 = scmp.eq.s32.totalorder %s31, 1
      %p44 = scmp.ne.s32.totalorder %s39, %s41
      %p45 = scmp.eq.s32.totalorder %s31, 0
      %p46 = por %p44, %p45
      %p47 = scmp.ne.s32.totalorder %s39, %s41
      %p48 = scmp.eq.s32.totalorder %s36, 1
      %p49 = por %p47, %p48
      %p50 = scmp.ne.s32.totalorder %s41, %s42
      %p51 = scmp.eq.s32.totalorder %s36, 0
      %p52 = por %p50, %p51
      %p53 = scmp.ne.s32.totalorder %s41, %s42
      %p54 = scmp.eq.s32.totalorder %s37, 1
      %p55 = por %p53, %p54
      %p57 = scmp.ne.s32.totalorder %s42, %s56
      %p58 = scmp.eq.s32.totalorder %s37, 0
      %p59 = por %p57, %p58
      %s61 = sadd.s32 %s60, 1
      %p64 = scmp.eq.s32.totalorder %s31, 1
      %p65 = scmp.ne.s32.totalorder %s60, %s62
      %p66 = scmp.eq.s32.totalorder %s31, 0
      %p67 = por %p65, %p66
      %p68 = scmp.ne.s32.totalorder %s60, %s62
      %p69 = scmp.eq.s32.totalorder %s36, 1
      %p70 = por %p68, %p69
      %p71 = scmp.ne.s32.totalorder %s62, %s63
      %p72 = scmp.eq.s32.totalorder %s36, 0
      %p73 = por %p71, %p72
      %p74 = scmp.ne.s32.totalorder %s62, %s63
      %p75 = scmp.eq.s32.totalorder %s37, 1
      %p76 = por %p74, %p75
      %p78 = scmp.ne.s32.totalorder %s63, %s77
      %p79 = scmp.eq.s32.totalorder %s37, 0
      %p80 = por %p78, %p79
      %s82 = sadd.s32 %s81, 1
      %p85 = scmp.eq.s32.totalorder %s31, 1
      %p86 = scmp.ne.s32.totalorder %s81, %s83
      %p87 = scmp.eq.s32.totalorder %s31, 0
      %p88 = por %p86, %p87
      %p89 = scmp.ne.s32.totalorder %s81, %s83
      %p90 = scmp.eq.s32.totalorder %s36, 1
      %p91 = por %p89, %p90
      %p92 = scmp.ne.s32.totalorder %s83, %s84
      %p93 = scmp.eq.s32.totalorder %s36, 0
      %p94 = por %p92, %p93
      %p95 = scmp.ne.s32.totalorder %s83, %s84
      %p96 = scmp.eq.s32.totalorder %s37, 1
      %p97 = por %p95, %p96
      %p99 = scmp.ne.s32.totalorder %s84, %s98
      %p100 = scmp.eq.s32.totalorder %s37, 0
      %p101 = por %p99, %p100
      %s103 = sadd.s32 %s102, 1
      %p106 = scmp.eq.s32.totalorder %s31, 1
      %p107 = scmp.ne.s32.totalorder %s102, %s104
      %p108 = scmp.eq.s32.totalorder %s31, 0
      %p109 = por %p107, %p108
      %p110 = scmp.ne.s32.totalorder %s102, %s104
      %p111 = scmp.eq.s32.totalorder %s36, 1
      %p112 = por %p110, %p111
      %p113 = scmp.ne.s32.totalorder %s104, %s105
      %p114 = scmp.eq.s32.totalorder %s36, 0
      %p115 = por %p113, %p114
      %p116 = scmp.ne.s32.totalorder %s104, %s105
      %p117 = scmp.eq.s32.totalorder %s37, 1
      %p118 = por %p116, %p117
      %p120 = scmp.ne.s32.totalorder %s105, %s119
      %p121 = scmp.eq.s32.totalorder %s37, 0
      %p122 = por %p120, %p121
      %s124 = sadd.s32 %s123, 1
      %p127 = scmp.eq.s32.totalorder %s31, 1
      %p128 = scmp.ne.s32.totalorder %s123, %s125
      %p129 = scmp.eq.s32.totalorder %s31, 0
      %p130 = por %p128, %p129
      %p131 = scmp.ne.s32.totalorder %s123, %s125
      %p132 = scmp.eq.s32.totalorder %s36, 1
      %p133 = por %p131, %p132
      %p134 = scmp.ne.s32.totalorder %s125, %s126
      %p135 = scmp.eq.s32.totalorder %s36, 0
      %p136 = por %p134, %p135
      %p137 = scmp.ne.s32.totalorder %s125, %s126
      %p138 = scmp.eq.s32.totalorder %s37, 1
      %p139 = por %p137, %p138
      %p141 = scmp.ne.s32.totalorder %s126, %s140
      %p142 = scmp.eq.s32.totalorder %s37, 0
      %p143 = por %p141, %p142
      %s145 = sadd.s32 %s144, 1
      %p148 = scmp.eq.s32.totalorder %s31, 1
      %p149 = scmp.ne.s32.totalorder %s144, %s146
      %p150 = scmp.eq.s32.totalorder %s31, 0
      %p151 = por %p149, %p150
      %p152 = scmp.ne.s32.totalorder %s144, %s146
      %p153 = scmp.eq.s32.totalorder %s36, 1
      %p154 = por %p152, %p153
      %p155 = scmp.ne.s32.totalorder %s146, %s147
      %p156 = scmp.eq.s32.totalorder %s36, 0
      %p157 = por %p155, %p156
      %p158 = scmp.ne.s32.totalorder %s146, %s147
      %p159 = scmp.eq.s32.totalorder %s37, 1
      %p160 = por %p158, %p159
      %p162 = scmp.ne.s32.totalorder %s147, %s161
      %p163 = scmp.eq.s32.totalorder %s37, 0
      %p164 = por %p162, %p163
      %s165 = ssub.s32 %s31, %s38
      %p166 = scmp.eq.s32.totalorder %s165, 0
      %s168 = sadd.s32 %s167, 1
      %s169 = scalar_select %p166, %s167, %s168
      %p172 = pneg %p166
      %p173 = scmp.eq.s32.totalorder %s31, 1
      %p174 = por %p172, %p173
      %p175 = scmp.ne.s32.totalorder %s167, %s170
      %p176 = scmp.eq.s32.totalorder %s31, 0
      %p177 = por %p175, %p176
      %p178 = scmp.ne.s32.totalorder %s167, %s170
      %p179 = scmp.eq.s32.totalorder %s36, 1
      %p180 = por %p178, %p179
      %p181 = scmp.ne.s32.totalorder %s170, %s171
      %p182 = scmp.eq.s32.totalorder %s36, 0
      %p183 = por %p181, %p182
      %p184 = scmp.ne.s32.totalorder %s170, %s171
      %p185 = scmp.eq.s32.totalorder %s37, 1
      %p186 = por %p184, %p185
      %p188 = scmp.ne.s32.totalorder %s171, %s187
      %p189 = scmp.eq.s32.totalorder %s37, 0
      %p190 = por %p188, %p189
      %s191 = ssub.s32 %s31, %s38
      %p192 = scmp.eq.s32.totalorder %s191, 0
      %s194 = sadd.s32 %s193, 1
      %s195 = scalar_select %p192, %s193, %s194
      %p198 = pneg %p192
      %p199 = scmp.eq.s32.totalorder %s31, 1
      %p200 = por %p198, %p199
      %p201 = scmp.ne.s32.totalorder %s193, %s196
      %p202 = scmp.eq.s32.totalorder %s31, 0
      %p203 = por %p201, %p202
      %p204 = scmp.ne.s32.totalorder %s193, %s196
      %p205 = scmp.eq.s32.totalorder %s36, 1
      %p206 = por %p204, %p205
      %p207 = scmp.ne.s32.totalorder %s196, %s197
      %p208 = scmp.eq.s32.totalorder %s36, 0
      %p209 = por %p207, %p208
      %p210 = scmp.ne.s32.totalorder %s196, %s197
      %p211 = scmp.eq.s32.totalorder %s37, 1
      %p212 = por %p210, %p211
      %p214 = scmp.ne.s32.totalorder %s197, %s213
      %p215 = scmp.eq.s32.totalorder %s37, 0
      %p216 = por %p214, %p215
      %s217 = ssub.s32 %s31, %s38
      %p218 = scmp.eq.s32.totalorder %s217, 0
      %s220 = sadd.s32 %s219, 1
      %s221 = scalar_select %p218, %s219, %s220
      %p224 = pneg %p218
      %p225 = scmp.eq.s32.totalorder %s31, 1
      %p226 = por %p224, %p225
      %p227 = scmp.ne.s32.totalorder %s219, %s222
      %p228 = scmp.eq.s32.totalorder %s31, 0
      %p229 = por %p227, %p228
      %p230 = scmp.ne.s32.totalorder %s219, %s222
      %p231 = scmp.eq.s32.totalorder %s36, 1
      %p232 = por %p230, %p231
      %p233 = scmp.ne.s32.totalorder %s222, %s223
      %p234 = scmp.eq.s32.totalorder %s36, 0
      %p235 = por %p233, %p234
      %p236 = scmp.ne.s32.totalorder %s222, %s223
      %p237 = scmp.eq.s32.totalorder %s37, 1
      %p238 = por %p236, %p237
      %p240 = scmp.ne.s32.totalorder %s223, %s239
      %p241 = scmp.eq.s32.totalorder %s37, 0
      %p242 = por %p240, %p241
      %s243 = ssub.s32 %s31, %s38
      %p244 = scmp.eq.s32.totalorder %s243, 0
      %s246 = sadd.s32 %s245, 1
      %s247 = scalar_select %p244, %s245, %s246
      %p250 = pneg %p244
      %p251 = scmp.eq.s32.totalorder %s31, 1
      %p252 = por %p250, %p251
      %p253 = scmp.ne.s32.totalorder %s245, %s248
      %p254 = scmp.eq.s32.totalorder %s31, 0
      %p255 = por %p253, %p254
      %p256 = scmp.ne.s32.totalorder %s245, %s248
      %p257 = scmp.eq.s32.totalorder %s36, 1
      %p258 = por %p256, %p257
      %p259 = scmp.ne.s32.totalorder %s248, %s249
      %p260 = scmp.eq.s32.totalorder %s36, 0
      %p261 = por %p259, %p260
      %p262 = scmp.ne.s32.totalorder %s248, %s249
      %p263 = scmp.eq.s32.totalorder %s37, 1
      %p264 = por %p262, %p263
      %p266 = scmp.ne.s32.totalorder %s249, %s265
      %p267 = scmp.eq.s32.totalorder %s37, 0
      %p268 = por %p266, %p267
      %s269 = ssub.s32 %s31, %s38
      %p270 = scmp.eq.s32.totalorder %s269, 0
      %s272 = sadd.s32 %s271, 1
      %s273 = scalar_select %p270, %s271, %s272
      %p276 = pneg %p270
      %p277 = scmp.eq.s32.totalorder %s31, 1
      %p278 = por %p276, %p277
      %p279 = scmp.ne.s32.totalorder %s271, %s274
      %p280 = scmp.eq.s32.totalorder %s31, 0
      %p281 = por %p279, %p280
      %p282 = scmp.ne.s32.totalorder %s271, %s274
      %p283 = scmp.eq.s32.totalorder %s36, 1
      %p284 = por %p282, %p283
      %p285 = scmp.ne.s32.totalorder %s274, %s275
      %p286 = scmp.eq.s32.totalorder %s36, 0
      %p287 = por %p285, %p286
      %p288 = scmp.ne.s32.totalorder %s274, %s275
      %p289 = scmp.eq.s32.totalorder %s37, 1
      %p290 = por %p288, %p289
      %p292 = scmp.ne.s32.totalorder %s275, %s291
      %p293 = scmp.eq.s32.totalorder %s37, 0
      %p294 = por %p292, %p293
      %s295 = ssub.s32 %s31, %s38
      %p296 = scmp.eq.s32.totalorder %s295, 0
      %s298 = sadd.s32 %s297, 1
      %s299 = scalar_select %p296, %s297, %s298
      %p302 = pneg %p296
      %p303 = scmp.eq.s32.totalorder %s31, 1
      %p304 = por %p302, %p303
      %p305 = scmp.ne.s32.totalorder %s297, %s300
      %p306 = scmp.eq.s32.totalorder %s31, 0
      %p307 = por %p305, %p306
      %p308 = scmp.ne.s32.totalorder %s297, %s300
      %p309 = scmp.eq.s32.totalorder %s36, 1
      %p310 = por %p308, %p309
      %p311 = scmp.ne.s32.totalorder %s300, %s301
      %p312 = scmp.eq.s32.totalorder %s36, 0
      %p313 = por %p311, %p312
      %p314 = scmp.ne.s32.totalorder %s300, %s301
      %p315 = scmp.eq.s32.totalorder %s37, 1
      %p316 = por %p314, %p315
      %p318 = scmp.ne.s32.totalorder %s301, %s317
      %p319 = scmp.eq.s32.totalorder %s37, 0
      %p320 = por %p318, %p319
      %s321 = ssub.s32 %s31, %s38
      %p322 = scmp.eq.s32.totalorder %s321, 0
      %s324 = sadd.s32 %s323, 1
      %s325 = scalar_select %p322, %s323, %s324
      %p328 = pneg %p322
      %p329 = scmp.eq.s32.totalorder %s31, 1
      %p330 = por %p328, %p329
      %p331 = scmp.ne.s32.totalorder %s323, %s326
      %p332 = scmp.eq.s32.totalorder %s31, 0
      %p333 = por %p331, %p332
      %p334 = scmp.ne.s32.totalorder %s323, %s326
      %p335 = scmp.eq.s32.totalorder %s36, 1
      %p336 = por %p334, %p335
      %p337 = scmp.ne.s32.totalorder %s326, %s327
      %p338 = scmp.eq.s32.totalorder %s36, 0
      %p339 = por %p337, %p338
      %p340 = scmp.ne.s32.totalorder %s326, %s327
      %p341 = scmp.eq.s32.totalorder %s37, 1
      %p342 = por %p340, %p341
      %p344 = scmp.ne.s32.totalorder %s327, %s343
      %p345 = scmp.eq.s32.totalorder %s37, 0
      %p346 = por %p344, %p345
      %s347 = ssub.s32 %s31, %s38
      %p348 = scmp.eq.s32.totalorder %s347, 0
      %s350 = sadd.s32 %s349, 1
      %s351 = scalar_select %p348, %s349, %s350
      %p354 = pneg %p348
      %p355 = scmp.eq.s32.totalorder %s31, 1
      %p356 = por %p354, %p355
      %p357 = scmp.ne.s32.totalorder %s349, %s352
      %p358 = scmp.eq.s32.totalorder %s31, 0
      %p359 = por %p357, %p358
      %p360 = scmp.ne.s32.totalorder %s349, %s352
      %p361 = scmp.eq.s32.totalorder %s36, 1
      %p362 = por %p360, %p361
      %p363 = scmp.ne.s32.totalorder %s352, %s353
      %p364 = scmp.eq.s32.totalorder %s36, 0
      %p365 = por %p363, %p364
      %p366 = scmp.ne.s32.totalorder %s352, %s353
      %p367 = scmp.eq.s32.totalorder %s37, 1
      %p368 = por %p366, %p367
      %p370 = scmp.ne.s32.totalorder %s353, %s369
      %p371 = scmp.eq.s32.totalorder %s37, 0
      %p372 = por %p370, %p371
      %s373 = ssub.s32 %s31, %s38
      %p374 = scmp.eq.s32.totalorder %s373, 0
      %s376 = sadd.s32 %s375, 1
      %s377 = scalar_select %p374, %s375, %s376
      %p380 = pneg %p374
      %p381 = scmp.eq.s32.totalorder %s31, 1
      %p382 = por %p380, %p381
      %p383 = scmp.ne.s32.totalorder %s375, %s378
      %p384 = scmp.eq.s32.totalorder %s31, 0
      %p385 = por %p383, %p384
      %p386 = scmp.ne.s32.totalorder %s375, %s378
      %p387 = scmp.eq.s32.totalorder %s36, 1
      %p388 = por %p386, %p387
      %p389 = scmp.ne.s32.totalorder %s378, %s379
      %p390 = scmp.eq.s32.totalorder %s36, 0
      %p391 = por %p389, %p390
      %p392 = scmp.ne.s32.totalorder %s378, %s379
      %p393 = scmp.eq.s32.totalorder %s37, 1
      %p394 = por %p392, %p393
      %p396 = scmp.ne.s32.totalorder %s379, %s395
      %p397 = scmp.eq.s32.totalorder %s37, 0
      %p398 = por %p396, %p397
      %s399 = ssub.s32 %s31, %s38
      %p400 = scmp.eq.s32.totalorder %s399, 0
      %s402 = sadd.s32 %s401, 1
      %s403 = scalar_select %p400, %s401, %s402
      %p406 = pneg %p400
      %p407 = scmp.eq.s32.totalorder %s31, 1
      %p408 = por %p406, %p407
      %p409 = scmp.ne.s32.totalorder %s401, %s404
      %p410 = scmp.eq.s32.totalorder %s31, 0
      %p411 = por %p409, %p410
      %p412 = scmp.ne.s32.totalorder %s401, %s404
      %p413 = scmp.eq.s32.totalorder %s36, 1
      %p414 = por %p412, %p413
      %p415 = scmp.ne.s32.totalorder %s404, %s405
      %p416 = scmp.eq.s32.totalorder %s36, 0
      %p417 = por %p415, %p416
      %p418 = scmp.ne.s32.totalorder %s404, %s405
      %p419 = scmp.eq.s32.totalorder %s37, 1
      %p420 = por %p418, %p419
      %p422 = scmp.ne.s32.totalorder %s405, %s421
      %p423 = scmp.eq.s32.totalorder %s37, 0
      %p424 = por %p422, %p423
      %s425 = ssub.s32 %s31, %s38
      %p426 = scmp.eq.s32.totalorder %s425, 0
      %s428 = sadd.s32 %s427, 1
      %s429 = scalar_select %p426, %s427, %s428
      %p432 = pneg %p426
      %p433 = scmp.eq.s32.totalorder %s31, 1
      %p434 = por %p432, %p433
      %p435 = scmp.ne.s32.totalorder %s427, %s430
      %p436 = scmp.eq.s32.totalorder %s31, 0
      %p437 = por %p435, %p436
      %p438 = scmp.ne.s32.totalorder %s427, %s430
      %p439 = scmp.eq.s32.totalorder %s36, 1
      %p440 = por %p438, %p439
      %p441 = scmp.ne.s32.totalorder %s430, %s431
      %p442 = scmp.eq.s32.totalorder %s36, 0
      %p443 = por %p441, %p442
      %p444 = scmp.ne.s32.totalorder %s430, %s431
      %p445 = scmp.eq.s32.totalorder %s37, 1
      %p446 = por %p444, %p445
      %p448 = scmp.ne.s32.totalorder %s431, %s447
      %p449 = scmp.eq.s32.totalorder %s37, 0
      %p450 = por %p448, %p449
      %s451 = ssub.s32 %s31, %s38
      %p452 = scmp.eq.s32.totalorder %s451, 0
      %s454 = sadd.s32 %s453, 1
      %s455 = scalar_select %p452, %s453, %s454
      %p458 = pneg %p452
      %p459 = scmp.eq.s32.totalorder %s31, 1
      %p460 = por %p458, %p459
      %p461 = scmp.ne.s32.totalorder %s453, %s456
      %p462 = scmp.eq.s32.totalorder %s31, 0
      %p463 = por %p461, %p462
      %p464 = scmp.ne.s32.totalorder %s453, %s456
      %p465 = scmp.eq.s32.totalorder %s36, 1
      %p466 = por %p464, %p465
      %p467 = scmp.ne.s32.totalorder %s456, %s457
      %p468 = scmp.eq.s32.totalorder %s36, 0
      %p469 = por %p467, %p468
      %p470 = scmp.ne.s32.totalorder %s456, %s457
      %p471 = scmp.eq.s32.totalorder %s37, 1
      %p472 = por %p470, %p471
      %p474 = scmp.ne.s32.totalorder %s457, %s473
      %p475 = scmp.eq.s32.totalorder %s37, 0
      %p476 = por %p474, %p475
      %s478 = sadd.s32 %s477, 1
      %p481 = scmp.eq.s32.totalorder %s31, 1
      %p482 = scmp.ne.s32.totalorder %s477, %s479
      %p483 = scmp.eq.s32.totalorder %s31, 0
      %p484 = por %p482, %p483
      %p485 = scmp.ne.s32.totalorder %s477, %s479
      %p486 = scmp.eq.s32.totalorder %s36, 1
      %p487 = por %p485, %p486
      %p488 = scmp.ne.s32.totalorder %s479, %s480
      %p489 = scmp.eq.s32.totalorder %s36, 0
      %p490 = por %p488, %p489
      %p491 = scmp.ne.s32.totalorder %s479, %s480
      %p492 = scmp.eq.s32.totalorder %s37, 1
      %p493 = por %p491, %p492
      %p495 = scmp.ne.s32.totalorder %s480, %s494
      %p496 = scmp.eq.s32.totalorder %s37, 0
      %p497 = por %p495, %p496
      %s499 = sadd.s32 %s498, 1
      %p502 = scmp.eq.s32.totalorder %s31, 1
      %p503 = scmp.ne.s32.totalorder %s498, %s500
      %p504 = scmp.eq.s32.totalorder %s31, 0
      %p505 = por %p503, %p504
      %p506 = scmp.ne.s32.totalorder %s498, %s500
      %p507 = scmp.eq.s32.totalorder %s36, 1
      %p508 = por %p506, %p507
      %p509 = scmp.ne.s32.totalorder %s500, %s501
      %p510 = scmp.eq.s32.totalorder %s36, 0
      %p511 = por %p509, %p510
      %p512 = scmp.ne.s32.totalorder %s500, %s501
      %p513 = scmp.eq.s32.totalorder %s37, 1
      %p514 = por %p512, %p513
      %p516 = scmp.ne.s32.totalorder %s501, %s515
      %p517 = scmp.eq.s32.totalorder %s37, 0
      %p518 = por %p516, %p517
      %s520 = sadd.s32 %s519, 1
      %p523 = scmp.eq.s32.totalorder %s31, 1
      %p524 = scmp.ne.s32.totalorder %s519, %s521
      %p525 = scmp.eq.s32.totalorder %s31, 0
      %p526 = por %p524, %p525
      %p527 = scmp.ne.s32.totalorder %s519, %s521
      %p528 = scmp.eq.s32.totalorder %s36, 1
      %p529 = por %p527, %p528
      %p530 = scmp.ne.s32.totalorder %s521, %s522
      %p531 = scmp.eq.s32.totalorder %s36, 0
      %p532 = por %p530, %p531
      %p533 = scmp.ne.s32.totalorder %s521, %s522
      %p534 = scmp.eq.s32.totalorder %s37, 1
      %p535 = por %p533, %p534
      %p537 = scmp.ne.s32.totalorder %s522, %s536
      %p538 = scmp.eq.s32.totalorder %s37, 0
      %p539 = por %p537, %p538
      %s541 = sadd.s32 %s540, 1
      %p544 = scmp.eq.s32.totalorder %s31, 1
      %p545 = scmp.ne.s32.totalorder %s540, %s542
      %p546 = scmp.eq.s32.totalorder %s31, 0
      %p547 = por %p545, %p546
      %p548 = scmp.ne.s32.totalorder %s540, %s542
      %p549 = scmp.eq.s32.totalorder %s36, 1
      %p550 = por %p548, %p549
      %p551 = scmp.ne.s32.totalorder %s542, %s543
      %p552 = scmp.eq.s32.totalorder %s36, 0
      %p553 = por %p551, %p552
      %p554 = scmp.ne.s32.totalorder %s542, %s543
      %p555 = scmp.eq.s32.totalorder %s37, 1
      %p556 = por %p554, %p555
      %p558 = scmp.ne.s32.totalorder %s543, %s557
      %p559 = scmp.eq.s32.totalorder %s37, 0
      %p560 = por %p558, %p559
      %p561 = scmp.le.s32.totalorder 1, %s31
      %p562 = scmp.lt.s32.totalorder %s31, 3
      %p563 = pnand %p561, %p562
      %p564 = pneg %p563
      // Predicated region
      $region9: #{_lambda_.1} parent=5 // pred_check
        _
      $region10: #{_lambda_.1} parent=5 // pred_check_branch
        %566 = sbr.rel (%p563) target = $region12
      $region11: #{_lambda_.1} parent=5 // pred_region
        %s567 = ssub.s32 %s31, 1
        // Predicated region
        $region13: #{_lambda_.1} parent=11 // pred_check
          %p568 = pneg %p52
        $region14: #{_lambda_.1} parent=11 // pred_check_branch
          %570 = sbr.rel (%p568) target = $region16
        $region15: #{_lambda_.1} parent=11 // pred_region
          _
        $region16: #{_lambda_.1} parent=11 // pred_fallthru
          _
        // Predicated region
        $region17: #{_lambda_.1} parent=11 // pred_check
          %p571 = pneg %p73
        $region18: #{_lambda_.1} parent=11 // pred_check_branch
          %573 = sbr.rel (%p571) target = $region20
        $region19: #{_lambda_.1} parent=11 // pred_region
          %575 = vsyncadd [#allocation4], 0
          %s576 = sshll.u32 %s1, 4
          %s577 = int_to_ptr.hbm [resolvable:$true] %s576
          %s578 = sshll.u32 [#allocation3], 4
          %s579 = int_to_ptr.vmem [resolvable:$true] %s578
          %584 = dma.hbm_to_vmem [thread:$0]  %s577, 768, %s579, [#allocation4], 128, 128, 8
        $region20: #{_lambda_.1} parent=11 // pred_fallthru
          _
        // Predicated region
        $region21: #{_lambda_.1} parent=11 // pred_check
          %p585 = pneg %p94
        $region22: #{_lambda_.1} parent=11 // pred_check_branch
          %587 = sbr.rel (%p585) target = $region24
        $region23: #{_lambda_.1} parent=11 // pred_region
          _
        $region24: #{_lambda_.1} parent=11 // pred_fallthru
          _
        // Predicated region
        $region25: #{_lambda_.1} parent=11 // pred_check
          %p588 = pneg %p115
        $region26: #{_lambda_.1} parent=11 // pred_check_branch
          %590 = sbr.rel (%p588) target = $region28
        $region27: #{_lambda_.1} parent=11 // pred_region
          %592 = vsyncadd [#allocation7], 0
          %s593 = sshll.u32 %s3, 4
          %s594 = int_to_ptr.hbm [resolvable:$true] %s593
          %s595 = sshll.u32 [#allocation6], 4
          %s596 = int_to_ptr.vmem [resolvable:$true] %s595
          %601 = dma.hbm_to_vmem [thread:$0]  %s594, 768, %s596, [#allocation7], 256, 256, 16
        $region28: #{_lambda_.1} parent=11 // pred_fallthru
          _
        // Predicated region
        $region29: #{_lambda_.1} parent=11 // pred_check
          %p602 = pneg %p136
        $region30: #{_lambda_.1} parent=11 // pred_check_branch
          %604 = sbr.rel (%p602) target = $region32
        $region31: #{_lambda_.1} parent=11 // pred_region
          %606 = vsyncadd [#allocation7], 0
          %s608 = sshll.u32 %s4, 4
          %s609 = int_to_ptr.hbm [resolvable:$true] %s608
          %s610 = sshll.u32 [#allocation8], 4
          %s611 = int_to_ptr.vmem [resolvable:$true] %s610
          %613 = dma.hbm_to_vmem [thread:$0]  %s609, 32, %s611, [#allocation7]
        $region32: #{_lambda_.1} parent=11 // pred_fallthru
          _
        // Predicated region
        $region33: #{_lambda_.1} parent=11 // pred_check
          %p614 = pneg %p157
        $region34: #{_lambda_.1} parent=11 // pred_check_branch
          %616 = sbr.rel (%p614) target = $region36
        $region35: #{_lambda_.1} parent=11 // pred_region
          %618 = vsyncadd [#allocation10], 0
          %s620 = sshll.u32 %s5, 4
          %s621 = int_to_ptr.hbm [resolvable:$true] %s620
          %s622 = sshll.u32 [#allocation9], 4
          %s623 = int_to_ptr.vmem [resolvable:$true] %s622
          %625 = dma.hbm_to_vmem [thread:$0]  %s621, 32, %s623, [#allocation10]
        $region36: #{_lambda_.1} parent=11 // pred_fallthru
          _
        // Predicated region
        $region37: #{_lambda_.1} parent=11 // pred_check
          %p626 = pneg %p490
        $region38: #{_lambda_.1} parent=11 // pred_check_branch
          %628 = sbr.rel (%p626) target = $region40
        $region39: #{_lambda_.1} parent=11 // pred_region
          %630 = vsyncadd [#allocation7], 0
          %s632 = sshll.u32 %s18, 4
          %s633 = int_to_ptr.hbm [resolvable:$true] %s632
          %s634 = sshll.u32 [#allocation21], 4
          %s635 = int_to_ptr.vmem [resolvable:$true] %s634
          %637 = dma.hbm_to_vmem [thread:$0]  %s633, 32, %s635, [#allocation7]
        $region40: #{_lambda_.1} parent=11 // pred_fallthru
          _
        // Predicated region
        $region41: #{_lambda_.1} parent=11 // pred_check
          %p638 = pneg %p511
        $region42: #{_lambda_.1} parent=11 // pred_check_branch
          %640 = sbr.rel (%p638) target = $region44
        $region43: #{_lambda_.1} parent=11 // pred_region
          %642 = vsyncadd [#allocation10], 0
          %s644 = sshll.u32 %s19, 4
          %s645 = int_to_ptr.hbm [resolvable:$true] %s644
          %s646 = sshll.u32 [#allocation22], 4
          %s647 = int_to_ptr.vmem [resolvable:$true] %s646
          %649 = dma.hbm_to_vmem [thread:$0]  %s645, 32, %s647, [#allocation10]
        $region44: #{_lambda_.1} parent=11 // pred_fallthru
          _
        // Predicated region
        $region45: #{_lambda_.1} parent=11 // pred_check
          %p650 = pneg %p532
        $region46: #{_lambda_.1} parent=11 // pred_check_branch
          %652 = sbr.rel (%p650) target = $region48
        $region47: #{_lambda_.1} parent=11 // pred_region
          _
        $region48: #{_lambda_.1} parent=11 // pred_fallthru
          _
      $region12: #{_lambda_.1} parent=5 // pred_fallthru
        _
      %p653 = scmp.lt.s32.totalorder %s31, 2
      // Predicated region
      $region49: #{_lambda_.1} parent=5 // pred_check
        %p654 = pneg %p653
      $region50: #{_lambda_.1} parent=5 // pred_check_branch
        %656 = sbr.rel (%p654) target = $region52
      $region51: #{_lambda_.1} parent=5 // pred_region
        // Predicated region
        $region53: #{_lambda_.1} parent=51 // pred_check
          %p657 = pneg %p177
        $region54: #{_lambda_.1} parent=51 // pred_check_branch
          %659 = sbr.rel (%p657) target = $region56
        $region55: #{_lambda_.1} parent=51 // pred_region
          %s660 = sand.u32 %s31, 1
          %s661 = scalar_lea.sflag [#allocation4], %s660
          %s662 = sand.u32 %s167, 1
          %s663 = smul.addr %s662, 2
          %s664 = scalar_lea.vmem [#allocation11], %s663
          %666 = vsyncadd %s661, 0
          %s667 = smul.addr %s31, 2
          %s668 = scalar_lea.hbm %s6, %s667
          %s670 = sshll.u32 %s668, 4
          %s671 = int_to_ptr.hbm [resolvable:$true] %s670
          %s672 = sshll.u32 %s664, 4
          %s673 = int_to_ptr.vmem [resolvable:$true] %s672
          %675 = dma.hbm_to_vmem [thread:$0]  %s671, 32, %s673, %s661
        $region56: #{_lambda_.1} parent=51 // pred_fallthru
          _
        // Predicated region
        $region57: #{_lambda_.1} parent=51 // pred_check
          %p676 = pneg %p203
        $region58: #{_lambda_.1} parent=51 // pred_check_branch
          %678 = sbr.rel (%p676) target = $region60
        $region59: #{_lambda_.1} parent=51 // pred_region
          %s679 = sand.u32 %s31, 1
          %s680 = scalar_lea.sflag [#allocation4], %s679
          %s681 = sand.u32 %s193, 1
          %s682 = smul.addr %s681, 2
          %s683 = scalar_lea.vmem [#allocation12], %s682
          %685 = vsyncadd %s680, 0
          %s686 = smul.addr %s31, 2
          %s687 = scalar_lea.hbm %s7, %s686
          %s689 = sshll.u32 %s687, 4
          %s690 = int_to_ptr.hbm [resolvable:$true] %s689
          %s691 = sshll.u32 %s683, 4
          %s692 = int_to_ptr.vmem [resolvable:$true] %s691
          %694 = dma.hbm_to_vmem [thread:$0]  %s690, 32, %s692, %s680
        $region60: #{_lambda_.1} parent=51 // pred_fallthru
          _
        // Predicated region
        $region61: #{_lambda_.1} parent=51 // pred_check
          %p695 = pneg %p229
        $region62: #{_lambda_.1} parent=51 // pred_check_branch
          %697 = sbr.rel (%p695) target = $region64
        $region63: #{_lambda_.1} parent=51 // pred_region
          %p698 = scmp.lt.s32.totalorder %s31, 1
          %s699 = scalar_select %p698, %s31, 1
          %s700 = smul.addr %s699, 192
          %s701 = smul.addr %s700, 4
          %s702 = scalar_lea.vmem %s8, %s701
        $region64: #{_lambda_.1} parent=51 // pred_fallthru
          _
        // Predicated region
        $region65: #{_lambda_.1} parent=51 // pred_check
          %p703 = pneg %p255
        $region66: #{_lambda_.1} parent=51 // pred_check_branch
          %705 = sbr.rel (%p703) target = $region68
        $region67: #{_lambda_.1} parent=51 // pred_region
          %s706 = sand.u32 %s31, 1
          %s707 = scalar_lea.sflag [#allocation4], %s706
          %s708 = sand.u32 %s245, 1
          %s709 = smul.addr %s708, 6
          %s710 = scalar_lea.vmem [#allocation13], %s709
          %712 = vsyncadd %s707, 0
          %s713 = smul.addr %s31, 6
          %s714 = scalar_lea.hbm %s9, %s713
          %s716 = sshll.u32 %s714, 4
          %s717 = int_to_ptr.hbm [resolvable:$true] %s716
          %s718 = sshll.u32 %s710, 4
          %s719 = int_to_ptr.vmem [resolvable:$true] %s718
          %721 = dma.hbm_to_vmem [thread:$0]  %s717, 96, %s719, %s707
        $region68: #{_lambda_.1} parent=51 // pred_fallthru
          _
        // Predicated region
        $region69: #{_lambda_.1} parent=51 // pred_check
          %p722 = pneg %p281
        $region70: #{_lambda_.1} parent=51 // pred_check_branch
          %724 = sbr.rel (%p722) target = $region72
        $region71: #{_lambda_.1} parent=51 // pred_region
          %s725 = sand.u32 %s31, 1
          %s726 = scalar_lea.sflag [#allocation4], %s725
          %s727 = sand.u32 %s271, 1
          %s728 = smul.addr %s727, 256
          %s729 = scalar_lea.vmem [#allocation14], %s728
          %731 = vsyncadd %s726, 0
          %s732 = smul.addr %s31, 64
          %s733 = smul.addr %s732, 4
          %s734 = scalar_lea.hbm %s10, %s733
          %s735 = sshll.u32 %s734, 4
          %s736 = int_to_ptr.hbm [resolvable:$true] %s735
          %s737 = sshll.u32 %s729, 4
          %s738 = int_to_ptr.vmem [resolvable:$true] %s737
          %743 = dma.hbm_to_vmem [thread:$0]  %s736, 4096, %s738, %s726, 128, 128, 8
        $region72: #{_lambda_.1} parent=51 // pred_fallthru
          _
        // Predicated region
        $region73: #{_lambda_.1} parent=51 // pred_check
          %p744 = pneg %p307
        $region74: #{_lambda_.1} parent=51 // pred_check_branch
          %746 = sbr.rel (%p744) target = $region76
        $region75: #{_lambda_.1} parent=51 // pred_region
          %s747 = sand.u32 %s31, 1
          %s748 = scalar_lea.sflag [#allocation4], %s747
          %s749 = sand.u32 %s297, 1
          %s750 = smul.addr %s749, 2
          %s751 = scalar_lea.vmem [#allocation15], %s750
          %753 = vsyncadd %s748, 0
          %s754 = smul.addr %s31, 2
          %s755 = scalar_lea.hbm %s11, %s754
          %s757 = sshll.u32 %s755, 4
          %s758 = int_to_ptr.hbm [resolvable:$true] %s757
          %s759 = sshll.u32 %s751, 4
          %s760 = int_to_ptr.vmem [resolvable:$true] %s759
          %762 = dma.hbm_to_vmem [thread:$0]  %s758, 32, %s760, %s748
        $region76: #{_lambda_.1} parent=51 // pred_fallthru
          _
        // Predicated region
        $region77: #{_lambda_.1} parent=51 // pred_check
          %p763 = pneg %p333
        $region78: #{_lambda_.1} parent=51 // pred_check_branch
          %765 = sbr.rel (%p763) target = $region80
        $region79: #{_lambda_.1} parent=51 // pred_region
          %s766 = sand.u32 %s31, 1
          %s767 = scalar_lea.sflag [#allocation4], %s766
          %s768 = sand.u32 %s323, 1
          %s769 = smul.addr %s768, 2
          %s770 = scalar_lea.vmem [#allocation16], %s769
          %772 = vsyncadd %s767, 0
          %s773 = smul.addr %s31, 2
          %s774 = scalar_lea.hbm %s12, %s773
          %s776 = sshll.u32 %s774, 4
          %s777 = int_to_ptr.hbm [resolvable:$true] %s776
          %s778 = sshll.u32 %s770, 4
          %s779 = int_to_ptr.vmem [resolvable:$true] %s778
          %781 = dma.hbm_to_vmem [thread:$0]  %s777, 32, %s779, %s767
        $region80: #{_lambda_.1} parent=51 // pred_fallthru
          _
        // Predicated region
        $region81: #{_lambda_.1} parent=51 // pred_check
          %p782 = pneg %p359
        $region82: #{_lambda_.1} parent=51 // pred_check_branch
          %784 = sbr.rel (%p782) target = $region84
        $region83: #{_lambda_.1} parent=51 // pred_region
          %s785 = sand.u32 %s31, 1
          %s786 = scalar_lea.sflag [#allocation4], %s785
          %s787 = sand.u32 %s349, 1
          %s788 = smul.addr %s787, 2
          %s789 = scalar_lea.vmem [#allocation17], %s788
          %791 = vsyncadd %s786, 0
          %s792 = smul.addr %s31, 2
          %s793 = scalar_lea.hbm %s13, %s792
          %s795 = sshll.u32 %s793, 4
          %s796 = int_to_ptr.hbm [resolvable:$true] %s795
          %s797 = sshll.u32 %s789, 4
          %s798 = int_to_ptr.vmem [resolvable:$true] %s797
          %800 = dma.hbm_to_vmem [thread:$0]  %s796, 32, %s798, %s786
        $region84: #{_lambda_.1} parent=51 // pred_fallthru
          _
        // Predicated region
        $region85: #{_lambda_.1} parent=51 // pred_check
          %p801 = pneg %p385
        $region86: #{_lambda_.1} parent=51 // pred_check_branch
          %803 = sbr.rel (%p801) target = $region88
        $region87: #{_lambda_.1} parent=51 // pred_region
          %s804 = sand.u32 %s31, 1
          %s805 = scalar_lea.sflag [#allocation4], %s804
          %s806 = sand.u32 %s375, 1
          %s807 = smul.addr %s806, 1024
          %s808 = scalar_lea.vmem [#allocation18], %s807
          %810 = vsyncadd %s805, 0
          %s811 = smul.addr %s31, 256
          %s812 = smul.addr %s811, 4
          %s813 = scalar_lea.hbm %s14, %s812
          %s814 = sshll.u32 %s813, 4
          %s815 = int_to_ptr.hbm [resolvable:$true] %s814
          %s816 = sshll.u32 %s808, 4
          %s817 = int_to_ptr.vmem [resolvable:$true] %s816
          %822 = dma.hbm_to_vmem [thread:$0]  %s815, 16384, %s817, %s805, 512, 512, 32
        $region88: #{_lambda_.1} parent=51 // pred_fallthru
          _
        // Predicated region
        $region89: #{_lambda_.1} parent=51 // pred_check
          %p823 = pneg %p411
        $region90: #{_lambda_.1} parent=51 // pred_check_branch
          %825 = sbr.rel (%p823) target = $region92
        $region91: #{_lambda_.1} parent=51 // pred_region
          %p826 = scmp.lt.s32.totalorder %s31, 1
          %s827 = scalar_select %p826, %s31, 1
          %s828 = smul.addr %s827, 8
          %s829 = scalar_lea.vmem %s15, %s828
        $region92: #{_lambda_.1} parent=51 // pred_fallthru
          _
        // Predicated region
        $region93: #{_lambda_.1} parent=51 // pred_check
          %p830 = pneg %p437
        $region94: #{_lambda_.1} parent=51 // pred_check_branch
          %832 = sbr.rel (%p830) target = $region96
        $region95: #{_lambda_.1} parent=51 // pred_region
          %s833 = sand.u32 %s31, 1
          %s834 = scalar_lea.sflag [#allocation4], %s833
          %s835 = sand.u32 %s427, 1
          %s836 = smul.addr %s835, 1024
          %s837 = scalar_lea.vmem [#allocation19], %s836
          %839 = vsyncadd %s834, 0
          %s840 = smul.addr %s31, 256
          %s841 = smul.addr %s840, 4
          %s842 = scalar_lea.hbm %s16, %s841
          %s843 = sshll.u32 %s842, 4
          %s844 = int_to_ptr.hbm [resolvable:$true] %s843
          %s845 = sshll.u32 %s837, 4
          %s846 = int_to_ptr.vmem [resolvable:$true] %s845
          %851 = dma.hbm_to_vmem [thread:$0]  %s844, 16384, %s846, %s834, 128, 128, 8
        $region96: #{_lambda_.1} parent=51 // pred_fallthru
          _
        // Predicated region
        $region97: #{_lambda_.1} parent=51 // pred_check
          %p852 = pneg %p463
        $region98: #{_lambda_.1} parent=51 // pred_check_branch
          %854 = sbr.rel (%p852) target = $region100
        $region99: #{_lambda_.1} parent=51 // pred_region
          %s855 = sand.u32 %s31, 1
          %s856 = scalar_lea.sflag [#allocation4], %s855
          %s857 = sand.u32 %s453, 1
          %s858 = smul.addr %s857, 2
          %s859 = scalar_lea.vmem [#allocation20], %s858
          %861 = vsyncadd %s856, 0
          %s862 = smul.addr %s31, 2
          %s863 = scalar_lea.hbm %s17, %s862
          %s865 = sshll.u32 %s863, 4
          %s866 = int_to_ptr.hbm [resolvable:$true] %s865
          %s867 = sshll.u32 %s859, 4
          %s868 = int_to_ptr.vmem [resolvable:$true] %s867
          %870 = dma.hbm_to_vmem [thread:$0]  %s866, 32, %s868, %s856
        $region100: #{_lambda_.1} parent=51 // pred_fallthru
          _
      $region52: #{_lambda_.1} parent=5 // pred_fallthru
        _
      %p871 = scmp.le.s32.totalorder 1, %s31
      %p872 = scmp.lt.s32.totalorder %s31, 3
      %p873 = pnand %p871, %p872
      %p874 = pneg %p873
      // Predicated region
      $region101: #{_lambda_.1} parent=5 // pred_check
        _
      $region102: #{_lambda_.1} parent=5 // pred_check_branch
        %876 = sbr.rel (%p873) target = $region104
      $region103: #{_lambda_.1} parent=5 // pred_region
        %s877 = ssub.s32 %s31, 1
        // Predicated region
        $region105: #{_lambda_.1} parent=103 // pred_check
          %p878 = pneg %p73
        $region106: #{_lambda_.1} parent=103 // pred_check_branch
          %880 = sbr.rel (%p878) target = $region108
        $region107: #{_lambda_.1} parent=103 // pred_region
          %882 = dma.done [#allocation4], 768
        $region108: #{_lambda_.1} parent=103 // pred_fallthru
          _
        // Predicated region
        $region109: #{_lambda_.1} parent=103 // pred_check
          %p883 = pneg %p115
        $region110: #{_lambda_.1} parent=103 // pred_check_branch
          %885 = sbr.rel (%p883) target = $region112
        $region111: #{_lambda_.1} parent=103 // pred_region
          %887 = dma.done [#allocation7], 768
        $region112: #{_lambda_.1} parent=103 // pred_fallthru
          _
        // Predicated region
        $region113: #{_lambda_.1} parent=103 // pred_check
          %p888 = pneg %p136
        $region114: #{_lambda_.1} parent=103 // pred_check_branch
          %890 = sbr.rel (%p888) target = $region116
        $region115: #{_lambda_.1} parent=103 // pred_region
          %892 = dma.done [#allocation7], 32
        $region116: #{_lambda_.1} parent=103 // pred_fallthru
          _
        // Predicated region
        $region117: #{_lambda_.1} parent=103 // pred_check
          %p893 = pneg %p157
        $region118: #{_lambda_.1} parent=103 // pred_check_branch
          %895 = sbr.rel (%p893) target = $region120
        $region119: #{_lambda_.1} parent=103 // pred_region
          %897 = dma.done [#allocation10], 32
        $region120: #{_lambda_.1} parent=103 // pred_fallthru
          _
        %s898 = sand.u32 %s36, 1
        %s899 = scalar_lea.sflag [#allocation4], %s898
        %s900 = sand.u32 %s170, 1
        %s901 = smul.addr %s900, 2
        %s902 = scalar_lea.vmem [#allocation11], %s901
        // Predicated region
        $region121: #{_lambda_.1} parent=103 // pred_check
          %p903 = pneg %p183
        $region122: #{_lambda_.1} parent=103 // pred_check_branch
          %905 = sbr.rel (%p903) target = $region124
        $region123: #{_lambda_.1} parent=103 // pred_region
          %907 = dma.done %s899, 32
        $region124: #{_lambda_.1} parent=103 // pred_fallthru
          _
        %s908 = sand.u32 %s36, 1
        %s909 = scalar_lea.sflag [#allocation4], %s908
        %s910 = sand.u32 %s196, 1
        %s911 = smul.addr %s910, 2
        %s912 = scalar_lea.vmem [#allocation12], %s911
        // Predicated region
        $region125: #{_lambda_.1} parent=103 // pred_check
          %p913 = pneg %p209
        $region126: #{_lambda_.1} parent=103 // pred_check_branch
          %915 = sbr.rel (%p913) target = $region128
        $region127: #{_lambda_.1} parent=103 // pred_region
          %917 = dma.done %s909, 32
        $region128: #{_lambda_.1} parent=103 // pred_fallthru
          _
        %s918 = sand.u32 %s36, 1
        %s919 = scalar_lea.sflag [#allocation4], %s918
        %s920 = sand.u32 %s248, 1
        %s921 = smul.addr %s920, 6
        %s922 = scalar_lea.vmem [#allocation13], %s921
        // Predicated region
        $region129: #{_lambda_.1} parent=103 // pred_check
          %p923 = pneg %p261
        $region130: #{_lambda_.1} parent=103 // pred_check_branch
          %925 = sbr.rel (%p923) target = $region132
        $region131: #{_lambda_.1} parent=103 // pred_region
          %927 = dma.done %s919, 96
        $region132: #{_lambda_.1} parent=103 // pred_fallthru
          _
        %s928 = sand.u32 %s36, 1
        %s929 = scalar_lea.sflag [#allocation4], %s928
        %s930 = sand.u32 %s274, 1
        %s931 = smul.addr %s930, 256
        %s932 = scalar_lea.vmem [#allocation14], %s931
        // Predicated region
        $region133: #{_lambda_.1} parent=103 // pred_check
          %p933 = pneg %p287
        $region134: #{_lambda_.1} parent=103 // pred_check_branch
          %935 = sbr.rel (%p933) target = $region136
        $region135: #{_lambda_.1} parent=103 // pred_region
          %937 = dma.done %s929, 4096
        $region136: #{_lambda_.1} parent=103 // pred_fallthru
          _
        %s938 = sand.u32 %s36, 1
        %s939 = scalar_lea.sflag [#allocation4], %s938
        %s940 = sand.u32 %s300, 1
        %s941 = smul.addr %s940, 2
        %s942 = scalar_lea.vmem [#allocation15], %s941
        // Predicated region
        $region137: #{_lambda_.1} parent=103 // pred_check
          %p943 = pneg %p313
        $region138: #{_lambda_.1} parent=103 // pred_check_branch
          %945 = sbr.rel (%p943) target = $region140
        $region139: #{_lambda_.1} parent=103 // pred_region
          %947 = dma.done %s939, 32
        $region140: #{_lambda_.1} parent=103 // pred_fallthru
          _
        %s948 = sand.u32 %s36, 1
        %s949 = scalar_lea.sflag [#allocation4], %s948
        %s950 = sand.u32 %s326, 1
        %s951 = smul.addr %s950, 2
        %s952 = scalar_lea.vmem [#allocation16], %s951
        // Predicated region
        $region141: #{_lambda_.1} parent=103 // pred_check
          %p953 = pneg %p339
        $region142: #{_lambda_.1} parent=103 // pred_check_branch
          %955 = sbr.rel (%p953) target = $region144
        $region143: #{_lambda_.1} parent=103 // pred_region
          %957 = dma.done %s949, 32
        $region144: #{_lambda_.1} parent=103 // pred_fallthru
          _
        %s958 = sand.u32 %s36, 1
        %s959 = scalar_lea.sflag [#allocation4], %s958
        %s960 = sand.u32 %s352, 1
        %s961 = smul.addr %s960, 2
        %s962 = scalar_lea.vmem [#allocation17], %s961
        // Predicated region
        $region145: #{_lambda_.1} parent=103 // pred_check
          %p963 = pneg %p365
        $region146: #{_lambda_.1} parent=103 // pred_check_branch
          %965 = sbr.rel (%p963) target = $region148
        $region147: #{_lambda_.1} parent=103 // pred_region
          %967 = dma.done %s959, 32
        $region148: #{_lambda_.1} parent=103 // pred_fallthru
          _
        %s968 = sand.u32 %s36, 1
        %s969 = scalar_lea.sflag [#allocation4], %s968
        %s970 = sand.u32 %s378, 1
        %s971 = smul.addr %s970, 1024
        %s972 = scalar_lea.vmem [#allocation18], %s971
        // Predicated region
        $region149: #{_lambda_.1} parent=103 // pred_check
          %p973 = pneg %p391
        $region150: #{_lambda_.1} parent=103 // pred_check_branch
          %975 = sbr.rel (%p973) target = $region152
        $region151: #{_lambda_.1} parent=103 // pred_region
          %977 = dma.done %s969, 16384
        $region152: #{_lambda_.1} parent=103 // pred_fallthru
          _
        %s978 = sand.u32 %s36, 1
        %s979 = scalar_lea.sflag [#allocation4], %s978
        %s980 = sand.u32 %s430, 1
        %s981 = smul.addr %s980, 1024
        %s982 = scalar_lea.vmem [#allocation19], %s981
        // Predicated region
        $region153: #{_lambda_.1} parent=103 // pred_check
          %p983 = pneg %p443
        $region154: #{_lambda_.1} parent=103 // pred_check_branch
          %985 = sbr.rel (%p983) target = $region156
        $region155: #{_lambda_.1} parent=103 // pred_region
          %987 = dma.done %s979, 16384
        $region156: #{_lambda_.1} parent=103 // pred_fallthru
          _
        %s988 = sand.u32 %s36, 1
        %s989 = scalar_lea.sflag [#allocation4], %s988
        %s990 = sand.u32 %s456, 1
        %s991 = smul.addr %s990, 2
        %s992 = scalar_lea.vmem [#allocation20], %s991
        // Predicated region
        $region157: #{_lambda_.1} parent=103 // pred_check
          %p993 = pneg %p469
        $region158: #{_lambda_.1} parent=103 // pred_check_branch
          %995 = sbr.rel (%p993) target = $region160
        $region159: #{_lambda_.1} parent=103 // pred_region
          %997 = dma.done %s989, 32
        $region160: #{_lambda_.1} parent=103 // pred_fallthru
          _
        // Predicated region
        $region161: #{_lambda_.1} parent=103 // pred_check
          %p998 = pneg %p490
        $region162: #{_lambda_.1} parent=103 // pred_check_branch
          %1000 = sbr.rel (%p998) target = $region164
        $region163: #{_lambda_.1} parent=103 // pred_region
          %1002 = dma.done [#allocation7], 32
        $region164: #{_lambda_.1} parent=103 // pred_fallthru
          _
        // Predicated region
        $region165: #{_lambda_.1} parent=103 // pred_check
          %p1003 = pneg %p511
        $region166: #{_lambda_.1} parent=103 // pred_check_branch
          %1005 = sbr.rel (%p1003) target = $region168
        $region167: #{_lambda_.1} parent=103 // pred_region
          %1007 = dma.done [#allocation10], 32
        $region168: #{_lambda_.1} parent=103 // pred_fallthru
          _
        %p1008 = pneg %p52
        %p1009 = pneg %p49
        %p1010 = pneg %p73
        %p1011 = pneg %p70
        %p1012 = pneg %p94
        %p1013 = pneg %p91
        %p1014 = pneg %p115
        %p1015 = pneg %p112
        %p1016 = pneg %p136
        %p1017 = pneg %p133
        %p1018 = pneg %p157
        %p1019 = pneg %p154
        %s1020 = sand.u32 %s36, 1
        %s1021 = scalar_lea.sflag [#allocation4], %s1020
        %s1022 = sand.u32 %s170, 1
        %s1023 = smul.addr %s1022, 2
        %s1024 = scalar_lea.vmem [#allocation11], %s1023
        %p1025 = pneg %p183
        %p1026 = pneg %p180
        %s1027 = sand.u32 %s36, 1
        %s1028 = scalar_lea.sflag [#allocation4], %s1027
        %s1029 = sand.u32 %s196, 1
        %s1030 = smul.addr %s1029, 2
        %s1031 = scalar_lea.vmem [#allocation12], %s1030
        %p1032 = pneg %p209
        %p1033 = pneg %p206
        %p1034 = scmp.lt.s32.totalorder %s36, 1
        %s1035 = scalar_select %p1034, %s36, 1
        %s1036 = smul.addr %s1035, 192
        %s1037 = smul.addr %s1036, 4
        %s1038 = scalar_lea.vmem %s8, %s1037
        %p1039 = pneg %p235
        %p1040 = pneg %p232
        %s1041 = sand.u32 %s36, 1
        %s1042 = scalar_lea.sflag [#allocation4], %s1041
        %s1043 = sand.u32 %s248, 1
        %s1044 = smul.addr %s1043, 6
        %s1045 = scalar_lea.vmem [#allocation13], %s1044
        %p1046 = pneg %p261
        %p1047 = pneg %p258
        %s1048 = sand.u32 %s36, 1
        %s1049 = scalar_lea.sflag [#allocation4], %s1048
        %s1050 = sand.u32 %s274, 1
        %s1051 = smul.addr %s1050, 256
        %s1052 = scalar_lea.vmem [#allocation14], %s1051
        %p1053 = pneg %p287
        %p1054 = pneg %p284
        %s1055 = sand.u32 %s36, 1
        %s1056 = scalar_lea.sflag [#allocation4], %s1055
        %s1057 = sand.u32 %s300, 1
        %s1058 = smul.addr %s1057, 2
        %s1059 = scalar_lea.vmem [#allocation15], %s1058
        %p1060 = pneg %p313
        %p1061 = pneg %p310
        %s1062 = sand.u32 %s36, 1
        %s1063 = scalar_lea.sflag [#allocation4], %s1062
        %s1064 = sand.u32 %s326, 1
        %s1065 = smul.addr %s1064, 2
        %s1066 = scalar_lea.vmem [#allocation16], %s1065
        %p1067 = pneg %p339
        %p1068 = pneg %p336
        %s1069 = sand.u32 %s36, 1
        %s1070 = scalar_lea.sflag [#allocation4], %s1069
        %s1071 = sand.u32 %s352, 1
        %s1072 = smul.addr %s1071, 2
        %s1073 = scalar_lea.vmem [#allocation17], %s1072
        %p1074 = pneg %p365
        %p1075 = pneg %p362
        %s1076 = sand.u32 %s36, 1
        %s1077 = scalar_lea.sflag [#allocation4], %s1076
        %s1078 = sand.u32 %s378, 1
        %s1079 = smul.addr %s1078, 1024
        %s1080 = scalar_lea.vmem [#allocation18], %s1079
        %p1081 = pneg %p391
        %p1082 = pneg %p388
        %p1083 = scmp.lt.s32.totalorder %s36, 1
        %s1084 = scalar_select %p1083, %s36, 1
        %s1085 = smul.addr %s1084, 8
        %s1086 = scalar_lea.vmem %s15, %s1085
        %p1087 = pneg %p417
        %p1088 = pneg %p414
        %s1089 = sand.u32 %s36, 1
        %s1090 = scalar_lea.sflag [#allocation4], %s1089
        %s1091 = sand.u32 %s430, 1
        %s1092 = smul.addr %s1091, 1024
        %s1093 = scalar_lea.vmem [#allocation19], %s1092
        %p1094 = pneg %p443
        %p1095 = pneg %p440
        %s1096 = sand.u32 %s36, 1
        %s1097 = scalar_lea.sflag [#allocation4], %s1096
        %s1098 = sand.u32 %s456, 1
        %s1099 = smul.addr %s1098, 2
        %s1100 = scalar_lea.vmem [#allocation20], %s1099
        %p1101 = pneg %p469
        %p1102 = pneg %p466
        %p1103 = pneg %p490
        %p1104 = pneg %p487
        %p1105 = pneg %p511
        %p1106 = pneg %p508
        %p1107 = pneg %p532
        %p1108 = pneg %p529
        %p1109 = pneg %p553
        %p1110 = pneg %p550
        %p1111 = scmp.lt.s32.totalorder %s36, 1
        %s1112 = scalar_select %p1111, %s36, 1
        %s1113 = smul.addr %s1112, 192
        %s1114 = smul.addr %s1113, 4
        %s1115 = scalar_lea.vmem %s8, %s1114
        %p1116 = scmp.lt.s32.totalorder %s36, 1
        %s1117 = scalar_select %p1116, %s36, 1
        %s1118 = smul.addr %s1117, 8
        %s1119 = scalar_lea.vmem %s15, %s1118
        %p1121 = scmp.eq.s32.totalorder %s36, 0
        // Predicated region
        $region169: #{_lambda_.1} parent=103 // pred_check
          %p1122 = pneg %p1121
        $region170: #{_lambda_.1} parent=103 // pred_check_branch
          %1124 = sbr.rel (%p1122) target = $region172
        $region171: #{_lambda_.1} parent=103 // pred_region
          %v1125 = vld [vmem:[%s0] sm:$0xff]
          %v1126 = vld [vmem:[%s0 + $0x8] sm:$0xff]
          %v1127 = vld [vmem:[%s0 + $0x10] sm:$0xff]
          %v1128 = vld [vmem:[%s0 + $0x18] sm:$0xff]
          %v1129 = vpack.c.bf16 %v1126, %v1125
          %v1130 = vpack.c.bf16 %v1128, %v1127
          %v1131 = vld [vmem:[#allocation3] sm:$0xff]
          %v1132 = vld [vmem:[#allocation3 + $0x8] sm:$0xff]
          %v1133 = vld [vmem:[#allocation3 + $0x10] sm:$0xff]
          %v1134 = vld [vmem:[#allocation3 + $0x18] sm:$0xff]
          %v1135 = vld [vmem:[#allocation3 + $0x20] sm:$0xff]
          %v1136 = vld [vmem:[#allocation3 + $0x28] sm:$0xff]
          %v1143 = vunpack.c.l.b16 %v1131
          %v1144 = vunpack.c.h.b16 %v1131
          %v1145 = vunpack.c.l.b16 %v1132
          %v1146 = vunpack.c.h.b16 %v1132
          %v1147 = vunpack.c.l.b16 %v1133
          %v1148 = vunpack.c.h.b16 %v1133
          %v1149 = vunpack.c.l.b16 %v1134
          %v1150 = vunpack.c.h.b16 %v1134
          %v1151 = vunpack.c.l.b16 %v1135
          %v1152 = vunpack.c.h.b16 %v1135
          %v1153 = vunpack.c.l.b16 %v1136
          %v1154 = vunpack.c.h.b16 %v1136
          %v1155 = vpack.c.b16 %v1145, %v1143
          %v1156 = vpack.c.b16 %v1146, %v1144
          %v1157 = vpack.c.b16 %v1149, %v1147
          %v1158 = vpack.c.b16 %v1150, %v1148
          %v1159 = vpack.c.b16 %v1153, %v1151
          %v1160 = vpack.c.b16 %v1154, %v1152
          %vm1167 = vcmask 392192
          %v1169 = vsel %vm1167, %v1129, 0
          %v1172 = vsel %vm1167, %v1130, 0
          %1174 = vmatpush.bf16.msra.mxu0 0
          %1175 = vmatpush.bf16.msra.mxu0 0
          %1176 = vmatpush.bf16.msra.mxu0 0
          %1177 = vmatpush.bf16.msra.mxu0 0
          %1178 = vmatpush.bf16.msra.mxu0 0
          %1179 = vmatpush.bf16.msra.mxu0 %v1159
          %1180 = vmatpush.bf16.msra.mxu0 %v1157
          %1181 = vmatpush.bf16.msra.mxu0 %v1155
          %1182 = vmatmul.bf16.gmra.mxu0 %v1169
          %v1183 = vpop.f32.mrf.mxu0
          %v1184 = vadd.f32 0.0, %v1183
          %v1185 = vpop.f32.mrf.mxu0
          %v1186 = vadd.f32 0.0, %v1185
          %1187 = vmatmul.bf16.gmra.mxu0 %v1172
          %v1188 = vpop.f32.mrf.mxu0
          %v1189 = vadd.f32 0.0, %v1188
          %v1190 = vpop.f32.mrf.mxu0
          %v1191 = vadd.f32 0.0, %v1190
          %1192 = vdwg.mxu0
          %1193 = vmatpush.bf16.msra.mxu0 0
          %1194 = vmatpush.bf16.msra.mxu0 0
          %1195 = vmatpush.bf16.msra.mxu0 0
          %1196 = vmatpush.bf16.msra.mxu0 0
          %1197 = vmatpush.bf16.msra.mxu0 0
          %1198 = vmatpush.bf16.msra.mxu0 %v1160
          %1199 = vmatpush.bf16.msra.mxu0 %v1158
          %1200 = vmatpush.bf16.msra.mxu0 %v1156
          %1201 = vmatmul.bf16.gmra.mxu0 %v1169
          %v1202 = vpop.f32.mrf.mxu0
          %v1203 = vadd.f32 0.0, %v1202
          %v1204 = vpop.f32.mrf.mxu0
          %v1205 = vadd.f32 0.0, %v1204
          %1206 = vmatmul.bf16.gmra.mxu0 %v1172
          %v1207 = vpop.f32.mrf.mxu0
          %v1208 = vadd.f32 0.0, %v1207
          %v1209 = vpop.f32.mrf.mxu0
          %v1210 = vadd.f32 0.0, %v1209
          %1211 = vdwg.mxu0
          %v1212 = vld [vmem:[#allocation8] sm:$0x3]
          %v1213 = vld [vmem:[#allocation9] sm:$0x3]
          %v1214 = vld [vmem:[%s2] sm:$0x3]
          %v1215 = vld [vmem:[#allocation6] ss:$8 sm:$0x3]
          %v1216 = vadd.f32 %v1214, %v1215
          %v1217 = vld [vmem:[#allocation6] sm:$0xfe]
          %v1218 = vld [vmem:[#allocation6 + $0x8] sm:$0xfe]
          %v1219 = vld [vmem:[#allocation6 + $0x10] sm:$0xff]
          %v1220 = vld [vmem:[#allocation6 + $0x18] sm:$0xff]
          %v1221 = vld [vmem:[#allocation6 + $0x20] sm:$0x1]
          %v1222 = vld [vmem:[#allocation6 + $0x28] sm:$0x1]
          %vm1229 = vcmask 1046528
          %v1230 = vrot.slane %v1217, 1
          %v1231 = vrot.slane %v1219, 1
          %v1232 = vsel %vm1229, %v1230, %v1231
          %v1233 = vrot.slane %v1218, 1
          %v1234 = vrot.slane %v1220, 1
          %v1235 = vsel %vm1229, %v1233, %v1234
          %v1236 = vrot.slane %v1221, 1
          %v1237 = vsel %vm1229, %v1231, %v1236
          %v1238 = vrot.slane %v1222, 1
          %v1239 = vsel %vm1229, %v1234, %v1238
          %v1244 = vadd.f32 %v1184, %v1232
          %v1245 = vadd.f32 %v1203, %v1235
          %v1246 = vadd.f32 %v1186, %v1237
          %v1247 = vadd.f32 %v1205, %v1239
          %v1249 = vperm.slane %v1216, 0
          %v1250 = vperm.slane %v1216, 1
          %v1253 = vadd.f32 %v1244, %v1245
          %1254 = vadd.xlane.f32.xlu0 %v1253
          %v1255 = vpop.xlane.xlu0 %1254
          %v1256 = vadd.f32 %v1246, %v1247
          %1257 = vadd.xlane.f32.xlu0 %v1256
          %v1258 = vpop.xlane.xlu0 %1257
          %vm1259 = vcmask 1040384
          %v1260 = vsel %vm1259, %v1249, 0.0
          %v1261 = vsel %vm1259, %v1250, 0.0
          %v1262 = vadd.f32 %v1260, %v1261
          %1263 = vadd.xlane.f32.xlu0 %v1262
          %v1264 = vpop.xlane.xlu0 %1263
          %v1265 = vrcp.pop 256.0
          %v1266 = vmul.f32 256.0, %v1265
          %v1267 = vsub.f32 1.0, %v1266
          %v1268 = vmul.f32 %v1265, %v1267
          %v1269 = vadd.f32 %v1265, %v1268
          %vm1270 = vweird.f32 %v1265
          %v1271 = vsel %vm1270, %v1265, %v1269
          %v1272 = vmul.f32 %v1255, %v1271
          %v1273 = vmul.f32 %v1258, %v1271
          %v1274 = vmul.f32 %v1264, %v1271
          %v1275 = vsub.f32 %v1244, %v1272
          %v1276 = vsub.f32 %v1245, %v1272
          %v1277 = vsub.f32 %v1246, %v1273
          %v1278 = vsub.f32 %v1247, %v1273
          %v1279 = vsub.f32 %v1249, %v1274
          %v1280 = vsub.f32 %v1250, %v1274
          %v1281 = vmul.f32 %v1275, %v1275
          %v1282 = vmul.f32 %v1276, %v1276
          %v1283 = vmul.f32 %v1277, %v1277
          %v1284 = vmul.f32 %v1278, %v1278
          %v1285 = vmul.f32 %v1279, %v1279
          %v1286 = vmul.f32 %v1280, %v1280
          %v1287 = vadd.f32 %v1281, %v1282
          %1288 = vadd.xlane.f32.xlu0 %v1287
          %v1289 = vpop.xlane.xlu0 %1288
          %v1290 = vadd.f32 %v1283, %v1284
          %1291 = vadd.xlane.f32.xlu0 %v1290
          %v1292 = vpop.xlane.xlu0 %1291
          %v1293 = vsel %vm1259, %v1285, 0.0
          %v1294 = vsel %vm1259, %v1286, 0.0
          %v1295 = vadd.f32 %v1293, %v1294
          %1296 = vadd.xlane.f32.xlu0 %v1295
          %v1297 = vpop.xlane.xlu0 %1296
          %v1298 = vmul.f32 %v1289, %v1271
          %v1299 = vmul.f32 %v1292, %v1271
          %v1300 = vmul.f32 %v1297, %v1271
          %v1301 = vadd.f32 %v1298, 1e-05
          %v1302 = vadd.f32 %v1299, 1e-05
          %v1303 = vadd.f32 %v1300, 1e-05
          %v1304 = vrsqrt.pop %v1301
          %v1305 = vmul.f32 %v1304, %v1301
          %v1306 = vmul.f32 %v1305, %v1304
          %v1307 = vmul.f32 0.5, %v1306
          %v1308 = vsub.f32 1.5, %v1307
          %v1309 = vmul.f32 %v1304, %v1308
          %vm1310 = vweird.f32 %v1301
          %vm1311 = vweird.f32 %v1304
          %vm1312 = vmor %vm1310, %vm1311
          %v1313 = vsel %vm1312, %v1304, %v1309
          %v1314 = vrsqrt.pop %v1302
          %v1315 = vmul.f32 %v1314, %v1302
          %v1316 = vmul.f32 %v1315, %v1314
          %v1317 = vmul.f32 0.5, %v1316
          %v1318 = vsub.f32 1.5, %v1317
          %v1319 = vmul.f32 %v1314, %v1318
          %vm1320 = vweird.f32 %v1302
          %vm1321 = vweird.f32 %v1314
          %vm1322 = vmor %vm1320, %vm1321
          %v1323 = vsel %vm1322, %v1314, %v1319
          %v1324 = vrsqrt.pop %v1303
          %v1325 = vmul.f32 %v1324, %v1303
          %v1326 = vmul.f32 %v1325, %v1324
          %v1327 = vmul.f32 0.5, %v1326
          %v1328 = vsub.f32 1.5, %v1327
          %v1329 = vmul.f32 %v1324, %v1328
          %vm1330 = vweird.f32 %v1303
          %vm1331 = vweird.f32 %v1324
          %vm1332 = vmor %vm1330, %vm1331
          %v1333 = vsel %vm1332, %v1324, %v1329
          %v1334 = vmul.f32 %v1275, %v1313
          %v1335 = vmul.f32 %v1276, %v1313
          %v1336 = vmul.f32 %v1277, %v1323
          %v1337 = vmul.f32 %v1278, %v1323
          %v1338 = vmul.f32 %v1279, %v1333
          %v1339 = vmul.f32 %v1280, %v1333
          %v1341 = vperm.slane %v1212, 0
          %v1342 = vperm.slane %v1212, 1
          %v1345 = vmul.f32 %v1334, %v1341
          %v1346 = vmul.f32 %v1335, %v1342
          %v1347 = vmul.f32 %v1336, %v1341
          %v1348 = vmul.f32 %v1337, %v1342
          %v1349 = vmul.f32 %v1338, %v1341
          %v1350 = vmul.f32 %v1339, %v1342
          %v1352 = vperm.slane %v1213, 0
          %v1353 = vperm.slane %v1213, 1
          %v1356 = vadd.f32 %v1345, %v1352
          %v1357 = vadd.f32 %v1346, %v1353
          %v1358 = vadd.f32 %v1347, %v1352
          %v1359 = vadd.f32 %v1348, %v1353
          %v1360 = vadd.f32 %v1349, %v1352
          %v1361 = vadd.f32 %v1350, %v1353
          %v1362 = vsel %vm1259, %v1360, 0.0
          %v1363 = vsel %vm1259, %v1361, 0.0
          %v1364 = vadd.f32 %v1189, %v1232
          %v1365 = vadd.f32 %v1208, %v1235
          %v1366 = vadd.f32 %v1191, %v1237
          %v1367 = vadd.f32 %v1210, %v1239
          %v1368 = vadd.f32 %v1364, %v1365
          %1369 = vadd.xlane.f32.xlu0 %v1368
          %v1370 = vpop.xlane.xlu0 %1369
          %v1371 = vadd.f32 %v1366, %v1367
          %1372 = vadd.xlane.f32.xlu0 %v1371
          %v1373 = vpop.xlane.xlu0 %1372
          %v1374 = vmul.f32 %v1370, %v1271
          %v1375 = vmul.f32 %v1373, %v1271
          %v1376 = vsub.f32 %v1364, %v1374
          %v1377 = vsub.f32 %v1365, %v1374
          %v1378 = vsub.f32 %v1366, %v1375
          %v1379 = vsub.f32 %v1367, %v1375
          %v1380 = vmul.f32 %v1376, %v1376
          %v1381 = vmul.f32 %v1377, %v1377
          %v1382 = vmul.f32 %v1378, %v1378
          %v1383 = vmul.f32 %v1379, %v1379
          %v1384 = vadd.f32 %v1380, %v1381
          %1385 = vadd.xlane.f32.xlu0 %v1384
          %v1386 = vpop.xlane.xlu0 %1385
          %v1387 = vadd.f32 %v1382, %v1383
          %1388 = vadd.xlane.f32.xlu0 %v1387
          %v1389 = vpop.xlane.xlu0 %1388
          %v1390 = vmul.f32 %v1386, %v1271
          %v1391 = vmul.f32 %v1389, %v1271
          %v1392 = vadd.f32 %v1390, 1e-05
          %v1393 = vadd.f32 %v1391, 1e-05
          %v1394 = vrsqrt.pop %v1392
          %v1395 = vmul.f32 %v1394, %v1392
          %v1396 = vmul.f32 %v1395, %v1394
          %v1397 = vmul.f32 0.5, %v1396
          %v1398 = vsub.f32 1.5, %v1397
          %v1399 = vmul.f32 %v1394, %v1398
          %vm1400 = vweird.f32 %v1392
          %vm1401 = vweird.f32 %v1394
          %vm1402 = vmor %vm1400, %vm1401
          %v1403 = vsel %vm1402, %v1394, %v1399
          %v1404 = vrsqrt.pop %v1393
          %v1405 = vmul.f32 %v1404, %v1393
          %v1406 = vmul.f32 %v1405, %v1404
          %v1407 = vmul.f32 0.5, %v1406
          %v1408 = vsub.f32 1.5, %v1407
          %v1409 = vmul.f32 %v1404, %v1408
          %vm1410 = vweird.f32 %v1393
          %vm1411 = vweird.f32 %v1404
          %vm1412 = vmor %vm1410, %vm1411
          %v1413 = vsel %vm1412, %v1404, %v1409
          %v1414 = vmul.f32 %v1376, %v1403
          %v1415 = vmul.f32 %v1377, %v1403
          %v1416 = vmul.f32 %v1378, %v1413
          %v1417 = vmul.f32 %v1379, %v1413
          %v1418 = vmul.f32 %v1414, %v1341
          %v1419 = vmul.f32 %v1415, %v1342
          %v1420 = vmul.f32 %v1416, %v1341
          %v1421 = vmul.f32 %v1417, %v1342
          %v1422 = vadd.f32 %v1418, %v1352
          %v1423 = vadd.f32 %v1419, %v1353
          %v1424 = vadd.f32 %v1420, %v1352
          %v1425 = vadd.f32 %v1421, %v1353
          %1426 = vst [vmem:[#allocation2] sm:$0xff] %v1356
          %1427 = vst [vmem:[#allocation2 + $0x8] sm:$0xff] %v1357
          %1428 = vst [vmem:[#allocation2 + $0x10] sm:$0xff] %v1358
          %1429 = vst [vmem:[#allocation2 + $0x18] sm:$0xff] %v1359
          %1430 = vst [vmem:[#allocation2 + $0x20] sm:$0xff] %v1362
          %1431 = vst [vmem:[#allocation2 + $0x28] sm:$0xff] %v1363
          %1432 = vst [vmem:[#allocation2 + $0x30] sm:$0xff] %v1422
          %1433 = vst [vmem:[#allocation2 + $0x38] sm:$0xff] %v1423
          %1434 = vst [vmem:[#allocation2 + $0x40] sm:$0xff] %v1424
          %1435 = vst [vmem:[#allocation2 + $0x48] sm:$0xff] %v1425
          %1436 = vst [vmem:[#allocation2 + $0x50] sm:$0xff] %v1362
          %1437 = vst [vmem:[#allocation2 + $0x58] sm:$0xff] %v1363
        $region172: #{_lambda_.1} parent=103 // pred_fallthru
          _
        %v1438 = vld [vmem:[#allocation2] sm:$0xff]
        %v1439 = vld [vmem:[#allocation2 + $0x8] sm:$0xff]
        %v1440 = vld [vmem:[#allocation2 + $0x10] sm:$0xff]
        %v1441 = vld [vmem:[#allocation2 + $0x18] sm:$0xff]
        %v1442 = vld [vmem:[#allocation2 + $0x20] sm:$0xff]
        %v1443 = vld [vmem:[#allocation2 + $0x28] sm:$0xff]
        %v1444 = vld [vmem:[#allocation2 + $0x30] sm:$0xff]
        %v1445 = vld [vmem:[#allocation2 + $0x38] sm:$0xff]
        %v1446 = vld [vmem:[#allocation2 + $0x40] sm:$0xff]
        %v1447 = vld [vmem:[#allocation2 + $0x48] sm:$0xff]
        %v1448 = vld [vmem:[#allocation2 + $0x50] sm:$0xff]
        %v1449 = vld [vmem:[#allocation2 + $0x58] sm:$0xff]
        %v1450 = vlaneseq
        %v1451 = vand.u32 %v1450, 127
        %vm1452 = vcmp.ge.s32.totalorder %v1451, 17
        %v1453 = vsel %vm1452, -1e+30, 0.0
        %v1454 = vld [vmem:[%s902] sm:$0x3]
        %v1455 = vld [vmem:[%s912] sm:$0x3]
        %v1456 = vadd.f32 %v1438, %v1439
        %1457 = vadd.xlane.f32.xlu0 %v1456
        %v1458 = vpop.xlane.xlu0 %1457
        %v1459 = vadd.f32 %v1440, %v1441
        %1460 = vadd.xlane.f32.xlu0 %v1459
        %v1461 = vpop.xlane.xlu0 %1460
        %v1462 = vadd.f32 %v1442, %v1443
        %1463 = vadd.xlane.f32.xlu0 %v1462
        %v1464 = vpop.xlane.xlu0 %1463
        %v1465 = vadd.f32 %v1444, %v1445
        %1466 = vadd.xlane.f32.xlu0 %v1465
        %v1467 = vpop.xlane.xlu0 %1466
        %v1468 = vadd.f32 %v1446, %v1447
        %1469 = vadd.xlane.f32.xlu0 %v1468
        %v1470 = vpop.xlane.xlu0 %1469
        %v1471 = vadd.f32 %v1448, %v1449
        %1472 = vadd.xlane.f32.xlu0 %v1471
        %v1473 = vpop.xlane.xlu0 %1472
        %v1474 = vrcp.pop 256.0
        %v1475 = vmul.f32 256.0, %v1474
        %v1476 = vsub.f32 1.0, %v1475
        %v1477 = vmul.f32 %v1474, %v1476
        %v1478 = vadd.f32 %v1474, %v1477
        %vm1479 = vweird.f32 %v1474
        %v1480 = vsel %vm1479, %v1474, %v1478
        %v1481 = vmul.f32 %v1458, %v1480
        %v1482 = vmul.f32 %v1461, %v1480
        %v1483 = vmul.f32 %v1464, %v1480
        %v1484 = vmul.f32 %v1467, %v1480
        %v1485 = vmul.f32 %v1470, %v1480
        %v1486 = vmul.f32 %v1473, %v1480
        %v1487 = vsub.f32 %v1438, %v1481
        %v1488 = vsub.f32 %v1439, %v1481
        %v1489 = vsub.f32 %v1440, %v1482
        %v1490 = vsub.f32 %v1441, %v1482
        %v1491 = vsub.f32 %v1442, %v1483
        %v1492 = vsub.f32 %v1443, %v1483
        %v1493 = vsub.f32 %v1444, %v1484
        %v1494 = vsub.f32 %v1445, %v1484
        %v1495 = vsub.f32 %v1446, %v1485
        %v1496 = vsub.f32 %v1447, %v1485
        %v1497 = vsub.f32 %v1448, %v1486
        %v1498 = vsub.f32 %v1449, %v1486
        %v1499 = vmul.f32 %v1487, %v1487
        %v1500 = vmul.f32 %v1488, %v1488
        %v1501 = vmul.f32 %v1489, %v1489
        %v1502 = vmul.f32 %v1490, %v1490
        %v1503 = vmul.f32 %v1491, %v1491
        %v1504 = vmul.f32 %v1492, %v1492
        %v1505 = vmul.f32 %v1493, %v1493
        %v1506 = vmul.f32 %v1494, %v1494
        %v1507 = vmul.f32 %v1495, %v1495
        %v1508 = vmul.f32 %v1496, %v1496
        %v1509 = vmul.f32 %v1497, %v1497
        %v1510 = vmul.f32 %v1498, %v1498
        %v1511 = vadd.f32 %v1499, %v1500
        %1512 = vadd.xlane.f32.xlu0 %v1511
        %v1513 = vpop.xlane.xlu0 %1512
        %v1514 = vadd.f32 %v1501, %v1502
        %1515 = vadd.xlane.f32.xlu0 %v1514
        %v1516 = vpop.xlane.xlu0 %1515
        %v1517 = vadd.f32 %v1503, %v1504
        %1518 = vadd.xlane.f32.xlu0 %v1517
        %v1519 = vpop.xlane.xlu0 %1518
        %v1520 = vadd.f32 %v1505, %v1506
        %1521 = vadd.xlane.f32.xlu0 %v1520
        %v1522 = vpop.xlane.xlu0 %1521
        %v1523 = vadd.f32 %v1507, %v1508
        %1524 = vadd.xlane.f32.xlu0 %v1523
        %v1525 = vpop.xlane.xlu0 %1524
        %v1526 = vadd.f32 %v1509, %v1510
        %1527 = vadd.xlane.f32.xlu0 %v1526
        %v1528 = vpop.xlane.xlu0 %1527
        %v1529 = vmul.f32 %v1513, %v1480
        %v1530 = vmul.f32 %v1516, %v1480
        %v1531 = vmul.f32 %v1519, %v1480
        %v1532 = vmul.f32 %v1522, %v1480
        %v1533 = vmul.f32 %v1525, %v1480
        %v1534 = vmul.f32 %v1528, %v1480
        %v1535 = vadd.f32 %v1529, 1e-05
        %v1536 = vadd.f32 %v1530, 1e-05
        %v1537 = vadd.f32 %v1531, 1e-05
        %v1538 = vadd.f32 %v1532, 1e-05
        %v1539 = vadd.f32 %v1533, 1e-05
        %v1540 = vadd.f32 %v1534, 1e-05
        %v1541 = vrsqrt.pop %v1535
        %v1542 = vmul.f32 %v1541, %v1535
        %v1543 = vmul.f32 %v1542, %v1541
        %v1544 = vmul.f32 0.5, %v1543
        %v1545 = vsub.f32 1.5, %v1544
        %v1546 = vmul.f32 %v1541, %v1545
        %vm1547 = vweird.f32 %v1535
        %vm1548 = vweird.f32 %v1541
        %vm1549 = vmor %vm1547, %vm1548
        %v1550 = vsel %vm1549, %v1541, %v1546
        %v1551 = vrsqrt.pop %v1536
        %v1552 = vmul.f32 %v1551, %v1536
        %v1553 = vmul.f32 %v1552, %v1551
        %v1554 = vmul.f32 0.5, %v1553
        %v1555 = vsub.f32 1.5, %v1554
        %v1556 = vmul.f32 %v1551, %v1555
        %vm1557 = vweird.f32 %v1536
        %vm1558 = vweird.f32 %v1551
        %vm1559 = vmor %vm1557, %vm1558
        %v1560 = vsel %vm1559, %v1551, %v1556
        %v1561 = vrsqrt.pop %v1537
        %v1562 = vmul.f32 %v1561, %v1537
        %v1563 = vmul.f32 %v1562, %v1561
        %v1564 = vmul.f32 0.5, %v1563
        %v1565 = vsub.f32 1.5, %v1564
        %v1566 = vmul.f32 %v1561, %v1565
        %vm1567 = vweird.f32 %v1537
        %vm1568 = vweird.f32 %v1561
        %vm1569 = vmor %vm1567, %vm1568
        %v1570 = vsel %vm1569, %v1561, %v1566
        %v1571 = vrsqrt.pop %v1538
        %v1572 = vmul.f32 %v1571, %v1538
        %v1573 = vmul.f32 %v1572, %v1571
        %v1574 = vmul.f32 0.5, %v1573
        %v1575 = vsub.f32 1.5, %v1574
        %v1576 = vmul.f32 %v1571, %v1575
        %vm1577 = vweird.f32 %v1538
        %vm1578 = vweird.f32 %v1571
        %vm1579 = vmor %vm1577, %vm1578
        %v1580 = vsel %vm1579, %v1571, %v1576
        %v1581 = vrsqrt.pop %v1539
        %v1582 = vmul.f32 %v1581, %v1539
        %v1583 = vmul.f32 %v1582, %v1581
        %v1584 = vmul.f32 0.5, %v1583
        %v1585 = vsub.f32 1.5, %v1584
        %v1586 = vmul.f32 %v1581, %v1585
        %vm1587 = vweird.f32 %v1539
        %vm1588 = vweird.f32 %v1581
        %vm1589 = vmor %vm1587, %vm1588
        %v1590 = vsel %vm1589, %v1581, %v1586
        %v1591 = vrsqrt.pop %v1540
        %v1592 = vmul.f32 %v1591, %v1540
        %v1593 = vmul.f32 %v1592, %v1591
        %v1594 = vmul.f32 0.5, %v1593
        %v1595 = vsub.f32 1.5, %v1594
        %v1596 = vmul.f32 %v1591, %v1595
        %vm1597 = vweird.f32 %v1540
        %vm1598 = vweird.f32 %v1591
        %vm1599 = vmor %vm1597, %vm1598
        %v1600 = vsel %vm1599, %v1591, %v1596
        %v1601 = vmul.f32 %v1487, %v1550
        %v1602 = vmul.f32 %v1488, %v1550
        %v1603 = vmul.f32 %v1489, %v1560
        %v1604 = vmul.f32 %v1490, %v1560
        %v1605 = vmul.f32 %v1491, %v1570
        %v1606 = vmul.f32 %v1492, %v1570
        %v1607 = vmul.f32 %v1493, %v1580
        %v1608 = vmul.f32 %v1494, %v1580
        %v1609 = vmul.f32 %v1495, %v1590
        %v1610 = vmul.f32 %v1496, %v1590
        %v1611 = vmul.f32 %v1497, %v1600
        %v1612 = vmul.f32 %v1498, %v1600
        %v1614 = vperm.slane %v1454, 0
        %v1615 = vperm.slane %v1454, 1
        %v1618 = vmul.f32 %v1601, %v1614
        %v1619 = vmul.f32 %v1602, %v1615
        %v1620 = vmul.f32 %v1603, %v1614
        %v1621 = vmul.f32 %v1604, %v1615
        %v1622 = vmul.f32 %v1605, %v1614
        %v1623 = vmul.f32 %v1606, %v1615
        %v1624 = vmul.f32 %v1607, %v1614
        %v1625 = vmul.f32 %v1608, %v1615
        %v1626 = vmul.f32 %v1609, %v1614
        %v1627 = vmul.f32 %v1610, %v1615
        %v1628 = vmul.f32 %v1611, %v1614
        %v1629 = vmul.f32 %v1612, %v1615
        %v1631 = vperm.slane %v1455, 0
        %v1632 = vperm.slane %v1455, 1
        %v1635 = vadd.f32 %v1618, %v1631
        %v1636 = vadd.f32 %v1619, %v1632
        %v1637 = vadd.f32 %v1620, %v1631
        %v1638 = vadd.f32 %v1621, %v1632
        %v1639 = vadd.f32 %v1622, %v1631
        %v1640 = vadd.f32 %v1623, %v1632
        %v1641 = vadd.f32 %v1624, %v1631
        %v1642 = vadd.f32 %v1625, %v1632
        %v1643 = vadd.f32 %v1626, %v1631
        %v1644 = vadd.f32 %v1627, %v1632
        %v1645 = vadd.f32 %v1628, %v1631
        %v1646 = vadd.f32 %v1629, %v1632
        %v1647 = vpack.c.bf16 %v1637, %v1635
        %v1648 = vpack.c.bf16 %v1638, %v1636
        %v1649 = vpack.c.bf16 %v1641, %v1639
        %v1650 = vpack.c.bf16 %v1642, %v1640
        %v1651 = vpack.c.bf16 %v1645, %v1643
        %v1652 = vpack.c.bf16 %v1646, %v1644
        %v1653 = vld [vmem:[%s1115] sm:$0xff]
        %v1654 = vld [vmem:[%s1115 + $0x8] sm:$0xff]
        %v1655 = vld [vmem:[%s1115 + $0x10] sm:$0xff]
        %v1656 = vld [vmem:[%s1115 + $0x18] sm:$0xff]
        %v1657 = vld [vmem:[%s1115 + $0x20] sm:$0xff]
        %v1658 = vld [vmem:[%s1115 + $0x28] sm:$0xff]
        %v1659 = vld [vmem:[%s1115 + $0x30] sm:$0xff]
        %v1660 = vld [vmem:[%s1115 + $0x38] sm:$0xff]
        %v1661 = vld [vmem:[%s1115 + $0x40] sm:$0xff]
        %v1662 = vld [vmem:[%s1115 + $0x48] sm:$0xff]
        %v1663 = vld [vmem:[%s1115 + $0x50] sm:$0xff]
        %v1664 = vld [vmem:[%s1115 + $0x58] sm:$0xff]
        %v1665 = vld [vmem:[%s1115 + $0x60] sm:$0xff]
        %v1666 = vld [vmem:[%s1115 + $0x68] sm:$0xff]
        %v1667 = vld [vmem:[%s1115 + $0x70] sm:$0xff]
        %v1668 = vld [vmem:[%s1115 + $0x78] sm:$0xff]
        %v1669 = vld [vmem:[%s1115 + $0x80] sm:$0xff]
        %v1670 = vld [vmem:[%s1115 + $0x88] sm:$0xff]
        %v1671 = vld [vmem:[%s1115 + $0x90] sm:$0xff]
        %v1672 = vld [vmem:[%s1115 + $0x98] sm:$0xff]
        %v1673 = vld [vmem:[%s1115 + $0xa0] sm:$0xff]
        %v1674 = vld [vmem:[%s1115 + $0xa8] sm:$0xff]
        %v1675 = vld [vmem:[%s1115 + $0xb0] sm:$0xff]
        %v1676 = vld [vmem:[%s1115 + $0xb8] sm:$0xff]
        %v1677 = vld [vmem:[%s1115 + $0xc0] sm:$0xff]
        %v1678 = vld [vmem:[%s1115 + $0xc8] sm:$0xff]
        %v1679 = vld [vmem:[%s1115 + $0xd0] sm:$0xff]
        %v1680 = vld [vmem:[%s1115 + $0xd8] sm:$0xff]
        %v1681 = vld [vmem:[%s1115 + $0xe0] sm:$0xff]
        %v1682 = vld [vmem:[%s1115 + $0xe8] sm:$0xff]
        %v1683 = vld [vmem:[%s1115 + $0xf0] sm:$0xff]
        %v1684 = vld [vmem:[%s1115 + $0xf8] sm:$0xff]
        %v1685 = vld [vmem:[%s1115 + $0x100] sm:$0xff]
        %v1686 = vld [vmem:[%s1115 + $0x108] sm:$0xff]
        %v1687 = vld [vmem:[%s1115 + $0x110] sm:$0xff]
        %v1688 = vld [vmem:[%s1115 + $0x118] sm:$0xff]
        %v1689 = vld [vmem:[%s1115 + $0x120] sm:$0xff]
        %v1690 = vld [vmem:[%s1115 + $0x128] sm:$0xff]
        %v1691 = vld [vmem:[%s1115 + $0x130] sm:$0xff]
        %v1692 = vld [vmem:[%s1115 + $0x138] sm:$0xff]
        %v1693 = vld [vmem:[%s1115 + $0x140] sm:$0xff]
        %v1694 = vld [vmem:[%s1115 + $0x148] sm:$0xff]
        %v1695 = vld [vmem:[%s1115 + $0x150] sm:$0xff]
        %v1696 = vld [vmem:[%s1115 + $0x158] sm:$0xff]
        %v1697 = vld [vmem:[%s1115 + $0x160] sm:$0xff]
        %v1698 = vld [vmem:[%s1115 + $0x168] sm:$0xff]
        %v1699 = vld [vmem:[%s1115 + $0x170] sm:$0xff]
        %v1700 = vld [vmem:[%s1115 + $0x178] sm:$0xff]
        %v1701 = vld [vmem:[%s1115 + $0x180] sm:$0xff]
        %v1702 = vld [vmem:[%s1115 + $0x188] sm:$0xff]
        %v1703 = vld [vmem:[%s1115 + $0x190] sm:$0xff]
        %v1704 = vld [vmem:[%s1115 + $0x198] sm:$0xff]
        %v1705 = vld [vmem:[%s1115 + $0x1a0] sm:$0xff]
        %v1706 = vld [vmem:[%s1115 + $0x1a8] sm:$0xff]
        %v1707 = vld [vmem:[%s1115 + $0x1b0] sm:$0xff]
        %v1708 = vld [vmem:[%s1115 + $0x1b8] sm:$0xff]
        %v1709 = vld [vmem:[%s1115 + $0x1c0] sm:$0xff]
        %v1710 = vld [vmem:[%s1115 + $0x1c8] sm:$0xff]
        %v1711 = vld [vmem:[%s1115 + $0x1d0] sm:$0xff]
        %v1712 = vld [vmem:[%s1115 + $0x1d8] sm:$0xff]
        %v1713 = vld [vmem:[%s1115 + $0x1e0] sm:$0xff]
        %v1714 = vld [vmem:[%s1115 + $0x1e8] sm:$0xff]
        %v1715 = vld [vmem:[%s1115 + $0x1f0] sm:$0xff]
        %v1716 = vld [vmem:[%s1115 + $0x1f8] sm:$0xff]
        %v1717 = vld [vmem:[%s1115 + $0x200] sm:$0xff]
        %v1718 = vld [vmem:[%s1115 + $0x208] sm:$0xff]
        %v1719 = vld [vmem:[%s1115 + $0x210] sm:$0xff]
        %v1720 = vld [vmem:[%s1115 + $0x218] sm:$0xff]
        %v1721 = vld [vmem:[%s1115 + $0x220] sm:$0xff]
        %v1722 = vld [vmem:[%s1115 + $0x228] sm:$0xff]
        %v1723 = vld [vmem:[%s1115 + $0x230] sm:$0xff]
        %v1724 = vld [vmem:[%s1115 + $0x238] sm:$0xff]
        %v1725 = vld [vmem:[%s1115 + $0x240] sm:$0xff]
        %v1726 = vld [vmem:[%s1115 + $0x248] sm:$0xff]
        %v1727 = vld [vmem:[%s1115 + $0x250] sm:$0xff]
        %v1728 = vld [vmem:[%s1115 + $0x258] sm:$0xff]
        %v1729 = vld [vmem:[%s1115 + $0x260] sm:$0xff]
        %v1730 = vld [vmem:[%s1115 + $0x268] sm:$0xff]
        %v1731 = vld [vmem:[%s1115 + $0x270] sm:$0xff]
        %v1732 = vld [vmem:[%s1115 + $0x278] sm:$0xff]
        %v1733 = vld [vmem:[%s1115 + $0x280] sm:$0xff]
        %v1734 = vld [vmem:[%s1115 + $0x288] sm:$0xff]
        %v1735 = vld [vmem:[%s1115 + $0x290] sm:$0xff]
        %v1736 = vld [vmem:[%s1115 + $0x298] sm:$0xff]
        %v1737 = vld [vmem:[%s1115 + $0x2a0] sm:$0xff]
        %v1738 = vld [vmem:[%s1115 + $0x2a8] sm:$0xff]
        %v1739 = vld [vmem:[%s1115 + $0x2b0] sm:$0xff]
        %v1740 = vld [vmem:[%s1115 + $0x2b8] sm:$0xff]
        %v1741 = vld [vmem:[%s1115 + $0x2c0] sm:$0xff]
        %v1742 = vld [vmem:[%s1115 + $0x2c8] sm:$0xff]
        %v1743 = vld [vmem:[%s1115 + $0x2d0] sm:$0xff]
        %v1744 = vld [vmem:[%s1115 + $0x2d8] sm:$0xff]
        %v1745 = vld [vmem:[%s1115 + $0x2e0] sm:$0xff]
        %v1746 = vld [vmem:[%s1115 + $0x2e8] sm:$0xff]
        %v1747 = vld [vmem:[%s1115 + $0x2f0] sm:$0xff]
        %v1748 = vld [vmem:[%s1115 + $0x2f8] sm:$0xff]
        %v1749 = vld [vmem:[%s922] sm:$0x3f]
        %v1751 = vperm.slane %v1749, 0
        %v1752 = vperm.slane %v1749, 1
        %v1753 = vperm.slane %v1749, 2
        %v1754 = vperm.slane %v1749, 3
        %v1755 = vperm.slane %v1749, 4
        %v1756 = vperm.slane %v1749, 5
        %v1859 = vunpack.c.l.b16 %v1653
        %v1860 = vunpack.c.h.b16 %v1653
        %v1861 = vunpack.c.l.b16 %v1654
        %v1862 = vunpack.c.h.b16 %v1654
        %v1863 = vunpack.c.l.b16 %v1655
        %v1864 = vunpack.c.h.b16 %v1655
        %v1865 = vunpack.c.l.b16 %v1656
        %v1866 = vunpack.c.h.b16 %v1656
        %v1867 = vunpack.c.l.b16 %v1657
        %v1868 = vunpack.c.h.b16 %v1657
        %v1869 = vunpack.c.l.b16 %v1658
        %v1870 = vunpack.c.h.b16 %v1658
        %v1871 = vunpack.c.l.b16 %v1659
        %v1872 = vunpack.c.h.b16 %v1659
        %v1873 = vunpack.c.l.b16 %v1660
        %v1874 = vunpack.c.h.b16 %v1660
        %v1875 = vunpack.c.l.b16 %v1661
        %v1876 = vunpack.c.h.b16 %v1661
        %v1877 = vunpack.c.l.b16 %v1662
        %v1878 = vunpack.c.h.b16 %v1662
        %v1879 = vunpack.c.l.b16 %v1663
        %v1880 = vunpack.c.h.b16 %v1663
        %v1881 = vunpack.c.l.b16 %v1664
        %v1882 = vunpack.c.h.b16 %v1664
        %v1883 = vunpack.c.l.b16 %v1665
        %v1884 = vunpack.c.h.b16 %v1665
        %v1885 = vunpack.c.l.b16 %v1666
        %v1886 = vunpack.c.h.b16 %v1666
        %v1887 = vunpack.c.l.b16 %v1667
        %v1888 = vunpack.c.h.b16 %v1667
        %v1889 = vunpack.c.l.b16 %v1668
        %v1890 = vunpack.c.h.b16 %v1668
        %v1891 = vunpack.c.l.b16 %v1669
        %v1892 = vunpack.c.h.b16 %v1669
        %v1893 = vunpack.c.l.b16 %v1670
        %v1894 = vunpack.c.h.b16 %v1670
        %v1895 = vunpack.c.l.b16 %v1671
        %v1896 = vunpack.c.h.b16 %v1671
        %v1897 = vunpack.c.l.b16 %v1672
        %v1898 = vunpack.c.h.b16 %v1672
        %v1899 = vunpack.c.l.b16 %v1673
        %v1900 = vunpack.c.h.b16 %v1673
        %v1901 = vunpack.c.l.b16 %v1674
        %v1902 = vunpack.c.h.b16 %v1674
        %v1903 = vunpack.c.l.b16 %v1675
        %v1904 = vunpack.c.h.b16 %v1675
        %v1905 = vunpack.c.l.b16 %v1676
        %v1906 = vunpack.c.h.b16 %v1676
        %v1907 = vunpack.c.l.b16 %v1677
        %v1908 = vunpack.c.h.b16 %v1677
        %v1909 = vunpack.c.l.b16 %v1678
        %v1910 = vunpack.c.h.b16 %v1678
        %v1911 = vunpack.c.l.b16 %v1679
        %v1912 = vunpack.c.h.b16 %v1679
        %v1913 = vunpack.c.l.b16 %v1680
        %v1914 = vunpack.c.h.b16 %v1680
        %v1915 = vunpack.c.l.b16 %v1681
        %v1916 = vunpack.c.h.b16 %v1681
        %v1917 = vunpack.c.l.b16 %v1682
        %v1918 = vunpack.c.h.b16 %v1682
        %v1919 = vunpack.c.l.b16 %v1683
        %v1920 = vunpack.c.h.b16 %v1683
        %v1921 = vunpack.c.l.b16 %v1684
        %v1922 = vunpack.c.h.b16 %v1684
        %v1923 = vunpack.c.l.b16 %v1685
        %v1924 = vunpack.c.h.b16 %v1685
        %v1925 = vunpack.c.l.b16 %v1686
        %v1926 = vunpack.c.h.b16 %v1686
        %v1927 = vunpack.c.l.b16 %v1687
        %v1928 = vunpack.c.h.b16 %v1687
        %v1929 = vunpack.c.l.b16 %v1688
        %v1930 = vunpack.c.h.b16 %v1688
        %v1931 = vunpack.c.l.b16 %v1689
        %v1932 = vunpack.c.h.b16 %v1689
        %v1933 = vunpack.c.l.b16 %v1690
        %v1934 = vunpack.c.h.b16 %v1690
        %v1935 = vunpack.c.l.b16 %v1691
        %v1936 = vunpack.c.h.b16 %v1691
        %v1937 = vunpack.c.l.b16 %v1692
        %v1938 = vunpack.c.h.b16 %v1692
        %v1939 = vunpack.c.l.b16 %v1693
        %v1940 = vunpack.c.h.b16 %v1693
        %v1941 = vunpack.c.l.b16 %v1694
        %v1942 = vunpack.c.h.b16 %v1694
        %v1943 = vunpack.c.l.b16 %v1695
        %v1944 = vunpack.c.h.b16 %v1695
        %v1945 = vunpack.c.l.b16 %v1696
        %v1946 = vunpack.c.h.b16 %v1696
        %v1947 = vunpack.c.l.b16 %v1697
        %v1948 = vunpack.c.h.b16 %v1697
        %v1949 = vunpack.c.l.b16 %v1698
        %v1950 = vunpack.c.h.b16 %v1698
        %v1951 = vunpack.c.l.b16 %v1699
        %v1952 = vunpack.c.h.b16 %v1699
        %v1953 = vunpack.c.l.b16 %v1700
        %v1954 = vunpack.c.h.b16 %v1700
        %v1955 = vunpack.c.l.b16 %v1701
        %v1956 = vunpack.c.h.b16 %v1701
        %v1957 = vunpack.c.l.b16 %v1702
        %v1958 = vunpack.c.h.b16 %v1702
        %v1959 = vunpack.c.l.b16 %v1703
        %v1960 = vunpack.c.h.b16 %v1703
        %v1961 = vunpack.c.l.b16 %v1704
        %v1962 = vunpack.c.h.b16 %v1704
        %v1963 = vunpack.c.l.b16 %v1705
        %v1964 = vunpack.c.h.b16 %v1705
        %v1965 = vunpack.c.l.b16 %v1706
        %v1966 = vunpack.c.h.b16 %v1706
        %v1967 = vunpack.c.l.b16 %v1707
        %v1968 = vunpack.c.h.b16 %v1707
        %v1969 = vunpack.c.l.b16 %v1708
        %v1970 = vunpack.c.h.b16 %v1708
        %v1971 = vunpack.c.l.b16 %v1709
        %v1972 = vunpack.c.h.b16 %v1709
        %v1973 = vunpack.c.l.b16 %v1710
        %v1974 = vunpack.c.h.b16 %v1710
        %v1975 = vunpack.c.l.b16 %v1711
        %v1976 = vunpack.c.h.b16 %v1711
        %v1977 = vunpack.c.l.b16 %v1712
        %v1978 = vunpack.c.h.b16 %v1712
        %v1979 = vunpack.c.l.b16 %v1713
        %v1980 = vunpack.c.h.b16 %v1713
        %v1981 = vunpack.c.l.b16 %v1714
        %v1982 = vunpack.c.h.b16 %v1714
        %v1983 = vunpack.c.l.b16 %v1715
        %v1984 = vunpack.c.h.b16 %v1715
        %v1985 = vunpack.c.l.b16 %v1716
        %v1986 = vunpack.c.h.b16 %v1716
        %v1987 = vunpack.c.l.b16 %v1717
        %v1988 = vunpack.c.h.b16 %v1717
        %v1989 = vunpack.c.l.b16 %v1718
        %v1990 = vunpack.c.h.b16 %v1718
        %v1991 = vunpack.c.l.b16 %v1719
        %v1992 = vunpack.c.h.b16 %v1719
        %v1993 = vunpack.c.l.b16 %v1720
        %v1994 = vunpack.c.h.b16 %v1720
        %v1995 = vunpack.c.l.b16 %v1721
        %v1996 = vunpack.c.h.b16 %v1721
        %v1997 = vunpack.c.l.b16 %v1722
        %v1998 = vunpack.c.h.b16 %v1722
        %v1999 = vunpack.c.l.b16 %v1723
        %v2000 = vunpack.c.h.b16 %v1723
        %v2001 = vunpack.c.l.b16 %v1724
        %v2002 = vunpack.c.h.b16 %v1724
        %v2003 = vunpack.c.l.b16 %v1725
        %v2004 = vunpack.c.h.b16 %v1725
        %v2005 = vunpack.c.l.b16 %v1726
        %v2006 = vunpack.c.h.b16 %v1726
        %v2007 = vunpack.c.l.b16 %v1727
        %v2008 = vunpack.c.h.b16 %v1727
        %v2009 = vunpack.c.l.b16 %v1728
        %v2010 = vunpack.c.h.b16 %v1728
        %v2011 = vunpack.c.l.b16 %v1729
        %v2012 = vunpack.c.h.b16 %v1729
        %v2013 = vunpack.c.l.b16 %v1730
        %v2014 = vunpack.c.h.b16 %v1730
        %v2015 = vunpack.c.l.b16 %v1731
        %v2016 = vunpack.c.h.b16 %v1731
        %v2017 = vunpack.c.l.b16 %v1732
        %v2018 = vunpack.c.h.b16 %v1732
        %v2019 = vunpack.c.l.b16 %v1733
        %v2020 = vunpack.c.h.b16 %v1733
        %v2021 = vunpack.c.l.b16 %v1734
        %v2022 = vunpack.c.h.b16 %v1734
        %v2023 = vunpack.c.l.b16 %v1735
        %v2024 = vunpack.c.h.b16 %v1735
        %v2025 = vunpack.c.l.b16 %v1736
        %v2026 = vunpack.c.h.b16 %v1736
        %v2027 = vunpack.c.l.b16 %v1737
        %v2028 = vunpack.c.h.b16 %v1737
        %v2029 = vunpack.c.l.b16 %v1738
        %v2030 = vunpack.c.h.b16 %v1738
        %v2031 = vunpack.c.l.b16 %v1739
        %v2032 = vunpack.c.h.b16 %v1739
        %v2033 = vunpack.c.l.b16 %v1740
        %v2034 = vunpack.c.h.b16 %v1740
        %v2035 = vunpack.c.l.b16 %v1741
        %v2036 = vunpack.c.h.b16 %v1741
        %v2037 = vunpack.c.l.b16 %v1742
        %v2038 = vunpack.c.h.b16 %v1742
        %v2039 = vunpack.c.l.b16 %v1743
        %v2040 = vunpack.c.h.b16 %v1743
        %v2041 = vunpack.c.l.b16 %v1744
        %v2042 = vunpack.c.h.b16 %v1744
        %v2043 = vunpack.c.l.b16 %v1745
        %v2044 = vunpack.c.h.b16 %v1745
        %v2045 = vunpack.c.l.b16 %v1746
        %v2046 = vunpack.c.h.b16 %v1746
        %v2047 = vunpack.c.l.b16 %v1747
        %v2048 = vunpack.c.h.b16 %v1747
        %v2049 = vunpack.c.l.b16 %v1748
        %v2050 = vunpack.c.h.b16 %v1748
        %v2051 = vpack.c.b16 %v1865, %v1859
        %v2052 = vpack.c.b16 %v1866, %v1860
        %v2053 = vpack.c.b16 %v1867, %v1861
        %v2054 = vpack.c.b16 %v1868, %v1862
        %v2055 = vpack.c.b16 %v1869, %v1863
        %v2056 = vpack.c.b16 %v1870, %v1864
        %v2057 = vpack.c.b16 %v1877, %v1871
        %v2058 = vpack.c.b16 %v1878, %v1872
        %v2059 = vpack.c.b16 %v1879, %v1873
        %v2060 = vpack.c.b16 %v1880, %v1874
        %v2061 = vpack.c.b16 %v1881, %v1875
        %v2062 = vpack.c.b16 %v1882, %v1876
        %v2063 = vpack.c.b16 %v1889, %v1883
        %v2064 = vpack.c.b16 %v1890, %v1884
        %v2065 = vpack.c.b16 %v1891, %v1885
        %v2066 = vpack.c.b16 %v1892, %v1886
        %v2067 = vpack.c.b16 %v1893, %v1887
        %v2068 = vpack.c.b16 %v1894, %v1888
        %v2069 = vpack.c.b16 %v1901, %v1895
        %v2070 = vpack.c.b16 %v1902, %v1896
        %v2071 = vpack.c.b16 %v1903, %v1897
        %v2072 = vpack.c.b16 %v1904, %v1898
        %v2073 = vpack.c.b16 %v1905, %v1899
        %v2074 = vpack.c.b16 %v1906, %v1900
        %v2075 = vpack.c.b16 %v1913, %v1907
        %v2076 = vpack.c.b16 %v1914, %v1908
        %v2077 = vpack.c.b16 %v1915, %v1909
        %v2078 = vpack.c.b16 %v1916, %v1910
        %v2079 = vpack.c.b16 %v1917, %v1911
        %v2080 = vpack.c.b16 %v1918, %v1912
        %v2081 = vpack.c.b16 %v1925, %v1919
        %v2082 = vpack.c.b16 %v1926, %v1920
        %v2083 = vpack.c.b16 %v1927, %v1921
        %v2084 = vpack.c.b16 %v1928, %v1922
        %v2085 = vpack.c.b16 %v1929, %v1923
        %v2086 = vpack.c.b16 %v1930, %v1924
        %v2087 = vpack.c.b16 %v1937, %v1931
        %v2088 = vpack.c.b16 %v1938, %v1932
        %v2089 = vpack.c.b16 %v1939, %v1933
        %v2090 = vpack.c.b16 %v1940, %v1934
        %v2091 = vpack.c.b16 %v1941, %v1935
        %v2092 = vpack.c.b16 %v1942, %v1936
        %v2093 = vpack.c.b16 %v1949, %v1943
        %v2094 = vpack.c.b16 %v1950, %v1944
        %v2095 = vpack.c.b16 %v1951, %v1945
        %v2096 = vpack.c.b16 %v1952, %v1946
        %v2097 = vpack.c.b16 %v1953, %v1947
        %v2098 = vpack.c.b16 %v1954, %v1948
        %v2099 = vpack.c.b16 %v1961, %v1955
        %v2100 = vpack.c.b16 %v1962, %v1956
        %v2101 = vpack.c.b16 %v1963, %v1957
        %v2102 = vpack.c.b16 %v1964, %v1958
        %v2103 = vpack.c.b16 %v1965, %v1959
        %v2104 = vpack.c.b16 %v1966, %v1960
        %v2105 = vpack.c.b16 %v1973, %v1967
        %v2106 = vpack.c.b16 %v1974, %v1968
        %v2107 = vpack.c.b16 %v1975, %v1969
        %v2108 = vpack.c.b16 %v1976, %v1970
        %v2109 = vpack.c.b16 %v1977, %v1971
        %v2110 = vpack.c.b16 %v1978, %v1972
        %v2111 = vpack.c.b16 %v1985, %v1979
        %v2112 = vpack.c.b16 %v1986, %v1980
        %v2113 = vpack.c.b16 %v1987, %v1981
        %v2114 = vpack.c.b16 %v1988, %v1982
        %v2115 = vpack.c.b16 %v1989, %v1983
        %v2116 = vpack.c.b16 %v1990, %v1984
        %v2117 = vpack.c.b16 %v1997, %v1991
        %v2118 = vpack.c.b16 %v1998, %v1992
        %v2119 = vpack.c.b16 %v1999, %v1993
        %v2120 = vpack.c.b16 %v2000, %v1994
        %v2121 = vpack.c.b16 %v2001, %v1995
        %v2122 = vpack.c.b16 %v2002, %v1996
        %v2123 = vpack.c.b16 %v2009, %v2003
        %v2124 = vpack.c.b16 %v2010, %v2004
        %v2125 = vpack.c.b16 %v2011, %v2005
        %v2126 = vpack.c.b16 %v2012, %v2006
        %v2127 = vpack.c.b16 %v2013, %v2007
        %v2128 = vpack.c.b16 %v2014, %v2008
        %v2129 = vpack.c.b16 %v2021, %v2015
        %v2130 = vpack.c.b16 %v2022, %v2016
        %v2131 = vpack.c.b16 %v2023, %v2017
        %v2132 = vpack.c.b16 %v2024, %v2018
        %v2133 = vpack.c.b16 %v2025, %v2019
        %v2134 = vpack.c.b16 %v2026, %v2020
        %v2135 = vpack.c.b16 %v2033, %v2027
        %v2136 = vpack.c.b16 %v2034, %v2028
        %v2137 = vpack.c.b16 %v2035, %v2029
        %v2138 = vpack.c.b16 %v2036, %v2030
        %v2139 = vpack.c.b16 %v2037, %v2031
        %v2140 = vpack.c.b16 %v2038, %v2032
        %v2141 = vpack.c.b16 %v2045, %v2039
        %v2142 = vpack.c.b16 %v2046, %v2040
        %v2143 = vpack.c.b16 %v2047, %v2041
        %v2144 = vpack.c.b16 %v2048, %v2042
        %v2145 = vpack.c.b16 %v2049, %v2043
        %v2146 = vpack.c.b16 %v2050, %v2044
        %2243 = vmatpush.bf16.msra.mxu0 %v2093
        %2244 = vmatpush.bf16.msra.mxu0 %v2087
        %2245 = vmatpush.bf16.msra.mxu0 %v2081
        %2246 = vmatpush.bf16.msra.mxu0 %v2075
        %2247 = vmatpush.bf16.msra.mxu0 %v2069
        %2248 = vmatpush.bf16.msra.mxu0 %v2063
        %2249 = vmatpush.bf16.msra.mxu0 %v2057
        %2250 = vmatpush.bf16.msra.mxu0 %v2051
        %2251 = vmatmul.bf16.gmra.mxu0 %v1647
        %v2252 = vpop.f32.mrf.mxu0
        %v2253 = vadd.f32 %v1751, %v2252
        %v2254 = vpop.f32.mrf.mxu0
        %v2255 = vadd.f32 %v1751, %v2254
        %2256 = vmatmul.bf16.gmra.mxu0 %v1649
        %v2257 = vpop.f32.mrf.mxu0
        %v2258 = vadd.f32 %v1751, %v2257
        %v2259 = vpop.f32.mrf.mxu0
        %v2260 = vadd.f32 %v1751, %v2259
        %2261 = vmatmul.bf16.gmra.mxu0 %v1651
        %v2262 = vpop.f32.mrf.mxu0
        %v2263 = vadd.f32 %v1751, %v2262
        %v2264 = vpop.f32.mrf.mxu0
        %v2265 = vadd.f32 %v1751, %v2264
        %2266 = vdwg.mxu0
        %2267 = vmatpush.bf16.msra.mxu0 %v2141
        %2268 = vmatpush.bf16.msra.mxu0 %v2135
        %2269 = vmatpush.bf16.msra.mxu0 %v2129
        %2270 = vmatpush.bf16.msra.mxu0 %v2123
        %2271 = vmatpush.bf16.msra.mxu0 %v2117
        %2272 = vmatpush.bf16.msra.mxu0 %v2111
        %2273 = vmatpush.bf16.msra.mxu0 %v2105
        %2274 = vmatpush.bf16.msra.mxu0 %v2099
        %2275 = vmatmul.bf16.gmra.mxu0 %v1648
        %v2276 = vpop.f32.mrf.mxu0
        %v2277 = vadd.f32 %v2253, %v2276
        %v2278 = vpop.f32.mrf.mxu0
        %v2279 = vadd.f32 %v2255, %v2278
        %2280 = vmatmul.bf16.gmra.mxu0 %v1650
        %v2281 = vpop.f32.mrf.mxu0
        %v2282 = vadd.f32 %v2258, %v2281
        %v2283 = vpop.f32.mrf.mxu0
        %v2284 = vadd.f32 %v2260, %v2283
        %2285 = vmatmul.bf16.gmra.mxu0 %v1652
        %v2286 = vpop.f32.mrf.mxu0
        %v2287 = vadd.f32 %v2263, %v2286
        %v2288 = vpop.f32.mrf.mxu0
        %v2289 = vadd.f32 %v2265, %v2288
        %2290 = vdwg.mxu0
        %2291 = vmatpush.bf16.msra.mxu0 %v2094
        %2292 = vmatpush.bf16.msra.mxu0 %v2088
        %2293 = vmatpush.bf16.msra.mxu0 %v2082
        %2294 = vmatpush.bf16.msra.mxu0 %v2076
        %2295 = vmatpush.bf16.msra.mxu0 %v2070
        %2296 = vmatpush.bf16.msra.mxu0 %v2064
        %2297 = vmatpush.bf16.msra.mxu0 %v2058
        %2298 = vmatpush.bf16.msra.mxu0 %v2052
        %2299 = vmatmul.bf16.gmra.mxu0 %v1647
        %v2300 = vpop.f32.mrf.mxu0
        %v2301 = vadd.f32 %v1752, %v2300
        %v2302 = vpop.f32.mrf.mxu0
        %v2303 = vadd.f32 %v1752, %v2302
        %2304 = vmatmul.bf16.gmra.mxu0 %v1649
        %v2305 = vpop.f32.mrf.mxu0
        %v2306 = vadd.f32 %v1752, %v2305
        %v2307 = vpop.f32.mrf.mxu0
        %v2308 = vadd.f32 %v1752, %v2307
        %2309 = vmatmul.bf16.gmra.mxu0 %v1651
        %v2310 = vpop.f32.mrf.mxu0
        %v2311 = vadd.f32 %v1752, %v2310
        %v2312 = vpop.f32.mrf.mxu0
        %v2313 = vadd.f32 %v1752, %v2312
        %2314 = vdwg.mxu0
        %2315 = vmatpush.bf16.msra.mxu0 %v2142
        %2316 = vmatpush.bf16.msra.mxu0 %v2136
        %2317 = vmatpush.bf16.msra.mxu0 %v2130
        %2318 = vmatpush.bf16.msra.mxu0 %v2124
        %2319 = vmatpush.bf16.msra.mxu0 %v2118
        %2320 = vmatpush.bf16.msra.mxu0 %v2112
        %2321 = vmatpush.bf16.msra.mxu0 %v2106
        %2322 = vmatpush.bf16.msra.mxu0 %v2100
        %2323 = vmatmul.bf16.gmra.mxu0 %v1648
        %v2324 = vpop.f32.mrf.mxu0
        %v2325 = vadd.f32 %v2301, %v2324
        %v2326 = vpop.f32.mrf.mxu0
        %v2327 = vadd.f32 %v2303, %v2326
        %2328 = vmatmul.bf16.gmra.mxu0 %v1650
        %v2329 = vpop.f32.mrf.mxu0
        %v2330 = vadd.f32 %v2306, %v2329
        %v2331 = vpop.f32.mrf.mxu0
        %v2332 = vadd.f32 %v2308, %v2331
        %2333 = vmatmul.bf16.gmra.mxu0 %v1652
        %v2334 = vpop.f32.mrf.mxu0
        %v2335 = vadd.f32 %v2311, %v2334
        %v2336 = vpop.f32.mrf.mxu0
        %v2337 = vadd.f32 %v2313, %v2336
        %2338 = vdwg.mxu0
        %2339 = vmatpush.bf16.msra.mxu0 %v2095
        %2340 = vmatpush.bf16.msra.mxu0 %v2089
        %2341 = vmatpush.bf16.msra.mxu0 %v2083
        %2342 = vmatpush.bf16.msra.mxu0 %v2077
        %2343 = vmatpush.bf16.msra.mxu0 %v2071
        %2344 = vmatpush.bf16.msra.mxu0 %v2065
        %2345 = vmatpush.bf16.msra.mxu0 %v2059
        %2346 = vmatpush.bf16.msra.mxu0 %v2053
        %2347 = vmatmul.bf16.gmra.mxu0 %v1647
        %v2348 = vpop.f32.mrf.mxu0
        %v2349 = vadd.f32 %v1753, %v2348
        %v2350 = vpop.f32.mrf.mxu0
        %v2351 = vadd.f32 %v1753, %v2350
        %2352 = vmatmul.bf16.gmra.mxu0 %v1649
        %v2353 = vpop.f32.mrf.mxu0
        %v2354 = vadd.f32 %v1753, %v2353
        %v2355 = vpop.f32.mrf.mxu0
        %v2356 = vadd.f32 %v1753, %v2355
        %2357 = vmatmul.bf16.gmra.mxu0 %v1651
        %v2358 = vpop.f32.mrf.mxu0
        %v2359 = vadd.f32 %v1753, %v2358
        %v2360 = vpop.f32.mrf.mxu0
        %v2361 = vadd.f32 %v1753, %v2360
        %2362 = vdwg.mxu0
        %2363 = vmatpush.bf16.msra.mxu0 %v2143
        %2364 = vmatpush.bf16.msra.mxu0 %v2137
        %2365 = vmatpush.bf16.msra.mxu0 %v2131
        %2366 = vmatpush.bf16.msra.mxu0 %v2125
        %2367 = vmatpush.bf16.msra.mxu0 %v2119
        %2368 = vmatpush.bf16.msra.mxu0 %v2113
        %2369 = vmatpush.bf16.msra.mxu0 %v2107
        %2370 = vmatpush.bf16.msra.mxu0 %v2101
        %2371 = vmatmul.bf16.gmra.mxu0 %v1648
        %v2372 = vpop.f32.mrf.mxu0
        %v2373 = vadd.f32 %v2349, %v2372
        %v2374 = vpop.f32.mrf.mxu0
        %v2375 = vadd.f32 %v2351, %v2374
        %2376 = vmatmul.bf16.gmra.mxu0 %v1650
        %v2377 = vpop.f32.mrf.mxu0
        %v2378 = vadd.f32 %v2354, %v2377
        %v2379 = vpop.f32.mrf.mxu0
        %v2380 = vadd.f32 %v2356, %v2379
        %2381 = vmatmul.bf16.gmra.mxu0 %v1652
        %v2382 = vpop.f32.mrf.mxu0
        %v2383 = vadd.f32 %v2359, %v2382
        %v2384 = vpop.f32.mrf.mxu0
        %v2385 = vadd.f32 %v2361, %v2384
        %2386 = vdwg.mxu0
        %2387 = vmatpush.bf16.msra.mxu0 %v2096
        %2388 = vmatpush.bf16.msra.mxu0 %v2090
        %2389 = vmatpush.bf16.msra.mxu0 %v2084
        %2390 = vmatpush.bf16.msra.mxu0 %v2078
        %2391 = vmatpush.bf16.msra.mxu0 %v2072
        %2392 = vmatpush.bf16.msra.mxu0 %v2066
        %2393 = vmatpush.bf16.msra.mxu0 %v2060
        %2394 = vmatpush.bf16.msra.mxu0 %v2054
        %2395 = vmatmul.bf16.gmra.mxu0 %v1647
        %v2396 = vpop.f32.mrf.mxu0
        %v2397 = vadd.f32 %v1754, %v2396
        %v2398 = vpop.f32.mrf.mxu0
        %v2399 = vadd.f32 %v1754, %v2398
        %2400 = vmatmul.bf16.gmra.mxu0 %v1649
        %v2401 = vpop.f32.mrf.mxu0
        %v2402 = vadd.f32 %v1754, %v2401
        %v2403 = vpop.f32.mrf.mxu0
        %v2404 = vadd.f32 %v1754, %v2403
        %2405 = vmatmul.bf16.gmra.mxu0 %v1651
        %v2406 = vpop.f32.mrf.mxu0
        %v2407 = vadd.f32 %v1754, %v2406
        %v2408 = vpop.f32.mrf.mxu0
        %v2409 = vadd.f32 %v1754, %v2408
        %2410 = vdwg.mxu0
        %2411 = vmatpush.bf16.msra.mxu0 %v2144
        %2412 = vmatpush.bf16.msra.mxu0 %v2138
        %2413 = vmatpush.bf16.msra.mxu0 %v2132
        %2414 = vmatpush.bf16.msra.mxu0 %v2126
        %2415 = vmatpush.bf16.msra.mxu0 %v2120
        %2416 = vmatpush.bf16.msra.mxu0 %v2114
        %2417 = vmatpush.bf16.msra.mxu0 %v2108
        %2418 = vmatpush.bf16.msra.mxu0 %v2102
        %2419 = vmatmul.bf16.gmra.mxu0 %v1648
        %v2420 = vpop.f32.mrf.mxu0
        %v2421 = vadd.f32 %v2397, %v2420
        %v2422 = vpop.f32.mrf.mxu0
        %v2423 = vadd.f32 %v2399, %v2422
        %2424 = vmatmul.bf16.gmra.mxu0 %v1650
        %v2425 = vpop.f32.mrf.mxu0
        %v2426 = vadd.f32 %v2402, %v2425
        %v2427 = vpop.f32.mrf.mxu0
        %v2428 = vadd.f32 %v2404, %v2427
        %2429 = vmatmul.bf16.gmra.mxu0 %v1652
        %v2430 = vpop.f32.mrf.mxu0
        %v2431 = vadd.f32 %v2407, %v2430
        %v2432 = vpop.f32.mrf.mxu0
        %v2433 = vadd.f32 %v2409, %v2432
        %2434 = vdwg.mxu0
        %2435 = vmatpush.bf16.msra.mxu0 %v2097
        %2436 = vmatpush.bf16.msra.mxu0 %v2091
        %2437 = vmatpush.bf16.msra.mxu0 %v2085
        %2438 = vmatpush.bf16.msra.mxu0 %v2079
        %2439 = vmatpush.bf16.msra.mxu0 %v2073
        %2440 = vmatpush.bf16.msra.mxu0 %v2067
        %2441 = vmatpush.bf16.msra.mxu0 %v2061
        %2442 = vmatpush.bf16.msra.mxu0 %v2055
        %2443 = vmatmul.bf16.gmra.mxu0 %v1647
        %v2444 = vpop.f32.mrf.mxu0
        %v2445 = vadd.f32 %v1755, %v2444
        %v2446 = vpop.f32.mrf.mxu0
        %v2447 = vadd.f32 %v1755, %v2446
        %2448 = vmatmul.bf16.gmra.mxu0 %v1649
        %v2449 = vpop.f32.mrf.mxu0
        %v2450 = vadd.f32 %v1755, %v2449
        %v2451 = vpop.f32.mrf.mxu0
        %v2452 = vadd.f32 %v1755, %v2451
        %2453 = vmatmul.bf16.gmra.mxu0 %v1651
        %v2454 = vpop.f32.mrf.mxu0
        %v2455 = vadd.f32 %v1755, %v2454
        %v2456 = vpop.f32.mrf.mxu0
        %v2457 = vadd.f32 %v1755, %v2456
        %2458 = vdwg.mxu0
        %2459 = vmatpush.bf16.msra.mxu0 %v2145
        %2460 = vmatpush.bf16.msra.mxu0 %v2139
        %2461 = vmatpush.bf16.msra.mxu0 %v2133
        %2462 = vmatpush.bf16.msra.mxu0 %v2127
        %2463 = vmatpush.bf16.msra.mxu0 %v2121
        %2464 = vmatpush.bf16.msra.mxu0 %v2115
        %2465 = vmatpush.bf16.msra.mxu0 %v2109
        %2466 = vmatpush.bf16.msra.mxu0 %v2103
        %2467 = vmatmul.bf16.gmra.mxu0 %v1648
        %v2468 = vpop.f32.mrf.mxu0
        %v2469 = vadd.f32 %v2445, %v2468
        %v2470 = vpop.f32.mrf.mxu0
        %v2471 = vadd.f32 %v2447, %v2470
        %2472 = vmatmul.bf16.gmra.mxu0 %v1650
        %v2473 = vpop.f32.mrf.mxu0
        %v2474 = vadd.f32 %v2450, %v2473
        %v2475 = vpop.f32.mrf.mxu0
        %v2476 = vadd.f32 %v2452, %v2475
        %2477 = vmatmul.bf16.gmra.mxu0 %v1652
        %v2478 = vpop.f32.mrf.mxu0
        %v2479 = vadd.f32 %v2455, %v2478
        %v2480 = vpop.f32.mrf.mxu0
        %v2481 = vadd.f32 %v2457, %v2480
        %2482 = vdwg.mxu0
        %2483 = vmatpush.bf16.msra.mxu0 %v2098
        %2484 = vmatpush.bf16.msra.mxu0 %v2092
        %2485 = vmatpush.bf16.msra.mxu0 %v2086
        %2486 = vmatpush.bf16.msra.mxu0 %v2080
        %2487 = vmatpush.bf16.msra.mxu0 %v2074
        %2488 = vmatpush.bf16.msra.mxu0 %v2068
        %2489 = vmatpush.bf16.msra.mxu0 %v2062
        %2490 = vmatpush.bf16.msra.mxu0 %v2056
        %2491 = vmatmul.bf16.gmra.mxu0 %v1647
        %v2492 = vpop.f32.mrf.mxu0
        %v2493 = vadd.f32 %v1756, %v2492
        %v2494 = vpop.f32.mrf.mxu0
        %v2495 = vadd.f32 %v1756, %v2494
        %2496 = vmatmul.bf16.gmra.mxu0 %v1649
        %v2497 = vpop.f32.mrf.mxu0
        %v2498 = vadd.f32 %v1756, %v2497
        %v2499 = vpop.f32.mrf.mxu0
        %v2500 = vadd.f32 %v1756, %v2499
        %2501 = vmatmul.bf16.gmra.mxu0 %v1651
        %v2502 = vpop.f32.mrf.mxu0
        %v2503 = vadd.f32 %v1756, %v2502
        %v2504 = vpop.f32.mrf.mxu0
        %v2505 = vadd.f32 %v1756, %v2504
        %2506 = vdwg.mxu0
        %2507 = vmatpush.bf16.msra.mxu0 %v2146
        %2508 = vmatpush.bf16.msra.mxu0 %v2140
        %2509 = vmatpush.bf16.msra.mxu0 %v2134
        %2510 = vmatpush.bf16.msra.mxu0 %v2128
        %2511 = vmatpush.bf16.msra.mxu0 %v2122
        %2512 = vmatpush.bf16.msra.mxu0 %v2116
        %2513 = vmatpush.bf16.msra.mxu0 %v2110
        %2514 = vmatpush.bf16.msra.mxu0 %v2104
        %2515 = vmatmul.bf16.gmra.mxu0 %v1648
        %v2516 = vpop.f32.mrf.mxu0
        %v2517 = vadd.f32 %v2493, %v2516
        %v2518 = vpop.f32.mrf.mxu0
        %v2519 = vadd.f32 %v2495, %v2518
        %2520 = vmatmul.bf16.gmra.mxu0 %v1650
        %v2521 = vpop.f32.mrf.mxu0
        %v2522 = vadd.f32 %v2498, %v2521
        %v2523 = vpop.f32.mrf.mxu0
        %v2524 = vadd.f32 %v2500, %v2523
        %2525 = vmatmul.bf16.gmra.mxu0 %v1652
        %v2526 = vpop.f32.mrf.mxu0
        %v2527 = vadd.f32 %v2503, %v2526
        %v2528 = vpop.f32.mrf.mxu0
        %v2529 = vadd.f32 %v2505, %v2528
        %2530 = vdwg.mxu0
        %v2531 = vpack.c.bf16 %v2279, %v2277
        %v2532 = vpack.c.bf16 %v2282, %v2282
        %v2533 = vpack.c.bf16 %v2375, %v2373
        %v2534 = vpack.c.bf16 %v2378, %v2378
        %2535 = vmatpush.bf16.xpose.msra.mxu0 0
        %2536 = vmatpush.bf16.xpose.msra.mxu0 0
        %2537 = vmatpush.bf16.xpose.msra.mxu0 0
        %2538 = vmatpush.bf16.xpose.msra.mxu0 0
        %2539 = vmatpush.bf16.xpose.msra.mxu0 0
        %2540 = vmatpush.bf16.xpose.msra.mxu0 0
        %2541 = vmatpush.bf16.xpose.msra.mxu0 %v2534
        %2542 = vmatpush.bf16.xpose.msra.mxu0 %v2533
        %2543 = vmatmul.bf16.gmra.mxu0 %v2531
        %v2544 = vpop.f32.mrf.mxu0
        %v2545 = vadd.f32 0.0, %v2544
        %v2546 = vpop.f32.mrf.mxu0
        %v2547 = vadd.f32 0.0, %v2546
        %2548 = vmatmul.bf16.gmra.mxu0 %v2532
        %v2549 = vpop.f32.mrf.mxu0
        %v2550 = vadd.f32 0.0, %v2549
        %v2551 = vpop.f32.mrf.mxu0
        %2552 = vdwg.mxu0
        %v2553 = vmul.f32 %v2545, 0.088388346
        %v2554 = vmul.f32 %v2547, 0.088388346
        %v2555 = vmul.f32 %v2550, 0.088388346
        %v2556 = vadd.f32 %v2553, %v1453
        %v2557 = vadd.f32 %v2554, %v1453
        %v2558 = vadd.f32 %v2555, %v1453
        %vm2559 = vcmask 195584
        %v2560 = vsel %vm2559, %v2556, -inf
        %2561 = vmax.xlane.f32.xlu0 %v2560
        %v2562 = vpop.xlane.xlu0 %2561
        %v2563 = vsel %vm2559, %v2557, -inf
        %2564 = vmax.xlane.f32.xlu0 %v2563
        %v2565 = vpop.xlane.xlu0 %2564
        %v2566 = vsel %vm2559, %v2558, -inf
        %2567 = vmax.xlane.f32.xlu0 %v2566
        %v2568 = vpop.xlane.xlu0 %2567
        %v2569 = vsub.f32 %v2556, %v2562
        %v2570 = vsub.f32 %v2557, %v2565
        %v2571 = vsub.f32 %v2558, %v2568
        %v2572 = vmul.f32 %v2569, 1.442695
        %v2573 = vpow.pop %v2572
        %v2574 = vmul.f32 %v2570, 1.442695
        %v2575 = vpow.pop %v2574
        %v2576 = vmul.f32 %v2571, 1.442695
        %v2577 = vpow.pop %v2576
        %v2578 = vsel %vm2559, %v2573, 0.0
        %2579 = vadd.xlane.f32.xlu0 %v2578
        %v2580 = vpop.xlane.xlu0 %2579
        %v2581 = vsel %vm2559, %v2575, 0.0
        %2582 = vadd.xlane.f32.xlu0 %v2581
        %v2583 = vpop.xlane.xlu0 %2582
        %v2584 = vsel %vm2559, %v2577, 0.0
        %2585 = vadd.xlane.f32.xlu0 %v2584
        %v2586 = vpop.xlane.xlu0 %2585
        %v2587 = vrcp.pop %v2580
        %v2588 = vrcp.pop %v2583
        %v2589 = vrcp.pop %v2586
        %v2590 = vmul.f32 %v2573, %v2587
        %v2591 = vmul.f32 %v2575, %v2588
        %v2592 = vmul.f32 %v2577, %v2589
        %v2593 = vpack.c.bf16 %v2591, %v2590
        %v2594 = vpack.c.bf16 %v2592, %v2592
        %v2595 = vpack.c.bf16 %v2471, %v2469
        %v2596 = vpack.c.bf16 %v2474, %v2474
        %v2598 = vsel %vm2559, %v2593, 0
        %v2601 = vsel %vm2559, %v2594, 0
        %vm2603 = vcmask 1043456
        %v2605 = vsel %vm2603, %v2596, 0
        %2607 = vmatpush.bf16.msra.mxu0 0
        %2608 = vmatpush.bf16.msra.mxu0 0
        %2609 = vmatpush.bf16.msra.mxu0 0
        %2610 = vmatpush.bf16.msra.mxu0 0
        %2611 = vmatpush.bf16.msra.mxu0 0
        %2612 = vmatpush.bf16.msra.mxu0 0
        %2613 = vmatpush.bf16.msra.mxu0 %v2605
        %2614 = vmatpush.bf16.msra.mxu0 %v2595
        %2615 = vmatmul.bf16.gmra.mxu0 %v2598
        %v2616 = vpop.f32.mrf.mxu0
        %v2617 = vadd.f32 0.0, %v2616
        %v2618 = vpop.f32.mrf.mxu0
        %v2619 = vadd.f32 0.0, %v2618
        %2620 = vmatmul.bf16.gmra.mxu0 %v2601
        %v2621 = vpop.f32.mrf.mxu0
        %v2622 = vadd.f32 0.0, %v2621
        %v2623 = vpop.f32.mrf.mxu0
        %2624 = vdwg.mxu0
        %v2625 = vpack.c.bf16 %v2327, %v2325
        %v2626 = vpack.c.bf16 %v2330, %v2330
        %v2627 = vpack.c.bf16 %v2423, %v2421
        %v2628 = vpack.c.bf16 %v2426, %v2426
        %2629 = vmatpush.bf16.xpose.msra.mxu0 0
        %2630 = vmatpush.bf16.xpose.msra.mxu0 0
        %2631 = vmatpush.bf16.xpose.msra.mxu0 0
        %2632 = vmatpush.bf16.xpose.msra.mxu0 0
        %2633 = vmatpush.bf16.xpose.msra.mxu0 0
        %2634 = vmatpush.bf16.xpose.msra.mxu0 0
        %2635 = vmatpush.bf16.xpose.msra.mxu0 %v2628
        %2636 = vmatpush.bf16.xpose.msra.mxu0 %v2627
        %2637 = vmatmul.bf16.gmra.mxu0 %v2625
        %v2638 = vpop.f32.mrf.mxu0
        %v2639 = vadd.f32 0.0, %v2638
        %v2640 = vpop.f32.mrf.mxu0
        %v2641 = vadd.f32 0.0, %v2640
        %2642 = vmatmul.bf16.gmra.mxu0 %v2626
        %v2643 = vpop.f32.mrf.mxu0
        %v2644 = vadd.f32 0.0, %v2643
        %v2645 = vpop.f32.mrf.mxu0
        %2646 = vdwg.mxu0
        %v2647 = vmul.f32 %v2639, 0.088388346
        %v2648 = vmul.f32 %v2641, 0.088388346
        %v2649 = vmul.f32 %v2644, 0.088388346
        %v2650 = vadd.f32 %v2647, %v1453
        %v2651 = vadd.f32 %v2648, %v1453
        %v2652 = vadd.f32 %v2649, %v1453
        %v2653 = vsel %vm2559, %v2650, -inf
        %2654 = vmax.xlane.f32.xlu0 %v2653
        %v2655 = vpop.xlane.xlu0 %2654
        %v2656 = vsel %vm2559, %v2651, -inf
        %2657 = vmax.xlane.f32.xlu0 %v2656
        %v2658 = vpop.xlane.xlu0 %2657
        %v2659 = vsel %vm2559, %v2652, -inf
        %2660 = vmax.xlane.f32.xlu0 %v2659
        %v2661 = vpop.xlane.xlu0 %2660
        %v2662 = vsub.f32 %v2650, %v2655
        %v2663 = vsub.f32 %v2651, %v2658
        %v2664 = vsub.f32 %v2652, %v2661
        %v2665 = vmul.f32 %v2662, 1.442695
        %v2666 = vpow.pop %v2665
        %v2667 = vmul.f32 %v2663, 1.442695
        %v2668 = vpow.pop %v2667
        %v2669 = vmul.f32 %v2664, 1.442695
        %v2670 = vpow.pop %v2669
        %v2671 = vsel %vm2559, %v2666, 0.0
        %2672 = vadd.xlane.f32.xlu0 %v2671
        %v2673 = vpop.xlane.xlu0 %2672
        %v2674 = vsel %vm2559, %v2668, 0.0
        %2675 = vadd.xlane.f32.xlu0 %v2674
        %v2676 = vpop.xlane.xlu0 %2675
        %v2677 = vsel %vm2559, %v2670, 0.0
        %2678 = vadd.xlane.f32.xlu0 %v2677
        %v2679 = vpop.xlane.xlu0 %2678
        %v2680 = vrcp.pop %v2673
        %v2681 = vrcp.pop %v2676
        %v2682 = vrcp.pop %v2679
        %v2683 = vmul.f32 %v2666, %v2680
        %v2684 = vmul.f32 %v2668, %v2681
        %v2685 = vmul.f32 %v2670, %v2682
        %v2686 = vpack.c.bf16 %v2684, %v2683
        %v2687 = vpack.c.bf16 %v2685, %v2685
        %v2688 = vpack.c.bf16 %v2519, %v2517
        %v2689 = vpack.c.bf16 %v2522, %v2522
        %v2691 = vsel %vm2559, %v2686, 0
        %v2694 = vsel %vm2559, %v2687, 0
        %v2697 = vsel %vm2603, %v2689, 0
        %2699 = vmatpush.bf16.msra.mxu0 0
        %2700 = vmatpush.bf16.msra.mxu0 0
        %2701 = vmatpush.bf16.msra.mxu0 0
        %2702 = vmatpush.bf16.msra.mxu0 0
        %2703 = vmatpush.bf16.msra.mxu0 0
        %2704 = vmatpush.bf16.msra.mxu0 0
        %2705 = vmatpush.bf16.msra.mxu0 %v2697
        %2706 = vmatpush.bf16.msra.mxu0 %v2688
        %2707 = vmatmul.bf16.gmra.mxu0 %v2691
        %v2708 = vpop.f32.mrf.mxu0
        %v2709 = vadd.f32 0.0, %v2708
        %v2710 = vpop.f32.mrf.mxu0
        %v2711 = vadd.f32 0.0, %v2710
        %2712 = vmatmul.bf16.gmra.mxu0 %v2694
        %v2713 = vpop.f32.mrf.mxu0
        %v2714 = vadd.f32 0.0, %v2713
        %v2715 = vpop.f32.mrf.mxu0
        %2716 = vdwg.mxu0
        %v2717 = vpack.c.bf16 %v2287, %v2284
        %v2718 = vpack.c.bf16 %v2289, %v2289
        %v2719 = vpack.c.bf16 %v2383, %v2380
        %v2720 = vpack.c.bf16 %v2385, %v2385
        %2721 = vmatpush.bf16.xpose.msra.mxu0 0
        %2722 = vmatpush.bf16.xpose.msra.mxu0 0
        %2723 = vmatpush.bf16.xpose.msra.mxu0 0
        %2724 = vmatpush.bf16.xpose.msra.mxu0 0
        %2725 = vmatpush.bf16.xpose.msra.mxu0 0
        %2726 = vmatpush.bf16.xpose.msra.mxu0 0
        %2727 = vmatpush.bf16.xpose.msra.mxu0 %v2720
        %2728 = vmatpush.bf16.xpose.msra.mxu0 %v2719
        %2729 = vmatmul.bf16.gmra.mxu0 %v2717
        %v2730 = vpop.f32.mrf.mxu0
        %v2731 = vadd.f32 0.0, %v2730
        %v2732 = vpop.f32.mrf.mxu0
        %v2733 = vadd.f32 0.0, %v2732
        %2734 = vmatmul.bf16.gmra.mxu0 %v2718
        %v2735 = vpop.f32.mrf.mxu0
        %v2736 = vadd.f32 0.0, %v2735
        %v2737 = vpop.f32.mrf.mxu0
        %2738 = vdwg.mxu0
        %v2739 = vmul.f32 %v2731, 0.088388346
        %v2740 = vmul.f32 %v2733, 0.088388346
        %v2741 = vmul.f32 %v2736, 0.088388346
        %v2742 = vadd.f32 %v2739, %v1453
        %v2743 = vadd.f32 %v2740, %v1453
        %v2744 = vadd.f32 %v2741, %v1453
        %v2745 = vsel %vm2559, %v2742, -inf
        %2746 = vmax.xlane.f32.xlu0 %v2745
        %v2747 = vpop.xlane.xlu0 %2746
        %v2748 = vsel %vm2559, %v2743, -inf
        %2749 = vmax.xlane.f32.xlu0 %v2748
        %v2750 = vpop.xlane.xlu0 %2749
        %v2751 = vsel %vm2559, %v2744, -inf
        %2752 = vmax.xlane.f32.xlu0 %v2751
        %v2753 = vpop.xlane.xlu0 %2752
        %v2754 = vsub.f32 %v2742, %v2747
        %v2755 = vsub.f32 %v2743, %v2750
        %v2756 = vsub.f32 %v2744, %v2753
        %v2757 = vmul.f32 %v2754, 1.442695
        %v2758 = vpow.pop %v2757
        %v2759 = vmul.f32 %v2755, 1.442695
        %v2760 = vpow.pop %v2759
        %v2761 = vmul.f32 %v2756, 1.442695
        %v2762 = vpow.pop %v2761
        %v2763 = vsel %vm2559, %v2758, 0.0
        %2764 = vadd.xlane.f32.xlu0 %v2763
        %v2765 = vpop.xlane.xlu0 %2764
        %v2766 = vsel %vm2559, %v2760, 0.0
        %2767 = vadd.xlane.f32.xlu0 %v2766
        %v2768 = vpop.xlane.xlu0 %2767
        %v2769 = vsel %vm2559, %v2762, 0.0
        %2770 = vadd.xlane.f32.xlu0 %v2769
        %v2771 = vpop.xlane.xlu0 %2770
        %v2772 = vrcp.pop %v2765
        %v2773 = vrcp.pop %v2768
        %v2774 = vrcp.pop %v2771
        %v2775 = vmul.f32 %v2758, %v2772
        %v2776 = vmul.f32 %v2760, %v2773
        %v2777 = vmul.f32 %v2762, %v2774
        %v2778 = vpack.c.bf16 %v2776, %v2775
        %v2779 = vpack.c.bf16 %v2777, %v2777
        %v2780 = vpack.c.bf16 %v2479, %v2476
        %v2781 = vpack.c.bf16 %v2481, %v2481
        %v2783 = vsel %vm2559, %v2778, 0
        %v2786 = vsel %vm2559, %v2779, 0
        %v2789 = vsel %vm2603, %v2781, 0
        %2791 = vmatpush.bf16.msra.mxu0 0
        %2792 = vmatpush.bf16.msra.mxu0 0
        %2793 = vmatpush.bf16.msra.mxu0 0
        %2794 = vmatpush.bf16.msra.mxu0 0
        %2795 = vmatpush.bf16.msra.mxu0 0
        %2796 = vmatpush.bf16.msra.mxu0 0
        %2797 = vmatpush.bf16.msra.mxu0 %v2789
        %2798 = vmatpush.bf16.msra.mxu0 %v2780
        %2799 = vmatmul.bf16.gmra.mxu0 %v2783
        %v2800 = vpop.f32.mrf.mxu0
        %v2801 = vadd.f32 0.0, %v2800
        %v2802 = vpop.f32.mrf.mxu0
        %v2803 = vadd.f32 0.0, %v2802
        %2804 = vmatmul.bf16.gmra.mxu0 %v2786
        %v2805 = vpop.f32.mrf.mxu0
        %v2806 = vadd.f32 0.0, %v2805
        %v2807 = vpop.f32.mrf.mxu0
        %2808 = vdwg.mxu0
        %v2809 = vpack.c.bf16 %v2335, %v2332
        %v2810 = vpack.c.bf16 %v2337, %v2337
        %v2811 = vpack.c.bf16 %v2431, %v2428
        %v2812 = vpack.c.bf16 %v2433, %v2433
        %2813 = vmatpush.bf16.xpose.msra.mxu0 0
        %2814 = vmatpush.bf16.xpose.msra.mxu0 0
        %2815 = vmatpush.bf16.xpose.msra.mxu0 0
        %2816 = vmatpush.bf16.xpose.msra.mxu0 0
        %2817 = vmatpush.bf16.xpose.msra.mxu0 0
        %2818 = vmatpush.bf16.xpose.msra.mxu0 0
        %2819 = vmatpush.bf16.xpose.msra.mxu0 %v2812
        %2820 = vmatpush.bf16.xpose.msra.mxu0 %v2811
        %2821 = vmatmul.bf16.gmra.mxu0 %v2809
        %v2822 = vpop.f32.mrf.mxu0
        %v2823 = vadd.f32 0.0, %v2822
        %v2824 = vpop.f32.mrf.mxu0
        %v2825 = vadd.f32 0.0, %v2824
        %2826 = vmatmul.bf16.gmra.mxu0 %v2810
        %v2827 = vpop.f32.mrf.mxu0
        %v2828 = vadd.f32 0.0, %v2827
        %v2829 = vpop.f32.mrf.mxu0
        %2830 = vdwg.mxu0
        %v2831 = vmul.f32 %v2823, 0.088388346
        %v2832 = vmul.f32 %v2825, 0.088388346
        %v2833 = vmul.f32 %v2828, 0.088388346
        %v2834 = vadd.f32 %v2831, %v1453
        %v2835 = vadd.f32 %v2832, %v1453
        %v2836 = vadd.f32 %v2833, %v1453
        %v2837 = vsel %vm2559, %v2834, -inf
        %2838 = vmax.xlane.f32.xlu0 %v2837
        %v2839 = vpop.xlane.xlu0 %2838
        %v2840 = vsel %vm2559, %v2835, -inf
        %2841 = vmax.xlane.f32.xlu0 %v2840
        %v2842 = vpop.xlane.xlu0 %2841
        %v2843 = vsel %vm2559, %v2836, -inf
        %2844 = vmax.xlane.f32.xlu0 %v2843
        %v2845 = vpop.xlane.xlu0 %2844
        %v2846 = vsub.f32 %v2834, %v2839
        %v2847 = vsub.f32 %v2835, %v2842
        %v2848 = vsub.f32 %v2836, %v2845
        %v2849 = vmul.f32 %v2846, 1.442695
        %v2850 = vpow.pop %v2849
        %v2851 = vmul.f32 %v2847, 1.442695
        %v2852 = vpow.pop %v2851
        %v2853 = vmul.f32 %v2848, 1.442695
        %v2854 = vpow.pop %v2853
        %v2855 = vsel %vm2559, %v2850, 0.0
        %2856 = vadd.xlane.f32.xlu0 %v2855
        %v2857 = vpop.xlane.xlu0 %2856
        %v2858 = vsel %vm2559, %v2852, 0.0
        %2859 = vadd.xlane.f32.xlu0 %v2858
        %v2860 = vpop.xlane.xlu0 %2859
        %v2861 = vsel %vm2559, %v2854, 0.0
        %2862 = vadd.xlane.f32.xlu0 %v2861
        %v2863 = vpop.xlane.xlu0 %2862
        %v2864 = vrcp.pop %v2857
        %v2865 = vrcp.pop %v2860
        %v2866 = vrcp.pop %v2863
        %v2867 = vmul.f32 %v2850, %v2864
        %v2868 = vmul.f32 %v2852, %v2865
        %v2869 = vmul.f32 %v2854, %v2866
        %v2870 = vpack.c.bf16 %v2868, %v2867
        %v2871 = vpack.c.bf16 %v2869, %v2869
        %v2872 = vpack.c.bf16 %v2527, %v2524
        %v2873 = vpack.c.bf16 %v2529, %v2529
        %v2875 = vsel %vm2559, %v2870, 0
        %v2878 = vsel %vm2559, %v2871, 0
        %v2881 = vsel %vm2603, %v2873, 0
        %2883 = vmatpush.bf16.msra.mxu0 0
        %2884 = vmatpush.bf16.msra.mxu0 0
        %2885 = vmatpush.bf16.msra.mxu0 0
        %2886 = vmatpush.bf16.msra.mxu0 0
        %2887 = vmatpush.bf16.msra.mxu0 0
        %2888 = vmatpush.bf16.msra.mxu0 0
        %2889 = vmatpush.bf16.msra.mxu0 %v2881
        %2890 = vmatpush.bf16.msra.mxu0 %v2872
        %2891 = vmatmul.bf16.gmra.mxu0 %v2875
        %v2892 = vpop.f32.mrf.mxu0
        %v2893 = vadd.f32 0.0, %v2892
        %v2894 = vpop.f32.mrf.mxu0
        %v2895 = vadd.f32 0.0, %v2894
        %2896 = vmatmul.bf16.gmra.mxu0 %v2878
        %v2897 = vpop.f32.mrf.mxu0
        %v2898 = vadd.f32 0.0, %v2897
        %v2899 = vpop.f32.mrf.mxu0
        %2900 = vdwg.mxu0
        %v2901 = vpack.c.bf16 %v2619, %v2617
        %v2902 = vpack.c.bf16 %v2711, %v2709
        %v2903 = vpack.c.bf16 %v2801, %v2622
        %v2904 = vpack.c.bf16 %v2893, %v2714
        %v2905 = vpack.c.bf16 %v2806, %v2803
        %v2906 = vpack.c.bf16 %v2898, %v2895
        %v2907 = vld [vmem:[%s932] sm:$0xff]
        %v2908 = vld [vmem:[%s932 + $0x8] sm:$0xff]
        %v2909 = vld [vmem:[%s932 + $0x10] sm:$0xff]
        %v2910 = vld [vmem:[%s932 + $0x18] sm:$0xff]
        %v2911 = vld [vmem:[%s932 + $0x20] sm:$0xff]
        %v2912 = vld [vmem:[%s932 + $0x28] sm:$0xff]
        %v2913 = vld [vmem:[%s932 + $0x30] sm:$0xff]
        %v2914 = vld [vmem:[%s932 + $0x38] sm:$0xff]
        %v2915 = vld [vmem:[%s932 + $0x40] sm:$0xff]
        %v2916 = vld [vmem:[%s932 + $0x48] sm:$0xff]
        %v2917 = vld [vmem:[%s932 + $0x50] sm:$0xff]
        %v2918 = vld [vmem:[%s932 + $0x58] sm:$0xff]
        %v2919 = vld [vmem:[%s932 + $0x60] sm:$0xff]
        %v2920 = vld [vmem:[%s932 + $0x68] sm:$0xff]
        %v2921 = vld [vmem:[%s932 + $0x70] sm:$0xff]
        %v2922 = vld [vmem:[%s932 + $0x78] sm:$0xff]
        %v2923 = vld [vmem:[%s932 + $0x80] sm:$0xff]
        %v2924 = vld [vmem:[%s932 + $0x88] sm:$0xff]
        %v2925 = vld [vmem:[%s932 + $0x90] sm:$0xff]
        %v2926 = vld [vmem:[%s932 + $0x98] sm:$0xff]
        %v2927 = vld [vmem:[%s932 + $0xa0] sm:$0xff]
        %v2928 = vld [vmem:[%s932 + $0xa8] sm:$0xff]
        %v2929 = vld [vmem:[%s932 + $0xb0] sm:$0xff]
        %v2930 = vld [vmem:[%s932 + $0xb8] sm:$0xff]
        %v2931 = vld [vmem:[%s932 + $0xc0] sm:$0xff]
        %v2932 = vld [vmem:[%s932 + $0xc8] sm:$0xff]
        %v2933 = vld [vmem:[%s932 + $0xd0] sm:$0xff]
        %v2934 = vld [vmem:[%s932 + $0xd8] sm:$0xff]
        %v2935 = vld [vmem:[%s932 + $0xe0] sm:$0xff]
        %v2936 = vld [vmem:[%s932 + $0xe8] sm:$0xff]
        %v2937 = vld [vmem:[%s932 + $0xf0] sm:$0xff]
        %v2938 = vld [vmem:[%s932 + $0xf8] sm:$0xff]
        %v2939 = vld [vmem:[%s942] sm:$0x3]
        %v2941 = vperm.slane %v2939, 0
        %v2942 = vperm.slane %v2939, 1
        %v2977 = vunpack.c.l.b16 %v2907
        %v2978 = vunpack.c.h.b16 %v2907
        %v2979 = vunpack.c.l.b16 %v2908
        %v2980 = vunpack.c.h.b16 %v2908
        %v2981 = vunpack.c.l.b16 %v2909
        %v2982 = vunpack.c.h.b16 %v2909
        %v2983 = vunpack.c.l.b16 %v2910
        %v2984 = vunpack.c.h.b16 %v2910
        %v2985 = vunpack.c.l.b16 %v2911
        %v2986 = vunpack.c.h.b16 %v2911
        %v2987 = vunpack.c.l.b16 %v2912
        %v2988 = vunpack.c.h.b16 %v2912
        %v2989 = vunpack.c.l.b16 %v2913
        %v2990 = vunpack.c.h.b16 %v2913
        %v2991 = vunpack.c.l.b16 %v2914
        %v2992 = vunpack.c.h.b16 %v2914
        %v2993 = vunpack.c.l.b16 %v2915
        %v2994 = vunpack.c.h.b16 %v2915
        %v2995 = vunpack.c.l.b16 %v2916
        %v2996 = vunpack.c.h.b16 %v2916
        %v2997 = vunpack.c.l.b16 %v2917
        %v2998 = vunpack.c.h.b16 %v2917
        %v2999 = vunpack.c.l.b16 %v2918
        %v3000 = vunpack.c.h.b16 %v2918
        %v3001 = vunpack.c.l.b16 %v2919
        %v3002 = vunpack.c.h.b16 %v2919
        %v3003 = vunpack.c.l.b16 %v2920
        %v3004 = vunpack.c.h.b16 %v2920
        %v3005 = vunpack.c.l.b16 %v2921
        %v3006 = vunpack.c.h.b16 %v2921
        %v3007 = vunpack.c.l.b16 %v2922
        %v3008 = vunpack.c.h.b16 %v2922
        %v3009 = vunpack.c.l.b16 %v2923
        %v3010 = vunpack.c.h.b16 %v2923
        %v3011 = vunpack.c.l.b16 %v2924
        %v3012 = vunpack.c.h.b16 %v2924
        %v3013 = vunpack.c.l.b16 %v2925
        %v3014 = vunpack.c.h.b16 %v2925
        %v3015 = vunpack.c.l.b16 %v2926
        %v3016 = vunpack.c.h.b16 %v2926
        %v3017 = vunpack.c.l.b16 %v2927
        %v3018 = vunpack.c.h.b16 %v2927
        %v3019 = vunpack.c.l.b16 %v2928
        %v3020 = vunpack.c.h.b16 %v2928
        %v3021 = vunpack.c.l.b16 %v2929
        %v3022 = vunpack.c.h.b16 %v2929
        %v3023 = vunpack.c.l.b16 %v2930
        %v3024 = vunpack.c.h.b16 %v2930
        %v3025 = vunpack.c.l.b16 %v2931
        %v3026 = vunpack.c.h.b16 %v2931
        %v3027 = vunpack.c.l.b16 %v2932
        %v3028 = vunpack.c.h.b16 %v2932
        %v3029 = vunpack.c.l.b16 %v2933
        %v3030 = vunpack.c.h.b16 %v2933
        %v3031 = vunpack.c.l.b16 %v2934
        %v3032 = vunpack.c.h.b16 %v2934
        %v3033 = vunpack.c.l.b16 %v2935
        %v3034 = vunpack.c.h.b16 %v2935
        %v3035 = vunpack.c.l.b16 %v2936
        %v3036 = vunpack.c.h.b16 %v2936
        %v3037 = vunpack.c.l.b16 %v2937
        %v3038 = vunpack.c.h.b16 %v2937
        %v3039 = vunpack.c.l.b16 %v2938
        %v3040 = vunpack.c.h.b16 %v2938
        %v3041 = vpack.c.b16 %v2979, %v2977
        %v3042 = vpack.c.b16 %v2980, %v2978
        %v3043 = vpack.c.b16 %v2983, %v2981
        %v3044 = vpack.c.b16 %v2984, %v2982
        %v3045 = vpack.c.b16 %v2987, %v2985
        %v3046 = vpack.c.b16 %v2988, %v2986
        %v3047 = vpack.c.b16 %v2991, %v2989
        %v3048 = vpack.c.b16 %v2992, %v2990
        %v3049 = vpack.c.b16 %v2995, %v2993
        %v3050 = vpack.c.b16 %v2996, %v2994
        %v3051 = vpack.c.b16 %v2999, %v2997
        %v3052 = vpack.c.b16 %v3000, %v2998
        %v3053 = vpack.c.b16 %v3003, %v3001
        %v3054 = vpack.c.b16 %v3004, %v3002
        %v3055 = vpack.c.b16 %v3007, %v3005
        %v3056 = vpack.c.b16 %v3008, %v3006
        %v3057 = vpack.c.b16 %v3011, %v3009
        %v3058 = vpack.c.b16 %v3012, %v3010
        %v3059 = vpack.c.b16 %v3015, %v3013
        %v3060 = vpack.c.b16 %v3016, %v3014
        %v3061 = vpack.c.b16 %v3019, %v3017
        %v3062 = vpack.c.b16 %v3020, %v3018
        %v3063 = vpack.c.b16 %v3023, %v3021
        %v3064 = vpack.c.b16 %v3024, %v3022
        %v3065 = vpack.c.b16 %v3027, %v3025
        %v3066 = vpack.c.b16 %v3028, %v3026
        %v3067 = vpack.c.b16 %v3031, %v3029
        %v3068 = vpack.c.b16 %v3032, %v3030
        %v3069 = vpack.c.b16 %v3035, %v3033
        %v3070 = vpack.c.b16 %v3036, %v3034
        %v3071 = vpack.c.b16 %v3039, %v3037
        %v3072 = vpack.c.b16 %v3040, %v3038
        %3105 = vmatpush.bf16.msra.mxu0 %v3055
        %3106 = vmatpush.bf16.msra.mxu0 %v3053
        %3107 = vmatpush.bf16.msra.mxu0 %v3051
        %3108 = vmatpush.bf16.msra.mxu0 %v3049
        %3109 = vmatpush.bf16.msra.mxu0 %v3047
        %3110 = vmatpush.bf16.msra.mxu0 %v3045
        %3111 = vmatpush.bf16.msra.mxu0 %v3043
        %3112 = vmatpush.bf16.msra.mxu0 %v3041
        %3113 = vmatmul.bf16.gmra.mxu0 %v2901
        %v3114 = vpop.f32.mrf.mxu0
        %v3115 = vadd.f32 %v2941, %v3114
        %v3116 = vpop.f32.mrf.mxu0
        %v3117 = vadd.f32 %v2941, %v3116
        %3118 = vmatmul.bf16.gmra.mxu0 %v2903
        %v3119 = vpop.f32.mrf.mxu0
        %v3120 = vadd.f32 %v2941, %v3119
        %v3121 = vpop.f32.mrf.mxu0
        %v3122 = vadd.f32 %v2941, %v3121
        %3123 = vmatmul.bf16.gmra.mxu0 %v2905
        %v3124 = vpop.f32.mrf.mxu0
        %v3125 = vadd.f32 %v2941, %v3124
        %v3126 = vpop.f32.mrf.mxu0
        %v3127 = vadd.f32 %v2941, %v3126
        %3128 = vdwg.mxu0
        %3129 = vmatpush.bf16.msra.mxu0 %v3071
        %3130 = vmatpush.bf16.msra.mxu0 %v3069
        %3131 = vmatpush.bf16.msra.mxu0 %v3067
        %3132 = vmatpush.bf16.msra.mxu0 %v3065
        %3133 = vmatpush.bf16.msra.mxu0 %v3063
        %3134 = vmatpush.bf16.msra.mxu0 %v3061
        %3135 = vmatpush.bf16.msra.mxu0 %v3059
        %3136 = vmatpush.bf16.msra.mxu0 %v3057
        %3137 = vmatmul.bf16.gmra.mxu0 %v2902
        %v3138 = vpop.f32.mrf.mxu0
        %v3139 = vadd.f32 %v3115, %v3138
        %v3140 = vpop.f32.mrf.mxu0
        %v3141 = vadd.f32 %v3117, %v3140
        %3142 = vmatmul.bf16.gmra.mxu0 %v2904
        %v3143 = vpop.f32.mrf.mxu0
        %v3144 = vadd.f32 %v3120, %v3143
        %v3145 = vpop.f32.mrf.mxu0
        %v3146 = vadd.f32 %v3122, %v3145
        %3147 = vmatmul.bf16.gmra.mxu0 %v2906
        %v3148 = vpop.f32.mrf.mxu0
        %v3149 = vadd.f32 %v3125, %v3148
        %v3150 = vpop.f32.mrf.mxu0
        %v3151 = vadd.f32 %v3127, %v3150
        %3152 = vdwg.mxu0
        %3153 = vmatpush.bf16.msra.mxu0 %v3056
        %3154 = vmatpush.bf16.msra.mxu0 %v3054
        %3155 = vmatpush.bf16.msra.mxu0 %v3052
        %3156 = vmatpush.bf16.msra.mxu0 %v3050
        %3157 = vmatpush.bf16.msra.mxu0 %v3048
        %3158 = vmatpush.bf16.msra.mxu0 %v3046
        %3159 = vmatpush.bf16.msra.mxu0 %v3044
        %3160 = vmatpush.bf16.msra.mxu0 %v3042
        %3161 = vmatmul.bf16.gmra.mxu0 %v2901
        %v3162 = vpop.f32.mrf.mxu0
        %v3163 = vadd.f32 %v2942, %v3162
        %v3164 = vpop.f32.mrf.mxu0
        %v3165 = vadd.f32 %v2942, %v3164
        %3166 = vmatmul.bf16.gmra.mxu0 %v2903
        %v3167 = vpop.f32.mrf.mxu0
        %v3168 = vadd.f32 %v2942, %v3167
        %v3169 = vpop.f32.mrf.mxu0
        %v3170 = vadd.f32 %v2942, %v3169
        %3171 = vmatmul.bf16.gmra.mxu0 %v2905
        %v3172 = vpop.f32.mrf.mxu0
        %v3173 = vadd.f32 %v2942, %v3172
        %v3174 = vpop.f32.mrf.mxu0
        %v3175 = vadd.f32 %v2942, %v3174
        %3176 = vdwg.mxu0
        %3177 = vmatpush.bf16.msra.mxu0 %v3072
        %3178 = vmatpush.bf16.msra.mxu0 %v3070
        %3179 = vmatpush.bf16.msra.mxu0 %v3068
        %3180 = vmatpush.bf16.msra.mxu0 %v3066
        %3181 = vmatpush.bf16.msra.mxu0 %v3064
        %3182 = vmatpush.bf16.msra.mxu0 %v3062
        %3183 = vmatpush.bf16.msra.mxu0 %v3060
        %3184 = vmatpush.bf16.msra.mxu0 %v3058
        %3185 = vmatmul.bf16.gmra.mxu0 %v2902
        %v3186 = vpop.f32.mrf.mxu0
        %v3187 = vadd.f32 %v3163, %v3186
        %v3188 = vpop.f32.mrf.mxu0
        %v3189 = vadd.f32 %v3165, %v3188
        %3190 = vmatmul.bf16.gmra.mxu0 %v2904
        %v3191 = vpop.f32.mrf.mxu0
        %v3192 = vadd.f32 %v3168, %v3191
        %v3193 = vpop.f32.mrf.mxu0
        %v3194 = vadd.f32 %v3170, %v3193
        %3195 = vmatmul.bf16.gmra.mxu0 %v2906
        %v3196 = vpop.f32.mrf.mxu0
        %v3197 = vadd.f32 %v3173, %v3196
        %v3198 = vpop.f32.mrf.mxu0
        %v3199 = vadd.f32 %v3175, %v3198
        %3200 = vdwg.mxu0
        %v3201 = vadd.f32 %v1438, %v3139
        %v3202 = vadd.f32 %v1439, %v3187
        %v3203 = vadd.f32 %v1440, %v3141
        %v3204 = vadd.f32 %v1441, %v3189
        %v3205 = vadd.f32 %v1442, %v3144
        %v3206 = vadd.f32 %v1443, %v3192
        %v3207 = vadd.f32 %v1444, %v3146
        %v3208 = vadd.f32 %v1445, %v3194
        %v3209 = vadd.f32 %v1446, %v3149
        %v3210 = vadd.f32 %v1447, %v3197
        %v3211 = vadd.f32 %v1448, %v3151
        %v3212 = vadd.f32 %v1449, %v3199
        %v3213 = vld [vmem:[%s952] sm:$0x3]
        %v3214 = vld [vmem:[%s962] sm:$0x3]
        %v3215 = vadd.f32 %v3201, %v3202
        %3216 = vadd.xlane.f32.xlu0 %v3215
        %v3217 = vpop.xlane.xlu0 %3216
        %v3218 = vadd.f32 %v3203, %v3204
        %3219 = vadd.xlane.f32.xlu0 %v3218
        %v3220 = vpop.xlane.xlu0 %3219
        %v3221 = vadd.f32 %v3205, %v3206
        %3222 = vadd.xlane.f32.xlu0 %v3221
        %v3223 = vpop.xlane.xlu0 %3222
        %v3224 = vadd.f32 %v3207, %v3208
        %3225 = vadd.xlane.f32.xlu0 %v3224
        %v3226 = vpop.xlane.xlu0 %3225
        %v3227 = vadd.f32 %v3209, %v3210
        %3228 = vadd.xlane.f32.xlu0 %v3227
        %v3229 = vpop.xlane.xlu0 %3228
        %v3230 = vadd.f32 %v3211, %v3212
        %3231 = vadd.xlane.f32.xlu0 %v3230
        %v3232 = vpop.xlane.xlu0 %3231
        %v3233 = vmul.f32 %v3217, %v1480
        %v3234 = vmul.f32 %v3220, %v1480
        %v3235 = vmul.f32 %v3223, %v1480
        %v3236 = vmul.f32 %v3226, %v1480
        %v3237 = vmul.f32 %v3229, %v1480
        %v3238 = vmul.f32 %v3232, %v1480
        %v3239 = vsub.f32 %v3201, %v3233
        %v3240 = vsub.f32 %v3202, %v3233
        %v3241 = vsub.f32 %v3203, %v3234
        %v3242 = vsub.f32 %v3204, %v3234
        %v3243 = vsub.f32 %v3205, %v3235
        %v3244 = vsub.f32 %v3206, %v3235
        %v3245 = vsub.f32 %v3207, %v3236
        %v3246 = vsub.f32 %v3208, %v3236
        %v3247 = vsub.f32 %v3209, %v3237
        %v3248 = vsub.f32 %v3210, %v3237
        %v3249 = vsub.f32 %v3211, %v3238
        %v3250 = vsub.f32 %v3212, %v3238
        %v3251 = vmul.f32 %v3239, %v3239
        %v3252 = vmul.f32 %v3240, %v3240
        %v3253 = vmul.f32 %v3241, %v3241
        %v3254 = vmul.f32 %v3242, %v3242
        %v3255 = vmul.f32 %v3243, %v3243
        %v3256 = vmul.f32 %v3244, %v3244
        %v3257 = vmul.f32 %v3245, %v3245
        %v3258 = vmul.f32 %v3246, %v3246
        %v3259 = vmul.f32 %v3247, %v3247
        %v3260 = vmul.f32 %v3248, %v3248
        %v3261 = vmul.f32 %v3249, %v3249
        %v3262 = vmul.f32 %v3250, %v3250
        %v3263 = vadd.f32 %v3251, %v3252
        %3264 = vadd.xlane.f32.xlu0 %v3263
        %v3265 = vpop.xlane.xlu0 %3264
        %v3266 = vadd.f32 %v3253, %v3254
        %3267 = vadd.xlane.f32.xlu0 %v3266
        %v3268 = vpop.xlane.xlu0 %3267
        %v3269 = vadd.f32 %v3255, %v3256
        %3270 = vadd.xlane.f32.xlu0 %v3269
        %v3271 = vpop.xlane.xlu0 %3270
        %v3272 = vadd.f32 %v3257, %v3258
        %3273 = vadd.xlane.f32.xlu0 %v3272
        %v3274 = vpop.xlane.xlu0 %3273
        %v3275 = vadd.f32 %v3259, %v3260
        %3276 = vadd.xlane.f32.xlu0 %v3275
        %v3277 = vpop.xlane.xlu0 %3276
        %v3278 = vadd.f32 %v3261, %v3262
        %3279 = vadd.xlane.f32.xlu0 %v3278
        %v3280 = vpop.xlane.xlu0 %3279
        %v3281 = vmul.f32 %v3265, %v1480
        %v3282 = vmul.f32 %v3268, %v1480
        %v3283 = vmul.f32 %v3271, %v1480
        %v3284 = vmul.f32 %v3274, %v1480
        %v3285 = vmul.f32 %v3277, %v1480
        %v3286 = vmul.f32 %v3280, %v1480
        %v3287 = vadd.f32 %v3281, 1e-05
        %v3288 = vadd.f32 %v3282, 1e-05
        %v3289 = vadd.f32 %v3283, 1e-05
        %v3290 = vadd.f32 %v3284, 1e-05
        %v3291 = vadd.f32 %v3285, 1e-05
        %v3292 = vadd.f32 %v3286, 1e-05
        %v3293 = vrsqrt.pop %v3287
        %v3294 = vmul.f32 %v3293, %v3287
        %v3295 = vmul.f32 %v3294, %v3293
        %v3296 = vmul.f32 0.5, %v3295
        %v3297 = vsub.f32 1.5, %v3296
        %v3298 = vmul.f32 %v3293, %v3297
        %vm3299 = vweird.f32 %v3287
        %vm3300 = vweird.f32 %v3293
        %vm3301 = vmor %vm3299, %vm3300
        %v3302 = vsel %vm3301, %v3293, %v3298
        %v3303 = vrsqrt.pop %v3288
        %v3304 = vmul.f32 %v3303, %v3288
        %v3305 = vmul.f32 %v3304, %v3303
        %v3306 = vmul.f32 0.5, %v3305
        %v3307 = vsub.f32 1.5, %v3306
        %v3308 = vmul.f32 %v3303, %v3307
        %vm3309 = vweird.f32 %v3288
        %vm3310 = vweird.f32 %v3303
        %vm3311 = vmor %vm3309, %vm3310
        %v3312 = vsel %vm3311, %v3303, %v3308
        %v3313 = vrsqrt.pop %v3289
        %v3314 = vmul.f32 %v3313, %v3289
        %v3315 = vmul.f32 %v3314, %v3313
        %v3316 = vmul.f32 0.5, %v3315
        %v3317 = vsub.f32 1.5, %v3316
        %v3318 = vmul.f32 %v3313, %v3317
        %vm3319 = vweird.f32 %v3289
        %vm3320 = vweird.f32 %v3313
        %vm3321 = vmor %vm3319, %vm3320
        %v3322 = vsel %vm3321, %v3313, %v3318
        %v3323 = vrsqrt.pop %v3290
        %v3324 = vmul.f32 %v3323, %v3290
        %v3325 = vmul.f32 %v3324, %v3323
        %v3326 = vmul.f32 0.5, %v3325
        %v3327 = vsub.f32 1.5, %v3326
        %v3328 = vmul.f32 %v3323, %v3327
        %vm3329 = vweird.f32 %v3290
        %vm3330 = vweird.f32 %v3323
        %vm3331 = vmor %vm3329, %vm3330
        %v3332 = vsel %vm3331, %v3323, %v3328
        %v3333 = vrsqrt.pop %v3291
        %v3334 = vmul.f32 %v3333, %v3291
        %v3335 = vmul.f32 %v3334, %v3333
        %v3336 = vmul.f32 0.5, %v3335
        %v3337 = vsub.f32 1.5, %v3336
        %v3338 = vmul.f32 %v3333, %v3337
        %vm3339 = vweird.f32 %v3291
        %vm3340 = vweird.f32 %v3333
        %vm3341 = vmor %vm3339, %vm3340
        %v3342 = vsel %vm3341, %v3333, %v3338
        %v3343 = vrsqrt.pop %v3292
        %v3344 = vmul.f32 %v3343, %v3292
        %v3345 = vmul.f32 %v3344, %v3343
        %v3346 = vmul.f32 0.5, %v3345
        %v3347 = vsub.f32 1.5, %v3346
        %v3348 = vmul.f32 %v3343, %v3347
        %vm3349 = vweird.f32 %v3292
        %vm3350 = vweird.f32 %v3343
        %vm3351 = vmor %vm3349, %vm3350
        %v3352 = vsel %vm3351, %v3343, %v3348
        %v3353 = vmul.f32 %v3239, %v3302
        %v3354 = vmul.f32 %v3240, %v3302
        %v3355 = vmul.f32 %v3241, %v3312
        %v3356 = vmul.f32 %v3242, %v3312
        %v3357 = vmul.f32 %v3243, %v3322
        %v3358 = vmul.f32 %v3244, %v3322
        %v3359 = vmul.f32 %v3245, %v3332
        %v3360 = vmul.f32 %v3246, %v3332
        %v3361 = vmul.f32 %v3247, %v3342
        %v3362 = vmul.f32 %v3248, %v3342
        %v3363 = vmul.f32 %v3249, %v3352
        %v3364 = vmul.f32 %v3250, %v3352
        %v3366 = vperm.slane %v3213, 0
        %v3367 = vperm.slane %v3213, 1
        %v3370 = vmul.f32 %v3353, %v3366
        %v3371 = vmul.f32 %v3354, %v3367
        %v3372 = vmul.f32 %v3355, %v3366
        %v3373 = vmul.f32 %v3356, %v3367
        %v3374 = vmul.f32 %v3357, %v3366
        %v3375 = vmul.f32 %v3358, %v3367
        %v3376 = vmul.f32 %v3359, %v3366
        %v3377 = vmul.f32 %v3360, %v3367
        %v3378 = vmul.f32 %v3361, %v3366
        %v3379 = vmul.f32 %v3362, %v3367
        %v3380 = vmul.f32 %v3363, %v3366
        %v3381 = vmul.f32 %v3364, %v3367
        %v3383 = vperm.slane %v3214, 0
        %v3384 = vperm.slane %v3214, 1
        %v3387 = vadd.f32 %v3370, %v3383
        %v3388 = vadd.f32 %v3371, %v3384
        %v3389 = vadd.f32 %v3372, %v3383
        %v3390 = vadd.f32 %v3373, %v3384
        %v3391 = vadd.f32 %v3374, %v3383
        %v3392 = vadd.f32 %v3375, %v3384
        %v3393 = vadd.f32 %v3376, %v3383
        %v3394 = vadd.f32 %v3377, %v3384
        %v3395 = vadd.f32 %v3378, %v3383
        %v3396 = vadd.f32 %v3379, %v3384
        %v3397 = vadd.f32 %v3380, %v3383
        %v3398 = vadd.f32 %v3381, %v3384
        %v3399 = vpack.c.bf16 %v3389, %v3387
        %v3400 = vpack.c.bf16 %v3390, %v3388
        %v3401 = vpack.c.bf16 %v3393, %v3391
        %v3402 = vpack.c.bf16 %v3394, %v3392
        %v3403 = vpack.c.bf16 %v3397, %v3395
        %v3404 = vpack.c.bf16 %v3398, %v3396
        %v3405 = vld [vmem:[%s972] sm:$0xff]
        %v3406 = vld [vmem:[%s972 + $0x8] sm:$0xff]
        %v3407 = vld [vmem:[%s972 + $0x20] sm:$0xff]
        %v3408 = vld [vmem:[%s972 + $0x28] sm:$0xff]
        %v3409 = vld [vmem:[%s972 + $0x40] sm:$0xff]
        %v3410 = vld [vmem:[%s972 + $0x48] sm:$0xff]
        %v3411 = vld [vmem:[%s972 + $0x60] sm:$0xff]
        %v3412 = vld [vmem:[%s972 + $0x68] sm:$0xff]
        %v3413 = vld [vmem:[%s972 + $0x80] sm:$0xff]
        %v3414 = vld [vmem:[%s972 + $0x88] sm:$0xff]
        %v3415 = vld [vmem:[%s972 + $0xa0] sm:$0xff]
        %v3416 = vld [vmem:[%s972 + $0xa8] sm:$0xff]
        %v3417 = vld [vmem:[%s972 + $0xc0] sm:$0xff]
        %v3418 = vld [vmem:[%s972 + $0xc8] sm:$0xff]
        %v3419 = vld [vmem:[%s972 + $0xe0] sm:$0xff]
        %v3420 = vld [vmem:[%s972 + $0xe8] sm:$0xff]
        %v3421 = vld [vmem:[%s972 + $0x100] sm:$0xff]
        %v3422 = vld [vmem:[%s972 + $0x108] sm:$0xff]
        %v3423 = vld [vmem:[%s972 + $0x120] sm:$0xff]
        %v3424 = vld [vmem:[%s972 + $0x128] sm:$0xff]
        %v3425 = vld [vmem:[%s972 + $0x140] sm:$0xff]
        %v3426 = vld [vmem:[%s972 + $0x148] sm:$0xff]
        %v3427 = vld [vmem:[%s972 + $0x160] sm:$0xff]
        %v3428 = vld [vmem:[%s972 + $0x168] sm:$0xff]
        %v3429 = vld [vmem:[%s972 + $0x180] sm:$0xff]
        %v3430 = vld [vmem:[%s972 + $0x188] sm:$0xff]
        %v3431 = vld [vmem:[%s972 + $0x1a0] sm:$0xff]
        %v3432 = vld [vmem:[%s972 + $0x1a8] sm:$0xff]
        %v3433 = vld [vmem:[%s972 + $0x1c0] sm:$0xff]
        %v3434 = vld [vmem:[%s972 + $0x1c8] sm:$0xff]
        %v3435 = vld [vmem:[%s972 + $0x1e0] sm:$0xff]
        %v3436 = vld [vmem:[%s972 + $0x1e8] sm:$0xff]
        %v3437 = vld [vmem:[%s972 + $0x200] sm:$0xff]
        %v3438 = vld [vmem:[%s972 + $0x208] sm:$0xff]
        %v3439 = vld [vmem:[%s972 + $0x220] sm:$0xff]
        %v3440 = vld [vmem:[%s972 + $0x228] sm:$0xff]
        %v3441 = vld [vmem:[%s972 + $0x240] sm:$0xff]
        %v3442 = vld [vmem:[%s972 + $0x248] sm:$0xff]
        %v3443 = vld [vmem:[%s972 + $0x260] sm:$0xff]
        %v3444 = vld [vmem:[%s972 + $0x268] sm:$0xff]
        %v3445 = vld [vmem:[%s972 + $0x280] sm:$0xff]
        %v3446 = vld [vmem:[%s972 + $0x288] sm:$0xff]
        %v3447 = vld [vmem:[%s972 + $0x2a0] sm:$0xff]
        %v3448 = vld [vmem:[%s972 + $0x2a8] sm:$0xff]
        %v3449 = vld [vmem:[%s972 + $0x2c0] sm:$0xff]
        %v3450 = vld [vmem:[%s972 + $0x2c8] sm:$0xff]
        %v3451 = vld [vmem:[%s972 + $0x2e0] sm:$0xff]
        %v3452 = vld [vmem:[%s972 + $0x2e8] sm:$0xff]
        %v3453 = vld [vmem:[%s972 + $0x300] sm:$0xff]
        %v3454 = vld [vmem:[%s972 + $0x308] sm:$0xff]
        %v3455 = vld [vmem:[%s972 + $0x320] sm:$0xff]
        %v3456 = vld [vmem:[%s972 + $0x328] sm:$0xff]
        %v3457 = vld [vmem:[%s972 + $0x340] sm:$0xff]
        %v3458 = vld [vmem:[%s972 + $0x348] sm:$0xff]
        %v3459 = vld [vmem:[%s972 + $0x360] sm:$0xff]
        %v3460 = vld [vmem:[%s972 + $0x368] sm:$0xff]
        %v3461 = vld [vmem:[%s972 + $0x380] sm:$0xff]
        %v3462 = vld [vmem:[%s972 + $0x388] sm:$0xff]
        %v3463 = vld [vmem:[%s972 + $0x3a0] sm:$0xff]
        %v3464 = vld [vmem:[%s972 + $0x3a8] sm:$0xff]
        %v3465 = vld [vmem:[%s972 + $0x3c0] sm:$0xff]
        %v3466 = vld [vmem:[%s972 + $0x3c8] sm:$0xff]
        %v3467 = vld [vmem:[%s972 + $0x3e0] sm:$0xff]
        %v3468 = vld [vmem:[%s972 + $0x3e8] sm:$0xff]
        %v3469 = vld [vmem:[%s1119] sm:$0xf]
        %v3471 = vperm.slane %v3469, 0
        %v3472 = vperm.slane %v3469, 1
        %v3473 = vperm.slane %v3469, 2
        %v3474 = vperm.slane %v3469, 3
        %v3543 = vunpack.c.l.b16 %v3405
        %v3544 = vunpack.c.h.b16 %v3405
        %v3545 = vunpack.c.l.b16 %v3406
        %v3546 = vunpack.c.h.b16 %v3406
        %v3547 = vunpack.c.l.b16 %v3407
        %v3548 = vunpack.c.h.b16 %v3407
        %v3549 = vunpack.c.l.b16 %v3408
        %v3550 = vunpack.c.h.b16 %v3408
        %v3551 = vunpack.c.l.b16 %v3409
        %v3552 = vunpack.c.h.b16 %v3409
        %v3553 = vunpack.c.l.b16 %v3410
        %v3554 = vunpack.c.h.b16 %v3410
        %v3555 = vunpack.c.l.b16 %v3411
        %v3556 = vunpack.c.h.b16 %v3411
        %v3557 = vunpack.c.l.b16 %v3412
        %v3558 = vunpack.c.h.b16 %v3412
        %v3559 = vunpack.c.l.b16 %v3413
        %v3560 = vunpack.c.h.b16 %v3413
        %v3561 = vunpack.c.l.b16 %v3414
        %v3562 = vunpack.c.h.b16 %v3414
        %v3563 = vunpack.c.l.b16 %v3415
        %v3564 = vunpack.c.h.b16 %v3415
        %v3565 = vunpack.c.l.b16 %v3416
        %v3566 = vunpack.c.h.b16 %v3416
        %v3567 = vunpack.c.l.b16 %v3417
        %v3568 = vunpack.c.h.b16 %v3417
        %v3569 = vunpack.c.l.b16 %v3418
        %v3570 = vunpack.c.h.b16 %v3418
        %v3571 = vunpack.c.l.b16 %v3419
        %v3572 = vunpack.c.h.b16 %v3419
        %v3573 = vunpack.c.l.b16 %v3420
        %v3574 = vunpack.c.h.b16 %v3420
        %v3575 = vunpack.c.l.b16 %v3421
        %v3576 = vunpack.c.h.b16 %v3421
        %v3577 = vunpack.c.l.b16 %v3422
        %v3578 = vunpack.c.h.b16 %v3422
        %v3579 = vunpack.c.l.b16 %v3423
        %v3580 = vunpack.c.h.b16 %v3423
        %v3581 = vunpack.c.l.b16 %v3424
        %v3582 = vunpack.c.h.b16 %v3424
        %v3583 = vunpack.c.l.b16 %v3425
        %v3584 = vunpack.c.h.b16 %v3425
        %v3585 = vunpack.c.l.b16 %v3426
        %v3586 = vunpack.c.h.b16 %v3426
        %v3587 = vunpack.c.l.b16 %v3427
        %v3588 = vunpack.c.h.b16 %v3427
        %v3589 = vunpack.c.l.b16 %v3428
        %v3590 = vunpack.c.h.b16 %v3428
        %v3591 = vunpack.c.l.b16 %v3429
        %v3592 = vunpack.c.h.b16 %v3429
        %v3593 = vunpack.c.l.b16 %v3430
        %v3594 = vunpack.c.h.b16 %v3430
        %v3595 = vunpack.c.l.b16 %v3431
        %v3596 = vunpack.c.h.b16 %v3431
        %v3597 = vunpack.c.l.b16 %v3432
        %v3598 = vunpack.c.h.b16 %v3432
        %v3599 = vunpack.c.l.b16 %v3433
        %v3600 = vunpack.c.h.b16 %v3433
        %v3601 = vunpack.c.l.b16 %v3434
        %v3602 = vunpack.c.h.b16 %v3434
        %v3603 = vunpack.c.l.b16 %v3435
        %v3604 = vunpack.c.h.b16 %v3435
        %v3605 = vunpack.c.l.b16 %v3436
        %v3606 = vunpack.c.h.b16 %v3436
        %v3607 = vunpack.c.l.b16 %v3437
        %v3608 = vunpack.c.h.b16 %v3437
        %v3609 = vunpack.c.l.b16 %v3438
        %v3610 = vunpack.c.h.b16 %v3438
        %v3611 = vunpack.c.l.b16 %v3439
        %v3612 = vunpack.c.h.b16 %v3439
        %v3613 = vunpack.c.l.b16 %v3440
        %v3614 = vunpack.c.h.b16 %v3440
        %v3615 = vunpack.c.l.b16 %v3441
        %v3616 = vunpack.c.h.b16 %v3441
        %v3617 = vunpack.c.l.b16 %v3442
        %v3618 = vunpack.c.h.b16 %v3442
        %v3619 = vunpack.c.l.b16 %v3443
        %v3620 = vunpack.c.h.b16 %v3443
        %v3621 = vunpack.c.l.b16 %v3444
        %v3622 = vunpack.c.h.b16 %v3444
        %v3623 = vunpack.c.l.b16 %v3445
        %v3624 = vunpack.c.h.b16 %v3445
        %v3625 = vunpack.c.l.b16 %v3446
        %v3626 = vunpack.c.h.b16 %v3446
        %v3627 = vunpack.c.l.b16 %v3447
        %v3628 = vunpack.c.h.b16 %v3447
        %v3629 = vunpack.c.l.b16 %v3448
        %v3630 = vunpack.c.h.b16 %v3448
        %v3631 = vunpack.c.l.b16 %v3449
        %v3632 = vunpack.c.h.b16 %v3449
        %v3633 = vunpack.c.l.b16 %v3450
        %v3634 = vunpack.c.h.b16 %v3450
        %v3635 = vunpack.c.l.b16 %v3451
        %v3636 = vunpack.c.h.b16 %v3451
        %v3637 = vunpack.c.l.b16 %v3452
        %v3638 = vunpack.c.h.b16 %v3452
        %v3639 = vunpack.c.l.b16 %v3453
        %v3640 = vunpack.c.h.b16 %v3453
        %v3641 = vunpack.c.l.b16 %v3454
        %v3642 = vunpack.c.h.b16 %v3454
        %v3643 = vunpack.c.l.b16 %v3455
        %v3644 = vunpack.c.h.b16 %v3455
        %v3645 = vunpack.c.l.b16 %v3456
        %v3646 = vunpack.c.h.b16 %v3456
        %v3647 = vunpack.c.l.b16 %v3457
        %v3648 = vunpack.c.h.b16 %v3457
        %v3649 = vunpack.c.l.b16 %v3458
        %v3650 = vunpack.c.h.b16 %v3458
        %v3651 = vunpack.c.l.b16 %v3459
        %v3652 = vunpack.c.h.b16 %v3459
        %v3653 = vunpack.c.l.b16 %v3460
        %v3654 = vunpack.c.h.b16 %v3460
        %v3655 = vunpack.c.l.b16 %v3461
        %v3656 = vunpack.c.h.b16 %v3461
        %v3657 = vunpack.c.l.b16 %v3462
        %v3658 = vunpack.c.h.b16 %v3462
        %v3659 = vunpack.c.l.b16 %v3463
        %v3660 = vunpack.c.h.b16 %v3463
        %v3661 = vunpack.c.l.b16 %v3464
        %v3662 = vunpack.c.h.b16 %v3464
        %v3663 = vunpack.c.l.b16 %v3465
        %v3664 = vunpack.c.h.b16 %v3465
        %v3665 = vunpack.c.l.b16 %v3466
        %v3666 = vunpack.c.h.b16 %v3466
        %v3667 = vunpack.c.l.b16 %v3467
        %v3668 = vunpack.c.h.b16 %v3467
        %v3669 = vunpack.c.l.b16 %v3468
        %v3670 = vunpack.c.h.b16 %v3468
        %v3671 = vpack.c.b16 %v3547, %v3543
        %v3672 = vpack.c.b16 %v3548, %v3544
        %v3673 = vpack.c.b16 %v3549, %v3545
        %v3674 = vpack.c.b16 %v3550, %v3546
        %v3675 = vpack.c.b16 %v3555, %v3551
        %v3676 = vpack.c.b16 %v3556, %v3552
        %v3677 = vpack.c.b16 %v3557, %v3553
        %v3678 = vpack.c.b16 %v3558, %v3554
        %v3679 = vpack.c.b16 %v3563, %v3559
        %v3680 = vpack.c.b16 %v3564, %v3560
        %v3681 = vpack.c.b16 %v3565, %v3561
        %v3682 = vpack.c.b16 %v3566, %v3562
        %v3683 = vpack.c.b16 %v3571, %v3567
        %v3684 = vpack.c.b16 %v3572, %v3568
        %v3685 = vpack.c.b16 %v3573, %v3569
        %v3686 = vpack.c.b16 %v3574, %v3570
        %v3687 = vpack.c.b16 %v3579, %v3575
        %v3688 = vpack.c.b16 %v3580, %v3576
        %v3689 = vpack.c.b16 %v3581, %v3577
        %v3690 = vpack.c.b16 %v3582, %v3578
        %v3691 = vpack.c.b16 %v3587, %v3583
        %v3692 = vpack.c.b16 %v3588, %v3584
        %v3693 = vpack.c.b16 %v3589, %v3585
        %v3694 = vpack.c.b16 %v3590, %v3586
        %v3695 = vpack.c.b16 %v3595, %v3591
        %v3696 = vpack.c.b16 %v3596, %v3592
        %v3697 = vpack.c.b16 %v3597, %v3593
        %v3698 = vpack.c.b16 %v3598, %v3594
        %v3699 = vpack.c.b16 %v3603, %v3599
        %v3700 = vpack.c.b16 %v3604, %v3600
        %v3701 = vpack.c.b16 %v3605, %v3601
        %v3702 = vpack.c.b16 %v3606, %v3602
        %v3703 = vpack.c.b16 %v3611, %v3607
        %v3704 = vpack.c.b16 %v3612, %v3608
        %v3705 = vpack.c.b16 %v3613, %v3609
        %v3706 = vpack.c.b16 %v3614, %v3610
        %v3707 = vpack.c.b16 %v3619, %v3615
        %v3708 = vpack.c.b16 %v3620, %v3616
        %v3709 = vpack.c.b16 %v3621, %v3617
        %v3710 = vpack.c.b16 %v3622, %v3618
        %v3711 = vpack.c.b16 %v3627, %v3623
        %v3712 = vpack.c.b16 %v3628, %v3624
        %v3713 = vpack.c.b16 %v3629, %v3625
        %v3714 = vpack.c.b16 %v3630, %v3626
        %v3715 = vpack.c.b16 %v3635, %v3631
        %v3716 = vpack.c.b16 %v3636, %v3632
        %v3717 = vpack.c.b16 %v3637, %v3633
        %v3718 = vpack.c.b16 %v3638, %v3634
        %v3719 = vpack.c.b16 %v3643, %v3639
        %v3720 = vpack.c.b16 %v3644, %v3640
        %v3721 = vpack.c.b16 %v3645, %v3641
        %v3722 = vpack.c.b16 %v3646, %v3642
        %v3723 = vpack.c.b16 %v3651, %v3647
        %v3724 = vpack.c.b16 %v3652, %v3648
        %v3725 = vpack.c.b16 %v3653, %v3649
        %v3726 = vpack.c.b16 %v3654, %v3650
        %v3727 = vpack.c.b16 %v3659, %v3655
        %v3728 = vpack.c.b16 %v3660, %v3656
        %v3729 = vpack.c.b16 %v3661, %v3657
        %v3730 = vpack.c.b16 %v3662, %v3658
        %v3731 = vpack.c.b16 %v3667, %v3663
        %v3732 = vpack.c.b16 %v3668, %v3664
        %v3733 = vpack.c.b16 %v3669, %v3665
        %v3734 = vpack.c.b16 %v3670, %v3666
        %3799 = vmatpush.bf16.msra.mxu0 %v3699
        %3800 = vmatpush.bf16.msra.mxu0 %v3695
        %3801 = vmatpush.bf16.msra.mxu0 %v3691
        %3802 = vmatpush.bf16.msra.mxu0 %v3687
        %3803 = vmatpush.bf16.msra.mxu0 %v3683
        %3804 = vmatpush.bf16.msra.mxu0 %v3679
        %3805 = vmatpush.bf16.msra.mxu0 %v3675
        %3806 = vmatpush.bf16.msra.mxu0 %v3671
        %3807 = vmatmul.bf16.gmra.mxu0 %v3399
        %v3808 = vpop.f32.mrf.mxu0
        %v3809 = vadd.f32 %v3471, %v3808
        %v3810 = vpop.f32.mrf.mxu0
        %v3811 = vadd.f32 %v3471, %v3810
        %3812 = vmatmul.bf16.gmra.mxu0 %v3401
        %v3813 = vpop.f32.mrf.mxu0
        %v3814 = vadd.f32 %v3471, %v3813
        %v3815 = vpop.f32.mrf.mxu0
        %v3816 = vadd.f32 %v3471, %v3815
        %3817 = vmatmul.bf16.gmra.mxu0 %v3403
        %v3818 = vpop.f32.mrf.mxu0
        %v3819 = vadd.f32 %v3471, %v3818
        %v3820 = vpop.f32.mrf.mxu0
        %v3821 = vadd.f32 %v3471, %v3820
        %3822 = vdwg.mxu0
        %3823 = vmatpush.bf16.msra.mxu0 %v3731
        %3824 = vmatpush.bf16.msra.mxu0 %v3727
        %3825 = vmatpush.bf16.msra.mxu0 %v3723
        %3826 = vmatpush.bf16.msra.mxu0 %v3719
        %3827 = vmatpush.bf16.msra.mxu0 %v3715
        %3828 = vmatpush.bf16.msra.mxu0 %v3711
        %3829 = vmatpush.bf16.msra.mxu0 %v3707
        %3830 = vmatpush.bf16.msra.mxu0 %v3703
        %3831 = vmatmul.bf16.gmra.mxu0 %v3400
        %v3832 = vpop.f32.mrf.mxu0
        %v3833 = vadd.f32 %v3809, %v3832
        %v3834 = vpop.f32.mrf.mxu0
        %v3835 = vadd.f32 %v3811, %v3834
        %3836 = vmatmul.bf16.gmra.mxu0 %v3402
        %v3837 = vpop.f32.mrf.mxu0
        %v3838 = vadd.f32 %v3814, %v3837
        %v3839 = vpop.f32.mrf.mxu0
        %v3840 = vadd.f32 %v3816, %v3839
        %3841 = vmatmul.bf16.gmra.mxu0 %v3404
        %v3842 = vpop.f32.mrf.mxu0
        %v3843 = vadd.f32 %v3819, %v3842
        %v3844 = vpop.f32.mrf.mxu0
        %v3845 = vadd.f32 %v3821, %v3844
        %3846 = vdwg.mxu0
        %3847 = vmatpush.bf16.msra.mxu0 %v3700
        %3848 = vmatpush.bf16.msra.mxu0 %v3696
        %3849 = vmatpush.bf16.msra.mxu0 %v3692
        %3850 = vmatpush.bf16.msra.mxu0 %v3688
        %3851 = vmatpush.bf16.msra.mxu0 %v3684
        %3852 = vmatpush.bf16.msra.mxu0 %v3680
        %3853 = vmatpush.bf16.msra.mxu0 %v3676
        %3854 = vmatpush.bf16.msra.mxu0 %v3672
        %3855 = vmatmul.bf16.gmra.mxu0 %v3399
        %v3856 = vpop.f32.mrf.mxu0
        %v3857 = vadd.f32 %v3472, %v3856
        %v3858 = vpop.f32.mrf.mxu0
        %v3859 = vadd.f32 %v3472, %v3858
        %3860 = vmatmul.bf16.gmra.mxu0 %v3401
        %v3861 = vpop.f32.mrf.mxu0
        %v3862 = vadd.f32 %v3472, %v3861
        %v3863 = vpop.f32.mrf.mxu0
        %v3864 = vadd.f32 %v3472, %v3863
        %3865 = vmatmul.bf16.gmra.mxu0 %v3403
        %v3866 = vpop.f32.mrf.mxu0
        %v3867 = vadd.f32 %v3472, %v3866
        %v3868 = vpop.f32.mrf.mxu0
        %v3869 = vadd.f32 %v3472, %v3868
        %3870 = vdwg.mxu0
        %3871 = vmatpush.bf16.msra.mxu0 %v3732
        %3872 = vmatpush.bf16.msra.mxu0 %v3728
        %3873 = vmatpush.bf16.msra.mxu0 %v3724
        %3874 = vmatpush.bf16.msra.mxu0 %v3720
        %3875 = vmatpush.bf16.msra.mxu0 %v3716
        %3876 = vmatpush.bf16.msra.mxu0 %v3712
        %3877 = vmatpush.bf16.msra.mxu0 %v3708
        %3878 = vmatpush.bf16.msra.mxu0 %v3704
        %3879 = vmatmul.bf16.gmra.mxu0 %v3400
        %v3880 = vpop.f32.mrf.mxu0
        %v3881 = vadd.f32 %v3857, %v3880
        %v3882 = vpop.f32.mrf.mxu0
        %v3883 = vadd.f32 %v3859, %v3882
        %3884 = vmatmul.bf16.gmra.mxu0 %v3402
        %v3885 = vpop.f32.mrf.mxu0
        %v3886 = vadd.f32 %v3862, %v3885
        %v3887 = vpop.f32.mrf.mxu0
        %v3888 = vadd.f32 %v3864, %v3887
        %3889 = vmatmul.bf16.gmra.mxu0 %v3404
        %v3890 = vpop.f32.mrf.mxu0
        %v3891 = vadd.f32 %v3867, %v3890
        %v3892 = vpop.f32.mrf.mxu0
        %v3893 = vadd.f32 %v3869, %v3892
        %3894 = vdwg.mxu0
        %3895 = vmatpush.bf16.msra.mxu0 %v3701
        %3896 = vmatpush.bf16.msra.mxu0 %v3697
        %3897 = vmatpush.bf16.msra.mxu0 %v3693
        %3898 = vmatpush.bf16.msra.mxu0 %v3689
        %3899 = vmatpush.bf16.msra.mxu0 %v3685
        %3900 = vmatpush.bf16.msra.mxu0 %v3681
        %3901 = vmatpush.bf16.msra.mxu0 %v3677
        %3902 = vmatpush.bf16.msra.mxu0 %v3673
        %3903 = vmatmul.bf16.gmra.mxu0 %v3399
        %v3904 = vpop.f32.mrf.mxu0
        %v3905 = vadd.f32 %v3473, %v3904
        %v3906 = vpop.f32.mrf.mxu0
        %v3907 = vadd.f32 %v3473, %v3906
        %3908 = vmatmul.bf16.gmra.mxu0 %v3401
        %v3909 = vpop.f32.mrf.mxu0
        %v3910 = vadd.f32 %v3473, %v3909
        %v3911 = vpop.f32.mrf.mxu0
        %v3912 = vadd.f32 %v3473, %v3911
        %3913 = vmatmul.bf16.gmra.mxu0 %v3403
        %v3914 = vpop.f32.mrf.mxu0
        %v3915 = vadd.f32 %v3473, %v3914
        %v3916 = vpop.f32.mrf.mxu0
        %v3917 = vadd.f32 %v3473, %v3916
        %3918 = vdwg.mxu0
        %3919 = vmatpush.bf16.msra.mxu0 %v3733
        %3920 = vmatpush.bf16.msra.mxu0 %v3729
        %3921 = vmatpush.bf16.msra.mxu0 %v3725
        %3922 = vmatpush.bf16.msra.mxu0 %v3721
        %3923 = vmatpush.bf16.msra.mxu0 %v3717
        %3924 = vmatpush.bf16.msra.mxu0 %v3713
        %3925 = vmatpush.bf16.msra.mxu0 %v3709
        %3926 = vmatpush.bf16.msra.mxu0 %v3705
        %3927 = vmatmul.bf16.gmra.mxu0 %v3400
        %v3928 = vpop.f32.mrf.mxu0
        %v3929 = vadd.f32 %v3905, %v3928
        %v3930 = vpop.f32.mrf.mxu0
        %v3931 = vadd.f32 %v3907, %v3930
        %3932 = vmatmul.bf16.gmra.mxu0 %v3402
        %v3933 = vpop.f32.mrf.mxu0
        %v3934 = vadd.f32 %v3910, %v3933
        %v3935 = vpop.f32.mrf.mxu0
        %v3936 = vadd.f32 %v3912, %v3935
        %3937 = vmatmul.bf16.gmra.mxu0 %v3404
        %v3938 = vpop.f32.mrf.mxu0
        %v3939 = vadd.f32 %v3915, %v3938
        %v3940 = vpop.f32.mrf.mxu0
        %v3941 = vadd.f32 %v3917, %v3940
        %3942 = vdwg.mxu0
        %3943 = vmatpush.bf16.msra.mxu0 %v3702
        %3944 = vmatpush.bf16.msra.mxu0 %v3698
        %3945 = vmatpush.bf16.msra.mxu0 %v3694
        %3946 = vmatpush.bf16.msra.mxu0 %v3690
        %3947 = vmatpush.bf16.msra.mxu0 %v3686
        %3948 = vmatpush.bf16.msra.mxu0 %v3682
        %3949 = vmatpush.bf16.msra.mxu0 %v3678
        %3950 = vmatpush.bf16.msra.mxu0 %v3674
        %3951 = vmatmul.bf16.gmra.mxu0 %v3399
        %v3952 = vpop.f32.mrf.mxu0
        %v3953 = vadd.f32 %v3474, %v3952
        %v3954 = vpop.f32.mrf.mxu0
        %v3955 = vadd.f32 %v3474, %v3954
        %3956 = vmatmul.bf16.gmra.mxu0 %v3401
        %v3957 = vpop.f32.mrf.mxu0
        %v3958 = vadd.f32 %v3474, %v3957
        %v3959 = vpop.f32.mrf.mxu0
        %v3960 = vadd.f32 %v3474, %v3959
        %3961 = vmatmul.bf16.gmra.mxu0 %v3403
        %v3962 = vpop.f32.mrf.mxu0
        %v3963 = vadd.f32 %v3474, %v3962
        %v3964 = vpop.f32.mrf.mxu0
        %v3965 = vadd.f32 %v3474, %v3964
        %3966 = vdwg.mxu0
        %3967 = vmatpush.bf16.msra.mxu0 %v3734
        %3968 = vmatpush.bf16.msra.mxu0 %v3730
        %3969 = vmatpush.bf16.msra.mxu0 %v3726
        %3970 = vmatpush.bf16.msra.mxu0 %v3722
        %3971 = vmatpush.bf16.msra.mxu0 %v3718
        %3972 = vmatpush.bf16.msra.mxu0 %v3714
        %3973 = vmatpush.bf16.msra.mxu0 %v3710
        %3974 = vmatpush.bf16.msra.mxu0 %v3706
        %3975 = vmatmul.bf16.gmra.mxu0 %v3400
        %v3976 = vpop.f32.mrf.mxu0
        %v3977 = vadd.f32 %v3953, %v3976
        %v3978 = vpop.f32.mrf.mxu0
        %v3979 = vadd.f32 %v3955, %v3978
        %3980 = vmatmul.bf16.gmra.mxu0 %v3402
        %v3981 = vpop.f32.mrf.mxu0
        %v3982 = vadd.f32 %v3958, %v3981
        %v3983 = vpop.f32.mrf.mxu0
        %v3984 = vadd.f32 %v3960, %v3983
        %3985 = vmatmul.bf16.gmra.mxu0 %v3404
        %v3986 = vpop.f32.mrf.mxu0
        %v3987 = vadd.f32 %v3963, %v3986
        %v3988 = vpop.f32.mrf.mxu0
        %v3989 = vadd.f32 %v3965, %v3988
        %3990 = vdwg.mxu0
        %v3991 = vmul.f32 %v3833, -1.702
        %v3992 = vmul.f32 %v3881, -1.702
        %v3993 = vmul.f32 %v3929, -1.702
        %v3994 = vmul.f32 %v3977, -1.702
        %v3995 = vmul.f32 %v3835, -1.702
        %v3996 = vmul.f32 %v3883, -1.702
        %v3997 = vmul.f32 %v3931, -1.702
        %v3998 = vmul.f32 %v3979, -1.702
        %v3999 = vmul.f32 %v3838, -1.702
        %v4000 = vmul.f32 %v3886, -1.702
        %v4001 = vmul.f32 %v3934, -1.702
        %v4002 = vmul.f32 %v3982, -1.702
        %v4003 = vmul.f32 %v3840, -1.702
        %v4004 = vmul.f32 %v3888, -1.702
        %v4005 = vmul.f32 %v3936, -1.702
        %v4006 = vmul.f32 %v3984, -1.702
        %v4007 = vmul.f32 %v3843, -1.702
        %v4008 = vmul.f32 %v3891, -1.702
        %v4009 = vmul.f32 %v3939, -1.702
        %v4010 = vmul.f32 %v3987, -1.702
        %v4011 = vmul.f32 %v3845, -1.702
        %v4012 = vmul.f32 %v3893, -1.702
        %v4013 = vmul.f32 %v3941, -1.702
        %v4014 = vmul.f32 %v3989, -1.702
        %v4015 = vmul.f32 %v3991, 1.442695
        %v4016 = vpow.pop %v4015
        %v4017 = vmul.f32 %v3992, 1.442695
        %v4018 = vpow.pop %v4017
        %v4019 = vmul.f32 %v3993, 1.442695
        %v4020 = vpow.pop %v4019
        %v4021 = vmul.f32 %v3994, 1.442695
        %v4022 = vpow.pop %v4021
        %v4023 = vmul.f32 %v3995, 1.442695
        %v4024 = vpow.pop %v4023
        %v4025 = vmul.f32 %v3996, 1.442695
        %v4026 = vpow.pop %v4025
        %v4027 = vmul.f32 %v3997, 1.442695
        %v4028 = vpow.pop %v4027
        %v4029 = vmul.f32 %v3998, 1.442695
        %v4030 = vpow.pop %v4029
        %v4031 = vmul.f32 %v3999, 1.442695
        %v4032 = vpow.pop %v4031
        %v4033 = vmul.f32 %v4000, 1.442695
        %v4034 = vpow.pop %v4033
        %v4035 = vmul.f32 %v4001, 1.442695
        %v4036 = vpow.pop %v4035
        %v4037 = vmul.f32 %v4002, 1.442695
        %v4038 = vpow.pop %v4037
        %v4039 = vmul.f32 %v4003, 1.442695
        %v4040 = vpow.pop %v4039
        %v4041 = vmul.f32 %v4004, 1.442695
        %v4042 = vpow.pop %v4041
        %v4043 = vmul.f32 %v4005, 1.442695
        %v4044 = vpow.pop %v4043
        %v4045 = vmul.f32 %v4006, 1.442695
        %v4046 = vpow.pop %v4045
        %v4047 = vmul.f32 %v4007, 1.442695
        %v4048 = vpow.pop %v4047
        %v4049 = vmul.f32 %v4008, 1.442695
        %v4050 = vpow.pop %v4049
        %v4051 = vmul.f32 %v4009, 1.442695
        %v4052 = vpow.pop %v4051
        %v4053 = vmul.f32 %v4010, 1.442695
        %v4054 = vpow.pop %v4053
        %v4055 = vmul.f32 %v4011, 1.442695
        %v4056 = vpow.pop %v4055
        %v4057 = vmul.f32 %v4012, 1.442695
        %v4058 = vpow.pop %v4057
        %v4059 = vmul.f32 %v4013, 1.442695
        %v4060 = vpow.pop %v4059
        %v4061 = vmul.f32 %v4014, 1.442695
        %v4062 = vpow.pop %v4061
        %v4063 = vadd.f32 %v4016, 1.0
        %v4064 = vadd.f32 %v4018, 1.0
        %v4065 = vadd.f32 %v4020, 1.0
        %v4066 = vadd.f32 %v4022, 1.0
        %v4067 = vadd.f32 %v4024, 1.0
        %v4068 = vadd.f32 %v4026, 1.0
        %v4069 = vadd.f32 %v4028, 1.0
        %v4070 = vadd.f32 %v4030, 1.0
        %v4071 = vadd.f32 %v4032, 1.0
        %v4072 = vadd.f32 %v4034, 1.0
        %v4073 = vadd.f32 %v4036, 1.0
        %v4074 = vadd.f32 %v4038, 1.0
        %v4075 = vadd.f32 %v4040, 1.0
        %v4076 = vadd.f32 %v4042, 1.0
        %v4077 = vadd.f32 %v4044, 1.0
        %v4078 = vadd.f32 %v4046, 1.0
        %v4079 = vadd.f32 %v4048, 1.0
        %v4080 = vadd.f32 %v4050, 1.0
        %v4081 = vadd.f32 %v4052, 1.0
        %v4082 = vadd.f32 %v4054, 1.0
        %v4083 = vadd.f32 %v4056, 1.0
        %v4084 = vadd.f32 %v4058, 1.0
        %v4085 = vadd.f32 %v4060, 1.0
        %v4086 = vadd.f32 %v4062, 1.0
        %v4087 = vrcp.pop %v4063
        %v4088 = vrcp.pop %v4064
        %v4089 = vrcp.pop %v4065
        %v4090 = vrcp.pop %v4066
        %v4091 = vrcp.pop %v4067
        %v4092 = vrcp.pop %v4068
        %v4093 = vrcp.pop %v4069
        %v4094 = vrcp.pop %v4070
        %v4095 = vrcp.pop %v4071
        %v4096 = vrcp.pop %v4072
        %v4097 = vrcp.pop %v4073
        %v4098 = vrcp.pop %v4074
        %v4099 = vrcp.pop %v4075
        %v4100 = vrcp.pop %v4076
        %v4101 = vrcp.pop %v4077
        %v4102 = vrcp.pop %v4078
        %v4103 = vrcp.pop %v4079
        %v4104 = vrcp.pop %v4080
        %v4105 = vrcp.pop %v4081
        %v4106 = vrcp.pop %v4082
        %v4107 = vrcp.pop %v4083
        %v4108 = vrcp.pop %v4084
        %v4109 = vrcp.pop %v4085
        %v4110 = vrcp.pop %v4086
        %v4111 = vmul.f32 %v3833, %v4087
        %v4112 = vmul.f32 %v3881, %v4088
        %v4113 = vmul.f32 %v3929, %v4089
        %v4114 = vmul.f32 %v3977, %v4090
        %v4115 = vmul.f32 %v3835, %v4091
        %v4116 = vmul.f32 %v3883, %v4092
        %v4117 = vmul.f32 %v3931, %v4093
        %v4118 = vmul.f32 %v3979, %v4094
        %v4119 = vmul.f32 %v3838, %v4095
        %v4120 = vmul.f32 %v3886, %v4096
        %v4121 = vmul.f32 %v3934, %v4097
        %v4122 = vmul.f32 %v3982, %v4098
        %v4123 = vmul.f32 %v3840, %v4099
        %v4124 = vmul.f32 %v3888, %v4100
        %v4125 = vmul.f32 %v3936, %v4101
        %v4126 = vmul.f32 %v3984, %v4102
        %v4127 = vmul.f32 %v3843, %v4103
        %v4128 = vmul.f32 %v3891, %v4104
        %v4129 = vmul.f32 %v3939, %v4105
        %v4130 = vmul.f32 %v3987, %v4106
        %v4131 = vmul.f32 %v3845, %v4107
        %v4132 = vmul.f32 %v3893, %v4108
        %v4133 = vmul.f32 %v3941, %v4109
        %v4134 = vmul.f32 %v3989, %v4110
        %v4135 = vpack.c.bf16 %v4115, %v4111
        %v4136 = vpack.c.bf16 %v4116, %v4112
        %v4137 = vpack.c.bf16 %v4117, %v4113
        %v4138 = vpack.c.bf16 %v4118, %v4114
        %v4139 = vpack.c.bf16 %v4123, %v4119
        %v4140 = vpack.c.bf16 %v4124, %v4120
        %v4141 = vpack.c.bf16 %v4125, %v4121
        %v4142 = vpack.c.bf16 %v4126, %v4122
        %v4143 = vpack.c.bf16 %v4131, %v4127
        %v4144 = vpack.c.bf16 %v4132, %v4128
        %v4145 = vpack.c.bf16 %v4133, %v4129
        %v4146 = vpack.c.bf16 %v4134, %v4130
        %v4147 = vld [vmem:[%s982] sm:$0xff]
        %v4148 = vld [vmem:[%s982 + $0x8] sm:$0xff]
        %v4149 = vld [vmem:[%s982 + $0x10] sm:$0xff]
        %v4150 = vld [vmem:[%s982 + $0x18] sm:$0xff]
        %v4151 = vld [vmem:[%s982 + $0x20] sm:$0xff]
        %v4152 = vld [vmem:[%s982 + $0x28] sm:$0xff]
        %v4153 = vld [vmem:[%s982 + $0x30] sm:$0xff]
        %v4154 = vld [vmem:[%s982 + $0x38] sm:$0xff]
        %v4155 = vld [vmem:[%s982 + $0x40] sm:$0xff]
        %v4156 = vld [vmem:[%s982 + $0x48] sm:$0xff]
        %v4157 = vld [vmem:[%s982 + $0x50] sm:$0xff]
        %v4158 = vld [vmem:[%s982 + $0x58] sm:$0xff]
        %v4159 = vld [vmem:[%s982 + $0x60] sm:$0xff]
        %v4160 = vld [vmem:[%s982 + $0x68] sm:$0xff]
        %v4161 = vld [vmem:[%s982 + $0x70] sm:$0xff]
        %v4162 = vld [vmem:[%s982 + $0x78] sm:$0xff]
        %v4163 = vld [vmem:[%s982 + $0x80] sm:$0xff]
        %v4164 = vld [vmem:[%s982 + $0x88] sm:$0xff]
        %v4165 = vld [vmem:[%s982 + $0x90] sm:$0xff]
        %v4166 = vld [vmem:[%s982 + $0x98] sm:$0xff]
        %v4167 = vld [vmem:[%s982 + $0xa0] sm:$0xff]
        %v4168 = vld [vmem:[%s982 + $0xa8] sm:$0xff]
        %v4169 = vld [vmem:[%s982 + $0xb0] sm:$0xff]
        %v4170 = vld [vmem:[%s982 + $0xb8] sm:$0xff]
        %v4171 = vld [vmem:[%s982 + $0xc0] sm:$0xff]
        %v4172 = vld [vmem:[%s982 + $0xc8] sm:$0xff]
        %v4173 = vld [vmem:[%s982 + $0xd0] sm:$0xff]
        %v4174 = vld [vmem:[%s982 + $0xd8] sm:$0xff]
        %v4175 = vld [vmem:[%s982 + $0xe0] sm:$0xff]
        %v4176 = vld [vmem:[%s982 + $0xe8] sm:$0xff]
        %v4177 = vld [vmem:[%s982 + $0xf0] sm:$0xff]
        %v4178 = vld [vmem:[%s982 + $0xf8] sm:$0xff]
        %v4179 = vld [vmem:[%s982 + $0x100] sm:$0xff]
        %v4180 = vld [vmem:[%s982 + $0x108] sm:$0xff]
        %v4181 = vld [vmem:[%s982 + $0x110] sm:$0xff]
        %v4182 = vld [vmem:[%s982 + $0x118] sm:$0xff]
        %v4183 = vld [vmem:[%s982 + $0x120] sm:$0xff]
        %v4184 = vld [vmem:[%s982 + $0x128] sm:$0xff]
        %v4185 = vld [vmem:[%s982 + $0x130] sm:$0xff]
        %v4186 = vld [vmem:[%s982 + $0x138] sm:$0xff]
        %v4187 = vld [vmem:[%s982 + $0x140] sm:$0xff]
        %v4188 = vld [vmem:[%s982 + $0x148] sm:$0xff]
        %v4189 = vld [vmem:[%s982 + $0x150] sm:$0xff]
        %v4190 = vld [vmem:[%s982 + $0x158] sm:$0xff]
        %v4191 = vld [vmem:[%s982 + $0x160] sm:$0xff]
        %v4192 = vld [vmem:[%s982 + $0x168] sm:$0xff]
        %v4193 = vld [vmem:[%s982 + $0x170] sm:$0xff]
        %v4194 = vld [vmem:[%s982 + $0x178] sm:$0xff]
        %v4195 = vld [vmem:[%s982 + $0x180] sm:$0xff]
        %v4196 = vld [vmem:[%s982 + $0x188] sm:$0xff]
        %v4197 = vld [vmem:[%s982 + $0x190] sm:$0xff]
        %v4198 = vld [vmem:[%s982 + $0x198] sm:$0xff]
        %v4199 = vld [vmem:[%s982 + $0x1a0] sm:$0xff]
        %v4200 = vld [vmem:[%s982 + $0x1a8] sm:$0xff]
        %v4201 = vld [vmem:[%s982 + $0x1b0] sm:$0xff]
        %v4202 = vld [vmem:[%s982 + $0x1b8] sm:$0xff]
        %v4203 = vld [vmem:[%s982 + $0x1c0] sm:$0xff]
        %v4204 = vld [vmem:[%s982 + $0x1c8] sm:$0xff]
        %v4205 = vld [vmem:[%s982 + $0x1d0] sm:$0xff]
        %v4206 = vld [vmem:[%s982 + $0x1d8] sm:$0xff]
        %v4207 = vld [vmem:[%s982 + $0x1e0] sm:$0xff]
        %v4208 = vld [vmem:[%s982 + $0x1e8] sm:$0xff]
        %v4209 = vld [vmem:[%s982 + $0x1f0] sm:$0xff]
        %v4210 = vld [vmem:[%s982 + $0x1f8] sm:$0xff]
        %v4211 = vld [vmem:[%s972 + $0x10] sm:$0xff]
        %v4212 = vld [vmem:[%s972 + $0x18] sm:$0xff]
        %v4213 = vld [vmem:[%s972 + $0x30] sm:$0xff]
        %v4214 = vld [vmem:[%s972 + $0x38] sm:$0xff]
        %v4215 = vld [vmem:[%s972 + $0x50] sm:$0xff]
        %v4216 = vld [vmem:[%s972 + $0x58] sm:$0xff]
        %v4217 = vld [vmem:[%s972 + $0x70] sm:$0xff]
        %v4218 = vld [vmem:[%s972 + $0x78] sm:$0xff]
        %v4219 = vld [vmem:[%s972 + $0x90] sm:$0xff]
        %v4220 = vld [vmem:[%s972 + $0x98] sm:$0xff]
        %v4221 = vld [vmem:[%s972 + $0xb0] sm:$0xff]
        %v4222 = vld [vmem:[%s972 + $0xb8] sm:$0xff]
        %v4223 = vld [vmem:[%s972 + $0xd0] sm:$0xff]
        %v4224 = vld [vmem:[%s972 + $0xd8] sm:$0xff]
        %v4225 = vld [vmem:[%s972 + $0xf0] sm:$0xff]
        %v4226 = vld [vmem:[%s972 + $0xf8] sm:$0xff]
        %v4227 = vld [vmem:[%s972 + $0x110] sm:$0xff]
        %v4228 = vld [vmem:[%s972 + $0x118] sm:$0xff]
        %v4229 = vld [vmem:[%s972 + $0x130] sm:$0xff]
        %v4230 = vld [vmem:[%s972 + $0x138] sm:$0xff]
        %v4231 = vld [vmem:[%s972 + $0x150] sm:$0xff]
        %v4232 = vld [vmem:[%s972 + $0x158] sm:$0xff]
        %v4233 = vld [vmem:[%s972 + $0x170] sm:$0xff]
        %v4234 = vld [vmem:[%s972 + $0x178] sm:$0xff]
        %v4235 = vld [vmem:[%s972 + $0x190] sm:$0xff]
        %v4236 = vld [vmem:[%s972 + $0x198] sm:$0xff]
        %v4237 = vld [vmem:[%s972 + $0x1b0] sm:$0xff]
        %v4238 = vld [vmem:[%s972 + $0x1b8] sm:$0xff]
        %v4239 = vld [vmem:[%s972 + $0x1d0] sm:$0xff]
        %v4240 = vld [vmem:[%s972 + $0x1d8] sm:$0xff]
        %v4241 = vld [vmem:[%s972 + $0x1f0] sm:$0xff]
        %v4242 = vld [vmem:[%s972 + $0x1f8] sm:$0xff]
        %v4243 = vld [vmem:[%s972 + $0x210] sm:$0xff]
        %v4244 = vld [vmem:[%s972 + $0x218] sm:$0xff]
        %v4245 = vld [vmem:[%s972 + $0x230] sm:$0xff]
        %v4246 = vld [vmem:[%s972 + $0x238] sm:$0xff]
        %v4247 = vld [vmem:[%s972 + $0x250] sm:$0xff]
        %v4248 = vld [vmem:[%s972 + $0x258] sm:$0xff]
        %v4249 = vld [vmem:[%s972 + $0x270] sm:$0xff]
        %v4250 = vld [vmem:[%s972 + $0x278] sm:$0xff]
        %v4251 = vld [vmem:[%s972 + $0x290] sm:$0xff]
        %v4252 = vld [vmem:[%s972 + $0x298] sm:$0xff]
        %v4253 = vld [vmem:[%s972 + $0x2b0] sm:$0xff]
        %v4254 = vld [vmem:[%s972 + $0x2b8] sm:$0xff]
        %v4255 = vld [vmem:[%s972 + $0x2d0] sm:$0xff]
        %v4256 = vld [vmem:[%s972 + $0x2d8] sm:$0xff]
        %v4257 = vld [vmem:[%s972 + $0x2f0] sm:$0xff]
        %v4258 = vld [vmem:[%s972 + $0x2f8] sm:$0xff]
        %v4259 = vld [vmem:[%s972 + $0x310] sm:$0xff]
        %v4260 = vld [vmem:[%s972 + $0x318] sm:$0xff]
        %v4261 = vld [vmem:[%s972 + $0x330] sm:$0xff]
        %v4262 = vld [vmem:[%s972 + $0x338] sm:$0xff]
        %v4263 = vld [vmem:[%s972 + $0x350] sm:$0xff]
        %v4264 = vld [vmem:[%s972 + $0x358] sm:$0xff]
        %v4265 = vld [vmem:[%s972 + $0x370] sm:$0xff]
        %v4266 = vld [vmem:[%s972 + $0x378] sm:$0xff]
        %v4267 = vld [vmem:[%s972 + $0x390] sm:$0xff]
        %v4268 = vld [vmem:[%s972 + $0x398] sm:$0xff]
        %v4269 = vld [vmem:[%s972 + $0x3b0] sm:$0xff]
        %v4270 = vld [vmem:[%s972 + $0x3b8] sm:$0xff]
        %v4271 = vld [vmem:[%s972 + $0x3d0] sm:$0xff]
        %v4272 = vld [vmem:[%s972 + $0x3d8] sm:$0xff]
        %v4273 = vld [vmem:[%s972 + $0x3f0] sm:$0xff]
        %v4274 = vld [vmem:[%s972 + $0x3f8] sm:$0xff]
        %v4275 = vld [vmem:[%s1119 + $0x4] sm:$0xf]
        %v4277 = vperm.slane %v4275, 0
        %v4278 = vperm.slane %v4275, 1
        %v4279 = vperm.slane %v4275, 2
        %v4280 = vperm.slane %v4275, 3
        %v4349 = vunpack.c.l.b16 %v4211
        %v4350 = vunpack.c.h.b16 %v4211
        %v4351 = vunpack.c.l.b16 %v4212
        %v4352 = vunpack.c.h.b16 %v4212
        %v4353 = vunpack.c.l.b16 %v4213
        %v4354 = vunpack.c.h.b16 %v4213
        %v4355 = vunpack.c.l.b16 %v4214
        %v4356 = vunpack.c.h.b16 %v4214
        %v4357 = vunpack.c.l.b16 %v4215
        %v4358 = vunpack.c.h.b16 %v4215
        %v4359 = vunpack.c.l.b16 %v4216
        %v4360 = vunpack.c.h.b16 %v4216
        %v4361 = vunpack.c.l.b16 %v4217
        %v4362 = vunpack.c.h.b16 %v4217
        %v4363 = vunpack.c.l.b16 %v4218
        %v4364 = vunpack.c.h.b16 %v4218
        %v4365 = vunpack.c.l.b16 %v4219
        %v4366 = vunpack.c.h.b16 %v4219
        %v4367 = vunpack.c.l.b16 %v4220
        %v4368 = vunpack.c.h.b16 %v4220
        %v4369 = vunpack.c.l.b16 %v4221
        %v4370 = vunpack.c.h.b16 %v4221
        %v4371 = vunpack.c.l.b16 %v4222
        %v4372 = vunpack.c.h.b16 %v4222
        %v4373 = vunpack.c.l.b16 %v4223
        %v4374 = vunpack.c.h.b16 %v4223
        %v4375 = vunpack.c.l.b16 %v4224
        %v4376 = vunpack.c.h.b16 %v4224
        %v4377 = vunpack.c.l.b16 %v4225
        %v4378 = vunpack.c.h.b16 %v4225
        %v4379 = vunpack.c.l.b16 %v4226
        %v4380 = vunpack.c.h.b16 %v4226
        %v4381 = vunpack.c.l.b16 %v4227
        %v4382 = vunpack.c.h.b16 %v4227
        %v4383 = vunpack.c.l.b16 %v4228
        %v4384 = vunpack.c.h.b16 %v4228
        %v4385 = vunpack.c.l.b16 %v4229
        %v4386 = vunpack.c.h.b16 %v4229
        %v4387 = vunpack.c.l.b16 %v4230
        %v4388 = vunpack.c.h.b16 %v4230
        %v4389 = vunpack.c.l.b16 %v4231
        %v4390 = vunpack.c.h.b16 %v4231
        %v4391 = vunpack.c.l.b16 %v4232
        %v4392 = vunpack.c.h.b16 %v4232
        %v4393 = vunpack.c.l.b16 %v4233
        %v4394 = vunpack.c.h.b16 %v4233
        %v4395 = vunpack.c.l.b16 %v4234
        %v4396 = vunpack.c.h.b16 %v4234
        %v4397 = vunpack.c.l.b16 %v4235
        %v4398 = vunpack.c.h.b16 %v4235
        %v4399 = vunpack.c.l.b16 %v4236
        %v4400 = vunpack.c.h.b16 %v4236
        %v4401 = vunpack.c.l.b16 %v4237
        %v4402 = vunpack.c.h.b16 %v4237
        %v4403 = vunpack.c.l.b16 %v4238
        %v4404 = vunpack.c.h.b16 %v4238
        %v4405 = vunpack.c.l.b16 %v4239
        %v4406 = vunpack.c.h.b16 %v4239
        %v4407 = vunpack.c.l.b16 %v4240
        %v4408 = vunpack.c.h.b16 %v4240
        %v4409 = vunpack.c.l.b16 %v4241
        %v4410 = vunpack.c.h.b16 %v4241
        %v4411 = vunpack.c.l.b16 %v4242
        %v4412 = vunpack.c.h.b16 %v4242
        %v4413 = vunpack.c.l.b16 %v4243
        %v4414 = vunpack.c.h.b16 %v4243
        %v4415 = vunpack.c.l.b16 %v4244
        %v4416 = vunpack.c.h.b16 %v4244
        %v4417 = vunpack.c.l.b16 %v4245
        %v4418 = vunpack.c.h.b16 %v4245
        %v4419 = vunpack.c.l.b16 %v4246
        %v4420 = vunpack.c.h.b16 %v4246
        %v4421 = vunpack.c.l.b16 %v4247
        %v4422 = vunpack.c.h.b16 %v4247
        %v4423 = vunpack.c.l.b16 %v4248
        %v4424 = vunpack.c.h.b16 %v4248
        %v4425 = vunpack.c.l.b16 %v4249
        %v4426 = vunpack.c.h.b16 %v4249
        %v4427 = vunpack.c.l.b16 %v4250
        %v4428 = vunpack.c.h.b16 %v4250
        %v4429 = vunpack.c.l.b16 %v4251
        %v4430 = vunpack.c.h.b16 %v4251
        %v4431 = vunpack.c.l.b16 %v4252
        %v4432 = vunpack.c.h.b16 %v4252
        %v4433 = vunpack.c.l.b16 %v4253
        %v4434 = vunpack.c.h.b16 %v4253
        %v4435 = vunpack.c.l.b16 %v4254
        %v4436 = vunpack.c.h.b16 %v4254
        %v4437 = vunpack.c.l.b16 %v4255
        %v4438 = vunpack.c.h.b16 %v4255
        %v4439 = vunpack.c.l.b16 %v4256
        %v4440 = vunpack.c.h.b16 %v4256
        %v4441 = vunpack.c.l.b16 %v4257
        %v4442 = vunpack.c.h.b16 %v4257
        %v4443 = vunpack.c.l.b16 %v4258
        %v4444 = vunpack.c.h.b16 %v4258
        %v4445 = vunpack.c.l.b16 %v4259
        %v4446 = vunpack.c.h.b16 %v4259
        %v4447 = vunpack.c.l.b16 %v4260
        %v4448 = vunpack.c.h.b16 %v4260
        %v4449 = vunpack.c.l.b16 %v4261
        %v4450 = vunpack.c.h.b16 %v4261
        %v4451 = vunpack.c.l.b16 %v4262
        %v4452 = vunpack.c.h.b16 %v4262
        %v4453 = vunpack.c.l.b16 %v4263
        %v4454 = vunpack.c.h.b16 %v4263
        %v4455 = vunpack.c.l.b16 %v4264
        %v4456 = vunpack.c.h.b16 %v4264
        %v4457 = vunpack.c.l.b16 %v4265
        %v4458 = vunpack.c.h.b16 %v4265
        %v4459 = vunpack.c.l.b16 %v4266
        %v4460 = vunpack.c.h.b16 %v4266
        %v4461 = vunpack.c.l.b16 %v4267
        %v4462 = vunpack.c.h.b16 %v4267
        %v4463 = vunpack.c.l.b16 %v4268
        %v4464 = vunpack.c.h.b16 %v4268
        %v4465 = vunpack.c.l.b16 %v4269
        %v4466 = vunpack.c.h.b16 %v4269
        %v4467 = vunpack.c.l.b16 %v4270
        %v4468 = vunpack.c.h.b16 %v4270
        %v4469 = vunpack.c.l.b16 %v4271
        %v4470 = vunpack.c.h.b16 %v4271
        %v4471 = vunpack.c.l.b16 %v4272
        %v4472 = vunpack.c.h.b16 %v4272
        %v4473 = vunpack.c.l.b16 %v4273
        %v4474 = vunpack.c.h.b16 %v4273
        %v4475 = vunpack.c.l.b16 %v4274
        %v4476 = vunpack.c.h.b16 %v4274
        %v4477 = vpack.c.b16 %v4353, %v4349
        %v4478 = vpack.c.b16 %v4354, %v4350
        %v4479 = vpack.c.b16 %v4355, %v4351
        %v4480 = vpack.c.b16 %v4356, %v4352
        %v4481 = vpack.c.b16 %v4361, %v4357
        %v4482 = vpack.c.b16 %v4362, %v4358
        %v4483 = vpack.c.b16 %v4363, %v4359
        %v4484 = vpack.c.b16 %v4364, %v4360
        %v4485 = vpack.c.b16 %v4369, %v4365
        %v4486 = vpack.c.b16 %v4370, %v4366
        %v4487 = vpack.c.b16 %v4371, %v4367
        %v4488 = vpack.c.b16 %v4372, %v4368
        %v4489 = vpack.c.b16 %v4377, %v4373
        %v4490 = vpack.c.b16 %v4378, %v4374
        %v4491 = vpack.c.b16 %v4379, %v4375
        %v4492 = vpack.c.b16 %v4380, %v4376
        %v4493 = vpack.c.b16 %v4385, %v4381
        %v4494 = vpack.c.b16 %v4386, %v4382
        %v4495 = vpack.c.b16 %v4387, %v4383
        %v4496 = vpack.c.b16 %v4388, %v4384
        %v4497 = vpack.c.b16 %v4393, %v4389
        %v4498 = vpack.c.b16 %v4394, %v4390
        %v4499 = vpack.c.b16 %v4395, %v4391
        %v4500 = vpack.c.b16 %v4396, %v4392
        %v4501 = vpack.c.b16 %v4401, %v4397
        %v4502 = vpack.c.b16 %v4402, %v4398
        %v4503 = vpack.c.b16 %v4403, %v4399
        %v4504 = vpack.c.b16 %v4404, %v4400
        %v4505 = vpack.c.b16 %v4409, %v4405
        %v4506 = vpack.c.b16 %v4410, %v4406
        %v4507 = vpack.c.b16 %v4411, %v4407
        %v4508 = vpack.c.b16 %v4412, %v4408
        %v4509 = vpack.c.b16 %v4417, %v4413
        %v4510 = vpack.c.b16 %v4418, %v4414
        %v4511 = vpack.c.b16 %v4419, %v4415
        %v4512 = vpack.c.b16 %v4420, %v4416
        %v4513 = vpack.c.b16 %v4425, %v4421
        %v4514 = vpack.c.b16 %v4426, %v4422
        %v4515 = vpack.c.b16 %v4427, %v4423
        %v4516 = vpack.c.b16 %v4428, %v4424
        %v4517 = vpack.c.b16 %v4433, %v4429
        %v4518 = vpack.c.b16 %v4434, %v4430
        %v4519 = vpack.c.b16 %v4435, %v4431
        %v4520 = vpack.c.b16 %v4436, %v4432
        %v4521 = vpack.c.b16 %v4441, %v4437
        %v4522 = vpack.c.b16 %v4442, %v4438
        %v4523 = vpack.c.b16 %v4443, %v4439
        %v4524 = vpack.c.b16 %v4444, %v4440
        %v4525 = vpack.c.b16 %v4449, %v4445
        %v4526 = vpack.c.b16 %v4450, %v4446
        %v4527 = vpack.c.b16 %v4451, %v4447
        %v4528 = vpack.c.b16 %v4452, %v4448
        %v4529 = vpack.c.b16 %v4457, %v4453
        %v4530 = vpack.c.b16 %v4458, %v4454
        %v4531 = vpack.c.b16 %v4459, %v4455
        %v4532 = vpack.c.b16 %v4460, %v4456
        %v4533 = vpack.c.b16 %v4465, %v4461
        %v4534 = vpack.c.b16 %v4466, %v4462
        %v4535 = vpack.c.b16 %v4467, %v4463
        %v4536 = vpack.c.b16 %v4468, %v4464
        %v4537 = vpack.c.b16 %v4473, %v4469
        %v4538 = vpack.c.b16 %v4474, %v4470
        %v4539 = vpack.c.b16 %v4475, %v4471
        %v4540 = vpack.c.b16 %v4476, %v4472
        %4605 = vmatpush.bf16.msra.mxu0 %v4505
        %4606 = vmatpush.bf16.msra.mxu0 %v4501
        %4607 = vmatpush.bf16.msra.mxu0 %v4497
        %4608 = vmatpush.bf16.msra.mxu0 %v4493
        %4609 = vmatpush.bf16.msra.mxu0 %v4489
        %4610 = vmatpush.bf16.msra.mxu0 %v4485
        %4611 = vmatpush.bf16.msra.mxu0 %v4481
        %4612 = vmatpush.bf16.msra.mxu0 %v4477
        %4613 = vmatmul.bf16.gmra.mxu0 %v3399
        %v4614 = vpop.f32.mrf.mxu0
        %v4615 = vadd.f32 %v4277, %v4614
        %v4616 = vpop.f32.mrf.mxu0
        %v4617 = vadd.f32 %v4277, %v4616
        %4618 = vmatmul.bf16.gmra.mxu0 %v3401
        %v4619 = vpop.f32.mrf.mxu0
        %v4620 = vadd.f32 %v4277, %v4619
        %v4621 = vpop.f32.mrf.mxu0
        %v4622 = vadd.f32 %v4277, %v4621
        %4623 = vmatmul.bf16.gmra.mxu0 %v3403
        %v4624 = vpop.f32.mrf.mxu0
        %v4625 = vadd.f32 %v4277, %v4624
        %v4626 = vpop.f32.mrf.mxu0
        %v4627 = vadd.f32 %v4277, %v4626
        %4628 = vdwg.mxu0
        %4629 = vmatpush.bf16.msra.mxu0 %v4537
        %4630 = vmatpush.bf16.msra.mxu0 %v4533
        %4631 = vmatpush.bf16.msra.mxu0 %v4529
        %4632 = vmatpush.bf16.msra.mxu0 %v4525
        %4633 = vmatpush.bf16.msra.mxu0 %v4521
        %4634 = vmatpush.bf16.msra.mxu0 %v4517
        %4635 = vmatpush.bf16.msra.mxu0 %v4513
        %4636 = vmatpush.bf16.msra.mxu0 %v4509
        %4637 = vmatmul.bf16.gmra.mxu0 %v3400
        %v4638 = vpop.f32.mrf.mxu0
        %v4639 = vadd.f32 %v4615, %v4638
        %v4640 = vpop.f32.mrf.mxu0
        %v4641 = vadd.f32 %v4617, %v4640
        %4642 = vmatmul.bf16.gmra.mxu0 %v3402
        %v4643 = vpop.f32.mrf.mxu0
        %v4644 = vadd.f32 %v4620, %v4643
        %v4645 = vpop.f32.mrf.mxu0
        %v4646 = vadd.f32 %v4622, %v4645
        %4647 = vmatmul.bf16.gmra.mxu0 %v3404
        %v4648 = vpop.f32.mrf.mxu0
        %v4649 = vadd.f32 %v4625, %v4648
        %v4650 = vpop.f32.mrf.mxu0
        %v4651 = vadd.f32 %v4627, %v4650
        %4652 = vdwg.mxu0
        %4653 = vmatpush.bf16.msra.mxu0 %v4506
        %4654 = vmatpush.bf16.msra.mxu0 %v4502
        %4655 = vmatpush.bf16.msra.mxu0 %v4498
        %4656 = vmatpush.bf16.msra.mxu0 %v4494
        %4657 = vmatpush.bf16.msra.mxu0 %v4490
        %4658 = vmatpush.bf16.msra.mxu0 %v4486
        %4659 = vmatpush.bf16.msra.mxu0 %v4482
        %4660 = vmatpush.bf16.msra.mxu0 %v4478
        %4661 = vmatmul.bf16.gmra.mxu0 %v3399
        %v4662 = vpop.f32.mrf.mxu0
        %v4663 = vadd.f32 %v4278, %v4662
        %v4664 = vpop.f32.mrf.mxu0
        %v4665 = vadd.f32 %v4278, %v4664
        %4666 = vmatmul.bf16.gmra.mxu0 %v3401
        %v4667 = vpop.f32.mrf.mxu0
        %v4668 = vadd.f32 %v4278, %v4667
        %v4669 = vpop.f32.mrf.mxu0
        %v4670 = vadd.f32 %v4278, %v4669
        %4671 = vmatmul.bf16.gmra.mxu0 %v3403
        %v4672 = vpop.f32.mrf.mxu0
        %v4673 = vadd.f32 %v4278, %v4672
        %v4674 = vpop.f32.mrf.mxu0
        %v4675 = vadd.f32 %v4278, %v4674
        %4676 = vdwg.mxu0
        %4677 = vmatpush.bf16.msra.mxu0 %v4538
        %4678 = vmatpush.bf16.msra.mxu0 %v4534
        %4679 = vmatpush.bf16.msra.mxu0 %v4530
        %4680 = vmatpush.bf16.msra.mxu0 %v4526
        %4681 = vmatpush.bf16.msra.mxu0 %v4522
        %4682 = vmatpush.bf16.msra.mxu0 %v4518
        %4683 = vmatpush.bf16.msra.mxu0 %v4514
        %4684 = vmatpush.bf16.msra.mxu0 %v4510
        %4685 = vmatmul.bf16.gmra.mxu0 %v3400
        %v4686 = vpop.f32.mrf.mxu0
        %v4687 = vadd.f32 %v4663, %v4686
        %v4688 = vpop.f32.mrf.mxu0
        %v4689 = vadd.f32 %v4665, %v4688
        %4690 = vmatmul.bf16.gmra.mxu0 %v3402
        %v4691 = vpop.f32.mrf.mxu0
        %v4692 = vadd.f32 %v4668, %v4691
        %v4693 = vpop.f32.mrf.mxu0
        %v4694 = vadd.f32 %v4670, %v4693
        %4695 = vmatmul.bf16.gmra.mxu0 %v3404
        %v4696 = vpop.f32.mrf.mxu0
        %v4697 = vadd.f32 %v4673, %v4696
        %v4698 = vpop.f32.mrf.mxu0
        %v4699 = vadd.f32 %v4675, %v4698
        %4700 = vdwg.mxu0
        %4701 = vmatpush.bf16.msra.mxu0 %v4507
        %4702 = vmatpush.bf16.msra.mxu0 %v4503
        %4703 = vmatpush.bf16.msra.mxu0 %v4499
        %4704 = vmatpush.bf16.msra.mxu0 %v4495
        %4705 = vmatpush.bf16.msra.mxu0 %v4491
        %4706 = vmatpush.bf16.msra.mxu0 %v4487
        %4707 = vmatpush.bf16.msra.mxu0 %v4483
        %4708 = vmatpush.bf16.msra.mxu0 %v4479
        %4709 = vmatmul.bf16.gmra.mxu0 %v3399
        %v4710 = vpop.f32.mrf.mxu0
        %v4711 = vadd.f32 %v4279, %v4710
        %v4712 = vpop.f32.mrf.mxu0
        %v4713 = vadd.f32 %v4279, %v4712
        %4714 = vmatmul.bf16.gmra.mxu0 %v3401
        %v4715 = vpop.f32.mrf.mxu0
        %v4716 = vadd.f32 %v4279, %v4715
        %v4717 = vpop.f32.mrf.mxu0
        %v4718 = vadd.f32 %v4279, %v4717
        %4719 = vmatmul.bf16.gmra.mxu0 %v3403
        %v4720 = vpop.f32.mrf.mxu0
        %v4721 = vadd.f32 %v4279, %v4720
        %v4722 = vpop.f32.mrf.mxu0
        %v4723 = vadd.f32 %v4279, %v4722
        %4724 = vdwg.mxu0
        %4725 = vmatpush.bf16.msra.mxu0 %v4539
        %4726 = vmatpush.bf16.msra.mxu0 %v4535
        %4727 = vmatpush.bf16.msra.mxu0 %v4531
        %4728 = vmatpush.bf16.msra.mxu0 %v4527
        %4729 = vmatpush.bf16.msra.mxu0 %v4523
        %4730 = vmatpush.bf16.msra.mxu0 %v4519
        %4731 = vmatpush.bf16.msra.mxu0 %v4515
        %4732 = vmatpush.bf16.msra.mxu0 %v4511
        %4733 = vmatmul.bf16.gmra.mxu0 %v3400
        %v4734 = vpop.f32.mrf.mxu0
        %v4735 = vadd.f32 %v4711, %v4734
        %v4736 = vpop.f32.mrf.mxu0
        %v4737 = vadd.f32 %v4713, %v4736
        %4738 = vmatmul.bf16.gmra.mxu0 %v3402
        %v4739 = vpop.f32.mrf.mxu0
        %v4740 = vadd.f32 %v4716, %v4739
        %v4741 = vpop.f32.mrf.mxu0
        %v4742 = vadd.f32 %v4718, %v4741
        %4743 = vmatmul.bf16.gmra.mxu0 %v3404
        %v4744 = vpop.f32.mrf.mxu0
        %v4745 = vadd.f32 %v4721, %v4744
        %v4746 = vpop.f32.mrf.mxu0
        %v4747 = vadd.f32 %v4723, %v4746
        %4748 = vdwg.mxu0
        %4749 = vmatpush.bf16.msra.mxu0 %v4508
        %4750 = vmatpush.bf16.msra.mxu0 %v4504
        %4751 = vmatpush.bf16.msra.mxu0 %v4500
        %4752 = vmatpush.bf16.msra.mxu0 %v4496
        %4753 = vmatpush.bf16.msra.mxu0 %v4492
        %4754 = vmatpush.bf16.msra.mxu0 %v4488
        %4755 = vmatpush.bf16.msra.mxu0 %v4484
        %4756 = vmatpush.bf16.msra.mxu0 %v4480
        %4757 = vmatmul.bf16.gmra.mxu0 %v3399
        %v4758 = vpop.f32.mrf.mxu0
        %v4759 = vadd.f32 %v4280, %v4758
        %v4760 = vpop.f32.mrf.mxu0
        %v4761 = vadd.f32 %v4280, %v4760
        %4762 = vmatmul.bf16.gmra.mxu0 %v3401
        %v4763 = vpop.f32.mrf.mxu0
        %v4764 = vadd.f32 %v4280, %v4763
        %v4765 = vpop.f32.mrf.mxu0
        %v4766 = vadd.f32 %v4280, %v4765
        %4767 = vmatmul.bf16.gmra.mxu0 %v3403
        %v4768 = vpop.f32.mrf.mxu0
        %v4769 = vadd.f32 %v4280, %v4768
        %v4770 = vpop.f32.mrf.mxu0
        %v4771 = vadd.f32 %v4280, %v4770
        %4772 = vdwg.mxu0
        %4773 = vmatpush.bf16.msra.mxu0 %v4540
        %4774 = vmatpush.bf16.msra.mxu0 %v4536
        %4775 = vmatpush.bf16.msra.mxu0 %v4532
        %4776 = vmatpush.bf16.msra.mxu0 %v4528
        %4777 = vmatpush.bf16.msra.mxu0 %v4524
        %4778 = vmatpush.bf16.msra.mxu0 %v4520
        %4779 = vmatpush.bf16.msra.mxu0 %v4516
        %4780 = vmatpush.bf16.msra.mxu0 %v4512
        %4781 = vmatmul.bf16.gmra.mxu0 %v3400
        %v4782 = vpop.f32.mrf.mxu0
        %v4783 = vadd.f32 %v4759, %v4782
        %v4784 = vpop.f32.mrf.mxu0
        %v4785 = vadd.f32 %v4761, %v4784
        %4786 = vmatmul.bf16.gmra.mxu0 %v3402
        %v4787 = vpop.f32.mrf.mxu0
        %v4788 = vadd.f32 %v4764, %v4787
        %v4789 = vpop.f32.mrf.mxu0
        %v4790 = vadd.f32 %v4766, %v4789
        %4791 = vmatmul.bf16.gmra.mxu0 %v3404
        %v4792 = vpop.f32.mrf.mxu0
        %v4793 = vadd.f32 %v4769, %v4792
        %v4794 = vpop.f32.mrf.mxu0
        %v4795 = vadd.f32 %v4771, %v4794
        %4796 = vdwg.mxu0
        %v4797 = vmul.f32 %v4639, -1.702
        %v4798 = vmul.f32 %v4687, -1.702
        %v4799 = vmul.f32 %v4735, -1.702
        %v4800 = vmul.f32 %v4783, -1.702
        %v4801 = vmul.f32 %v4641, -1.702
        %v4802 = vmul.f32 %v4689, -1.702
        %v4803 = vmul.f32 %v4737, -1.702
        %v4804 = vmul.f32 %v4785, -1.702
        %v4805 = vmul.f32 %v4644, -1.702
        %v4806 = vmul.f32 %v4692, -1.702
        %v4807 = vmul.f32 %v4740, -1.702
        %v4808 = vmul.f32 %v4788, -1.702
        %v4809 = vmul.f32 %v4646, -1.702
        %v4810 = vmul.f32 %v4694, -1.702
        %v4811 = vmul.f32 %v4742, -1.702
        %v4812 = vmul.f32 %v4790, -1.702
        %v4813 = vmul.f32 %v4649, -1.702
        %v4814 = vmul.f32 %v4697, -1.702
        %v4815 = vmul.f32 %v4745, -1.702
        %v4816 = vmul.f32 %v4793, -1.702
        %v4817 = vmul.f32 %v4651, -1.702
        %v4818 = vmul.f32 %v4699, -1.702
        %v4819 = vmul.f32 %v4747, -1.702
        %v4820 = vmul.f32 %v4795, -1.702
        %v4821 = vmul.f32 %v4797, 1.442695
        %v4822 = vpow.pop %v4821
        %v4823 = vmul.f32 %v4798, 1.442695
        %v4824 = vpow.pop %v4823
        %v4825 = vmul.f32 %v4799, 1.442695
        %v4826 = vpow.pop %v4825
        %v4827 = vmul.f32 %v4800, 1.442695
        %v4828 = vpow.pop %v4827
        %v4829 = vmul.f32 %v4801, 1.442695
        %v4830 = vpow.pop %v4829
        %v4831 = vmul.f32 %v4802, 1.442695
        %v4832 = vpow.pop %v4831
        %v4833 = vmul.f32 %v4803, 1.442695
        %v4834 = vpow.pop %v4833
        %v4835 = vmul.f32 %v4804, 1.442695
        %v4836 = vpow.pop %v4835
        %v4837 = vmul.f32 %v4805, 1.442695
        %v4838 = vpow.pop %v4837
        %v4839 = vmul.f32 %v4806, 1.442695
        %v4840 = vpow.pop %v4839
        %v4841 = vmul.f32 %v4807, 1.442695
        %v4842 = vpow.pop %v4841
        %v4843 = vmul.f32 %v4808, 1.442695
        %v4844 = vpow.pop %v4843
        %v4845 = vmul.f32 %v4809, 1.442695
        %v4846 = vpow.pop %v4845
        %v4847 = vmul.f32 %v4810, 1.442695
        %v4848 = vpow.pop %v4847
        %v4849 = vmul.f32 %v4811, 1.442695
        %v4850 = vpow.pop %v4849
        %v4851 = vmul.f32 %v4812, 1.442695
        %v4852 = vpow.pop %v4851
        %v4853 = vmul.f32 %v4813, 1.442695
        %v4854 = vpow.pop %v4853
        %v4855 = vmul.f32 %v4814, 1.442695
        %v4856 = vpow.pop %v4855
        %v4857 = vmul.f32 %v4815, 1.442695
        %v4858 = vpow.pop %v4857
        %v4859 = vmul.f32 %v4816, 1.442695
        %v4860 = vpow.pop %v4859
        %v4861 = vmul.f32 %v4817, 1.442695
        %v4862 = vpow.pop %v4861
        %v4863 = vmul.f32 %v4818, 1.442695
        %v4864 = vpow.pop %v4863
        %v4865 = vmul.f32 %v4819, 1.442695
        %v4866 = vpow.pop %v4865
        %v4867 = vmul.f32 %v4820, 1.442695
        %v4868 = vpow.pop %v4867
        %v4869 = vadd.f32 %v4822, 1.0
        %v4870 = vadd.f32 %v4824, 1.0
        %v4871 = vadd.f32 %v4826, 1.0
        %v4872 = vadd.f32 %v4828, 1.0
        %v4873 = vadd.f32 %v4830, 1.0
        %v4874 = vadd.f32 %v4832, 1.0
        %v4875 = vadd.f32 %v4834, 1.0
        %v4876 = vadd.f32 %v4836, 1.0
        %v4877 = vadd.f32 %v4838, 1.0
        %v4878 = vadd.f32 %v4840, 1.0
        %v4879 = vadd.f32 %v4842, 1.0
        %v4880 = vadd.f32 %v4844, 1.0
        %v4881 = vadd.f32 %v4846, 1.0
        %v4882 = vadd.f32 %v4848, 1.0
        %v4883 = vadd.f32 %v4850, 1.0
        %v4884 = vadd.f32 %v4852, 1.0
        %v4885 = vadd.f32 %v4854, 1.0
        %v4886 = vadd.f32 %v4856, 1.0
        %v4887 = vadd.f32 %v4858, 1.0
        %v4888 = vadd.f32 %v4860, 1.0
        %v4889 = vadd.f32 %v4862, 1.0
        %v4890 = vadd.f32 %v4864, 1.0
        %v4891 = vadd.f32 %v4866, 1.0
        %v4892 = vadd.f32 %v4868, 1.0
        %v4893 = vrcp.pop %v4869
        %v4894 = vrcp.pop %v4870
        %v4895 = vrcp.pop %v4871
        %v4896 = vrcp.pop %v4872
        %v4897 = vrcp.pop %v4873
        %v4898 = vrcp.pop %v4874
        %v4899 = vrcp.pop %v4875
        %v4900 = vrcp.pop %v4876
        %v4901 = vrcp.pop %v4877
        %v4902 = vrcp.pop %v4878
        %v4903 = vrcp.pop %v4879
        %v4904 = vrcp.pop %v4880
        %v4905 = vrcp.pop %v4881
        %v4906 = vrcp.pop %v4882
        %v4907 = vrcp.pop %v4883
        %v4908 = vrcp.pop %v4884
        %v4909 = vrcp.pop %v4885
        %v4910 = vrcp.pop %v4886
        %v4911 = vrcp.pop %v4887
        %v4912 = vrcp.pop %v4888
        %v4913 = vrcp.pop %v4889
        %v4914 = vrcp.pop %v4890
        %v4915 = vrcp.pop %v4891
        %v4916 = vrcp.pop %v4892
        %v4917 = vmul.f32 %v4639, %v4893
        %v4918 = vmul.f32 %v4687, %v4894
        %v4919 = vmul.f32 %v4735, %v4895
        %v4920 = vmul.f32 %v4783, %v4896
        %v4921 = vmul.f32 %v4641, %v4897
        %v4922 = vmul.f32 %v4689, %v4898
        %v4923 = vmul.f32 %v4737, %v4899
        %v4924 = vmul.f32 %v4785, %v4900
        %v4925 = vmul.f32 %v4644, %v4901
        %v4926 = vmul.f32 %v4692, %v4902
        %v4927 = vmul.f32 %v4740, %v4903
        %v4928 = vmul.f32 %v4788, %v4904
        %v4929 = vmul.f32 %v4646, %v4905
        %v4930 = vmul.f32 %v4694, %v4906
        %v4931 = vmul.f32 %v4742, %v4907
        %v4932 = vmul.f32 %v4790, %v4908
        %v4933 = vmul.f32 %v4649, %v4909
        %v4934 = vmul.f32 %v4697, %v4910
        %v4935 = vmul.f32 %v4745, %v4911
        %v4936 = vmul.f32 %v4793, %v4912
        %v4937 = vmul.f32 %v4651, %v4913
        %v4938 = vmul.f32 %v4699, %v4914
        %v4939 = vmul.f32 %v4747, %v4915
        %v4940 = vmul.f32 %v4795, %v4916
        %v4941 = vpack.c.bf16 %v4921, %v4917
        %v4942 = vpack.c.bf16 %v4922, %v4918
        %v4943 = vpack.c.bf16 %v4923, %v4919
        %v4944 = vpack.c.bf16 %v4924, %v4920
        %v4945 = vpack.c.bf16 %v4929, %v4925
        %v4946 = vpack.c.bf16 %v4930, %v4926
        %v4947 = vpack.c.bf16 %v4931, %v4927
        %v4948 = vpack.c.bf16 %v4932, %v4928
        %v4949 = vpack.c.bf16 %v4937, %v4933
        %v4950 = vpack.c.bf16 %v4938, %v4934
        %v4951 = vpack.c.bf16 %v4939, %v4935
        %v4952 = vpack.c.bf16 %v4940, %v4936
        %v4953 = vld [vmem:[%s982 + $0x200] sm:$0xff]
        %v4954 = vld [vmem:[%s982 + $0x208] sm:$0xff]
        %v4955 = vld [vmem:[%s982 + $0x210] sm:$0xff]
        %v4956 = vld [vmem:[%s982 + $0x218] sm:$0xff]
        %v4957 = vld [vmem:[%s982 + $0x220] sm:$0xff]
        %v4958 = vld [vmem:[%s982 + $0x228] sm:$0xff]
        %v4959 = vld [vmem:[%s982 + $0x230] sm:$0xff]
        %v4960 = vld [vmem:[%s982 + $0x238] sm:$0xff]
        %v4961 = vld [vmem:[%s982 + $0x240] sm:$0xff]
        %v4962 = vld [vmem:[%s982 + $0x248] sm:$0xff]
        %v4963 = vld [vmem:[%s982 + $0x250] sm:$0xff]
        %v4964 = vld [vmem:[%s982 + $0x258] sm:$0xff]
        %v4965 = vld [vmem:[%s982 + $0x260] sm:$0xff]
        %v4966 = vld [vmem:[%s982 + $0x268] sm:$0xff]
        %v4967 = vld [vmem:[%s982 + $0x270] sm:$0xff]
        %v4968 = vld [vmem:[%s982 + $0x278] sm:$0xff]
        %v4969 = vld [vmem:[%s982 + $0x280] sm:$0xff]
        %v4970 = vld [vmem:[%s982 + $0x288] sm:$0xff]
        %v4971 = vld [vmem:[%s982 + $0x290] sm:$0xff]
        %v4972 = vld [vmem:[%s982 + $0x298] sm:$0xff]
        %v4973 = vld [vmem:[%s982 + $0x2a0] sm:$0xff]
        %v4974 = vld [vmem:[%s982 + $0x2a8] sm:$0xff]
        %v4975 = vld [vmem:[%s982 + $0x2b0] sm:$0xff]
        %v4976 = vld [vmem:[%s982 + $0x2b8] sm:$0xff]
        %v4977 = vld [vmem:[%s982 + $0x2c0] sm:$0xff]
        %v4978 = vld [vmem:[%s982 + $0x2c8] sm:$0xff]
        %v4979 = vld [vmem:[%s982 + $0x2d0] sm:$0xff]
        %v4980 = vld [vmem:[%s982 + $0x2d8] sm:$0xff]
        %v4981 = vld [vmem:[%s982 + $0x2e0] sm:$0xff]
        %v4982 = vld [vmem:[%s982 + $0x2e8] sm:$0xff]
        %v4983 = vld [vmem:[%s982 + $0x2f0] sm:$0xff]
        %v4984 = vld [vmem:[%s982 + $0x2f8] sm:$0xff]
        %v4985 = vld [vmem:[%s982 + $0x300] sm:$0xff]
        %v4986 = vld [vmem:[%s982 + $0x308] sm:$0xff]
        %v4987 = vld [vmem:[%s982 + $0x310] sm:$0xff]
        %v4988 = vld [vmem:[%s982 + $0x318] sm:$0xff]
        %v4989 = vld [vmem:[%s982 + $0x320] sm:$0xff]
        %v4990 = vld [vmem:[%s982 + $0x328] sm:$0xff]
        %v4991 = vld [vmem:[%s982 + $0x330] sm:$0xff]
        %v4992 = vld [vmem:[%s982 + $0x338] sm:$0xff]
        %v4993 = vld [vmem:[%s982 + $0x340] sm:$0xff]
        %v4994 = vld [vmem:[%s982 + $0x348] sm:$0xff]
        %v4995 = vld [vmem:[%s982 + $0x350] sm:$0xff]
        %v4996 = vld [vmem:[%s982 + $0x358] sm:$0xff]
        %v4997 = vld [vmem:[%s982 + $0x360] sm:$0xff]
        %v4998 = vld [vmem:[%s982 + $0x368] sm:$0xff]
        %v4999 = vld [vmem:[%s982 + $0x370] sm:$0xff]
        %v5000 = vld [vmem:[%s982 + $0x378] sm:$0xff]
        %v5001 = vld [vmem:[%s982 + $0x380] sm:$0xff]
        %v5002 = vld [vmem:[%s982 + $0x388] sm:$0xff]
        %v5003 = vld [vmem:[%s982 + $0x390] sm:$0xff]
        %v5004 = vld [vmem:[%s982 + $0x398] sm:$0xff]
        %v5005 = vld [vmem:[%s982 + $0x3a0] sm:$0xff]
        %v5006 = vld [vmem:[%s982 + $0x3a8] sm:$0xff]
        %v5007 = vld [vmem:[%s982 + $0x3b0] sm:$0xff]
        %v5008 = vld [vmem:[%s982 + $0x3b8] sm:$0xff]
        %v5009 = vld [vmem:[%s982 + $0x3c0] sm:$0xff]
        %v5010 = vld [vmem:[%s982 + $0x3c8] sm:$0xff]
        %v5011 = vld [vmem:[%s982 + $0x3d0] sm:$0xff]
        %v5012 = vld [vmem:[%s982 + $0x3d8] sm:$0xff]
        %v5013 = vld [vmem:[%s982 + $0x3e0] sm:$0xff]
        %v5014 = vld [vmem:[%s982 + $0x3e8] sm:$0xff]
        %v5015 = vld [vmem:[%s982 + $0x3f0] sm:$0xff]
        %v5016 = vld [vmem:[%s982 + $0x3f8] sm:$0xff]
        %v5081 = vunpack.c.l.b16 %v4953
        %v5082 = vunpack.c.h.b16 %v4953
        %v5083 = vunpack.c.l.b16 %v4954
        %v5084 = vunpack.c.h.b16 %v4954
        %v5085 = vunpack.c.l.b16 %v4955
        %v5086 = vunpack.c.h.b16 %v4955
        %v5087 = vunpack.c.l.b16 %v4956
        %v5088 = vunpack.c.h.b16 %v4956
        %v5089 = vunpack.c.l.b16 %v4957
        %v5090 = vunpack.c.h.b16 %v4957
        %v5091 = vunpack.c.l.b16 %v4958
        %v5092 = vunpack.c.h.b16 %v4958
        %v5093 = vunpack.c.l.b16 %v4959
        %v5094 = vunpack.c.h.b16 %v4959
        %v5095 = vunpack.c.l.b16 %v4960
        %v5096 = vunpack.c.h.b16 %v4960
        %v5097 = vunpack.c.l.b16 %v4961
        %v5098 = vunpack.c.h.b16 %v4961
        %v5099 = vunpack.c.l.b16 %v4962
        %v5100 = vunpack.c.h.b16 %v4962
        %v5101 = vunpack.c.l.b16 %v4963
        %v5102 = vunpack.c.h.b16 %v4963
        %v5103 = vunpack.c.l.b16 %v4964
        %v5104 = vunpack.c.h.b16 %v4964
        %v5105 = vunpack.c.l.b16 %v4965
        %v5106 = vunpack.c.h.b16 %v4965
        %v5107 = vunpack.c.l.b16 %v4966
        %v5108 = vunpack.c.h.b16 %v4966
        %v5109 = vunpack.c.l.b16 %v4967
        %v5110 = vunpack.c.h.b16 %v4967
        %v5111 = vunpack.c.l.b16 %v4968
        %v5112 = vunpack.c.h.b16 %v4968
        %v5113 = vunpack.c.l.b16 %v4969
        %v5114 = vunpack.c.h.b16 %v4969
        %v5115 = vunpack.c.l.b16 %v4970
        %v5116 = vunpack.c.h.b16 %v4970
        %v5117 = vunpack.c.l.b16 %v4971
        %v5118 = vunpack.c.h.b16 %v4971
        %v5119 = vunpack.c.l.b16 %v4972
        %v5120 = vunpack.c.h.b16 %v4972
        %v5121 = vunpack.c.l.b16 %v4973
        %v5122 = vunpack.c.h.b16 %v4973
        %v5123 = vunpack.c.l.b16 %v4974
        %v5124 = vunpack.c.h.b16 %v4974
        %v5125 = vunpack.c.l.b16 %v4975
        %v5126 = vunpack.c.h.b16 %v4975
        %v5127 = vunpack.c.l.b16 %v4976
        %v5128 = vunpack.c.h.b16 %v4976
        %v5129 = vunpack.c.l.b16 %v4977
        %v5130 = vunpack.c.h.b16 %v4977
        %v5131 = vunpack.c.l.b16 %v4978
        %v5132 = vunpack.c.h.b16 %v4978
        %v5133 = vunpack.c.l.b16 %v4979
        %v5134 = vunpack.c.h.b16 %v4979
        %v5135 = vunpack.c.l.b16 %v4980
        %v5136 = vunpack.c.h.b16 %v4980
        %v5137 = vunpack.c.l.b16 %v4981
        %v5138 = vunpack.c.h.b16 %v4981
        %v5139 = vunpack.c.l.b16 %v4982
        %v5140 = vunpack.c.h.b16 %v4982
        %v5141 = vunpack.c.l.b16 %v4983
        %v5142 = vunpack.c.h.b16 %v4983
        %v5143 = vunpack.c.l.b16 %v4984
        %v5144 = vunpack.c.h.b16 %v4984
        %v5145 = vunpack.c.l.b16 %v4985
        %v5146 = vunpack.c.h.b16 %v4985
        %v5147 = vunpack.c.l.b16 %v4986
        %v5148 = vunpack.c.h.b16 %v4986
        %v5149 = vunpack.c.l.b16 %v4987
        %v5150 = vunpack.c.h.b16 %v4987
        %v5151 = vunpack.c.l.b16 %v4988
        %v5152 = vunpack.c.h.b16 %v4988
        %v5153 = vunpack.c.l.b16 %v4989
        %v5154 = vunpack.c.h.b16 %v4989
        %v5155 = vunpack.c.l.b16 %v4990
        %v5156 = vunpack.c.h.b16 %v4990
        %v5157 = vunpack.c.l.b16 %v4991
        %v5158 = vunpack.c.h.b16 %v4991
        %v5159 = vunpack.c.l.b16 %v4992
        %v5160 = vunpack.c.h.b16 %v4992
        %v5161 = vunpack.c.l.b16 %v4993
        %v5162 = vunpack.c.h.b16 %v4993
        %v5163 = vunpack.c.l.b16 %v4994
        %v5164 = vunpack.c.h.b16 %v4994
        %v5165 = vunpack.c.l.b16 %v4995
        %v5166 = vunpack.c.h.b16 %v4995
        %v5167 = vunpack.c.l.b16 %v4996
        %v5168 = vunpack.c.h.b16 %v4996
        %v5169 = vunpack.c.l.b16 %v4997
        %v5170 = vunpack.c.h.b16 %v4997
        %v5171 = vunpack.c.l.b16 %v4998
        %v5172 = vunpack.c.h.b16 %v4998
        %v5173 = vunpack.c.l.b16 %v4999
        %v5174 = vunpack.c.h.b16 %v4999
        %v5175 = vunpack.c.l.b16 %v5000
        %v5176 = vunpack.c.h.b16 %v5000
        %v5177 = vunpack.c.l.b16 %v5001
        %v5178 = vunpack.c.h.b16 %v5001
        %v5179 = vunpack.c.l.b16 %v5002
        %v5180 = vunpack.c.h.b16 %v5002
        %v5181 = vunpack.c.l.b16 %v5003
        %v5182 = vunpack.c.h.b16 %v5003
        %v5183 = vunpack.c.l.b16 %v5004
        %v5184 = vunpack.c.h.b16 %v5004
        %v5185 = vunpack.c.l.b16 %v5005
        %v5186 = vunpack.c.h.b16 %v5005
        %v5187 = vunpack.c.l.b16 %v5006
        %v5188 = vunpack.c.h.b16 %v5006
        %v5189 = vunpack.c.l.b16 %v5007
        %v5190 = vunpack.c.h.b16 %v5007
        %v5191 = vunpack.c.l.b16 %v5008
        %v5192 = vunpack.c.h.b16 %v5008
        %v5193 = vunpack.c.l.b16 %v5009
        %v5194 = vunpack.c.h.b16 %v5009
        %v5195 = vunpack.c.l.b16 %v5010
        %v5196 = vunpack.c.h.b16 %v5010
        %v5197 = vunpack.c.l.b16 %v5011
        %v5198 = vunpack.c.h.b16 %v5011
        %v5199 = vunpack.c.l.b16 %v5012
        %v5200 = vunpack.c.h.b16 %v5012
        %v5201 = vunpack.c.l.b16 %v5013
        %v5202 = vunpack.c.h.b16 %v5013
        %v5203 = vunpack.c.l.b16 %v5014
        %v5204 = vunpack.c.h.b16 %v5014
        %v5205 = vunpack.c.l.b16 %v5015
        %v5206 = vunpack.c.h.b16 %v5015
        %v5207 = vunpack.c.l.b16 %v5016
        %v5208 = vunpack.c.h.b16 %v5016
        %v5209 = vpack.c.b16 %v5083, %v5081
        %v5210 = vpack.c.b16 %v5084, %v5082
        %v5211 = vpack.c.b16 %v5087, %v5085
        %v5212 = vpack.c.b16 %v5088, %v5086
        %v5213 = vpack.c.b16 %v5091, %v5089
        %v5214 = vpack.c.b16 %v5092, %v5090
        %v5215 = vpack.c.b16 %v5095, %v5093
        %v5216 = vpack.c.b16 %v5096, %v5094
        %v5217 = vpack.c.b16 %v5099, %v5097
        %v5218 = vpack.c.b16 %v5100, %v5098
        %v5219 = vpack.c.b16 %v5103, %v5101
        %v5220 = vpack.c.b16 %v5104, %v5102
        %v5221 = vpack.c.b16 %v5107, %v5105
        %v5222 = vpack.c.b16 %v5108, %v5106
        %v5223 = vpack.c.b16 %v5111, %v5109
        %v5224 = vpack.c.b16 %v5112, %v5110
        %v5225 = vpack.c.b16 %v5115, %v5113
        %v5226 = vpack.c.b16 %v5116, %v5114
        %v5227 = vpack.c.b16 %v5119, %v5117
        %v5228 = vpack.c.b16 %v5120, %v5118
        %v5229 = vpack.c.b16 %v5123, %v5121
        %v5230 = vpack.c.b16 %v5124, %v5122
        %v5231 = vpack.c.b16 %v5127, %v5125
        %v5232 = vpack.c.b16 %v5128, %v5126
        %v5233 = vpack.c.b16 %v5131, %v5129
        %v5234 = vpack.c.b16 %v5132, %v5130
        %v5235 = vpack.c.b16 %v5135, %v5133
        %v5236 = vpack.c.b16 %v5136, %v5134
        %v5237 = vpack.c.b16 %v5139, %v5137
        %v5238 = vpack.c.b16 %v5140, %v5138
        %v5239 = vpack.c.b16 %v5143, %v5141
        %v5240 = vpack.c.b16 %v5144, %v5142
        %v5241 = vpack.c.b16 %v5147, %v5145
        %v5242 = vpack.c.b16 %v5148, %v5146
        %v5243 = vpack.c.b16 %v5151, %v5149
        %v5244 = vpack.c.b16 %v5152, %v5150
        %v5245 = vpack.c.b16 %v5155, %v5153
        %v5246 = vpack.c.b16 %v5156, %v5154
        %v5247 = vpack.c.b16 %v5159, %v5157
        %v5248 = vpack.c.b16 %v5160, %v5158
        %v5249 = vpack.c.b16 %v5163, %v5161
        %v5250 = vpack.c.b16 %v5164, %v5162
        %v5251 = vpack.c.b16 %v5167, %v5165
        %v5252 = vpack.c.b16 %v5168, %v5166
        %v5253 = vpack.c.b16 %v5171, %v5169
        %v5254 = vpack.c.b16 %v5172, %v5170
        %v5255 = vpack.c.b16 %v5175, %v5173
        %v5256 = vpack.c.b16 %v5176, %v5174
        %v5257 = vpack.c.b16 %v5179, %v5177
        %v5258 = vpack.c.b16 %v5180, %v5178
        %v5259 = vpack.c.b16 %v5183, %v5181
        %v5260 = vpack.c.b16 %v5184, %v5182
        %v5261 = vpack.c.b16 %v5187, %v5185
        %v5262 = vpack.c.b16 %v5188, %v5186
        %v5263 = vpack.c.b16 %v5191, %v5189
        %v5264 = vpack.c.b16 %v5192, %v5190
        %v5265 = vpack.c.b16 %v5195, %v5193
        %v5266 = vpack.c.b16 %v5196, %v5194
        %v5267 = vpack.c.b16 %v5199, %v5197
        %v5268 = vpack.c.b16 %v5200, %v5198
        %v5269 = vpack.c.b16 %v5203, %v5201
        %v5270 = vpack.c.b16 %v5204, %v5202
        %v5271 = vpack.c.b16 %v5207, %v5205
        %v5272 = vpack.c.b16 %v5208, %v5206
        %5337 = vmatpush.bf16.msra.mxu0 %v5223
        %5338 = vmatpush.bf16.msra.mxu0 %v5221
        %5339 = vmatpush.bf16.msra.mxu0 %v5219
        %5340 = vmatpush.bf16.msra.mxu0 %v5217
        %5341 = vmatpush.bf16.msra.mxu0 %v5215
        %5342 = vmatpush.bf16.msra.mxu0 %v5213
        %5343 = vmatpush.bf16.msra.mxu0 %v5211
        %5344 = vmatpush.bf16.msra.mxu0 %v5209
        %5345 = vmatmul.bf16.gmra.mxu0 %v4941
        %v5346 = vpop.f32.mrf.mxu0
        %v5347 = vadd.f32 0.0, %v5346
        %v5348 = vpop.f32.mrf.mxu0
        %v5349 = vadd.f32 0.0, %v5348
        %5350 = vmatmul.bf16.gmra.mxu0 %v4945
        %v5351 = vpop.f32.mrf.mxu0
        %v5352 = vadd.f32 0.0, %v5351
        %v5353 = vpop.f32.mrf.mxu0
        %v5354 = vadd.f32 0.0, %v5353
        %5355 = vmatmul.bf16.gmra.mxu0 %v4949
        %v5356 = vpop.f32.mrf.mxu0
        %v5357 = vadd.f32 0.0, %v5356
        %v5358 = vpop.f32.mrf.mxu0
        %v5359 = vadd.f32 0.0, %v5358
        %5360 = vdwg.mxu0
        %5361 = vmatpush.bf16.msra.mxu0 %v5239
        %5362 = vmatpush.bf16.msra.mxu0 %v5237
        %5363 = vmatpush.bf16.msra.mxu0 %v5235
        %5364 = vmatpush.bf16.msra.mxu0 %v5233
        %5365 = vmatpush.bf16.msra.mxu0 %v5231
        %5366 = vmatpush.bf16.msra.mxu0 %v5229
        %5367 = vmatpush.bf16.msra.mxu0 %v5227
        %5368 = vmatpush.bf16.msra.mxu0 %v5225
        %5369 = vmatmul.bf16.gmra.mxu0 %v4942
        %v5370 = vpop.f32.mrf.mxu0
        %v5371 = vadd.f32 %v5347, %v5370
        %v5372 = vpop.f32.mrf.mxu0
        %v5373 = vadd.f32 %v5349, %v5372
        %5374 = vmatmul.bf16.gmra.mxu0 %v4946
        %v5375 = vpop.f32.mrf.mxu0
        %v5376 = vadd.f32 %v5352, %v5375
        %v5377 = vpop.f32.mrf.mxu0
        %v5378 = vadd.f32 %v5354, %v5377
        %5379 = vmatmul.bf16.gmra.mxu0 %v4950
        %v5380 = vpop.f32.mrf.mxu0
        %v5381 = vadd.f32 %v5357, %v5380
        %v5382 = vpop.f32.mrf.mxu0
        %v5383 = vadd.f32 %v5359, %v5382
        %5384 = vdwg.mxu0
        %5385 = vmatpush.bf16.msra.mxu0 %v5255
        %5386 = vmatpush.bf16.msra.mxu0 %v5253
        %5387 = vmatpush.bf16.msra.mxu0 %v5251
        %5388 = vmatpush.bf16.msra.mxu0 %v5249
        %5389 = vmatpush.bf16.msra.mxu0 %v5247
        %5390 = vmatpush.bf16.msra.mxu0 %v5245
        %5391 = vmatpush.bf16.msra.mxu0 %v5243
        %5392 = vmatpush.bf16.msra.mxu0 %v5241
        %5393 = vmatmul.bf16.gmra.mxu0 %v4943
        %v5394 = vpop.f32.mrf.mxu0
        %v5395 = vadd.f32 %v5371, %v5394
        %v5396 = vpop.f32.mrf.mxu0
        %v5397 = vadd.f32 %v5373, %v5396
        %5398 = vmatmul.bf16.gmra.mxu0 %v4947
        %v5399 = vpop.f32.mrf.mxu0
        %v5400 = vadd.f32 %v5376, %v5399
        %v5401 = vpop.f32.mrf.mxu0
        %v5402 = vadd.f32 %v5378, %v5401
        %5403 = vmatmul.bf16.gmra.mxu0 %v4951
        %v5404 = vpop.f32.mrf.mxu0
        %v5405 = vadd.f32 %v5381, %v5404
        %v5406 = vpop.f32.mrf.mxu0
        %v5407 = vadd.f32 %v5383, %v5406
        %5408 = vdwg.mxu0
        %5409 = vmatpush.bf16.msra.mxu0 %v5271
        %5410 = vmatpush.bf16.msra.mxu0 %v5269
        %5411 = vmatpush.bf16.msra.mxu0 %v5267
        %5412 = vmatpush.bf16.msra.mxu0 %v5265
        %5413 = vmatpush.bf16.msra.mxu0 %v5263
        %5414 = vmatpush.bf16.msra.mxu0 %v5261
        %5415 = vmatpush.bf16.msra.mxu0 %v5259
        %5416 = vmatpush.bf16.msra.mxu0 %v5257
        %5417 = vmatmul.bf16.gmra.mxu0 %v4944
        %v5418 = vpop.f32.mrf.mxu0
        %v5419 = vadd.f32 %v5395, %v5418
        %v5420 = vpop.f32.mrf.mxu0
        %v5421 = vadd.f32 %v5397, %v5420
        %5422 = vmatmul.bf16.gmra.mxu0 %v4948
        %v5423 = vpop.f32.mrf.mxu0
        %v5424 = vadd.f32 %v5400, %v5423
        %v5425 = vpop.f32.mrf.mxu0
        %v5426 = vadd.f32 %v5402, %v5425
        %5427 = vmatmul.bf16.gmra.mxu0 %v4952
        %v5428 = vpop.f32.mrf.mxu0
        %v5429 = vadd.f32 %v5405, %v5428
        %v5430 = vpop.f32.mrf.mxu0
        %v5431 = vadd.f32 %v5407, %v5430
        %5432 = vdwg.mxu0
        %5433 = vmatpush.bf16.msra.mxu0 %v5224
        %5434 = vmatpush.bf16.msra.mxu0 %v5222
        %5435 = vmatpush.bf16.msra.mxu0 %v5220
        %5436 = vmatpush.bf16.msra.mxu0 %v5218
        %5437 = vmatpush.bf16.msra.mxu0 %v5216
        %5438 = vmatpush.bf16.msra.mxu0 %v5214
        %5439 = vmatpush.bf16.msra.mxu0 %v5212
        %5440 = vmatpush.bf16.msra.mxu0 %v5210
        %5441 = vmatmul.bf16.gmra.mxu0 %v4941
        %v5442 = vpop.f32.mrf.mxu0
        %v5443 = vadd.f32 0.0, %v5442
        %v5444 = vpop.f32.mrf.mxu0
        %v5445 = vadd.f32 0.0, %v5444
        %5446 = vmatmul.bf16.gmra.mxu0 %v4945
        %v5447 = vpop.f32.mrf.mxu0
        %v5448 = vadd.f32 0.0, %v5447
        %v5449 = vpop.f32.mrf.mxu0
        %v5450 = vadd.f32 0.0, %v5449
        %5451 = vmatmul.bf16.gmra.mxu0 %v4949
        %v5452 = vpop.f32.mrf.mxu0
        %v5453 = vadd.f32 0.0, %v5452
        %v5454 = vpop.f32.mrf.mxu0
        %v5455 = vadd.f32 0.0, %v5454
        %5456 = vdwg.mxu0
        %5457 = vmatpush.bf16.msra.mxu0 %v5240
        %5458 = vmatpush.bf16.msra.mxu0 %v5238
        %5459 = vmatpush.bf16.msra.mxu0 %v5236
        %5460 = vmatpush.bf16.msra.mxu0 %v5234
        %5461 = vmatpush.bf16.msra.mxu0 %v5232
        %5462 = vmatpush.bf16.msra.mxu0 %v5230
        %5463 = vmatpush.bf16.msra.mxu0 %v5228
        %5464 = vmatpush.bf16.msra.mxu0 %v5226
        %5465 = vmatmul.bf16.gmra.mxu0 %v4942
        %v5466 = vpop.f32.mrf.mxu0
        %v5467 = vadd.f32 %v5443, %v5466
        %v5468 = vpop.f32.mrf.mxu0
        %v5469 = vadd.f32 %v5445, %v5468
        %5470 = vmatmul.bf16.gmra.mxu0 %v4946
        %v5471 = vpop.f32.mrf.mxu0
        %v5472 = vadd.f32 %v5448, %v5471
        %v5473 = vpop.f32.mrf.mxu0
        %v5474 = vadd.f32 %v5450, %v5473
        %5475 = vmatmul.bf16.gmra.mxu0 %v4950
        %v5476 = vpop.f32.mrf.mxu0
        %v5477 = vadd.f32 %v5453, %v5476
        %v5478 = vpop.f32.mrf.mxu0
        %v5479 = vadd.f32 %v5455, %v5478
        %5480 = vdwg.mxu0
        %5481 = vmatpush.bf16.msra.mxu0 %v5256
        %5482 = vmatpush.bf16.msra.mxu0 %v5254
        %5483 = vmatpush.bf16.msra.mxu0 %v5252
        %5484 = vmatpush.bf16.msra.mxu0 %v5250
        %5485 = vmatpush.bf16.msra.mxu0 %v5248
        %5486 = vmatpush.bf16.msra.mxu0 %v5246
        %5487 = vmatpush.bf16.msra.mxu0 %v5244
        %5488 = vmatpush.bf16.msra.mxu0 %v5242
        %5489 = vmatmul.bf16.gmra.mxu0 %v4943
        %v5490 = vpop.f32.mrf.mxu0
        %v5491 = vadd.f32 %v5467, %v5490
        %v5492 = vpop.f32.mrf.mxu0
        %v5493 = vadd.f32 %v5469, %v5492
        %5494 = vmatmul.bf16.gmra.mxu0 %v4947
        %v5495 = vpop.f32.mrf.mxu0
        %v5496 = vadd.f32 %v5472, %v5495
        %v5497 = vpop.f32.mrf.mxu0
        %v5498 = vadd.f32 %v5474, %v5497
        %5499 = vmatmul.bf16.gmra.mxu0 %v4951
        %v5500 = vpop.f32.mrf.mxu0
        %v5501 = vadd.f32 %v5477, %v5500
        %v5502 = vpop.f32.mrf.mxu0
        %v5503 = vadd.f32 %v5479, %v5502
        %5504 = vdwg.mxu0
        %5505 = vmatpush.bf16.msra.mxu0 %v5272
        %5506 = vmatpush.bf16.msra.mxu0 %v5270
        %5507 = vmatpush.bf16.msra.mxu0 %v5268
        %5508 = vmatpush.bf16.msra.mxu0 %v5266
        %5509 = vmatpush.bf16.msra.mxu0 %v5264
        %5510 = vmatpush.bf16.msra.mxu0 %v5262
        %5511 = vmatpush.bf16.msra.mxu0 %v5260
        %5512 = vmatpush.bf16.msra.mxu0 %v5258
        %5513 = vmatmul.bf16.gmra.mxu0 %v4944
        %v5514 = vpop.f32.mrf.mxu0
        %v5515 = vadd.f32 %v5491, %v5514
        %v5516 = vpop.f32.mrf.mxu0
        %v5517 = vadd.f32 %v5493, %v5516
        %5518 = vmatmul.bf16.gmra.mxu0 %v4948
        %v5519 = vpop.f32.mrf.mxu0
        %v5520 = vadd.f32 %v5496, %v5519
        %v5521 = vpop.f32.mrf.mxu0
        %v5522 = vadd.f32 %v5498, %v5521
        %5523 = vmatmul.bf16.gmra.mxu0 %v4952
        %v5524 = vpop.f32.mrf.mxu0
        %v5525 = vadd.f32 %v5501, %v5524
        %v5526 = vpop.f32.mrf.mxu0
        %v5527 = vadd.f32 %v5503, %v5526
        %5528 = vdwg.mxu0
        %v5593 = vunpack.c.l.b16 %v4147
        %v5594 = vunpack.c.h.b16 %v4147
        %v5595 = vunpack.c.l.b16 %v4148
        %v5596 = vunpack.c.h.b16 %v4148
        %v5597 = vunpack.c.l.b16 %v4149
        %v5598 = vunpack.c.h.b16 %v4149
        %v5599 = vunpack.c.l.b16 %v4150
        %v5600 = vunpack.c.h.b16 %v4150
        %v5601 = vunpack.c.l.b16 %v4151
        %v5602 = vunpack.c.h.b16 %v4151
        %v5603 = vunpack.c.l.b16 %v4152
        %v5604 = vunpack.c.h.b16 %v4152
        %v5605 = vunpack.c.l.b16 %v4153
        %v5606 = vunpack.c.h.b16 %v4153
        %v5607 = vunpack.c.l.b16 %v4154
        %v5608 = vunpack.c.h.b16 %v4154
        %v5609 = vunpack.c.l.b16 %v4155
        %v5610 = vunpack.c.h.b16 %v4155
        %v5611 = vunpack.c.l.b16 %v4156
        %v5612 = vunpack.c.h.b16 %v4156
        %v5613 = vunpack.c.l.b16 %v4157
        %v5614 = vunpack.c.h.b16 %v4157
        %v5615 = vunpack.c.l.b16 %v4158
        %v5616 = vunpack.c.h.b16 %v4158
        %v5617 = vunpack.c.l.b16 %v4159
        %v5618 = vunpack.c.h.b16 %v4159
        %v5619 = vunpack.c.l.b16 %v4160
        %v5620 = vunpack.c.h.b16 %v4160
        %v5621 = vunpack.c.l.b16 %v4161
        %v5622 = vunpack.c.h.b16 %v4161
        %v5623 = vunpack.c.l.b16 %v4162
        %v5624 = vunpack.c.h.b16 %v4162
        %v5625 = vunpack.c.l.b16 %v4163
        %v5626 = vunpack.c.h.b16 %v4163
        %v5627 = vunpack.c.l.b16 %v4164
        %v5628 = vunpack.c.h.b16 %v4164
        %v5629 = vunpack.c.l.b16 %v4165
        %v5630 = vunpack.c.h.b16 %v4165
        %v5631 = vunpack.c.l.b16 %v4166
        %v5632 = vunpack.c.h.b16 %v4166
        %v5633 = vunpack.c.l.b16 %v4167
        %v5634 = vunpack.c.h.b16 %v4167
        %v5635 = vunpack.c.l.b16 %v4168
        %v5636 = vunpack.c.h.b16 %v4168
        %v5637 = vunpack.c.l.b16 %v4169
        %v5638 = vunpack.c.h.b16 %v4169
        %v5639 = vunpack.c.l.b16 %v4170
        %v5640 = vunpack.c.h.b16 %v4170
        %v5641 = vunpack.c.l.b16 %v4171
        %v5642 = vunpack.c.h.b16 %v4171
        %v5643 = vunpack.c.l.b16 %v4172
        %v5644 = vunpack.c.h.b16 %v4172
        %v5645 = vunpack.c.l.b16 %v4173
        %v5646 = vunpack.c.h.b16 %v4173
        %v5647 = vunpack.c.l.b16 %v4174
        %v5648 = vunpack.c.h.b16 %v4174
        %v5649 = vunpack.c.l.b16 %v4175
        %v5650 = vunpack.c.h.b16 %v4175
        %v5651 = vunpack.c.l.b16 %v4176
        %v5652 = vunpack.c.h.b16 %v4176
        %v5653 = vunpack.c.l.b16 %v4177
        %v5654 = vunpack.c.h.b16 %v4177
        %v5655 = vunpack.c.l.b16 %v4178
        %v5656 = vunpack.c.h.b16 %v4178
        %v5657 = vunpack.c.l.b16 %v4179
        %v5658 = vunpack.c.h.b16 %v4179
        %v5659 = vunpack.c.l.b16 %v4180
        %v5660 = vunpack.c.h.b16 %v4180
        %v5661 = vunpack.c.l.b16 %v4181
        %v5662 = vunpack.c.h.b16 %v4181
        %v5663 = vunpack.c.l.b16 %v4182
        %v5664 = vunpack.c.h.b16 %v4182
        %v5665 = vunpack.c.l.b16 %v4183
        %v5666 = vunpack.c.h.b16 %v4183
        %v5667 = vunpack.c.l.b16 %v4184
        %v5668 = vunpack.c.h.b16 %v4184
        %v5669 = vunpack.c.l.b16 %v4185
        %v5670 = vunpack.c.h.b16 %v4185
        %v5671 = vunpack.c.l.b16 %v4186
        %v5672 = vunpack.c.h.b16 %v4186
        %v5673 = vunpack.c.l.b16 %v4187
        %v5674 = vunpack.c.h.b16 %v4187
        %v5675 = vunpack.c.l.b16 %v4188
        %v5676 = vunpack.c.h.b16 %v4188
        %v5677 = vunpack.c.l.b16 %v4189
        %v5678 = vunpack.c.h.b16 %v4189
        %v5679 = vunpack.c.l.b16 %v4190
        %v5680 = vunpack.c.h.b16 %v4190
        %v5681 = vunpack.c.l.b16 %v4191
        %v5682 = vunpack.c.h.b16 %v4191
        %v5683 = vunpack.c.l.b16 %v4192
        %v5684 = vunpack.c.h.b16 %v4192
        %v5685 = vunpack.c.l.b16 %v4193
        %v5686 = vunpack.c.h.b16 %v4193
        %v5687 = vunpack.c.l.b16 %v4194
        %v5688 = vunpack.c.h.b16 %v4194
        %v5689 = vunpack.c.l.b16 %v4195
        %v5690 = vunpack.c.h.b16 %v4195
        %v5691 = vunpack.c.l.b16 %v4196
        %v5692 = vunpack.c.h.b16 %v4196
        %v5693 = vunpack.c.l.b16 %v4197
        %v5694 = vunpack.c.h.b16 %v4197
        %v5695 = vunpack.c.l.b16 %v4198
        %v5696 = vunpack.c.h.b16 %v4198
        %v5697 = vunpack.c.l.b16 %v4199
        %v5698 = vunpack.c.h.b16 %v4199
        %v5699 = vunpack.c.l.b16 %v4200
        %v5700 = vunpack.c.h.b16 %v4200
        %v5701 = vunpack.c.l.b16 %v4201
        %v5702 = vunpack.c.h.b16 %v4201
        %v5703 = vunpack.c.l.b16 %v4202
        %v5704 = vunpack.c.h.b16 %v4202
        %v5705 = vunpack.c.l.b16 %v4203
        %v5706 = vunpack.c.h.b16 %v4203
        %v5707 = vunpack.c.l.b16 %v4204
        %v5708 = vunpack.c.h.b16 %v4204
        %v5709 = vunpack.c.l.b16 %v4205
        %v5710 = vunpack.c.h.b16 %v4205
        %v5711 = vunpack.c.l.b16 %v4206
        %v5712 = vunpack.c.h.b16 %v4206
        %v5713 = vunpack.c.l.b16 %v4207
        %v5714 = vunpack.c.h.b16 %v4207
        %v5715 = vunpack.c.l.b16 %v4208
        %v5716 = vunpack.c.h.b16 %v4208
        %v5717 = vunpack.c.l.b16 %v4209
        %v5718 = vunpack.c.h.b16 %v4209
        %v5719 = vunpack.c.l.b16 %v4210
        %v5720 = vunpack.c.h.b16 %v4210
        %v5721 = vpack.c.b16 %v5595, %v5593
        %v5722 = vpack.c.b16 %v5596, %v5594
        %v5723 = vpack.c.b16 %v5599, %v5597
        %v5724 = vpack.c.b16 %v5600, %v5598
        %v5725 = vpack.c.b16 %v5603, %v5601
        %v5726 = vpack.c.b16 %v5604, %v5602
        %v5727 = vpack.c.b16 %v5607, %v5605
        %v5728 = vpack.c.b16 %v5608, %v5606
        %v5729 = vpack.c.b16 %v5611, %v5609
        %v5730 = vpack.c.b16 %v5612, %v5610
        %v5731 = vpack.c.b16 %v5615, %v5613
        %v5732 = vpack.c.b16 %v5616, %v5614
        %v5733 = vpack.c.b16 %v5619, %v5617
        %v5734 = vpack.c.b16 %v5620, %v5618
        %v5735 = vpack.c.b16 %v5623, %v5621
        %v5736 = vpack.c.b16 %v5624, %v5622
        %v5737 = vpack.c.b16 %v5627, %v5625
        %v5738 = vpack.c.b16 %v5628, %v5626
        %v5739 = vpack.c.b16 %v5631, %v5629
        %v5740 = vpack.c.b16 %v5632, %v5630
        %v5741 = vpack.c.b16 %v5635, %v5633
        %v5742 = vpack.c.b16 %v5636, %v5634
        %v5743 = vpack.c.b16 %v5639, %v5637
        %v5744 = vpack.c.b16 %v5640, %v5638
        %v5745 = vpack.c.b16 %v5643, %v5641
        %v5746 = vpack.c.b16 %v5644, %v5642
        %v5747 = vpack.c.b16 %v5647, %v5645
        %v5748 = vpack.c.b16 %v5648, %v5646
        %v5749 = vpack.c.b16 %v5651, %v5649
        %v5750 = vpack.c.b16 %v5652, %v5650
        %v5751 = vpack.c.b16 %v5655, %v5653
        %v5752 = vpack.c.b16 %v5656, %v5654
        %v5753 = vpack.c.b16 %v5659, %v5657
        %v5754 = vpack.c.b16 %v5660, %v5658
        %v5755 = vpack.c.b16 %v5663, %v5661
        %v5756 = vpack.c.b16 %v5664, %v5662
        %v5757 = vpack.c.b16 %v5667, %v5665
        %v5758 = vpack.c.b16 %v5668, %v5666
        %v5759 = vpack.c.b16 %v5671, %v5669
        %v5760 = vpack.c.b16 %v5672, %v5670
        %v5761 = vpack.c.b16 %v5675, %v5673
        %v5762 = vpack.c.b16 %v5676, %v5674
        %v5763 = vpack.c.b16 %v5679, %v5677
        %v5764 = vpack.c.b16 %v5680, %v5678
        %v5765 = vpack.c.b16 %v5683, %v5681
        %v5766 = vpack.c.b16 %v5684, %v5682
        %v5767 = vpack.c.b16 %v5687, %v5685
        %v5768 = vpack.c.b16 %v5688, %v5686
        %v5769 = vpack.c.b16 %v5691, %v5689
        %v5770 = vpack.c.b16 %v5692, %v5690
        %v5771 = vpack.c.b16 %v5695, %v5693
        %v5772 = vpack.c.b16 %v5696, %v5694
        %v5773 = vpack.c.b16 %v5699, %v5697
        %v5774 = vpack.c.b16 %v5700, %v5698
        %v5775 = vpack.c.b16 %v5703, %v5701
        %v5776 = vpack.c.b16 %v5704, %v5702
        %v5777 = vpack.c.b16 %v5707, %v5705
        %v5778 = vpack.c.b16 %v5708, %v5706
        %v5779 = vpack.c.b16 %v5711, %v5709
        %v5780 = vpack.c.b16 %v5712, %v5710
        %v5781 = vpack.c.b16 %v5715, %v5713
        %v5782 = vpack.c.b16 %v5716, %v5714
        %v5783 = vpack.c.b16 %v5719, %v5717
        %v5784 = vpack.c.b16 %v5720, %v5718
        %5849 = vmatpush.bf16.msra.mxu0 %v5735
        %5850 = vmatpush.bf16.msra.mxu0 %v5733
        %5851 = vmatpush.bf16.msra.mxu0 %v5731
        %5852 = vmatpush.bf16.msra.mxu0 %v5729
        %5853 = vmatpush.bf16.msra.mxu0 %v5727
        %5854 = vmatpush.bf16.msra.mxu0 %v5725
        %5855 = vmatpush.bf16.msra.mxu0 %v5723
        %5856 = vmatpush.bf16.msra.mxu0 %v5721
        %5857 = vmatmul.bf16.gmra.mxu0 %v4135
        %v5858 = vpop.f32.mrf.mxu0
        %v5859 = vadd.f32 %v5419, %v5858
        %v5860 = vpop.f32.mrf.mxu0
        %v5861 = vadd.f32 %v5421, %v5860
        %5862 = vmatmul.bf16.gmra.mxu0 %v4139
        %v5863 = vpop.f32.mrf.mxu0
        %v5864 = vadd.f32 %v5424, %v5863
        %v5865 = vpop.f32.mrf.mxu0
        %v5866 = vadd.f32 %v5426, %v5865
        %5867 = vmatmul.bf16.gmra.mxu0 %v4143
        %v5868 = vpop.f32.mrf.mxu0
        %v5869 = vadd.f32 %v5429, %v5868
        %v5870 = vpop.f32.mrf.mxu0
        %v5871 = vadd.f32 %v5431, %v5870
        %5872 = vdwg.mxu0
        %5873 = vmatpush.bf16.msra.mxu0 %v5751
        %5874 = vmatpush.bf16.msra.mxu0 %v5749
        %5875 = vmatpush.bf16.msra.mxu0 %v5747
        %5876 = vmatpush.bf16.msra.mxu0 %v5745
        %5877 = vmatpush.bf16.msra.mxu0 %v5743
        %5878 = vmatpush.bf16.msra.mxu0 %v5741
        %5879 = vmatpush.bf16.msra.mxu0 %v5739
        %5880 = vmatpush.bf16.msra.mxu0 %v5737
        %5881 = vmatmul.bf16.gmra.mxu0 %v4136
        %v5882 = vpop.f32.mrf.mxu0
        %v5883 = vadd.f32 %v5859, %v5882
        %v5884 = vpop.f32.mrf.mxu0
        %v5885 = vadd.f32 %v5861, %v5884
        %5886 = vmatmul.bf16.gmra.mxu0 %v4140
        %v5887 = vpop.f32.mrf.mxu0
        %v5888 = vadd.f32 %v5864, %v5887
        %v5889 = vpop.f32.mrf.mxu0
        %v5890 = vadd.f32 %v5866, %v5889
        %5891 = vmatmul.bf16.gmra.mxu0 %v4144
        %v5892 = vpop.f32.mrf.mxu0
        %v5893 = vadd.f32 %v5869, %v5892
        %v5894 = vpop.f32.mrf.mxu0
        %v5895 = vadd.f32 %v5871, %v5894
        %5896 = vdwg.mxu0
        %5897 = vmatpush.bf16.msra.mxu0 %v5767
        %5898 = vmatpush.bf16.msra.mxu0 %v5765
        %5899 = vmatpush.bf16.msra.mxu0 %v5763
        %5900 = vmatpush.bf16.msra.mxu0 %v5761
        %5901 = vmatpush.bf16.msra.mxu0 %v5759
        %5902 = vmatpush.bf16.msra.mxu0 %v5757
        %5903 = vmatpush.bf16.msra.mxu0 %v5755
        %5904 = vmatpush.bf16.msra.mxu0 %v5753
        %5905 = vmatmul.bf16.gmra.mxu0 %v4137
        %v5906 = vpop.f32.mrf.mxu0
        %v5907 = vadd.f32 %v5883, %v5906
        %v5908 = vpop.f32.mrf.mxu0
        %v5909 = vadd.f32 %v5885, %v5908
        %5910 = vmatmul.bf16.gmra.mxu0 %v4141
        %v5911 = vpop.f32.mrf.mxu0
        %v5912 = vadd.f32 %v5888, %v5911
        %v5913 = vpop.f32.mrf.mxu0
        %v5914 = vadd.f32 %v5890, %v5913
        %5915 = vmatmul.bf16.gmra.mxu0 %v4145
        %v5916 = vpop.f32.mrf.mxu0
        %v5917 = vadd.f32 %v5893, %v5916
        %v5918 = vpop.f32.mrf.mxu0
        %v5919 = vadd.f32 %v5895, %v5918
        %5920 = vdwg.mxu0
        %5921 = vmatpush.bf16.msra.mxu0 %v5783
        %5922 = vmatpush.bf16.msra.mxu0 %v5781
        %5923 = vmatpush.bf16.msra.mxu0 %v5779
        %5924 = vmatpush.bf16.msra.mxu0 %v5777
        %5925 = vmatpush.bf16.msra.mxu0 %v5775
        %5926 = vmatpush.bf16.msra.mxu0 %v5773
        %5927 = vmatpush.bf16.msra.mxu0 %v5771
        %5928 = vmatpush.bf16.msra.mxu0 %v5769
        %5929 = vmatmul.bf16.gmra.mxu0 %v4138
        %v5930 = vpop.f32.mrf.mxu0
        %v5931 = vadd.f32 %v5907, %v5930
        %v5932 = vpop.f32.mrf.mxu0
        %v5933 = vadd.f32 %v5909, %v5932
        %5934 = vmatmul.bf16.gmra.mxu0 %v4142
        %v5935 = vpop.f32.mrf.mxu0
        %v5936 = vadd.f32 %v5912, %v5935
        %v5937 = vpop.f32.mrf.mxu0
        %v5938 = vadd.f32 %v5914, %v5937
        %5939 = vmatmul.bf16.gmra.mxu0 %v4146
        %v5940 = vpop.f32.mrf.mxu0
        %v5941 = vadd.f32 %v5917, %v5940
        %v5942 = vpop.f32.mrf.mxu0
        %v5943 = vadd.f32 %v5919, %v5942
        %5944 = vdwg.mxu0
        %5945 = vmatpush.bf16.msra.mxu0 %v5736
        %5946 = vmatpush.bf16.msra.mxu0 %v5734
        %5947 = vmatpush.bf16.msra.mxu0 %v5732
        %5948 = vmatpush.bf16.msra.mxu0 %v5730
        %5949 = vmatpush.bf16.msra.mxu0 %v5728
        %5950 = vmatpush.bf16.msra.mxu0 %v5726
        %5951 = vmatpush.bf16.msra.mxu0 %v5724
        %5952 = vmatpush.bf16.msra.mxu0 %v5722
        %5953 = vmatmul.bf16.gmra.mxu0 %v4135
        %v5954 = vpop.f32.mrf.mxu0
        %v5955 = vadd.f32 %v5515, %v5954
        %v5956 = vpop.f32.mrf.mxu0
        %v5957 = vadd.f32 %v5517, %v5956
        %5958 = vmatmul.bf16.gmra.mxu0 %v4139
        %v5959 = vpop.f32.mrf.mxu0
        %v5960 = vadd.f32 %v5520, %v5959
        %v5961 = vpop.f32.mrf.mxu0
        %v5962 = vadd.f32 %v5522, %v5961
        %5963 = vmatmul.bf16.gmra.mxu0 %v4143
        %v5964 = vpop.f32.mrf.mxu0
        %v5965 = vadd.f32 %v5525, %v5964
        %v5966 = vpop.f32.mrf.mxu0
        %v5967 = vadd.f32 %v5527, %v5966
        %5968 = vdwg.mxu0
        %5969 = vmatpush.bf16.msra.mxu0 %v5752
        %5970 = vmatpush.bf16.msra.mxu0 %v5750
        %5971 = vmatpush.bf16.msra.mxu0 %v5748
        %5972 = vmatpush.bf16.msra.mxu0 %v5746
        %5973 = vmatpush.bf16.msra.mxu0 %v5744
        %5974 = vmatpush.bf16.msra.mxu0 %v5742
        %5975 = vmatpush.bf16.msra.mxu0 %v5740
        %5976 = vmatpush.bf16.msra.mxu0 %v5738
        %5977 = vmatmul.bf16.gmra.mxu0 %v4136
        %v5978 = vpop.f32.mrf.mxu0
        %v5979 = vadd.f32 %v5955, %v5978
        %v5980 = vpop.f32.mrf.mxu0
        %v5981 = vadd.f32 %v5957, %v5980
        %5982 = vmatmul.bf16.gmra.mxu0 %v4140
        %v5983 = vpop.f32.mrf.mxu0
        %v5984 = vadd.f32 %v5960, %v5983
        %v5985 = vpop.f32.mrf.mxu0
        %v5986 = vadd.f32 %v5962, %v5985
        %5987 = vmatmul.bf16.gmra.mxu0 %v4144
        %v5988 = vpop.f32.mrf.mxu0
        %v5989 = vadd.f32 %v5965, %v5988
        %v5990 = vpop.f32.mrf.mxu0
        %v5991 = vadd.f32 %v5967, %v5990
        %5992 = vdwg.mxu0
        %5993 = vmatpush.bf16.msra.mxu0 %v5768
        %5994 = vmatpush.bf16.msra.mxu0 %v5766
        %5995 = vmatpush.bf16.msra.mxu0 %v5764
        %5996 = vmatpush.bf16.msra.mxu0 %v5762
        %5997 = vmatpush.bf16.msra.mxu0 %v5760
        %5998 = vmatpush.bf16.msra.mxu0 %v5758
        %5999 = vmatpush.bf16.msra.mxu0 %v5756
        %6000 = vmatpush.bf16.msra.mxu0 %v5754
        %6001 = vmatmul.bf16.gmra.mxu0 %v4137
        %v6002 = vpop.f32.mrf.mxu0
        %v6003 = vadd.f32 %v5979, %v6002
        %v6004 = vpop.f32.mrf.mxu0
        %v6005 = vadd.f32 %v5981, %v6004
        %6006 = vmatmul.bf16.gmra.mxu0 %v4141
        %v6007 = vpop.f32.mrf.mxu0
        %v6008 = vadd.f32 %v5984, %v6007
        %v6009 = vpop.f32.mrf.mxu0
        %v6010 = vadd.f32 %v5986, %v6009
        %6011 = vmatmul.bf16.gmra.mxu0 %v4145
        %v6012 = vpop.f32.mrf.mxu0
        %v6013 = vadd.f32 %v5989, %v6012
        %v6014 = vpop.f32.mrf.mxu0
        %v6015 = vadd.f32 %v5991, %v6014
        %6016 = vdwg.mxu0
        %6017 = vmatpush.bf16.msra.mxu0 %v5784
        %6018 = vmatpush.bf16.msra.mxu0 %v5782
        %6019 = vmatpush.bf16.msra.mxu0 %v5780
        %6020 = vmatpush.bf16.msra.mxu0 %v5778
        %6021 = vmatpush.bf16.msra.mxu0 %v5776
        %6022 = vmatpush.bf16.msra.mxu0 %v5774
        %6023 = vmatpush.bf16.msra.mxu0 %v5772
        %6024 = vmatpush.bf16.msra.mxu0 %v5770
        %6025 = vmatmul.bf16.gmra.mxu0 %v4138
        %v6026 = vpop.f32.mrf.mxu0
        %v6027 = vadd.f32 %v6003, %v6026
        %v6028 = vpop.f32.mrf.mxu0
        %v6029 = vadd.f32 %v6005, %v6028
        %6030 = vmatmul.bf16.gmra.mxu0 %v4142
        %v6031 = vpop.f32.mrf.mxu0
        %v6032 = vadd.f32 %v6008, %v6031
        %v6033 = vpop.f32.mrf.mxu0
        %v6034 = vadd.f32 %v6010, %v6033
        %6035 = vmatmul.bf16.gmra.mxu0 %v4146
        %v6036 = vpop.f32.mrf.mxu0
        %v6037 = vadd.f32 %v6013, %v6036
        %v6038 = vpop.f32.mrf.mxu0
        %v6039 = vadd.f32 %v6015, %v6038
        %6040 = vdwg.mxu0
        %v6041 = vadd.f32 %v3201, %v5931
        %v6042 = vadd.f32 %v3202, %v6027
        %v6043 = vadd.f32 %v3203, %v5933
        %v6044 = vadd.f32 %v3204, %v6029
        %v6045 = vadd.f32 %v3205, %v5936
        %v6046 = vadd.f32 %v3206, %v6032
        %v6047 = vadd.f32 %v3207, %v5938
        %v6048 = vadd.f32 %v3208, %v6034
        %v6049 = vadd.f32 %v3209, %v5941
        %v6050 = vadd.f32 %v3210, %v6037
        %v6051 = vadd.f32 %v3211, %v5943
        %v6052 = vadd.f32 %v3212, %v6039
        %v6053 = vld [vmem:[%s992] sm:$0x3]
        %v6055 = vperm.slane %v6053, 0
        %v6056 = vperm.slane %v6053, 1
        %v6059 = vadd.f32 %v6041, %v6055
        %v6060 = vadd.f32 %v6042, %v6056
        %v6061 = vadd.f32 %v6043, %v6055
        %v6062 = vadd.f32 %v6044, %v6056
        %v6063 = vadd.f32 %v6045, %v6055
        %v6064 = vadd.f32 %v6046, %v6056
        %v6065 = vadd.f32 %v6047, %v6055
        %v6066 = vadd.f32 %v6048, %v6056
        %v6067 = vadd.f32 %v6049, %v6055
        %v6068 = vadd.f32 %v6050, %v6056
        %v6069 = vadd.f32 %v6051, %v6055
        %v6070 = vadd.f32 %v6052, %v6056
        %6071 = vst [vmem:[#allocation2] sm:$0xff] %v6059
        %6072 = vst [vmem:[#allocation2 + $0x8] sm:$0xff] %v6060
        %6073 = vst [vmem:[#allocation2 + $0x10] sm:$0xff] %v6061
        %6074 = vst [vmem:[#allocation2 + $0x18] sm:$0xff] %v6062
        %6075 = vst [vmem:[#allocation2 + $0x20] sm:$0xff] %v6063
        %6076 = vst [vmem:[#allocation2 + $0x28] sm:$0xff] %v6064
        %6077 = vst [vmem:[#allocation2 + $0x30] sm:$0xff] %v6065
        %6078 = vst [vmem:[#allocation2 + $0x38] sm:$0xff] %v6066
        %6079 = vst [vmem:[#allocation2 + $0x40] sm:$0xff] %v6067
        %6080 = vst [vmem:[#allocation2 + $0x48] sm:$0xff] %v6068
        %6081 = vst [vmem:[#allocation2 + $0x50] sm:$0xff] %v6069
        %6082 = vst [vmem:[#allocation2 + $0x58] sm:$0xff] %v6070
        %p6083 = scmp.eq.s32.totalorder %s36, 1
        // Predicated region
        $region173: #{_lambda_.1} parent=103 // pred_check
          %p6084 = pneg %p6083
        $region174: #{_lambda_.1} parent=103 // pred_check_branch
          %6086 = sbr.rel (%p6084) target = $region176
        $region175: #{_lambda_.1} parent=103 // pred_region
          %v6087 = vld [vmem:[#allocation21] sm:$0x3]
          %v6088 = vld [vmem:[#allocation22] sm:$0x3]
          %v6089 = vld [vmem:[%s20] sm:$0xf]
          %v6090 = vld [vmem:[%s20 + $0x4] sm:$0xf]
          %v6091 = vld [vmem:[%s20 + $0x8] sm:$0xf]
          %v6092 = vld [vmem:[%s20 + $0xc] sm:$0xf]
          %v6093 = vld [vmem:[%s20 + $0x10] sm:$0xf]
          %v6094 = vld [vmem:[%s20 + $0x14] sm:$0xf]
          %v6095 = vld [vmem:[%s20 + $0x18] sm:$0xf]
          %v6096 = vld [vmem:[%s20 + $0x1c] sm:$0xf]
          %v6097 = vld [vmem:[%s20 + $0x20] sm:$0xf]
          %v6098 = vld [vmem:[%s20 + $0x24] sm:$0xf]
          %v6099 = vld [vmem:[%s20 + $0x28] sm:$0xf]
          %v6100 = vld [vmem:[%s20 + $0x2c] sm:$0xf]
          %v6101 = vld [vmem:[%s20 + $0x30] sm:$0xf]
          %v6102 = vld [vmem:[%s20 + $0x34] sm:$0xf]
          %v6103 = vld [vmem:[%s20 + $0x38] sm:$0xf]
          %v6104 = vld [vmem:[%s20 + $0x3c] sm:$0xf]
          %v6105 = vld [vmem:[%s20 + $0x40] sm:$0xf]
          %v6106 = vld [vmem:[%s20 + $0x44] sm:$0xf]
          %v6107 = vld [vmem:[%s20 + $0x48] sm:$0xf]
          %v6108 = vld [vmem:[%s20 + $0x4c] sm:$0xf]
          %v6109 = vld [vmem:[%s20 + $0x50] sm:$0xf]
          %v6110 = vld [vmem:[%s20 + $0x54] sm:$0xf]
          %v6111 = vld [vmem:[%s20 + $0x58] sm:$0xf]
          %v6112 = vld [vmem:[%s20 + $0x5c] sm:$0xf]
          %v6113 = vld [vmem:[%s20 + $0x60] sm:$0xf]
          %v6114 = vld [vmem:[%s20 + $0x64] sm:$0xf]
          %v6115 = vld [vmem:[%s20 + $0x68] sm:$0xf]
          %v6116 = vld [vmem:[%s20 + $0x6c] sm:$0xf]
          %v6117 = vld [vmem:[%s20 + $0x70] sm:$0xf]
          %v6118 = vld [vmem:[%s20 + $0x74] sm:$0xf]
          %v6119 = vld [vmem:[%s20 + $0x78] sm:$0xf]
          %v6120 = vld [vmem:[%s20 + $0x7c] sm:$0xf]
          %v6121 = vld [vmem:[#allocation2] sm:$0xff]
          %v6122 = vld [vmem:[#allocation2 + $0x8] sm:$0xff]
          %v6123 = vld [vmem:[#allocation2 + $0x10] sm:$0xff]
          %v6124 = vld [vmem:[#allocation2 + $0x18] sm:$0xff]
          %v6125 = vadd.f32 %v6121, %v6122
          %6126 = vadd.xlane.f32.xlu0 %v6125
          %v6127 = vpop.xlane.xlu0 %6126
          %v6128 = vadd.f32 %v6123, %v6124
          %6129 = vadd.xlane.f32.xlu0 %v6128
          %v6130 = vpop.xlane.xlu0 %6129
          %v6131 = vmul.f32 %v6127, %v1480
          %v6132 = vmul.f32 %v6130, %v1480
          %v6133 = vsub.f32 %v6121, %v6131
          %v6134 = vsub.f32 %v6122, %v6131
          %v6135 = vsub.f32 %v6123, %v6132
          %v6136 = vsub.f32 %v6124, %v6132
          %v6137 = vmul.f32 %v6133, %v6133
          %v6138 = vmul.f32 %v6134, %v6134
          %v6139 = vmul.f32 %v6135, %v6135
          %v6140 = vmul.f32 %v6136, %v6136
          %v6141 = vadd.f32 %v6137, %v6138
          %6142 = vadd.xlane.f32.xlu0 %v6141
          %v6143 = vpop.xlane.xlu0 %6142
          %v6144 = vadd.f32 %v6139, %v6140
          %6145 = vadd.xlane.f32.xlu0 %v6144
          %v6146 = vpop.xlane.xlu0 %6145
          %v6147 = vmul.f32 %v6143, %v1480
          %v6148 = vmul.f32 %v6146, %v1480
          %v6149 = vadd.f32 %v6147, 1e-05
          %v6150 = vadd.f32 %v6148, 1e-05
          %v6151 = vrsqrt.pop %v6149
          %v6152 = vmul.f32 %v6151, %v6149
          %v6153 = vmul.f32 %v6152, %v6151
          %v6154 = vmul.f32 0.5, %v6153
          %v6155 = vsub.f32 1.5, %v6154
          %v6156 = vmul.f32 %v6151, %v6155
          %vm6157 = vweird.f32 %v6149
          %vm6158 = vweird.f32 %v6151
          %vm6159 = vmor %vm6157, %vm6158
          %v6160 = vsel %vm6159, %v6151, %v6156
          %v6161 = vrsqrt.pop %v6150
          %v6162 = vmul.f32 %v6161, %v6150
          %v6163 = vmul.f32 %v6162, %v6161
          %v6164 = vmul.f32 0.5, %v6163
          %v6165 = vsub.f32 1.5, %v6164
          %v6166 = vmul.f32 %v6161, %v6165
          %vm6167 = vweird.f32 %v6150
          %vm6168 = vweird.f32 %v6161
          %vm6169 = vmor %vm6167, %vm6168
          %v6170 = vsel %vm6169, %v6161, %v6166
          %v6171 = vmul.f32 %v6133, %v6160
          %v6172 = vmul.f32 %v6134, %v6160
          %v6173 = vmul.f32 %v6135, %v6170
          %v6174 = vmul.f32 %v6136, %v6170
          %v6176 = vperm.slane %v6087, 0
          %v6177 = vperm.slane %v6087, 1
          %v6180 = vmul.f32 %v6171, %v6176
          %v6181 = vmul.f32 %v6172, %v6177
          %v6182 = vmul.f32 %v6173, %v6176
          %v6183 = vmul.f32 %v6174, %v6177
          %v6185 = vperm.slane %v6088, 0
          %v6186 = vperm.slane %v6088, 1
          %v6189 = vadd.f32 %v6180, %v6185
          %v6190 = vadd.f32 %v6181, %v6186
          %v6191 = vadd.f32 %v6182, %v6185
          %v6192 = vadd.f32 %v6183, %v6186
          %v6193 = vpack.c.bf16 %v6191, %v6189
          %v6194 = vpack.c.bf16 %v6192, %v6190
          %v6227 = vunpack.c.l.b16 %v6089
          %v6228 = vunpack.c.l.b16 %v6090
          %v6229 = vunpack.c.l.b16 %v6091
          %v6230 = vunpack.c.l.b16 %v6092
          %v6231 = vunpack.c.l.b16 %v6093
          %v6232 = vunpack.c.l.b16 %v6094
          %v6233 = vunpack.c.l.b16 %v6095
          %v6234 = vunpack.c.l.b16 %v6096
          %v6235 = vunpack.c.l.b16 %v6097
          %v6236 = vunpack.c.l.b16 %v6098
          %v6237 = vunpack.c.l.b16 %v6099
          %v6238 = vunpack.c.l.b16 %v6100
          %v6239 = vunpack.c.l.b16 %v6101
          %v6240 = vunpack.c.l.b16 %v6102
          %v6241 = vunpack.c.l.b16 %v6103
          %v6242 = vunpack.c.l.b16 %v6104
          %v6243 = vunpack.c.l.b16 %v6105
          %v6244 = vunpack.c.l.b16 %v6106
          %v6245 = vunpack.c.l.b16 %v6107
          %v6246 = vunpack.c.l.b16 %v6108
          %v6247 = vunpack.c.l.b16 %v6109
          %v6248 = vunpack.c.l.b16 %v6110
          %v6249 = vunpack.c.l.b16 %v6111
          %v6250 = vunpack.c.l.b16 %v6112
          %v6251 = vunpack.c.l.b16 %v6113
          %v6252 = vunpack.c.l.b16 %v6114
          %v6253 = vunpack.c.l.b16 %v6115
          %v6254 = vunpack.c.l.b16 %v6116
          %v6255 = vunpack.c.l.b16 %v6117
          %v6256 = vunpack.c.l.b16 %v6118
          %v6257 = vunpack.c.l.b16 %v6119
          %v6258 = vunpack.c.l.b16 %v6120
          %v6259 = vpack.c.b16 %v6228, %v6227
          %v6260 = vpack.c.b16 %v6230, %v6229
          %v6261 = vpack.c.b16 %v6232, %v6231
          %v6262 = vpack.c.b16 %v6234, %v6233
          %v6263 = vpack.c.b16 %v6236, %v6235
          %v6264 = vpack.c.b16 %v6238, %v6237
          %v6265 = vpack.c.b16 %v6240, %v6239
          %v6266 = vpack.c.b16 %v6242, %v6241
          %v6267 = vpack.c.b16 %v6244, %v6243
          %v6268 = vpack.c.b16 %v6246, %v6245
          %v6269 = vpack.c.b16 %v6248, %v6247
          %v6270 = vpack.c.b16 %v6250, %v6249
          %v6271 = vpack.c.b16 %v6252, %v6251
          %v6272 = vpack.c.b16 %v6254, %v6253
          %v6273 = vpack.c.b16 %v6256, %v6255
          %v6274 = vpack.c.b16 %v6258, %v6257
          %6291 = vmatpush.bf16.msra.mxu0 %v6266
          %6292 = vmatpush.bf16.msra.mxu0 %v6265
          %6293 = vmatpush.bf16.msra.mxu0 %v6264
          %6294 = vmatpush.bf16.msra.mxu0 %v6263
          %6295 = vmatpush.bf16.msra.mxu0 %v6262
          %6296 = vmatpush.bf16.msra.mxu0 %v6261
          %6297 = vmatpush.bf16.msra.mxu0 %v6260
          %6298 = vmatpush.bf16.msra.mxu0 %v6259
          %6299 = vmatmul.bf16.gmra.mxu0 %v6193
          %v6300 = vpop.f32.mrf.mxu0
          %v6301 = vadd.f32 0.0, %v6300
          %v6302 = vpop.f32.mrf.mxu0
          %v6303 = vadd.f32 0.0, %v6302
          %6304 = vdwg.mxu0
          %6305 = vmatpush.bf16.msra.mxu0 %v6274
          %6306 = vmatpush.bf16.msra.mxu0 %v6273
          %6307 = vmatpush.bf16.msra.mxu0 %v6272
          %6308 = vmatpush.bf16.msra.mxu0 %v6271
          %6309 = vmatpush.bf16.msra.mxu0 %v6270
          %6310 = vmatpush.bf16.msra.mxu0 %v6269
          %6311 = vmatpush.bf16.msra.mxu0 %v6268
          %6312 = vmatpush.bf16.msra.mxu0 %v6267
          %6313 = vmatmul.bf16.gmra.mxu0 %v6194
          %v6314 = vpop.f32.mrf.mxu0
          %v6315 = vadd.f32 %v6301, %v6314
          %v6316 = vpop.f32.mrf.mxu0
          %v6317 = vadd.f32 %v6303, %v6316
          %6318 = vdwg.mxu0
          %6319 = vst [vmem:[#allocation23] sm:$0xff] %v6315
          %6320 = vst [vmem:[#allocation23 + $0x8] sm:$0xff] %v6317
          %v6321 = vld [vmem:[#allocation2 + $0x30] sm:$0xff]
          %v6322 = vld [vmem:[#allocation2 + $0x38] sm:$0xff]
          %v6323 = vld [vmem:[#allocation2 + $0x40] sm:$0xff]
          %v6324 = vld [vmem:[#allocation2 + $0x48] sm:$0xff]
          %v6325 = vadd.f32 %v6321, %v6322
          %6326 = vadd.xlane.f32.xlu0 %v6325
          %v6327 = vpop.xlane.xlu0 %6326
          %v6328 = vadd.f32 %v6323, %v6324
          %6329 = vadd.xlane.f32.xlu0 %v6328
          %v6330 = vpop.xlane.xlu0 %6329
          %v6331 = vmul.f32 %v6327, %v1480
          %v6332 = vmul.f32 %v6330, %v1480
          %v6333 = vsub.f32 %v6321, %v6331
          %v6334 = vsub.f32 %v6322, %v6331
          %v6335 = vsub.f32 %v6323, %v6332
          %v6336 = vsub.f32 %v6324, %v6332
          %v6337 = vmul.f32 %v6333, %v6333
          %v6338 = vmul.f32 %v6334, %v6334
          %v6339 = vmul.f32 %v6335, %v6335
          %v6340 = vmul.f32 %v6336, %v6336
          %v6341 = vadd.f32 %v6337, %v6338
          %6342 = vadd.xlane.f32.xlu0 %v6341
          %v6343 = vpop.xlane.xlu0 %6342
          %v6344 = vadd.f32 %v6339, %v6340
          %6345 = vadd.xlane.f32.xlu0 %v6344
          %v6346 = vpop.xlane.xlu0 %6345
          %v6347 = vmul.f32 %v6343, %v1480
          %v6348 = vmul.f32 %v6346, %v1480
          %v6349 = vadd.f32 %v6347, 1e-05
          %v6350 = vadd.f32 %v6348, 1e-05
          %v6351 = vrsqrt.pop %v6349
          %v6352 = vmul.f32 %v6351, %v6349
          %v6353 = vmul.f32 %v6352, %v6351
          %v6354 = vmul.f32 0.5, %v6353
          %v6355 = vsub.f32 1.5, %v6354
          %v6356 = vmul.f32 %v6351, %v6355
          %vm6357 = vweird.f32 %v6349
          %vm6358 = vweird.f32 %v6351
          %vm6359 = vmor %vm6357, %vm6358
          %v6360 = vsel %vm6359, %v6351, %v6356
          %v6361 = vrsqrt.pop %v6350
          %v6362 = vmul.f32 %v6361, %v6350
          %v6363 = vmul.f32 %v6362, %v6361
          %v6364 = vmul.f32 0.5, %v6363
          %v6365 = vsub.f32 1.5, %v6364
          %v6366 = vmul.f32 %v6361, %v6365
          %vm6367 = vweird.f32 %v6350
          %vm6368 = vweird.f32 %v6361
          %vm6369 = vmor %vm6367, %vm6368
          %v6370 = vsel %vm6369, %v6361, %v6366
          %v6371 = vmul.f32 %v6333, %v6360
          %v6372 = vmul.f32 %v6334, %v6360
          %v6373 = vmul.f32 %v6335, %v6370
          %v6374 = vmul.f32 %v6336, %v6370
          %v6375 = vmul.f32 %v6371, %v6176
          %v6376 = vmul.f32 %v6372, %v6177
          %v6377 = vmul.f32 %v6373, %v6176
          %v6378 = vmul.f32 %v6374, %v6177
          %v6379 = vadd.f32 %v6375, %v6185
          %v6380 = vadd.f32 %v6376, %v6186
          %v6381 = vadd.f32 %v6377, %v6185
          %v6382 = vadd.f32 %v6378, %v6186
          %v6383 = vpack.c.bf16 %v6381, %v6379
          %v6384 = vpack.c.bf16 %v6382, %v6380
          %6385 = vmatpush.bf16.msra.mxu0 %v6266
          %6386 = vmatpush.bf16.msra.mxu0 %v6265
          %6387 = vmatpush.bf16.msra.mxu0 %v6264
          %6388 = vmatpush.bf16.msra.mxu0 %v6263
          %6389 = vmatpush.bf16.msra.mxu0 %v6262
          %6390 = vmatpush.bf16.msra.mxu0 %v6261
          %6391 = vmatpush.bf16.msra.mxu0 %v6260
          %6392 = vmatpush.bf16.msra.mxu0 %v6259
          %6393 = vmatmul.bf16.gmra.mxu0 %v6383
          %v6394 = vpop.f32.mrf.mxu0
          %v6395 = vadd.f32 0.0, %v6394
          %v6396 = vpop.f32.mrf.mxu0
          %v6397 = vadd.f32 0.0, %v6396
          %6398 = vdwg.mxu0
          %6399 = vmatpush.bf16.msra.mxu0 %v6274
          %6400 = vmatpush.bf16.msra.mxu0 %v6273
          %6401 = vmatpush.bf16.msra.mxu0 %v6272
          %6402 = vmatpush.bf16.msra.mxu0 %v6271
          %6403 = vmatpush.bf16.msra.mxu0 %v6270
          %6404 = vmatpush.bf16.msra.mxu0 %v6269
          %6405 = vmatpush.bf16.msra.mxu0 %v6268
          %6406 = vmatpush.bf16.msra.mxu0 %v6267
          %6407 = vmatmul.bf16.gmra.mxu0 %v6384
          %v6408 = vpop.f32.mrf.mxu0
          %v6409 = vadd.f32 %v6395, %v6408
          %v6410 = vpop.f32.mrf.mxu0
          %v6411 = vadd.f32 %v6397, %v6410
          %6412 = vdwg.mxu0
          %s6413 = scalar_lea.vmem [#allocation23], 16
          %6414 = vst [vmem:[%s6413] sm:$0xff] %v6409
          %6415 = vst [vmem:[%s6413 + $0x8] sm:$0xff] %v6411
        $region176: #{_lambda_.1} parent=103 // pred_fallthru
          _
        // Predicated region
        $region177: #{_lambda_.1} parent=103 // pred_check
          %p6416 = pneg %p550
        $region178: #{_lambda_.1} parent=103 // pred_check_branch
          %6418 = sbr.rel (%p6416) target = $region180
        $region179: #{_lambda_.1} parent=103 // pred_region
          %6420 = vsyncadd [#allocation5], 0
          %s6421 = sshll.u32 [#allocation23], 4
          %s6422 = int_to_ptr.vmem [resolvable:$true] %s6421
          %s6423 = sshll.u32 %s21, 4
          %s6424 = int_to_ptr.hbm [resolvable:$true] %s6423
          %6429 = dma.vmem_to_hbm [thread:$0]  %s6422, 512, %s6424, [#allocation5], 128, 128, 8
        $region180: #{_lambda_.1} parent=103 // pred_fallthru
          _
        // Predicated region
        $region181: #{_lambda_.1} parent=103 // pred_check
          %p6430 = pneg %p550
        $region182: #{_lambda_.1} parent=103 // pred_check_branch
          %6432 = sbr.rel (%p6430) target = $region184
        $region183: #{_lambda_.1} parent=103 // pred_region
          %6434 = dma.done [#allocation5], 512
        $region184: #{_lambda_.1} parent=103 // pred_fallthru
          _
      $region104: #{_lambda_.1} parent=5 // pred_fallthru
        _
      %p6435 = scmp.le.s32.totalorder 2, %s31
      // Predicated region
      $region185: #{_lambda_.1} parent=5 // pred_check
        %p6436 = pneg %p6435
      $region186: #{_lambda_.1} parent=5 // pred_check_branch
        %6438 = sbr.rel (%p6436) target = $region188
      $region187: #{_lambda_.1} parent=5 // pred_region
        %s6439 = ssub.s32 %s31, 2
      $region188: #{_lambda_.1} parent=5 // pred_fallthru
        _
    $region6: #{_lambda_.1} parent=1 // loop_footer
      %s35 = sadd.s32 1, %s31
    $region7: #{_lambda_.1} parent=1 // loop_footer_branch
      %30 = sbr.rel target = $region3
    $region8: #{_lambda_.1} parent=1 // loop_exit
      _
    %6440 = vsyncpa [#allocation4], 1
    %s6441 = scalar_lea.sflag [#allocation4], 1
    %6442 = vsyncpa %s6441, 1
    %6443 = vsyncpa [#allocation7], 1
    %6444 = vsyncpa [#allocation10], 1
    %6445 = vsyncpa [#allocation5], 1
    %s6446 = scalar_lea.sflag [#allocation5], 1
    %6447 = vsyncpa %s6446, 1

</llo_original>
